<compile_context>
chip_gen: v5e
topology: v5e:2x2
jax: 0.10.0
libtpu: 0.0.40
codegen_flags: <defaults>
</compile_context>

<pallas_src>
import math
from functools import partial

import jax
import jax.numpy as jnp
from jax import lax
from jax.experimental import pallas as pl
from jax.experimental.pallas import tpu as pltpu

_SQRT2_INV = 1.0 / math.sqrt(2.0)


def _gelu(y):
    # exact (erf) GELU, matching nn.GELU default
    return 0.5 * y * (1.0 + lax.erf(y * _SQRT2_INV))


def _layernorm(x, g, b, eps):
    mu = jnp.mean(x, axis=-1, keepdims=True)
    var = jnp.mean(jnp.square(x - mu), axis=-1, keepdims=True)
    return (x - mu) * lax.rsqrt(var + eps) * g + b


# ----------------------------------------------------------------------------
# Pallas kernels
# ----------------------------------------------------------------------------

def _fused_linear_kernel(*refs, eps, act, has_ln, has_res):
    """[optional LayerNorm] -> x @ w + b -> [optional GELU] -> [optional +res]."""
    idx = 0
    x_ref = refs[idx]; idx += 1
    if has_ln:
        g_ref = refs[idx]; bln_ref = refs[idx + 1]; idx += 2
    w_ref = refs[idx]; b_ref = refs[idx + 1]; idx += 2
    if has_res:
        r_ref = refs[idx]; idx += 1
    o_ref = refs[idx]

    x = x_ref[...].astype(jnp.float32)
    if has_ln:
        x = _layernorm(x, g_ref[...].astype(jnp.float32),
                       bln_ref[...].astype(jnp.float32), eps)
    y = jnp.dot(x, w_ref[...].astype(jnp.float32), preferred_element_type=jnp.float32)
    y = y + b_ref[...].astype(jnp.float32)
    if act == "gelu":
        y = _gelu(y)
    if has_res:
        y = y + r_ref[...].astype(jnp.float32)
    o_ref[...] = y.astype(o_ref.dtype)


def pallas_linear(x, w, b, *, act="none", ln=None, residual=None):
    """y = [LN](x) @ w + b  (+ GELU) (+ residual).

    x:(M,K) w:(K,N) b:(N,)  ln=(gamma, beta, eps)  residual:(M,N)
    Whole-slab single grid step: all operands fit trivially in VMEM here.
    """
    M, K = x.shape
    Kw, N = w.shape
    assert K == Kw

    args = [x]
    in_specs = [pl.BlockSpec((M, K), lambda i: (0, 0))]
    eps = 0.0
    if ln is not None:
        g, bln, eps = ln
        args += [g.reshape(1, K), bln.reshape(1, K)]
        in_specs += [pl.BlockSpec((1, K), lambda i: (0, 0)),
                     pl.BlockSpec((1, K), lambda i: (0, 0))]
    args += [w, b.reshape(1, N)]
    in_specs += [pl.BlockSpec((K, N), lambda i: (0, 0)),
                 pl.BlockSpec((1, N), lambda i: (0, 0))]
    if residual is not None:
        args.append(residual)
        in_specs.append(pl.BlockSpec((M, N), lambda i: (0, 0)))

    return pl.pallas_call(
        partial(_fused_linear_kernel, eps=float(eps), act=act,
                has_ln=ln is not None, has_res=residual is not None),
        out_shape=jax.ShapeDtypeStruct((M, N), x.dtype),
        grid_spec=pltpu.PrefetchScalarGridSpec(
            num_scalar_prefetch=0,
            grid=(1,),
            in_specs=in_specs,
            out_specs=pl.BlockSpec((M, N), lambda i: (0, 0)),
        ),
        compiler_params=pltpu.CompilerParams(dimension_semantics=("arbitrary",)),
    )(*args)


def _block_kernel(x_ref, ln1g_ref, ln1b_ref, qkvw_ref, qkvb_ref,
                  projw_ref, projb_ref, ln2g_ref, ln2b_ref,
                  fc1w_ref, fc1b_ref, fc2w_ref, fc2b_ref, o_ref,
                  *, num_heads, scale, eps):
    """Fused transformer block for one batch element.

    x_ref:(1,N,C)  o_ref:(1,N,C).  Head split via static lane slices (no 5-D
    transposes); score contraction over D via dot_general (no explicit K.T)."""
    x = x_ref[0].astype(jnp.float32)                       # (N, C)
    C = x.shape[-1]
    D = C // num_heads

    # --- attention branch ---------------------------------------------------
    xn = _layernorm(x, ln1g_ref[...].astype(jnp.float32),
                    ln1b_ref[...].astype(jnp.float32), eps)
    qkv = jnp.dot(xn, qkvw_ref[...].astype(jnp.float32),
                  preferred_element_type=jnp.float32) + qkvb_ref[...].astype(jnp.float32)
    outs = []
    for h in range(num_heads):                             # unrolled (num_heads small)
        q = qkv[:, h * D:(h + 1) * D]
        k = qkv[:, C + h * D: C + (h + 1) * D]
        v = qkv[:, 2 * C + h * D: 2 * C + (h + 1) * D]
        s = lax.dot_general(q, k, (((1,), (1,)), ((), ())),
                            preferred_element_type=jnp.float32) * scale
        s = s - jnp.max(s, axis=-1, keepdims=True)
        p = jnp.exp(s)
        p = p / jnp.sum(p, axis=-1, keepdims=True)
        outs.append(jnp.dot(p, v, preferred_element_type=jnp.float32))
    attn = jnp.concatenate(outs, axis=-1)                  # (N, C)
    x1 = (jnp.dot(attn, projw_ref[...].astype(jnp.float32),
                  preferred_element_type=jnp.float32)
          + projb_ref[...].astype(jnp.float32) + x)

    # --- MLP branch -----------------------------------------------------------
    x1n = _layernorm(x1, ln2g_ref[...].astype(jnp.float32),
                     ln2b_ref[...].astype(jnp.float32), eps)
    hdn = _gelu(jnp.dot(x1n, fc1w_ref[...].astype(jnp.float32),
                        preferred_element_type=jnp.float32)
                + fc1b_ref[...].astype(jnp.float32))
    x2 = (jnp.dot(hdn, fc2w_ref[...].astype(jnp.float32),
                  preferred_element_type=jnp.float32)
          + fc2b_ref[...].astype(jnp.float32) + x1)
    o_ref[0] = x2.astype(o_ref.dtype)


def pallas_block(x, bp, num_heads, eps=1e-6):
    """Whole transformer block, gridded over B (parallel -> both v7x TCs)."""
    B, N, C = x.shape
    D = C // num_heads
    scale = D ** -0.5
    hid = bp["fc1_w"].shape[1]

    def w2(a):
        return pl.BlockSpec(a.shape, lambda i: (0, 0))

    args = [x,
            bp["ln1_g"].reshape(1, C), bp["ln1_b"].reshape(1, C),
            bp["qkv_w"], bp["qkv_b"].reshape(1, 3 * C),
            bp["proj_w"], bp["proj_b"].reshape(1, C),
            bp["ln2_g"].reshape(1, C), bp["ln2_b"].reshape(1, C),
            bp["fc1_w"], bp["fc1_b"].reshape(1, hid),
            bp["fc2_w"], bp["fc2_b"].reshape(1, C)]
    in_specs = ([pl.BlockSpec((1, N, C), lambda i: (i, 0, 0))]
                + [w2(a) for a in args[1:]])

    return pl.pallas_call(
        partial(_block_kernel, num_heads=num_heads, scale=scale, eps=float(eps)),
        out_shape=jax.ShapeDtypeStruct((B, N, C), x.dtype),
        grid_spec=pltpu.PrefetchScalarGridSpec(
            num_scalar_prefetch=0,
            grid=(B,),
            in_specs=in_specs,
            out_specs=pl.BlockSpec((1, N, C), lambda i: (i, 0, 0)),
        ),
        compiler_params=pltpu.CompilerParams(dimension_semantics=("parallel",)),
    )(*args)


def _predictor_tail_kernel(x_ref, w1_ref, b1_ref, w2_ref, b2_ref, w3_ref, b3_ref,
                           o_ref):
    """Fused out_conv: Linear->GELU->Linear->GELU->Linear->LogSoftmax."""
    h = x_ref[...].astype(jnp.float32)
    h = _gelu(jnp.dot(h, w1_ref[...].astype(jnp.float32),
                      preferred_element_type=jnp.float32)
              + b1_ref[...].astype(jnp.float32))
    h = _gelu(jnp.dot(h, w2_ref[...].astype(jnp.float32),
                      preferred_element_type=jnp.float32)
              + b2_ref[...].astype(jnp.float32))
    h = jnp.dot(h, w3_ref[...].astype(jnp.float32),
                preferred_element_type=jnp.float32) + b3_ref[...].astype(jnp.float32)
    m = jnp.max(h, axis=-1, keepdims=True)
    z = h - m
    lse = jnp.log(jnp.sum(jnp.exp(z), axis=-1, keepdims=True))
    o_ref[...] = (z - lse).astype(o_ref.dtype)


def pallas_predictor_tail(x, pp):
    """x:(M, C) -> log-softmax scores (M, 2)."""
    M, _ = x.shape
    args = [x,
            pp["o1_w"], pp["o1_b"].reshape(1, -1),
            pp["o2_w"], pp["o2_b"].reshape(1, -1),
            pp["o3_w"], pp["o3_b"].reshape(1, -1)]
    in_specs = [pl.BlockSpec(a.shape, lambda i: (0, 0)) for a in args]
    return pl.pallas_call(
        _predictor_tail_kernel,
        out_shape=jax.ShapeDtypeStruct((M, 2), x.dtype),
        grid_spec=pltpu.PrefetchScalarGridSpec(
            num_scalar_prefetch=0,
            grid=(1,),
            in_specs=in_specs,
            out_specs=pl.BlockSpec((M, 2), lambda i: (0, 0)),
        ),
        compiler_params=pltpu.CompilerParams(dimension_semantics=("arbitrary",)),
    )(*args)


# ----------------------------------------------------------------------------
# Model (parameters + forward), eval-mode semantics of STPrivacy.forward
# ----------------------------------------------------------------------------

CFG = dict(
    img_size=16,
    patch_size=4,
    tubelet_size=2,
    all_frames=4,
    in_chans=3,
    embed_dim=48,        # divisible by num_heads and by 3 (PredictorLG split)
    depth=2,
    num_heads=4,
    mlp_ratio=4.0,
    pruning_loc=[1],
    token_ratio=[0.5],
)


def _tn(key, shape, std=0.02):
    # deterministic synthetic "trunc_normal_" init (clipped normal)
    return jnp.clip(jax.random.normal(key, shape, dtype=jnp.float32) * std,
                    -2.0 * std, 2.0 * std)


def init_params(key, cfg):
    C = cfg["embed_dim"]
    p = cfg["patch_size"]
    t0 = cfg["tubelet_size"]
    Cin = cfg["in_chans"]
    nT = cfg["all_frames"] // t0
    num_patches = (cfg["img_size"] // p) ** 2 * nT
    Kpatch = Cin * t0 * p * p
    Cout = p * p * t0 * 3
    hid = int(C * cfg["mlp_ratio"])

    keys = iter(jax.random.split(key, 64))
    prm = {}
    prm["patch_w"] = _tn(next(keys), (Kpatch, C))
    prm["patch_b"] = jnp.zeros((C,), jnp.float32)
    prm["pos_embed"] = _tn(next(keys), (1, num_patches, C))

    blocks = []
    for _ in range(cfg["depth"]):
        bp = dict(
            ln1_g=jnp.ones((C,), jnp.float32), ln1_b=jnp.zeros((C,), jnp.float32),
            qkv_w=_tn(next(keys), (C, 3 * C)), qkv_b=jnp.zeros((3 * C,), jnp.float32),
            proj_w=_tn(next(keys), (C, C)), proj_b=jnp.zeros((C,), jnp.float32),
            ln2_g=jnp.ones((C,), jnp.float32), ln2_b=jnp.zeros((C,), jnp.float32),
            fc1_w=_tn(next(keys), (C, hid)), fc1_b=jnp.zeros((hid,), jnp.float32),
            fc2_w=_tn(next(keys), (hid, C)), fc2_b=jnp.zeros((C,), jnp.float32),
        )
        blocks.append(bp)
    prm["blocks"] = blocks

    prm["nr_g"] = jnp.ones((C,), jnp.float32)
    prm["nr_b"] = jnp.zeros((C,), jnp.float32)
    prm["head_w"] = _tn(next(keys), (C, Cout))
    prm["head_b"] = jnp.zeros((Cout,), jnp.float32)

    preds = []
    for _ in range(len(cfg["pruning_loc"])):
        pp = dict(
            ln_g=jnp.ones((C,), jnp.float32), ln_b=jnp.zeros((C,), jnp.float32),
            in_w=_tn(next(keys), (C, C)), in_b=jnp.zeros((C,), jnp.float32),
            o1_w=_tn(next(keys), (C, C // 2)), o1_b=jnp.zeros((C // 2,), jnp.float32),
            o2_w=_tn(next(keys), (C // 2, C // 4)), o2_b=jnp.zeros((C // 4,), jnp.float32),
            o3_w=_tn(next(keys), (C // 4, 2)), o3_b=jnp.zeros((2,), jnp.float32),
        )
        preds.append(pp)
    prm["predictors"] = preds
    return prm


def predictor_forward(pp, x, policy, num_tubelet):
    B, N, C = x.shape
    xf = x.reshape(B * N, C)
    # in_conv: fused LayerNorm (nn.LayerNorm default eps=1e-5) + Linear + GELU
    h = pallas_linear(xf, pp["in_w"], pp["in_b"], act="gelu",
                      ln=(pp["ln_g"], pp["ln_b"], 1e-5))
    h = h.reshape(B, N, C)

    t = num_tubelet
    n = N // t
    c3 = C // 3
    xr = h.reshape(B, t, n, C)
    pr = policy.reshape(B, t, n, 1)
    local_x = xr[..., :c3]
    frame_x = (xr[..., c3:2 * c3] * pr).sum(axis=2, keepdims=True) / pr.sum(axis=2, keepdims=True)
    video_x = (xr[..., 2 * c3:] * pr).sum(axis=(1, 2), keepdims=True) / pr.sum(axis=(1, 2), keepdims=True)
    xcat = jnp.concatenate(
        [local_x,
         jnp.broadcast_to(frame_x, (B, t, n, c3)),
         jnp.broadcast_to(video_x, (B, t, n, c3))], axis=-1)

    # fused out_conv (o1 -> GELU -> o2 -> GELU -> o3 -> LogSoftmax)
    logp = pallas_predictor_tail(xcat.reshape(B * N, C), pp)
    return logp.reshape(B, N, 2)


def stprivacy_forward(params, x, cfg):
    """Eval-mode forward.  x: (B, Cin, T, H, W) float32 (NCTHW, like PyTorch)."""
    B, Cin, T, H, W = x.shape
    p = cfg["patch_size"]
    t0 = cfg["tubelet_size"]
    C = cfg["embed_dim"]
    num_heads = cfg["num_heads"]
    num_tubelet = cfg["all_frames"] // t0
    th, hh, ww = T // t0, H // p, W // p
    init_n = th * hh * ww

    # PatchEmbed: non-overlapping Conv3d == patch-extract + linear (Pallas matmul)
    xp = x.reshape(B, Cin, th, t0, hh, p, ww, p)
    xp = xp.transpose(0, 2, 4, 6, 1, 3, 5, 7)                 # B, th, hh, ww, Cin, t0, p, p
    xp = xp.reshape(B * init_n, Cin * t0 * p * p)
    tokens = pallas_linear(xp, params["patch_w"], params["patch_b"])
    xt = tokens.reshape(B, init_n, C) + params["pos_embed"]

    preserve_index = jnp.broadcast_to(
        jnp.arange(init_n, dtype=jnp.int32).reshape(1, init_n, 1), (B, init_n, 1))
    prev_decision = jnp.ones((B, init_n, 1), dtype=xt.dtype)

    p_count = 0
    for i, bp in enumerate(params["blocks"]):
        if i in cfg["pruning_loc"]:
            pred_score = predictor_forward(params["predictors"][p_count], xt,
                                           prev_decision, num_tubelet)      # (B, N, 2)
            Ncur = xt.shape[1]
            n_per_frame = Ncur // num_tubelet
            score = pred_score[:, :, 0].reshape(B, num_tubelet, n_per_frame)
            num_keep = int(init_n // num_tubelet * cfg["token_ratio"][p_count])
            # TODO(synk): argsort/top-k pruning + gathers stay in XLA (data-dependent
            # token selection has no benefit as a Pallas kernel at this size).
            keep = jnp.argsort(-score, axis=2)[:, :, :num_keep]             # descending
            offset = jnp.arange(num_tubelet, dtype=jnp.int32).reshape(1, num_tubelet, 1) * n_per_frame
            now_policy = (keep + offset).reshape(B, -1)                     # (B, t*keep)
            xt = jnp.take_along_axis(xt, now_policy[:, :, None], axis=1)
            prev_decision = jnp.take_along_axis(prev_decision, now_policy[:, :, None], axis=1)
            preserve_index = jnp.take_along_axis(preserve_index, now_policy[:, :, None], axis=1)
            xt = pallas_block(xt, bp, num_heads, eps=1e-6)
            p_count += 1
        else:
            xt = pallas_block(xt, bp, num_heads, eps=1e-6)

    Bc, Nk, _ = xt.shape
    xf = xt.reshape(Bc * Nk, C)
    # fused norm_recon (eps=1e-6) + head_recon
    xf = pallas_linear(xf, params["head_w"], params["head_b"],
                       ln=(params["nr_g"], params["nr_b"], 1e-6))
    Cout = xf.shape[-1]
    xo = xf.reshape(B, Nk, Cout)

    # scatter kept tokens back into full token grid (eval branch of forward)
    pidx = preserve_index[..., 0]                                           # (B, Nk)
    batch_idx = jnp.arange(B)[:, None]
    final_select = jnp.zeros((B, init_n), dtype=xo.dtype).at[batch_idx, pidx].set(1.0)
    anony = jnp.zeros((B, init_n, Cout), dtype=xo.dtype).at[batch_idx, pidx].set(xo)
    final_select = final_select[..., None]

    # 'b (t h w) (p0 p1 p2 c) -> b c (t p0) (h p1) (w p2)'
    hg = wg = int(math.sqrt(init_n // num_tubelet))
    av = anony.reshape(B, num_tubelet, hg, wg, t0, p, p, 3)
    av = av.transpose(0, 7, 1, 4, 2, 5, 3, 6)
    av = av.reshape(B, 3, num_tubelet * t0, hg * p, wg * p)
    return av, final_select, None


# ----------------------------------------------------------------------------
# main
# ----------------------------------------------------------------------------

if __name__ == "__main__":
    key = jax.random.PRNGKey(0)
    kp, kx = jax.random.split(key)
    params = init_params(kp, CFG)

    B = 2
    x = jax.random.normal(
        kx, (B, CFG["in_chans"], CFG["all_frames"], CFG["img_size"], CFG["img_size"]),
        dtype=jnp.float32)

    forward = jax.jit(partial(stprivacy_forward, cfg=CFG))
    anony_video, final_select, _ = forward(params, x)
    anony_video = jax.block_until_ready(anony_video)
    final_select = jax.block_until_ready(final_select)

    assert anony_video.shape == (B, 3, CFG["all_frames"], CFG["img_size"], CFG["img_size"])
    assert final_select.shape == (B, (CFG["img_size"] // CFG["patch_size"]) ** 2
                                  * (CFG["all_frames"] // CFG["tubelet_size"]), 1)
    assert bool(jnp.all(jnp.isfinite(anony_video)))
    # TODO(synk): training branch (gumbel_softmax hard-keep + softmax_with_policy)
    # is not implemented; eval-mode forward semantics are reproduced.
    print("KERNEL_OK")
</pallas_src>

<mosaic_0001>
module attributes {stable_mosaic.version = 11 : i64} {
  func.func @_fused_linear_kernel(%arg0: i32, %arg1: memref<64x96xf32, #tpu.memory_space<vmem>>, %arg2: memref<96x48xf32, #tpu.memory_space<vmem>>, %arg3: memref<1x48xf32, #tpu.memory_space<vmem>>, %arg4: memref<64x48xf32, #tpu.memory_space<vmem>>) attributes {dimension_semantics = [#tpu.dimension_semantics<arbitrary>], iteration_bounds = array<i64: 1>, scalar_prefetch = 0 : i64, scratch_operands = 0 : i64, tpu.core_type = #tpu.core_type<tc>, window_params = [{pipeline_mode = #tpu.pipeline_mode<synchronous>, transform_indices = @transform_0, window_bounds = array<i64: 64, 96>}, {pipeline_mode = #tpu.pipeline_mode<synchronous>, transform_indices = @transform_1, window_bounds = array<i64: 96, 48>}, {pipeline_mode = #tpu.pipeline_mode<synchronous>, transform_indices = @transform_2, window_bounds = array<i64: 1, 48>}, {pipeline_mode = #tpu.pipeline_mode<synchronous>, transform_indices = @transform_3, window_bounds = array<i64: 64, 48>}]} {
    %c0 = arith.constant 0 : index
    %c0_0 = arith.constant 0 : index
    %0 = vector.load %arg1[%c0, %c0_0] : memref<64x96xf32, #tpu.memory_space<vmem>>, vector<64x96xf32>
    %c0_1 = arith.constant 0 : index
    %c0_2 = arith.constant 0 : index
    %1 = vector.load %arg2[%c0_1, %c0_2] : memref<96x48xf32, #tpu.memory_space<vmem>>, vector<96x48xf32>
    %cst = arith.constant dense<0.000000e+00> : vector<64x48xf32>
    %2 = tpu.matmul %0, %1, %cst {dimension_numbers = #tpu.dot_dimension_numbers<[1], [0], [0], [1], [0, 0, 1, 1], [], []>} : vector<64x96xf32>, vector<96x48xf32>, vector<64x48xf32> -> vector<64x48xf32>
    %c0_3 = arith.constant 0 : index
    %c0_4 = arith.constant 0 : index
    %3 = vector.load %arg3[%c0_3, %c0_4] : memref<1x48xf32, #tpu.memory_space<vmem>>, vector<1x48xf32>
    %4 = vector.broadcast %3 : vector<1x48xf32> to vector<64x48xf32>
    %5 = arith.addf %2, %4 : vector<64x48xf32>
    %c0_5 = arith.constant 0 : index
    %c0_6 = arith.constant 0 : index
    %6 = vector.load %arg4[%c0_5, %c0_6] : memref<64x48xf32, #tpu.memory_space<vmem>>, vector<64x48xf32>
    tpu.vector_store %arg4[%c0_5, %c0_6], %5 {strides = array<i32>} : memref<64x48xf32, #tpu.memory_space<vmem>>, vector<64x48xf32>,
    return
  }
  func.func @transform_0(%arg0: i32) -> (i32, i32) {
    %c0_i32 = arith.constant 0 : i32
    %c0_i32_0 = arith.constant 0 : i32
    %c0_i32_1 = arith.constant 0 : i32
    return %c0_i32, %c0_i32_0 : i32, i32
  }
  func.func @transform_1(%arg0: i32) -> (i32, i32) {
    %c0_i32 = arith.constant 0 : i32
    %c0_i32_0 = arith.constant 0 : i32
    %c0_i32_1 = arith.constant 0 : i32
    return %c0_i32, %c0_i32_0 : i32, i32
  }
  func.func @transform_2(%arg0: i32) -> (i32, i32) {
    %c0_i32 = arith.constant 0 : i32
    %c0_i32_0 = arith.constant 0 : i32
    %c0_i32_1 = arith.constant 0 : i32
    return %c0_i32, %c0_i32_0 : i32, i32
  }
  func.func @transform_3(%arg0: i32) -> (i32, i32) {
    %c0_i32 = arith.constant 0 : i32
    %c0_i32_0 = arith.constant 0 : i32
    %c0_i32_1 = arith.constant 0 : i32
    return %c0_i32, %c0_i32_0 : i32, i32
  }
}

module attributes {stable_mosaic.version = 11 : i64} {
  func.func @_block_kernel(%arg0: i32, %arg1: memref<1x32x48xf32, #tpu.memory_space<vmem>>, %arg2: memref<1x48xf32, #tpu.memory_space<vmem>>, %arg3: memref<1x48xf32, #tpu.memory_space<vmem>>, %arg4: memref<48x144xf32, #tpu.memory_space<vmem>>, %arg5: memref<1x144xf32, #tpu.memory_space<vmem>>, %arg6: memref<48x48xf32, #tpu.memory_space<vmem>>, %arg7: memref<1x48xf32, #tpu.memory_space<vmem>>, %arg8: memref<1x48xf32, #tpu.memory_space<vmem>>, %arg9: memref<1x48xf32, #tpu.memory_space<vmem>>, %arg10: memref<48x192xf32, #tpu.memory_space<vmem>>, %arg11: memref<1x192xf32, #tpu.memory_space<vmem>>, %arg12: memref<192x48xf32, #tpu.memory_space<vmem>>, %arg13: memref<1x48xf32, #tpu.memory_space<vmem>>, %arg14: memref<1x32x48xf32, #tpu.memory_space<vmem>>) attributes {dimension_semantics = [#tpu.dimension_semantics<parallel>], iteration_bounds = array<i64: 2>, scalar_prefetch = 0 : i64, scratch_operands = 0 : i64, tpu.core_type = #tpu.core_type<tc>, window_params = [{transform_indices = @transform_0, window_bounds = array<i64: 1, 32, 48>}, {pipeline_mode = #tpu.pipeline_mode<synchronous>, transform_indices = @transform_1, window_bounds = array<i64: 1, 48>}, {pipeline_mode = #tpu.pipeline_mode<synchronous>, transform_indices = @transform_2, window_bounds = array<i64: 1, 48>}, {pipeline_mode = #tpu.pipeline_mode<synchronous>, transform_indices = @transform_3, window_bounds = array<i64: 48, 144>}, {pipeline_mode = #tpu.pipeline_mode<synchronous>, transform_indices = @transform_4, window_bounds = array<i64: 1, 144>}, {pipeline_mode = #tpu.pipeline_mode<synchronous>, transform_indices = @transform_5, window_bounds = array<i64: 48, 48>}, {pipeline_mode = #tpu.pipeline_mode<synchronous>, transform_indices = @transform_6, window_bounds = array<i64: 1, 48>}, {pipeline_mode = #tpu.pipeline_mode<synchronous>, transform_indices = @transform_7, window_bounds = array<i64: 1, 48>}, {pipeline_mode = #tpu.pipeline_mode<synchronous>, transform_indices = @transform_8, window_bounds = array<i64: 1, 48>}, {pipeline_mode = #tpu.pipeline_mode<synchronous>, transform_indices = @transform_9, window_bounds = array<i64: 48, 192>}, {pipeline_mode = #tpu.pipeline_mode<synchronous>, transform_indices = @transform_10, window_bounds = array<i64: 1, 192>}, {pipeline_mode = #tpu.pipeline_mode<synchronous>, transform_indices = @transform_11, window_bounds = array<i64: 192, 48>}, {pipeline_mode = #tpu.pipeline_mode<synchronous>, transform_indices = @transform_12, window_bounds = array<i64: 1, 48>}, {transform_indices = @transform_13, window_bounds = array<i64: 1, 32, 48>}]} {
    %c0 = arith.constant 0 : index
    %c0_0 = arith.constant 0 : index
    %c0_1 = arith.constant 0 : index
    %0 = vector.load %arg1[%c0, %c0_0, %c0_1] : memref<1x32x48xf32, #tpu.memory_space<vmem>>, vector<1x32x48xf32>
    %1 = vector.shape_cast %0 : vector<1x32x48xf32> to vector<32x48xf32>
    %c0_2 = arith.constant 0 : index
    %c0_3 = arith.constant 0 : index
    %2 = vector.load %arg2[%c0_2, %c0_3] : memref<1x48xf32, #tpu.memory_space<vmem>>, vector<1x48xf32>
    %c0_4 = arith.constant 0 : index
    %c0_5 = arith.constant 0 : index
    %3 = vector.load %arg3[%c0_4, %c0_5] : memref<1x48xf32, #tpu.memory_space<vmem>>, vector<1x48xf32>
    %cst = arith.constant dense<0.000000e+00> : vector<32xf32>
    %4 = vector.multi_reduction <add>, %1, %cst [1] : vector<32x48xf32> to vector<32xf32>
    %5 = vector.shape_cast %4 : vector<32xf32> to vector<32x1xf32>
    %cst_6 = arith.constant 4.800000e+01 : f32
    %6 = vector.broadcast %cst_6 : f32 to vector<32x1xf32>
    %7 = arith.divf %5, %6 : vector<32x1xf32>
    %8 = vector.broadcast %7 : vector<32x1xf32> to vector<32x48xf32>
    %9 = arith.subf %1, %8 : vector<32x48xf32>
    %10 = arith.mulf %9, %9 : vector<32x48xf32>
    %cst_7 = arith.constant dense<0.000000e+00> : vector<32xf32>
    %11 = vector.multi_reduction <add>, %10, %cst_7 [1] : vector<32x48xf32> to vector<32xf32>
    %12 = vector.shape_cast %11 : vector<32xf32> to vector<32x1xf32>
    %cst_8 = arith.constant 4.800000e+01 : f32
    %13 = vector.broadcast %cst_8 : f32 to vector<32x1xf32>
    %14 = arith.divf %12, %13 : vector<32x1xf32>
    %15 = vector.broadcast %7 : vector<32x1xf32> to vector<32x48xf32>
    %16 = arith.subf %1, %15 : vector<32x48xf32>
    %cst_9 = arith.constant 9.99999997E-7 : f32
    %17 = vector.broadcast %cst_9 : f32 to vector<32x1xf32>
    %18 = arith.addf %14, %17 : vector<32x1xf32>
    %19 = math.rsqrt %18 : vector<32x1xf32>
    %20 = vector.broadcast %19 : vector<32x1xf32> to vector<32x48xf32>
    %21 = arith.mulf %16, %20 : vector<32x48xf32>
    %22 = vector.broadcast %2 : vector<1x48xf32> to vector<32x48xf32>
    %23 = arith.mulf %21, %22 : vector<32x48xf32>
    %24 = vector.broadcast %3 : vector<1x48xf32> to vector<32x48xf32>
    %25 = arith.addf %23, %24 : vector<32x48xf32>
    %c0_10 = arith.constant 0 : index
    %c0_11 = arith.constant 0 : index
    %26 = vector.load %arg4[%c0_10, %c0_11] : memref<48x144xf32, #tpu.memory_space<vmem>>, vector<48x144xf32>
    %cst_12 = arith.constant dense<0.000000e+00> : vector<32x144xf32>
    %27 = tpu.matmul %25, %26, %cst_12 {dimension_numbers = #tpu.dot_dimension_numbers<[1], [0], [0], [1], [0, 0, 1, 1], [], []>} : vector<32x48xf32>, vector<48x144xf32>, vector<32x144xf32> -> vector<32x144xf32>
    %c0_13 = arith.constant 0 : index
    %c0_14 = arith.constant 0 : index
    %28 = vector.load %arg5[%c0_13, %c0_14] : memref<1x144xf32, #tpu.memory_space<vmem>>, vector<1x144xf32>
    %29 = vector.broadcast %28 : vector<1x144xf32> to vector<32x144xf32>
    %30 = arith.addf %27, %29 : vector<32x144xf32>
    %31 = vector.extract_strided_slice %30 {offsets = [0, 0], sizes = [32, 12], strides = [1, 1]} : vector<32x144xf32> to vector<32x12xf32>
    %32 = vector.extract_strided_slice %30 {offsets = [0, 48], sizes = [32, 12], strides = [1, 1]} : vector<32x144xf32> to vector<32x12xf32>
    %33 = vector.extract_strided_slice %30 {offsets = [0, 96], sizes = [32, 12], strides = [1, 1]} : vector<32x144xf32> to vector<32x12xf32>
    %cst_15 = arith.constant dense<0.000000e+00> : vector<32x32xf32>
    %34 = tpu.matmul %31, %32, %cst_15 {dimension_numbers = #tpu.dot_dimension_numbers<[1], [1], [0], [0], [0, 0, 1, 0], [], []>} : vector<32x12xf32>, vector<32x12xf32>, vector<32x32xf32> -> vector<32x32xf32>
    %cst_16 = arith.constant 0.288675129 : f32
    %35 = vector.broadcast %cst_16 : f32 to vector<32x32xf32>
    %36 = arith.mulf %34, %35 : vector<32x32xf32>
    %cst_17 = arith.constant dense<0xFF800000> : vector<32xf32>
    %37 = vector.multi_reduction <maximumf>, %36, %cst_17 [1] : vector<32x32xf32> to vector<32xf32>
    %38 = vector.shape_cast %37 : vector<32xf32> to vector<32x1xf32>
    %39 = vector.broadcast %38 : vector<32x1xf32> to vector<32x32xf32>
    %40 = arith.subf %36, %39 : vector<32x32xf32>
    %41 = math.exp %40 : vector<32x32xf32>
    %cst_18 = arith.constant dense<0.000000e+00> : vector<32xf32>
    %42 = vector.multi_reduction <add>, %41, %cst_18 [1] : vector<32x32xf32> to vector<32xf32>
    %43 = vector.shape_cast %42 : vector<32xf32> to vector<32x1xf32>
    %44 = vector.broadcast %43 : vector<32x1xf32> to vector<32x32xf32>
    %45 = arith.divf %41, %44 : vector<32x32xf32>
    %cst_19 = arith.constant dense<0.000000e+00> : vector<32x12xf32>
    %46 = tpu.matmul %45, %33, %cst_19 {dimension_numbers = #tpu.dot_dimension_numbers<[1], [0], [0], [1], [0, 0, 1, 1], [], []>} : vector<32x32xf32>, vector<32x12xf32>, vector<32x12xf32> -> vector<32x12xf32>
    %47 = vector.extract_strided_slice %30 {offsets = [0, 12], sizes = [32, 12], strides = [1, 1]} : vector<32x144xf32> to vector<32x12xf32>
    %48 = vector.extract_strided_slice %30 {offsets = [0, 60], sizes = [32, 12], strides = [1, 1]} : vector<32x144xf32> to vector<32x12xf32>
    %49 = vector.extract_strided_slice %30 {offsets = [0, 108], sizes = [32, 12], strides = [1, 1]} : vector<32x144xf32> to vector<32x12xf32>
    %cst_20 = arith.constant dense<0.000000e+00> : vector<32x32xf32>
    %50 = tpu.matmul %47, %48, %cst_20 {dimension_numbers = #tpu.dot_dimension_numbers<[1], [1], [0], [0], [0, 0, 1, 0], [], []>} : vector<32x12xf32>, vector<32x12xf32>, vector<32x32xf32> -> vector<32x32xf32>
    %cst_21 = arith.constant 0.288675129 : f32
    %51 = vector.broadcast %cst_21 : f32 to vector<32x32xf32>
    %52 = arith.mulf %50, %51 : vector<32x32xf32>
    %cst_22 = arith.constant dense<0xFF800000> : vector<32xf32>
    %53 = vector.multi_reduction <maximumf>, %52, %cst_22 [1] : vector<32x32xf32> to vector<32xf32>
    %54 = vector.shape_cast %53 : vector<32xf32> to vector<32x1xf32>
    %55 = vector.broadcast %54 : vector<32x1xf32> to vector<32x32xf32>
    %56 = arith.subf %52, %55 : vector<32x32xf32>
    %57 = math.exp %56 : vector<32x32xf32>
    %cst_23 = arith.constant dense<0.000000e+00> : vector<32xf32>
    %58 = vector.multi_reduction <add>, %57, %cst_23 [1] : vector<32x32xf32> to vector<32xf32>
    %59 = vector.shape_cast %58 : vector<32xf32> to vector<32x1xf32>
    %60 = vector.broadcast %59 : vector<32x1xf32> to vector<32x32xf32>
    %61 = arith.divf %57, %60 : vector<32x32xf32>
    %cst_24 = arith.constant dense<0.000000e+00> : vector<32x12xf32>
    %62 = tpu.matmul %61, %49, %cst_24 {dimension_numbers = #tpu.dot_dimension_numbers<[1], [0], [0], [1], [0, 0, 1, 1], [], []>} : vector<32x32xf32>, vector<32x12xf32>, vector<32x12xf32> -> vector<32x12xf32>
    %63 = vector.extract_strided_slice %30 {offsets = [0, 24], sizes = [32, 12], strides = [1, 1]} : vector<32x144xf32> to vector<32x12xf32>
    %64 = vector.extract_strided_slice %30 {offsets = [0, 72], sizes = [32, 12], strides = [1, 1]} : vector<32x144xf32> to vector<32x12xf32>
    %65 = vector.extract_strided_slice %30 {offsets = [0, 120], sizes = [32, 12], strides = [1, 1]} : vector<32x144xf32> to vector<32x12xf32>
    %cst_25 = arith.constant dense<0.000000e+00> : vector<32x32xf32>
    %66 = tpu.matmul %63, %64, %cst_25 {dimension_numbers = #tpu.dot_dimension_numbers<[1], [1], [0], [0], [0, 0, 1, 0], [], []>} : vector<32x12xf32>, vector<32x12xf32>, vector<32x32xf32> -> vector<32x32xf32>
    %cst_26 = arith.constant 0.288675129 : f32
    %67 = vector.broadcast %cst_26 : f32 to vector<32x32xf32>
    %68 = arith.mulf %66, %67 : vector<32x32xf32>
    %cst_27 = arith.constant dense<0xFF800000> : vector<32xf32>
    %69 = vector.multi_reduction <maximumf>, %68, %cst_27 [1] : vector<32x32xf32> to vector<32xf32>
    %70 = vector.shape_cast %69 : vector<32xf32> to vector<32x1xf32>
    %71 = vector.broadcast %70 : vector<32x1xf32> to vector<32x32xf32>
    %72 = arith.subf %68, %71 : vector<32x32xf32>
    %73 = math.exp %72 : vector<32x32xf32>
    %cst_28 = arith.constant dense<0.000000e+00> : vector<32xf32>
    %74 = vector.multi_reduction <add>, %73, %cst_28 [1] : vector<32x32xf32> to vector<32xf32>
    %75 = vector.shape_cast %74 : vector<32xf32> to vector<32x1xf32>
    %76 = vector.broadcast %75 : vector<32x1xf32> to vector<32x32xf32>
    %77 = arith.divf %73, %76 : vector<32x32xf32>
    %cst_29 = arith.constant dense<0.000000e+00> : vector<32x12xf32>
    %78 = tpu.matmul %77, %65, %cst_29 {dimension_numbers = #tpu.dot_dimension_numbers<[1], [0], [0], [1], [0, 0, 1, 1], [], []>} : vector<32x32xf32>, vector<32x12xf32>, vector<32x12xf32> -> vector<32x12xf32>
    %79 = vector.extract_strided_slice %30 {offsets = [0, 36], sizes = [32, 12], strides = [1, 1]} : vector<32x144xf32> to vector<32x12xf32>
    %80 = vector.extract_strided_slice %30 {offsets = [0, 84], sizes = [32, 12], strides = [1, 1]} : vector<32x144xf32> to vector<32x12xf32>
    %81 = vector.extract_strided_slice %30 {offsets = [0, 132], sizes = [32, 12], strides = [1, 1]} : vector<32x144xf32> to vector<32x12xf32>
    %cst_30 = arith.constant dense<0.000000e+00> : vector<32x32xf32>
    %82 = tpu.matmul %79, %80, %cst_30 {dimension_numbers = #tpu.dot_dimension_numbers<[1], [1], [0], [0], [0, 0, 1, 0], [], []>} : vector<32x12xf32>, vector<32x12xf32>, vector<32x32xf32> -> vector<32x32xf32>
    %cst_31 = arith.constant 0.288675129 : f32
    %83 = vector.broadcast %cst_31 : f32 to vector<32x32xf32>
    %84 = arith.mulf %82, %83 : vector<32x32xf32>
    %cst_32 = arith.constant dense<0xFF800000> : vector<32xf32>
    %85 = vector.multi_reduction <maximumf>, %84, %cst_32 [1] : vector<32x32xf32> to vector<32xf32>
    %86 = vector.shape_cast %85 : vector<32xf32> to vector<32x1xf32>
    %87 = vector.broadcast %86 : vector<32x1xf32> to vector<32x32xf32>
    %88 = arith.subf %84, %87 : vector<32x32xf32>
    %89 = math.exp %88 : vector<32x32xf32>
    %cst_33 = arith.constant dense<0.000000e+00> : vector<32xf32>
    %90 = vector.multi_reduction <add>, %89, %cst_33 [1] : vector<32x32xf32> to vector<32xf32>
    %91 = vector.shape_cast %90 : vector<32xf32> to vector<32x1xf32>
    %92 = vector.broadcast %91 : vector<32x1xf32> to vector<32x32xf32>
    %93 = arith.divf %89, %92 : vector<32x32xf32>
    %cst_34 = arith.constant dense<0.000000e+00> : vector<32x12xf32>
    %94 = tpu.matmul %93, %81, %cst_34 {dimension_numbers = #tpu.dot_dimension_numbers<[1], [0], [0], [1], [0, 0, 1, 1], [], []>} : vector<32x32xf32>, vector<32x12xf32>, vector<32x12xf32> -> vector<32x12xf32>
    %95 = tpu.concatenate %46, %62, %78, %94 in 1 : vector<32x12xf32>, vector<32x12xf32>, vector<32x12xf32>, vector<32x12xf32> -> vector<32x48xf32>
    %c0_35 = arith.constant 0 : index
    %c0_36 = arith.constant 0 : index
    %96 = vector.load %arg6[%c0_35, %c0_36] : memref<48x48xf32, #tpu.memory_space<vmem>>, vector<48x48xf32>
    %cst_37 = arith.constant dense<0.000000e+00> : vector<32x48xf32>
    %97 = tpu.matmul %95, %96, %cst_37 {dimension_numbers = #tpu.dot_dimension_numbers<[1], [0], [0], [1], [0, 0, 1, 1], [], []>} : vector<32x48xf32>, vector<48x48xf32>, vector<32x48xf32> -> vector<32x48xf32>
    %c0_38 = arith.constant 0 : index
    %c0_39 = arith.constant 0 : index
    %98 = vector.load %arg7[%c0_38, %c0_39] : memref<1x48xf32, #tpu.memory_space<vmem>>, vector<1x48xf32>
    %99 = vector.broadcast %98 : vector<1x48xf32> to vector<32x48xf32>
    %100 = arith.addf %97, %99 : vector<32x48xf32>
    %101 = arith.addf %100, %1 : vector<32x48xf32>
    %c0_40 = arith.constant 0 : index
    %c0_41 = arith.constant 0 : index
    %102 = vector.load %arg8[%c0_40, %c0_41] : memref<1x48xf32, #tpu.memory_space<vmem>>, vector<1x48xf32>
    %c0_42 = arith.constant 0 : index
    %c0_43 = arith.constant 0 : index
    %103 = vector.load %arg9[%c0_42, %c0_43] : memref<1x48xf32, #tpu.memory_space<vmem>>, vector<1x48xf32>
    %cst_44 = arith.constant dense<0.000000e+00> : vector<32xf32>
    %104 = vector.multi_reduction <add>, %101, %cst_44 [1] : vector<32x48xf32> to vector<32xf32>
    %105 = vector.shape_cast %104 : vector<32xf32> to vector<32x1xf32>
    %cst_45 = arith.constant 4.800000e+01 : f32
    %106 = vector.broadcast %cst_45 : f32 to vector<32x1xf32>
    %107 = arith.divf %105, %106 : vector<32x1xf32>
    %108 = vector.broadcast %107 : vector<32x1xf32> to vector<32x48xf32>
    %109 = arith.subf %101, %108 : vector<32x48xf32>
    %110 = arith.mulf %109, %109 : vector<32x48xf32>
    %cst_46 = arith.constant dense<0.000000e+00> : vector<32xf32>
    %111 = vector.multi_reduction <add>, %110, %cst_46 [1] : vector<32x48xf32> to vector<32xf32>
    %112 = vector.shape_cast %111 : vector<32xf32> to vector<32x1xf32>
    %cst_47 = arith.constant 4.800000e+01 : f32
    %113 = vector.broadcast %cst_47 : f32 to vector<32x1xf32>
    %114 = arith.divf %112, %113 : vector<32x1xf32>
    %115 = vector.broadcast %107 : vector<32x1xf32> to vector<32x48xf32>
    %116 = arith.subf %101, %115 : vector<32x48xf32>
    %cst_48 = arith.constant 9.99999997E-7 : f32
    %117 = vector.broadcast %cst_48 : f32 to vector<32x1xf32>
    %118 = arith.addf %114, %117 : vector<32x1xf32>
    %119 = math.rsqrt %118 : vector<32x1xf32>
    %120 = vector.broadcast %119 : vector<32x1xf32> to vector<32x48xf32>
    %121 = arith.mulf %116, %120 : vector<32x48xf32>
    %122 = vector.broadcast %102 : vector<1x48xf32> to vector<32x48xf32>
    %123 = arith.mulf %121, %122 : vector<32x48xf32>
    %124 = vector.broadcast %103 : vector<1x48xf32> to vector<32x48xf32>
    %125 = arith.addf %123, %124 : vector<32x48xf32>
    %c0_49 = arith.constant 0 : index
    %c0_50 = arith.constant 0 : index
    %126 = vector.load %arg10[%c0_49, %c0_50] : memref<48x192xf32, #tpu.memory_space<vmem>>, vector<48x192xf32>
    %cst_51 = arith.constant dense<0.000000e+00> : vector<32x192xf32>
    %127 = tpu.matmul %125, %126, %cst_51 {dimension_numbers = #tpu.dot_dimension_numbers<[1], [0], [0], [1], [0, 0, 1, 1], [], []>} : vector<32x48xf32>, vector<48x192xf32>, vector<32x192xf32> -> vector<32x192xf32>
    %c0_52 = arith.constant 0 : index
    %c0_53 = arith.constant 0 : index
    %128 = vector.load %arg11[%c0_52, %c0_53] : memref<1x192xf32, #tpu.memory_space<vmem>>, vector<1x192xf32>
    %129 = vector.broadcast %128 : vector<1x192xf32> to vector<32x192xf32>
    %130 = arith.addf %127, %129 : vector<32x192xf32>
    %cst_54 = arith.constant 5.000000e-01 : f32
    %131 = vector.broadcast %cst_54 : f32 to vector<32x192xf32>
    %132 = arith.mulf %131, %130 : vector<32x192xf32>
    %cst_55 = arith.constant 0.707106769 : f32
    %133 = vector.broadcast %cst_55 : f32 to vector<32x192xf32>
    %134 = arith.mulf %130, %133 : vector<32x192xf32>
    %135 = math.erf %134 : vector<32x192xf32>
    %cst_56 = arith.constant 1.000000e+00 : f32
    %136 = vector.broadcast %cst_56 : f32 to vector<32x192xf32>
    %137 = arith.addf %136, %135 : vector<32x192xf32>
    %138 = arith.mulf %132, %137 : vector<32x192xf32>
    %c0_57 = arith.constant 0 : index
    %c0_58 = arith.constant 0 : index
    %139 = vector.load %arg12[%c0_57, %c0_58] : memref<192x48xf32, #tpu.memory_space<vmem>>, vector<192x48xf32>
    %cst_59 = arith.constant dense<0.000000e+00> : vector<32x48xf32>
    %140 = tpu.matmul %138, %139, %cst_59 {dimension_numbers = #tpu.dot_dimension_numbers<[1], [0], [0], [1], [0, 0, 1, 1], [], []>} : vector<32x192xf32>, vector<192x48xf32>, vector<32x48xf32> -> vector<32x48xf32>
    %c0_60 = arith.constant 0 : index
    %c0_61 = arith.constant 0 : index
    %141 = vector.load %arg13[%c0_60, %c0_61] : memref<1x48xf32, #tpu.memory_space<vmem>>, vector<1x48xf32>
    %142 = vector.broadcast %141 : vector<1x48xf32> to vector<32x48xf32>
    %143 = arith.addf %140, %142 : vector<32x48xf32>
    %144 = arith.addf %143, %101 : vector<32x48xf32>
    %c0_62 = arith.constant 0 : index
    %c0_63 = arith.constant 0 : index
    %c0_64 = arith.constant 0 : index
    %145 = vector.load %arg14[%c0_62, %c0_63, %c0_64] : memref<1x32x48xf32, #tpu.memory_space<vmem>>, vector<1x32x48xf32>
    %146 = vector.shape_cast %145 : vector<1x32x48xf32> to vector<32x48xf32>
    %147 = vector.shape_cast %144 : vector<32x48xf32> to vector<1x32x48xf32>
    tpu.vector_store %arg14[%c0_62, %c0_63, %c0_64], %147 {strides = array<i32>} : memref<1x32x48xf32, #tpu.memory_space<vmem>>, vector<1x32x48xf32>,
    return
  }
  func.func @transform_0(%arg0: i32) -> (i32, i32, i32) {
    %c0_i32 = arith.constant 0 : i32
    %c0_i32_0 = arith.constant 0 : i32
    %c0_i32_1 = arith.constant 0 : i32
    return %arg0, %c0_i32, %c0_i32_0 : i32, i32, i32
  }
  func.func @transform_1(%arg0: i32) -> (i32, i32) {
    %c0_i32 = arith.constant 0 : i32
    %c0_i32_0 = arith.constant 0 : i32
    %c0_i32_1 = arith.constant 0 : i32
    return %c0_i32, %c0_i32_0 : i32, i32
  }
  func.func @transform_2(%arg0: i32) -> (i32, i32) {
    %c0_i32 = arith.constant 0 : i32
    %c0_i32_0 = arith.constant 0 : i32
    %c0_i32_1 = arith.constant 0 : i32
    return %c0_i32, %c0_i32_0 : i32, i32
  }
  func.func @transform_3(%arg0: i32) -> (i32, i32) {
    %c0_i32 = arith.constant 0 : i32
    %c0_i32_0 = arith.constant 0 : i32
    %c0_i32_1 = arith.constant 0 : i32
    return %c0_i32, %c0_i32_0 : i32, i32
  }
  func.func @transform_4(%arg0: i32) -> (i32, i32) {
    %c0_i32 = arith.constant 0 : i32
    %c0_i32_0 = arith.constant 0 : i32
    %c0_i32_1 = arith.constant 0 : i32
    return %c0_i32, %c0_i32_0 : i32, i32
  }
  func.func @transform_5(%arg0: i32) -> (i32, i32) {
    %c0_i32 = arith.constant 0 : i32
    %c0_i32_0 = arith.constant 0 : i32
    %c0_i32_1 = arith.constant 0 : i32
    return %c0_i32, %c0_i32_0 : i32, i32
  }
  func.func @transform_6(%arg0: i32) -> (i32, i32) {
    %c0_i32 = arith.constant 0 : i32
    %c0_i32_0 = arith.constant 0 : i32
    %c0_i32_1 = arith.constant 0 : i32
    return %c0_i32, %c0_i32_0 : i32, i32
  }
  func.func @transform_7(%arg0: i32) -> (i32, i32) {
    %c0_i32 = arith.constant 0 : i32
    %c0_i32_0 = arith.constant 0 : i32
    %c0_i32_1 = arith.constant 0 : i32
    return %c0_i32, %c0_i32_0 : i32, i32
  }
  func.func @transform_8(%arg0: i32) -> (i32, i32) {
    %c0_i32 = arith.constant 0 : i32
    %c0_i32_0 = arith.constant 0 : i32
    %c0_i32_1 = arith.constant 0 : i32
    return %c0_i32, %c0_i32_0 : i32, i32
  }
  func.func @transform_9(%arg0: i32) -> (i32, i32) {
    %c0_i32 = arith.constant 0 : i32
    %c0_i32_0 = arith.constant 0 : i32
    %c0_i32_1 = arith.constant 0 : i32
    return %c0_i32, %c0_i32_0 : i32, i32
  }
  func.func @transform_10(%arg0: i32) -> (i32, i32) {
    %c0_i32 = arith.constant 0 : i32
    %c0_i32_0 = arith.constant 0 : i32
    %c0_i32_1 = arith.constant 0 : i32
    return %c0_i32, %c0_i32_0 : i32, i32
  }
  func.func @transform_11(%arg0: i32) -> (i32, i32) {
    %c0_i32 = arith.constant 0 : i32
    %c0_i32_0 = arith.constant 0 : i32
    %c0_i32_1 = arith.constant 0 : i32
    return %c0_i32, %c0_i32_0 : i32, i32
  }
  func.func @transform_12(%arg0: i32) -> (i32, i32) {
    %c0_i32 = arith.constant 0 : i32
    %c0_i32_0 = arith.constant 0 : i32
    %c0_i32_1 = arith.constant 0 : i32
    return %c0_i32, %c0_i32_0 : i32, i32
  }
  func.func @transform_13(%arg0: i32) -> (i32, i32, i32) {
    %c0_i32 = arith.constant 0 : i32
    %c0_i32_0 = arith.constant 0 : i32
    %c0_i32_1 = arith.constant 0 : i32
    return %arg0, %c0_i32, %c0_i32_0 : i32, i32, i32
  }
}

module attributes {stable_mosaic.version = 11 : i64} {
  func.func @_fused_linear_kernel(%arg0: i32, %arg1: memref<64x48xf32, #tpu.memory_space<vmem>>, %arg2: memref<1x48xf32, #tpu.memory_space<vmem>>, %arg3: memref<1x48xf32, #tpu.memory_space<vmem>>, %arg4: memref<48x48xf32, #tpu.memory_space<vmem>>, %arg5: memref<1x48xf32, #tpu.memory_space<vmem>>, %arg6: memref<64x48xf32, #tpu.memory_space<vmem>>) attributes {dimension_semantics = [#tpu.dimension_semantics<arbitrary>], iteration_bounds = array<i64: 1>, scalar_prefetch = 0 : i64, scratch_operands = 0 : i64, tpu.core_type = #tpu.core_type<tc>, window_params = [{pipeline_mode = #tpu.pipeline_mode<synchronous>, transform_indices = @transform_0, window_bounds = array<i64: 64, 48>}, {pipeline_mode = #tpu.pipeline_mode<synchronous>, transform_indices = @transform_1, window_bounds = array<i64: 1, 48>}, {pipeline_mode = #tpu.pipeline_mode<synchronous>, transform_indices = @transform_2, window_bounds = array<i64: 1, 48>}, {pipeline_mode = #tpu.pipeline_mode<synchronous>, transform_indices = @transform_3, window_bounds = array<i64: 48, 48>}, {pipeline_mode = #tpu.pipeline_mode<synchronous>, transform_indices = @transform_4, window_bounds = array<i64: 1, 48>}, {pipeline_mode = #tpu.pipeline_mode<synchronous>, transform_indices = @transform_5, window_bounds = array<i64: 64, 48>}]} {
    %c0 = arith.constant 0 : index
    %c0_0 = arith.constant 0 : index
    %0 = vector.load %arg1[%c0, %c0_0] : memref<64x48xf32, #tpu.memory_space<vmem>>, vector<64x48xf32>
    %c0_1 = arith.constant 0 : index
    %c0_2 = arith.constant 0 : index
    %1 = vector.load %arg2[%c0_1, %c0_2] : memref<1x48xf32, #tpu.memory_space<vmem>>, vector<1x48xf32>
    %c0_3 = arith.constant 0 : index
    %c0_4 = arith.constant 0 : index
    %2 = vector.load %arg3[%c0_3, %c0_4] : memref<1x48xf32, #tpu.memory_space<vmem>>, vector<1x48xf32>
    %cst = arith.constant dense<0.000000e+00> : vector<64xf32>
    %3 = vector.multi_reduction <add>, %0, %cst [1] : vector<64x48xf32> to vector<64xf32>
    %4 = vector.shape_cast %3 : vector<64xf32> to vector<64x1xf32>
    %cst_5 = arith.constant 4.800000e+01 : f32
    %5 = vector.broadcast %cst_5 : f32 to vector<64x1xf32>
    %6 = arith.divf %4, %5 : vector<64x1xf32>
    %7 = vector.broadcast %6 : vector<64x1xf32> to vector<64x48xf32>
    %8 = arith.subf %0, %7 : vector<64x48xf32>
    %9 = arith.mulf %8, %8 : vector<64x48xf32>
    %cst_6 = arith.constant dense<0.000000e+00> : vector<64xf32>
    %10 = vector.multi_reduction <add>, %9, %cst_6 [1] : vector<64x48xf32> to vector<64xf32>
    %11 = vector.shape_cast %10 : vector<64xf32> to vector<64x1xf32>
    %cst_7 = arith.constant 4.800000e+01 : f32
    %12 = vector.broadcast %cst_7 : f32 to vector<64x1xf32>
    %13 = arith.divf %11, %12 : vector<64x1xf32>
    %14 = vector.broadcast %6 : vector<64x1xf32> to vector<64x48xf32>
    %15 = arith.subf %0, %14 : vector<64x48xf32>
    %cst_8 = arith.constant 9.99999974E-6 : f32
    %16 = vector.broadcast %cst_8 : f32 to vector<64x1xf32>
    %17 = arith.addf %13, %16 : vector<64x1xf32>
    %18 = math.rsqrt %17 : vector<64x1xf32>
    %19 = vector.broadcast %18 : vector<64x1xf32> to vector<64x48xf32>
    %20 = arith.mulf %15, %19 : vector<64x48xf32>
    %21 = vector.broadcast %1 : vector<1x48xf32> to vector<64x48xf32>
    %22 = arith.mulf %20, %21 : vector<64x48xf32>
    %23 = vector.broadcast %2 : vector<1x48xf32> to vector<64x48xf32>
    %24 = arith.addf %22, %23 : vector<64x48xf32>
    %c0_9 = arith.constant 0 : index
    %c0_10 = arith.constant 0 : index
    %25 = vector.load %arg4[%c0_9, %c0_10] : memref<48x48xf32, #tpu.memory_space<vmem>>, vector<48x48xf32>
    %cst_11 = arith.constant dense<0.000000e+00> : vector<64x48xf32>
    %26 = tpu.matmul %24, %25, %cst_11 {dimension_numbers = #tpu.dot_dimension_numbers<[1], [0], [0], [1], [0, 0, 1, 1], [], []>} : vector<64x48xf32>, vector<48x48xf32>, vector<64x48xf32> -> vector<64x48xf32>
    %c0_12 = arith.constant 0 : index
    %c0_13 = arith.constant 0 : index
    %27 = vector.load %arg5[%c0_12, %c0_13] : memref<1x48xf32, #tpu.memory_space<vmem>>, vector<1x48xf32>
    %28 = vector.broadcast %27 : vector<1x48xf32> to vector<64x48xf32>
    %29 = arith.addf %26, %28 : vector<64x48xf32>
    %cst_14 = arith.constant 5.000000e-01 : f32
    %30 = vector.broadcast %cst_14 : f32 to vector<64x48xf32>
    %31 = arith.mulf %30, %29 : vector<64x48xf32>
    %cst_15 = arith.constant 0.707106769 : f32
    %32 = vector.broadcast %cst_15 : f32 to vector<64x48xf32>
    %33 = arith.mulf %29, %32 : vector<64x48xf32>
    %34 = math.erf %33 : vector<64x48xf32>
    %cst_16 = arith.constant 1.000000e+00 : f32
    %35 = vector.broadcast %cst_16 : f32 to vector<64x48xf32>
    %36 = arith.addf %35, %34 : vector<64x48xf32>
    %37 = arith.mulf %31, %36 : vector<64x48xf32>
    %c0_17 = arith.constant 0 : index
    %c0_18 = arith.constant 0 : index
    %38 = vector.load %arg6[%c0_17, %c0_18] : memref<64x48xf32, #tpu.memory_space<vmem>>, vector<64x48xf32>
    tpu.vector_store %arg6[%c0_17, %c0_18], %37 {strides = array<i32>} : memref<64x48xf32, #tpu.memory_space<vmem>>, vector<64x48xf32>,
    return
  }
  func.func @transform_0(%arg0: i32) -> (i32, i32) {
    %c0_i32 = arith.constant 0 : i32
    %c0_i32_0 = arith.constant 0 : i32
    %c0_i32_1 = arith.constant 0 : i32
    return %c0_i32, %c0_i32_0 : i32, i32
  }
  func.func @transform_1(%arg0: i32) -> (i32, i32) {
    %c0_i32 = arith.constant 0 : i32
    %c0_i32_0 = arith.constant 0 : i32
    %c0_i32_1 = arith.constant 0 : i32
    return %c0_i32, %c0_i32_0 : i32, i32
  }
  func.func @transform_2(%arg0: i32) -> (i32, i32) {
    %c0_i32 = arith.constant 0 : i32
    %c0_i32_0 = arith.constant 0 : i32
    %c0_i32_1 = arith.constant 0 : i32
    return %c0_i32, %c0_i32_0 : i32, i32
  }
  func.func @transform_3(%arg0: i32) -> (i32, i32) {
    %c0_i32 = arith.constant 0 : i32
    %c0_i32_0 = arith.constant 0 : i32
    %c0_i32_1 = arith.constant 0 : i32
    return %c0_i32, %c0_i32_0 : i32, i32
  }
  func.func @transform_4(%arg0: i32) -> (i32, i32) {
    %c0_i32 = arith.constant 0 : i32
    %c0_i32_0 = arith.constant 0 : i32
    %c0_i32_1 = arith.constant 0 : i32
    return %c0_i32, %c0_i32_0 : i32, i32
  }
  func.func @transform_5(%arg0: i32) -> (i32, i32) {
    %c0_i32 = arith.constant 0 : i32
    %c0_i32_0 = arith.constant 0 : i32
    %c0_i32_1 = arith.constant 0 : i32
    return %c0_i32, %c0_i32_0 : i32, i32
  }
}

module attributes {stable_mosaic.version = 11 : i64} {
  func.func @_predictor_tail_kernel(%arg0: i32, %arg1: memref<64x48xf32, #tpu.memory_space<vmem>>, %arg2: memref<48x24xf32, #tpu.memory_space<vmem>>, %arg3: memref<1x24xf32, #tpu.memory_space<vmem>>, %arg4: memref<24x12xf32, #tpu.memory_space<vmem>>, %arg5: memref<1x12xf32, #tpu.memory_space<vmem>>, %arg6: memref<12x2xf32, #tpu.memory_space<vmem>>, %arg7: memref<1x2xf32, #tpu.memory_space<vmem>>, %arg8: memref<64x2xf32, #tpu.memory_space<vmem>>) attributes {dimension_semantics = [#tpu.dimension_semantics<arbitrary>], iteration_bounds = array<i64: 1>, scalar_prefetch = 0 : i64, scratch_operands = 0 : i64, tpu.core_type = #tpu.core_type<tc>, window_params = [{pipeline_mode = #tpu.pipeline_mode<synchronous>, transform_indices = @transform_0, window_bounds = array<i64: 64, 48>}, {pipeline_mode = #tpu.pipeline_mode<synchronous>, transform_indices = @transform_1, window_bounds = array<i64: 48, 24>}, {pipeline_mode = #tpu.pipeline_mode<synchronous>, transform_indices = @transform_2, window_bounds = array<i64: 1, 24>}, {pipeline_mode = #tpu.pipeline_mode<synchronous>, transform_indices = @transform_3, window_bounds = array<i64: 24, 12>}, {pipeline_mode = #tpu.pipeline_mode<synchronous>, transform_indices = @transform_4, window_bounds = array<i64: 1, 12>}, {pipeline_mode = #tpu.pipeline_mode<synchronous>, transform_indices = @transform_5, window_bounds = array<i64: 12, 2>}, {pipeline_mode = #tpu.pipeline_mode<synchronous>, transform_indices = @transform_6, window_bounds = array<i64: 1, 2>}, {pipeline_mode = #tpu.pipeline_mode<synchronous>, transform_indices = @transform_7, window_bounds = array<i64: 64, 2>}]} {
    %c0 = arith.constant 0 : index
    %c0_0 = arith.constant 0 : index
    %0 = vector.load %arg1[%c0, %c0_0] : memref<64x48xf32, #tpu.memory_space<vmem>>, vector<64x48xf32>
    %c0_1 = arith.constant 0 : index
    %c0_2 = arith.constant 0 : index
    %1 = vector.load %arg2[%c0_1, %c0_2] : memref<48x24xf32, #tpu.memory_space<vmem>>, vector<48x24xf32>
    %cst = arith.constant dense<0.000000e+00> : vector<64x24xf32>
    %2 = tpu.matmul %0, %1, %cst {dimension_numbers = #tpu.dot_dimension_numbers<[1], [0], [0], [1], [0, 0, 1, 1], [], []>} : vector<64x48xf32>, vector<48x24xf32>, vector<64x24xf32> -> vector<64x24xf32>
    %c0_3 = arith.constant 0 : index
    %c0_4 = arith.constant 0 : index
    %3 = vector.load %arg3[%c0_3, %c0_4] : memref<1x24xf32, #tpu.memory_space<vmem>>, vector<1x24xf32>
    %4 = vector.broadcast %3 : vector<1x24xf32> to vector<64x24xf32>
    %5 = arith.addf %2, %4 : vector<64x24xf32>
    %cst_5 = arith.constant 5.000000e-01 : f32
    %6 = vector.broadcast %cst_5 : f32 to vector<64x24xf32>
    %7 = arith.mulf %6, %5 : vector<64x24xf32>
    %cst_6 = arith.constant 0.707106769 : f32
    %8 = vector.broadcast %cst_6 : f32 to vector<64x24xf32>
    %9 = arith.mulf %5, %8 : vector<64x24xf32>
    %10 = math.erf %9 : vector<64x24xf32>
    %cst_7 = arith.constant 1.000000e+00 : f32
    %11 = vector.broadcast %cst_7 : f32 to vector<64x24xf32>
    %12 = arith.addf %11, %10 : vector<64x24xf32>
    %13 = arith.mulf %7, %12 : vector<64x24xf32>
    %c0_8 = arith.constant 0 : index
    %c0_9 = arith.constant 0 : index
    %14 = vector.load %arg4[%c0_8, %c0_9] : memref<24x12xf32, #tpu.memory_space<vmem>>, vector<24x12xf32>
    %cst_10 = arith.constant dense<0.000000e+00> : vector<64x12xf32>
    %15 = tpu.matmul %13, %14, %cst_10 {dimension_numbers = #tpu.dot_dimension_numbers<[1], [0], [0], [1], [0, 0, 1, 1], [], []>} : vector<64x24xf32>, vector<24x12xf32>, vector<64x12xf32> -> vector<64x12xf32>
    %c0_11 = arith.constant 0 : index
    %c0_12 = arith.constant 0 : index
    %16 = vector.load %arg5[%c0_11, %c0_12] : memref<1x12xf32, #tpu.memory_space<vmem>>, vector<1x12xf32>
    %17 = vector.broadcast %16 : vector<1x12xf32> to vector<64x12xf32>
    %18 = arith.addf %15, %17 : vector<64x12xf32>
    %cst_13 = arith.constant 5.000000e-01 : f32
    %19 = vector.broadcast %cst_13 : f32 to vector<64x12xf32>
    %20 = arith.mulf %19, %18 : vector<64x12xf32>
    %cst_14 = arith.constant 0.707106769 : f32
    %21 = vector.broadcast %cst_14 : f32 to vector<64x12xf32>
    %22 = arith.mulf %18, %21 : vector<64x12xf32>
    %23 = math.erf %22 : vector<64x12xf32>
    %cst_15 = arith.constant 1.000000e+00 : f32
    %24 = vector.broadcast %cst_15 : f32 to vector<64x12xf32>
    %25 = arith.addf %24, %23 : vector<64x12xf32>
    %26 = arith.mulf %20, %25 : vector<64x12xf32>
    %c0_16 = arith.constant 0 : index
    %c0_17 = arith.constant 0 : index
    %27 = vector.load %arg6[%c0_16, %c0_17] : memref<12x2xf32, #tpu.memory_space<vmem>>, vector<12x2xf32>
    %cst_18 = arith.constant dense<0.000000e+00> : vector<64x2xf32>
    %28 = tpu.matmul %26, %27, %cst_18 {dimension_numbers = #tpu.dot_dimension_numbers<[1], [0], [0], [1], [0, 0, 1, 1], [], []>} : vector<64x12xf32>, vector<12x2xf32>, vector<64x2xf32> -> vector<64x2xf32>
    %c0_19 = arith.constant 0 : index
    %c0_20 = arith.constant 0 : index
    %29 = vector.load %arg7[%c0_19, %c0_20] : memref<1x2xf32, #tpu.memory_space<vmem>>, vector<1x2xf32>
    %30 = vector.broadcast %29 : vector<1x2xf32> to vector<64x2xf32>
    %31 = arith.addf %28, %30 : vector<64x2xf32>
    %cst_21 = arith.constant dense<0xFF800000> : vector<64xf32>
    %32 = vector.multi_reduction <maximumf>, %31, %cst_21 [1] : vector<64x2xf32> to vector<64xf32>
    %33 = vector.shape_cast %32 : vector<64xf32> to vector<64x1xf32>
    %34 = vector.broadcast %33 : vector<64x1xf32> to vector<64x2xf32>
    %35 = arith.subf %31, %34 : vector<64x2xf32>
    %36 = math.exp %35 : vector<64x2xf32>
    %cst_22 = arith.constant dense<0.000000e+00> : vector<64xf32>
    %37 = vector.multi_reduction <add>, %36, %cst_22 [1] : vector<64x2xf32> to vector<64xf32>
    %38 = vector.shape_cast %37 : vector<64xf32> to vector<64x1xf32>
    %39 = math.log %38 : vector<64x1xf32>
    %40 = vector.broadcast %39 : vector<64x1xf32> to vector<64x2xf32>
    %41 = arith.subf %35, %40 : vector<64x2xf32>
    %c0_23 = arith.constant 0 : index
    %c0_24 = arith.constant 0 : index
    %42 = vector.load %arg8[%c0_23, %c0_24] : memref<64x2xf32, #tpu.memory_space<vmem>>, vector<64x2xf32>
    tpu.vector_store %arg8[%c0_23, %c0_24], %41 {strides = array<i32>} : memref<64x2xf32, #tpu.memory_space<vmem>>, vector<64x2xf32>,
    return
  }
  func.func @transform_0(%arg0: i32) -> (i32, i32) {
    %c0_i32 = arith.constant 0 : i32
    %c0_i32_0 = arith.constant 0 : i32
    %c0_i32_1 = arith.constant 0 : i32
    return %c0_i32, %c0_i32_0 : i32, i32
  }
  func.func @transform_1(%arg0: i32) -> (i32, i32) {
    %c0_i32 = arith.constant 0 : i32
    %c0_i32_0 = arith.constant 0 : i32
    %c0_i32_1 = arith.constant 0 : i32
    return %c0_i32, %c0_i32_0 : i32, i32
  }
  func.func @transform_2(%arg0: i32) -> (i32, i32) {
    %c0_i32 = arith.constant 0 : i32
    %c0_i32_0 = arith.constant 0 : i32
    %c0_i32_1 = arith.constant 0 : i32
    return %c0_i32, %c0_i32_0 : i32, i32
  }
  func.func @transform_3(%arg0: i32) -> (i32, i32) {
    %c0_i32 = arith.constant 0 : i32
    %c0_i32_0 = arith.constant 0 : i32
    %c0_i32_1 = arith.constant 0 : i32
    return %c0_i32, %c0_i32_0 : i32, i32
  }
  func.func @transform_4(%arg0: i32) -> (i32, i32) {
    %c0_i32 = arith.constant 0 : i32
    %c0_i32_0 = arith.constant 0 : i32
    %c0_i32_1 = arith.constant 0 : i32
    return %c0_i32, %c0_i32_0 : i32, i32
  }
  func.func @transform_5(%arg0: i32) -> (i32, i32) {
    %c0_i32 = arith.constant 0 : i32
    %c0_i32_0 = arith.constant 0 : i32
    %c0_i32_1 = arith.constant 0 : i32
    return %c0_i32, %c0_i32_0 : i32, i32
  }
  func.func @transform_6(%arg0: i32) -> (i32, i32) {
    %c0_i32 = arith.constant 0 : i32
    %c0_i32_0 = arith.constant 0 : i32
    %c0_i32_1 = arith.constant 0 : i32
    return %c0_i32, %c0_i32_0 : i32, i32
  }
  func.func @transform_7(%arg0: i32) -> (i32, i32) {
    %c0_i32 = arith.constant 0 : i32
    %c0_i32_0 = arith.constant 0 : i32
    %c0_i32_1 = arith.constant 0 : i32
    return %c0_i32, %c0_i32_0 : i32, i32
  }
}

module attributes {stable_mosaic.version = 11 : i64} {
  func.func @_block_kernel(%arg0: i32, %arg1: memref<1x16x48xf32, #tpu.memory_space<vmem>>, %arg2: memref<1x48xf32, #tpu.memory_space<vmem>>, %arg3: memref<1x48xf32, #tpu.memory_space<vmem>>, %arg4: memref<48x144xf32, #tpu.memory_space<vmem>>, %arg5: memref<1x144xf32, #tpu.memory_space<vmem>>, %arg6: memref<48x48xf32, #tpu.memory_space<vmem>>, %arg7: memref<1x48xf32, #tpu.memory_space<vmem>>, %arg8: memref<1x48xf32, #tpu.memory_space<vmem>>, %arg9: memref<1x48xf32, #tpu.memory_space<vmem>>, %arg10: memref<48x192xf32, #tpu.memory_space<vmem>>, %arg11: memref<1x192xf32, #tpu.memory_space<vmem>>, %arg12: memref<192x48xf32, #tpu.memory_space<vmem>>, %arg13: memref<1x48xf32, #tpu.memory_space<vmem>>, %arg14: memref<1x16x48xf32, #tpu.memory_space<vmem>>) attributes {dimension_semantics = [#tpu.dimension_semantics<parallel>], iteration_bounds = array<i64: 2>, scalar_prefetch = 0 : i64, scratch_operands = 0 : i64, tpu.core_type = #tpu.core_type<tc>, window_params = [{transform_indices = @transform_0, window_bounds = array<i64: 1, 16, 48>}, {pipeline_mode = #tpu.pipeline_mode<synchronous>, transform_indices = @transform_1, window_bounds = array<i64: 1, 48>}, {pipeline_mode = #tpu.pipeline_mode<synchronous>, transform_indices = @transform_2, window_bounds = array<i64: 1, 48>}, {pipeline_mode = #tpu.pipeline_mode<synchronous>, transform_indices = @transform_3, window_bounds = array<i64: 48, 144>}, {pipeline_mode = #tpu.pipeline_mode<synchronous>, transform_indices = @transform_4, window_bounds = array<i64: 1, 144>}, {pipeline_mode = #tpu.pipeline_mode<synchronous>, transform_indices = @transform_5, window_bounds = array<i64: 48, 48>}, {pipeline_mode = #tpu.pipeline_mode<synchronous>, transform_indices = @transform_6, window_bounds = array<i64: 1, 48>}, {pipeline_mode = #tpu.pipeline_mode<synchronous>, transform_indices = @transform_7, window_bounds = array<i64: 1, 48>}, {pipeline_mode = #tpu.pipeline_mode<synchronous>, transform_indices = @transform_8, window_bounds = array<i64: 1, 48>}, {pipeline_mode = #tpu.pipeline_mode<synchronous>, transform_indices = @transform_9, window_bounds = array<i64: 48, 192>}, {pipeline_mode = #tpu.pipeline_mode<synchronous>, transform_indices = @transform_10, window_bounds = array<i64: 1, 192>}, {pipeline_mode = #tpu.pipeline_mode<synchronous>, transform_indices = @transform_11, window_bounds = array<i64: 192, 48>}, {pipeline_mode = #tpu.pipeline_mode<synchronous>, transform_indices = @transform_12, window_bounds = array<i64: 1, 48>}, {transform_indices = @transform_13, window_bounds = array<i64: 1, 16, 48>}]} {
    %c0 = arith.constant 0 : index
    %c0_0 = arith.constant 0 : index
    %c0_1 = arith.constant 0 : index
    %0 = vector.load %arg1[%c0, %c0_0, %c0_1] : memref<1x16x48xf32, #tpu.memory_space<vmem>>, vector<1x16x48xf32>
    %1 = vector.shape_cast %0 : vector<1x16x48xf32> to vector<16x48xf32>
    %c0_2 = arith.constant 0 : index
    %c0_3 = arith.constant 0 : index
    %2 = vector.load %arg2[%c0_2, %c0_3] : memref<1x48xf32, #tpu.memory_space<vmem>>, vector<1x48xf32>
    %c0_4 = arith.constant 0 : index
    %c0_5 = arith.constant 0 : index
    %3 = vector.load %arg3[%c0_4, %c0_5] : memref<1x48xf32, #tpu.memory_space<vmem>>, vector<1x48xf32>
    %cst = arith.constant dense<0.000000e+00> : vector<16xf32>
    %4 = vector.multi_reduction <add>, %1, %cst [1] : vector<16x48xf32> to vector<16xf32>
    %5 = vector.shape_cast %4 : vector<16xf32> to vector<16x1xf32>
    %cst_6 = arith.constant 4.800000e+01 : f32
    %6 = vector.broadcast %cst_6 : f32 to vector<16x1xf32>
    %7 = arith.divf %5, %6 : vector<16x1xf32>
    %8 = vector.broadcast %7 : vector<16x1xf32> to vector<16x48xf32>
    %9 = arith.subf %1, %8 : vector<16x48xf32>
    %10 = arith.mulf %9, %9 : vector<16x48xf32>
    %cst_7 = arith.constant dense<0.000000e+00> : vector<16xf32>
    %11 = vector.multi_reduction <add>, %10, %cst_7 [1] : vector<16x48xf32> to vector<16xf32>
    %12 = vector.shape_cast %11 : vector<16xf32> to vector<16x1xf32>
    %cst_8 = arith.constant 4.800000e+01 : f32
    %13 = vector.broadcast %cst_8 : f32 to vector<16x1xf32>
    %14 = arith.divf %12, %13 : vector<16x1xf32>
    %15 = vector.broadcast %7 : vector<16x1xf32> to vector<16x48xf32>
    %16 = arith.subf %1, %15 : vector<16x48xf32>
    %cst_9 = arith.constant 9.99999997E-7 : f32
    %17 = vector.broadcast %cst_9 : f32 to vector<16x1xf32>
    %18 = arith.addf %14, %17 : vector<16x1xf32>
    %19 = math.rsqrt %18 : vector<16x1xf32>
    %20 = vector.broadcast %19 : vector<16x1xf32> to vector<16x48xf32>
    %21 = arith.mulf %16, %20 : vector<16x48xf32>
    %22 = vector.broadcast %2 : vector<1x48xf32> to vector<16x48xf32>
    %23 = arith.mulf %21, %22 : vector<16x48xf32>
    %24 = vector.broadcast %3 : vector<1x48xf32> to vector<16x48xf32>
    %25 = arith.addf %23, %24 : vector<16x48xf32>
    %c0_10 = arith.constant 0 : index
    %c0_11 = arith.constant 0 : index
    %26 = vector.load %arg4[%c0_10, %c0_11] : memref<48x144xf32, #tpu.memory_space<vmem>>, vector<48x144xf32>
    %cst_12 = arith.constant dense<0.000000e+00> : vector<16x144xf32>
    %27 = tpu.matmul %25, %26, %cst_12 {dimension_numbers = #tpu.dot_dimension_numbers<[1], [0], [0], [1], [0, 0, 1, 1], [], []>} : vector<16x48xf32>, vector<48x144xf32>, vector<16x144xf32> -> vector<16x144xf32>
    %c0_13 = arith.constant 0 : index
    %c0_14 = arith.constant 0 : index
    %28 = vector.load %arg5[%c0_13, %c0_14] : memref<1x144xf32, #tpu.memory_space<vmem>>, vector<1x144xf32>
    %29 = vector.broadcast %28 : vector<1x144xf32> to vector<16x144xf32>
    %30 = arith.addf %27, %29 : vector<16x144xf32>
    %31 = vector.extract_strided_slice %30 {offsets = [0, 0], sizes = [16, 12], strides = [1, 1]} : vector<16x144xf32> to vector<16x12xf32>
    %32 = vector.extract_strided_slice %30 {offsets = [0, 48], sizes = [16, 12], strides = [1, 1]} : vector<16x144xf32> to vector<16x12xf32>
    %33 = vector.extract_strided_slice %30 {offsets = [0, 96], sizes = [16, 12], strides = [1, 1]} : vector<16x144xf32> to vector<16x12xf32>
    %cst_15 = arith.constant dense<0.000000e+00> : vector<16x16xf32>
    %34 = tpu.matmul %31, %32, %cst_15 {dimension_numbers = #tpu.dot_dimension_numbers<[1], [1], [0], [0], [0, 0, 1, 0], [], []>} : vector<16x12xf32>, vector<16x12xf32>, vector<16x16xf32> -> vector<16x16xf32>
    %cst_16 = arith.constant 0.288675129 : f32
    %35 = vector.broadcast %cst_16 : f32 to vector<16x16xf32>
    %36 = arith.mulf %34, %35 : vector<16x16xf32>
    %cst_17 = arith.constant dense<0xFF800000> : vector<16xf32>
    %37 = vector.multi_reduction <maximumf>, %36, %cst_17 [1] : vector<16x16xf32> to vector<16xf32>
    %38 = vector.shape_cast %37 : vector<16xf32> to vector<16x1xf32>
    %39 = vector.broadcast %38 : vector<16x1xf32> to vector<16x16xf32>
    %40 = arith.subf %36, %39 : vector<16x16xf32>
    %41 = math.exp %40 : vector<16x16xf32>
    %cst_18 = arith.constant dense<0.000000e+00> : vector<16xf32>
    %42 = vector.multi_reduction <add>, %41, %cst_18 [1] : vector<16x16xf32> to vector<16xf32>
    %43 = vector.shape_cast %42 : vector<16xf32> to vector<16x1xf32>
    %44 = vector.broadcast %43 : vector<16x1xf32> to vector<16x16xf32>
    %45 = arith.divf %41, %44 : vector<16x16xf32>
    %cst_19 = arith.constant dense<0.000000e+00> : vector<16x12xf32>
    %46 = tpu.matmul %45, %33, %cst_19 {dimension_numbers = #tpu.dot_dimension_numbers<[1], [0], [0], [1], [0, 0, 1, 1], [], []>} : vector<16x16xf32>, vector<16x12xf32>, vector<16x12xf32> -> vector<16x12xf32>
    %47 = vector.extract_strided_slice %30 {offsets = [0, 12], sizes = [16, 12], strides = [1, 1]} : vector<16x144xf32> to vector<16x12xf32>
    %48 = vector.extract_strided_slice %30 {offsets = [0, 60], sizes = [16, 12], strides = [1, 1]} : vector<16x144xf32> to vector<16x12xf32>
    %49 = vector.extract_strided_slice %30 {offsets = [0, 108], sizes = [16, 12], strides = [1, 1]} : vector<16x144xf32> to vector<16x12xf32>
    %cst_20 = arith.constant dense<0.000000e+00> : vector<16x16xf32>
    %50 = tpu.matmul %47, %48, %cst_20 {dimension_numbers = #tpu.dot_dimension_numbers<[1], [1], [0], [0], [0, 0, 1, 0], [], []>} : vector<16x12xf32>, vector<16x12xf32>, vector<16x16xf32> -> vector<16x16xf32>
    %cst_21 = arith.constant 0.288675129 : f32
    %51 = vector.broadcast %cst_21 : f32 to vector<16x16xf32>
    %52 = arith.mulf %50, %51 : vector<16x16xf32>
    %cst_22 = arith.constant dense<0xFF800000> : vector<16xf32>
    %53 = vector.multi_reduction <maximumf>, %52, %cst_22 [1] : vector<16x16xf32> to vector<16xf32>
    %54 = vector.shape_cast %53 : vector<16xf32> to vector<16x1xf32>
    %55 = vector.broadcast %54 : vector<16x1xf32> to vector<16x16xf32>
    %56 = arith.subf %52, %55 : vector<16x16xf32>
    %57 = math.exp %56 : vector<16x16xf32>
    %cst_23 = arith.constant dense<0.000000e+00> : vector<16xf32>
    %58 = vector.multi_reduction <add>, %57, %cst_23 [1] : vector<16x16xf32> to vector<16xf32>
    %59 = vector.shape_cast %58 : vector<16xf32> to vector<16x1xf32>
    %60 = vector.broadcast %59 : vector<16x1xf32> to vector<16x16xf32>
    %61 = arith.divf %57, %60 : vector<16x16xf32>
    %cst_24 = arith.constant dense<0.000000e+00> : vector<16x12xf32>
    %62 = tpu.matmul %61, %49, %cst_24 {dimension_numbers = #tpu.dot_dimension_numbers<[1], [0], [0], [1], [0, 0, 1, 1], [], []>} : vector<16x16xf32>, vector<16x12xf32>, vector<16x12xf32> -> vector<16x12xf32>
    %63 = vector.extract_strided_slice %30 {offsets = [0, 24], sizes = [16, 12], strides = [1, 1]} : vector<16x144xf32> to vector<16x12xf32>
    %64 = vector.extract_strided_slice %30 {offsets = [0, 72], sizes = [16, 12], strides = [1, 1]} : vector<16x144xf32> to vector<16x12xf32>
    %65 = vector.extract_strided_slice %30 {offsets = [0, 120], sizes = [16, 12], strides = [1, 1]} : vector<16x144xf32> to vector<16x12xf32>
    %cst_25 = arith.constant dense<0.000000e+00> : vector<16x16xf32>
    %66 = tpu.matmul %63, %64, %cst_25 {dimension_numbers = #tpu.dot_dimension_numbers<[1], [1], [0], [0], [0, 0, 1, 0], [], []>} : vector<16x12xf32>, vector<16x12xf32>, vector<16x16xf32> -> vector<16x16xf32>
    %cst_26 = arith.constant 0.288675129 : f32
    %67 = vector.broadcast %cst_26 : f32 to vector<16x16xf32>
    %68 = arith.mulf %66, %67 : vector<16x16xf32>
    %cst_27 = arith.constant dense<0xFF800000> : vector<16xf32>
    %69 = vector.multi_reduction <maximumf>, %68, %cst_27 [1] : vector<16x16xf32> to vector<16xf32>
    %70 = vector.shape_cast %69 : vector<16xf32> to vector<16x1xf32>
    %71 = vector.broadcast %70 : vector<16x1xf32> to vector<16x16xf32>
    %72 = arith.subf %68, %71 : vector<16x16xf32>
    %73 = math.exp %72 : vector<16x16xf32>
    %cst_28 = arith.constant dense<0.000000e+00> : vector<16xf32>
    %74 = vector.multi_reduction <add>, %73, %cst_28 [1] : vector<16x16xf32> to vector<16xf32>
    %75 = vector.shape_cast %74 : vector<16xf32> to vector<16x1xf32>
    %76 = vector.broadcast %75 : vector<16x1xf32> to vector<16x16xf32>
    %77 = arith.divf %73, %76 : vector<16x16xf32>
    %cst_29 = arith.constant dense<0.000000e+00> : vector<16x12xf32>
    %78 = tpu.matmul %77, %65, %cst_29 {dimension_numbers = #tpu.dot_dimension_numbers<[1], [0], [0], [1], [0, 0, 1, 1], [], []>} : vector<16x16xf32>, vector<16x12xf32>, vector<16x12xf32> -> vector<16x12xf32>
    %79 = vector.extract_strided_slice %30 {offsets = [0, 36], sizes = [16, 12], strides = [1, 1]} : vector<16x144xf32> to vector<16x12xf32>
    %80 = vector.extract_strided_slice %30 {offsets = [0, 84], sizes = [16, 12], strides = [1, 1]} : vector<16x144xf32> to vector<16x12xf32>
    %81 = vector.extract_strided_slice %30 {offsets = [0, 132], sizes = [16, 12], strides = [1, 1]} : vector<16x144xf32> to vector<16x12xf32>
    %cst_30 = arith.constant dense<0.000000e+00> : vector<16x16xf32>
    %82 = tpu.matmul %79, %80, %cst_30 {dimension_numbers = #tpu.dot_dimension_numbers<[1], [1], [0], [0], [0, 0, 1, 0], [], []>} : vector<16x12xf32>, vector<16x12xf32>, vector<16x16xf32> -> vector<16x16xf32>
    %cst_31 = arith.constant 0.288675129 : f32
    %83 = vector.broadcast %cst_31 : f32 to vector<16x16xf32>
    %84 = arith.mulf %82, %83 : vector<16x16xf32>
    %cst_32 = arith.constant dense<0xFF800000> : vector<16xf32>
    %85 = vector.multi_reduction <maximumf>, %84, %cst_32 [1] : vector<16x16xf32> to vector<16xf32>
    %86 = vector.shape_cast %85 : vector<16xf32> to vector<16x1xf32>
    %87 = vector.broadcast %86 : vector<16x1xf32> to vector<16x16xf32>
    %88 = arith.subf %84, %87 : vector<16x16xf32>
    %89 = math.exp %88 : vector<16x16xf32>
    %cst_33 = arith.constant dense<0.000000e+00> : vector<16xf32>
    %90 = vector.multi_reduction <add>, %89, %cst_33 [1] : vector<16x16xf32> to vector<16xf32>
    %91 = vector.shape_cast %90 : vector<16xf32> to vector<16x1xf32>
    %92 = vector.broadcast %91 : vector<16x1xf32> to vector<16x16xf32>
    %93 = arith.divf %89, %92 : vector<16x16xf32>
    %cst_34 = arith.constant dense<0.000000e+00> : vector<16x12xf32>
    %94 = tpu.matmul %93, %81, %cst_34 {dimension_numbers = #tpu.dot_dimension_numbers<[1], [0], [0], [1], [0, 0, 1, 1], [], []>} : vector<16x16xf32>, vector<16x12xf32>, vector<16x12xf32> -> vector<16x12xf32>
    %95 = tpu.concatenate %46, %62, %78, %94 in 1 : vector<16x12xf32>, vector<16x12xf32>, vector<16x12xf32>, vector<16x12xf32> -> vector<16x48xf32>
    %c0_35 = arith.constant 0 : index
    %c0_36 = arith.constant 0 : index
    %96 = vector.load %arg6[%c0_35, %c0_36] : memref<48x48xf32, #tpu.memory_space<vmem>>, vector<48x48xf32>
    %cst_37 = arith.constant dense<0.000000e+00> : vector<16x48xf32>
    %97 = tpu.matmul %95, %96, %cst_37 {dimension_numbers = #tpu.dot_dimension_numbers<[1], [0], [0], [1], [0, 0, 1, 1], [], []>} : vector<16x48xf32>, vector<48x48xf32>, vector<16x48xf32> -> vector<16x48xf32>
    %c0_38 = arith.constant 0 : index
    %c0_39 = arith.constant 0 : index
    %98 = vector.load %arg7[%c0_38, %c0_39] : memref<1x48xf32, #tpu.memory_space<vmem>>, vector<1x48xf32>
    %99 = vector.broadcast %98 : vector<1x48xf32> to vector<16x48xf32>
    %100 = arith.addf %97, %99 : vector<16x48xf32>
    %101 = arith.addf %100, %1 : vector<16x48xf32>
    %c0_40 = arith.constant 0 : index
    %c0_41 = arith.constant 0 : index
    %102 = vector.load %arg8[%c0_40, %c0_41] : memref<1x48xf32, #tpu.memory_space<vmem>>, vector<1x48xf32>
    %c0_42 = arith.constant 0 : index
    %c0_43 = arith.constant 0 : index
    %103 = vector.load %arg9[%c0_42, %c0_43] : memref<1x48xf32, #tpu.memory_space<vmem>>, vector<1x48xf32>
    %cst_44 = arith.constant dense<0.000000e+00> : vector<16xf32>
    %104 = vector.multi_reduction <add>, %101, %cst_44 [1] : vector<16x48xf32> to vector<16xf32>
    %105 = vector.shape_cast %104 : vector<16xf32> to vector<16x1xf32>
    %cst_45 = arith.constant 4.800000e+01 : f32
    %106 = vector.broadcast %cst_45 : f32 to vector<16x1xf32>
    %107 = arith.divf %105, %106 : vector<16x1xf32>
    %108 = vector.broadcast %107 : vector<16x1xf32> to vector<16x48xf32>
    %109 = arith.subf %101, %108 : vector<16x48xf32>
    %110 = arith.mulf %109, %109 : vector<16x48xf32>
    %cst_46 = arith.constant dense<0.000000e+00> : vector<16xf32>
    %111 = vector.multi_reduction <add>, %110, %cst_46 [1] : vector<16x48xf32> to vector<16xf32>
    %112 = vector.shape_cast %111 : vector<16xf32> to vector<16x1xf32>
    %cst_47 = arith.constant 4.800000e+01 : f32
    %113 = vector.broadcast %cst_47 : f32 to vector<16x1xf32>
    %114 = arith.divf %112, %113 : vector<16x1xf32>
    %115 = vector.broadcast %107 : vector<16x1xf32> to vector<16x48xf32>
    %116 = arith.subf %101, %115 : vector<16x48xf32>
    %cst_48 = arith.constant 9.99999997E-7 : f32
    %117 = vector.broadcast %cst_48 : f32 to vector<16x1xf32>
    %118 = arith.addf %114, %117 : vector<16x1xf32>
    %119 = math.rsqrt %118 : vector<16x1xf32>
    %120 = vector.broadcast %119 : vector<16x1xf32> to vector<16x48xf32>
    %121 = arith.mulf %116, %120 : vector<16x48xf32>
    %122 = vector.broadcast %102 : vector<1x48xf32> to vector<16x48xf32>
    %123 = arith.mulf %121, %122 : vector<16x48xf32>
    %124 = vector.broadcast %103 : vector<1x48xf32> to vector<16x48xf32>
    %125 = arith.addf %123, %124 : vector<16x48xf32>
    %c0_49 = arith.constant 0 : index
    %c0_50 = arith.constant 0 : index
    %126 = vector.load %arg10[%c0_49, %c0_50] : memref<48x192xf32, #tpu.memory_space<vmem>>, vector<48x192xf32>
    %cst_51 = arith.constant dense<0.000000e+00> : vector<16x192xf32>
    %127 = tpu.matmul %125, %126, %cst_51 {dimension_numbers = #tpu.dot_dimension_numbers<[1], [0], [0], [1], [0, 0, 1, 1], [], []>} : vector<16x48xf32>, vector<48x192xf32>, vector<16x192xf32> -> vector<16x192xf32>
    %c0_52 = arith.constant 0 : index
    %c0_53 = arith.constant 0 : index
    %128 = vector.load %arg11[%c0_52, %c0_53] : memref<1x192xf32, #tpu.memory_space<vmem>>, vector<1x192xf32>
    %129 = vector.broadcast %128 : vector<1x192xf32> to vector<16x192xf32>
    %130 = arith.addf %127, %129 : vector<16x192xf32>
    %cst_54 = arith.constant 5.000000e-01 : f32
    %131 = vector.broadcast %cst_54 : f32 to vector<16x192xf32>
    %132 = arith.mulf %131, %130 : vector<16x192xf32>
    %cst_55 = arith.constant 0.707106769 : f32
    %133 = vector.broadcast %cst_55 : f32 to vector<16x192xf32>
    %134 = arith.mulf %130, %133 : vector<16x192xf32>
    %135 = math.erf %134 : vector<16x192xf32>
    %cst_56 = arith.constant 1.000000e+00 : f32
    %136 = vector.broadcast %cst_56 : f32 to vector<16x192xf32>
    %137 = arith.addf %136, %135 : vector<16x192xf32>
    %138 = arith.mulf %132, %137 : vector<16x192xf32>
    %c0_57 = arith.constant 0 : index
    %c0_58 = arith.constant 0 : index
    %139 = vector.load %arg12[%c0_57, %c0_58] : memref<192x48xf32, #tpu.memory_space<vmem>>, vector<192x48xf32>
    %cst_59 = arith.constant dense<0.000000e+00> : vector<16x48xf32>
    %140 = tpu.matmul %138, %139, %cst_59 {dimension_numbers = #tpu.dot_dimension_numbers<[1], [0], [0], [1], [0, 0, 1, 1], [], []>} : vector<16x192xf32>, vector<192x48xf32>, vector<16x48xf32> -> vector<16x48xf32>
    %c0_60 = arith.constant 0 : index
    %c0_61 = arith.constant 0 : index
    %141 = vector.load %arg13[%c0_60, %c0_61] : memref<1x48xf32, #tpu.memory_space<vmem>>, vector<1x48xf32>
    %142 = vector.broadcast %141 : vector<1x48xf32> to vector<16x48xf32>
    %143 = arith.addf %140, %142 : vector<16x48xf32>
    %144 = arith.addf %143, %101 : vector<16x48xf32>
    %c0_62 = arith.constant 0 : index
    %c0_63 = arith.constant 0 : index
    %c0_64 = arith.constant 0 : index
    %145 = vector.load %arg14[%c0_62, %c0_63, %c0_64] : memref<1x16x48xf32, #tpu.memory_space<vmem>>, vector<1x16x48xf32>
    %146 = vector.shape_cast %145 : vector<1x16x48xf32> to vector<16x48xf32>
    %147 = vector.shape_cast %144 : vector<16x48xf32> to vector<1x16x48xf32>
    tpu.vector_store %arg14[%c0_62, %c0_63, %c0_64], %147 {strides = array<i32>} : memref<1x16x48xf32, #tpu.memory_space<vmem>>, vector<1x16x48xf32>,
    return
  }
  func.func @transform_0(%arg0: i32) -> (i32, i32, i32) {
    %c0_i32 = arith.constant 0 : i32
    %c0_i32_0 = arith.constant 0 : i32
    %c0_i32_1 = arith.constant 0 : i32
    return %arg0, %c0_i32, %c0_i32_0 : i32, i32, i32
  }
  func.func @transform_1(%arg0: i32) -> (i32, i32) {
    %c0_i32 = arith.constant 0 : i32
    %c0_i32_0 = arith.constant 0 : i32
    %c0_i32_1 = arith.constant 0 : i32
    return %c0_i32, %c0_i32_0 : i32, i32
  }
  func.func @transform_2(%arg0: i32) -> (i32, i32) {
    %c0_i32 = arith.constant 0 : i32
    %c0_i32_0 = arith.constant 0 : i32
    %c0_i32_1 = arith.constant 0 : i32
    return %c0_i32, %c0_i32_0 : i32, i32
  }
  func.func @transform_3(%arg0: i32) -> (i32, i32) {
    %c0_i32 = arith.constant 0 : i32
    %c0_i32_0 = arith.constant 0 : i32
    %c0_i32_1 = arith.constant 0 : i32
    return %c0_i32, %c0_i32_0 : i32, i32
  }
  func.func @transform_4(%arg0: i32) -> (i32, i32) {
    %c0_i32 = arith.constant 0 : i32
    %c0_i32_0 = arith.constant 0 : i32
    %c0_i32_1 = arith.constant 0 : i32
    return %c0_i32, %c0_i32_0 : i32, i32
  }
  func.func @transform_5(%arg0: i32) -> (i32, i32) {
    %c0_i32 = arith.constant 0 : i32
    %c0_i32_0 = arith.constant 0 : i32
    %c0_i32_1 = arith.constant 0 : i32
    return %c0_i32, %c0_i32_0 : i32, i32
  }
  func.func @transform_6(%arg0: i32) -> (i32, i32) {
    %c0_i32 = arith.constant 0 : i32
    %c0_i32_0 = arith.constant 0 : i32
    %c0_i32_1 = arith.constant 0 : i32
    return %c0_i32, %c0_i32_0 : i32, i32
  }
  func.func @transform_7(%arg0: i32) -> (i32, i32) {
    %c0_i32 = arith.constant 0 : i32
    %c0_i32_0 = arith.constant 0 : i32
    %c0_i32_1 = arith.constant 0 : i32
    return %c0_i32, %c0_i32_0 : i32, i32
  }
  func.func @transform_8(%arg0: i32) -> (i32, i32) {
    %c0_i32 = arith.constant 0 : i32
    %c0_i32_0 = arith.constant 0 : i32
    %c0_i32_1 = arith.constant 0 : i32
    return %c0_i32, %c0_i32_0 : i32, i32
  }
  func.func @transform_9(%arg0: i32) -> (i32, i32) {
    %c0_i32 = arith.constant 0 : i32
    %c0_i32_0 = arith.constant 0 : i32
    %c0_i32_1 = arith.constant 0 : i32
    return %c0_i32, %c0_i32_0 : i32, i32
  }
  func.func @transform_10(%arg0: i32) -> (i32, i32) {
    %c0_i32 = arith.constant 0 : i32
    %c0_i32_0 = arith.constant 0 : i32
    %c0_i32_1 = arith.constant 0 : i32
    return %c0_i32, %c0_i32_0 : i32, i32
  }
  func.func @transform_11(%arg0: i32) -> (i32, i32) {
    %c0_i32 = arith.constant 0 : i32
    %c0_i32_0 = arith.constant 0 : i32
    %c0_i32_1 = arith.constant 0 : i32
    return %c0_i32, %c0_i32_0 : i32, i32
  }
  func.func @transform_12(%arg0: i32) -> (i32, i32) {
    %c0_i32 = arith.constant 0 : i32
    %c0_i32_0 = arith.constant 0 : i32
    %c0_i32_1 = arith.constant 0 : i32
    return %c0_i32, %c0_i32_0 : i32, i32
  }
  func.func @transform_13(%arg0: i32) -> (i32, i32, i32) {
    %c0_i32 = arith.constant 0 : i32
    %c0_i32_0 = arith.constant 0 : i32
    %c0_i32_1 = arith.constant 0 : i32
    return %arg0, %c0_i32, %c0_i32_0 : i32, i32, i32
  }
}

module attributes {stable_mosaic.version = 11 : i64} {
  func.func @_fused_linear_kernel(%arg0: i32, %arg1: memref<32x48xf32, #tpu.memory_space<vmem>>, %arg2: memref<1x48xf32, #tpu.memory_space<vmem>>, %arg3: memref<1x48xf32, #tpu.memory_space<vmem>>, %arg4: memref<48x96xf32, #tpu.memory_space<vmem>>, %arg5: memref<1x96xf32, #tpu.memory_space<vmem>>, %arg6: memref<32x96xf32, #tpu.memory_space<vmem>>) attributes {dimension_semantics = [#tpu.dimension_semantics<arbitrary>], iteration_bounds = array<i64: 1>, scalar_prefetch = 0 : i64, scratch_operands = 0 : i64, tpu.core_type = #tpu.core_type<tc>, window_params = [{pipeline_mode = #tpu.pipeline_mode<synchronous>, transform_indices = @transform_0, window_bounds = array<i64: 32, 48>}, {pipeline_mode = #tpu.pipeline_mode<synchronous>, transform_indices = @transform_1, window_bounds = array<i64: 1, 48>}, {pipeline_mode = #tpu.pipeline_mode<synchronous>, transform_indices = @transform_2, window_bounds = array<i64: 1, 48>}, {pipeline_mode = #tpu.pipeline_mode<synchronous>, transform_indices = @transform_3, window_bounds = array<i64: 48, 96>}, {pipeline_mode = #tpu.pipeline_mode<synchronous>, transform_indices = @transform_4, window_bounds = array<i64: 1, 96>}, {pipeline_mode = #tpu.pipeline_mode<synchronous>, transform_indices = @transform_5, window_bounds = array<i64: 32, 96>}]} {
    %c0 = arith.constant 0 : index
    %c0_0 = arith.constant 0 : index
    %0 = vector.load %arg1[%c0, %c0_0] : memref<32x48xf32, #tpu.memory_space<vmem>>, vector<32x48xf32>
    %c0_1 = arith.constant 0 : index
    %c0_2 = arith.constant 0 : index
    %1 = vector.load %arg2[%c0_1, %c0_2] : memref<1x48xf32, #tpu.memory_space<vmem>>, vector<1x48xf32>
    %c0_3 = arith.constant 0 : index
    %c0_4 = arith.constant 0 : index
    %2 = vector.load %arg3[%c0_3, %c0_4] : memref<1x48xf32, #tpu.memory_space<vmem>>, vector<1x48xf32>
    %cst = arith.constant dense<0.000000e+00> : vector<32xf32>
    %3 = vector.multi_reduction <add>, %0, %cst [1] : vector<32x48xf32> to vector<32xf32>
    %4 = vector.shape_cast %3 : vector<32xf32> to vector<32x1xf32>
    %cst_5 = arith.constant 4.800000e+01 : f32
    %5 = vector.broadcast %cst_5 : f32 to vector<32x1xf32>
    %6 = arith.divf %4, %5 : vector<32x1xf32>
    %7 = vector.broadcast %6 : vector<32x1xf32> to vector<32x48xf32>
    %8 = arith.subf %0, %7 : vector<32x48xf32>
    %9 = arith.mulf %8, %8 : vector<32x48xf32>
    %cst_6 = arith.constant dense<0.000000e+00> : vector<32xf32>
    %10 = vector.multi_reduction <add>, %9, %cst_6 [1] : vector<32x48xf32> to vector<32xf32>
    %11 = vector.shape_cast %10 : vector<32xf32> to vector<32x1xf32>
    %cst_7 = arith.constant 4.800000e+01 : f32
    %12 = vector.broadcast %cst_7 : f32 to vector<32x1xf32>
    %13 = arith.divf %11, %12 : vector<32x1xf32>
    %14 = vector.broadcast %6 : vector<32x1xf32> to vector<32x48xf32>
    %15 = arith.subf %0, %14 : vector<32x48xf32>
    %cst_8 = arith.constant 9.99999997E-7 : f32
    %16 = vector.broadcast %cst_8 : f32 to vector<32x1xf32>
    %17 = arith.addf %13, %16 : vector<32x1xf32>
    %18 = math.rsqrt %17 : vector<32x1xf32>
    %19 = vector.broadcast %18 : vector<32x1xf32> to vector<32x48xf32>
    %20 = arith.mulf %15, %19 : vector<32x48xf32>
    %21 = vector.broadcast %1 : vector<1x48xf32> to vector<32x48xf32>
    %22 = arith.mulf %20, %21 : vector<32x48xf32>
    %23 = vector.broadcast %2 : vector<1x48xf32> to vector<32x48xf32>
    %24 = arith.addf %22, %23 : vector<32x48xf32>
    %c0_9 = arith.constant 0 : index
    %c0_10 = arith.constant 0 : index
    %25 = vector.load %arg4[%c0_9, %c0_10] : memref<48x96xf32, #tpu.memory_space<vmem>>, vector<48x96xf32>
    %cst_11 = arith.constant dense<0.000000e+00> : vector<32x96xf32>
    %26 = tpu.matmul %24, %25, %cst_11 {dimension_numbers = #tpu.dot_dimension_numbers<[1], [0], [0], [1], [0, 0, 1, 1], [], []>} : vector<32x48xf32>, vector<48x96xf32>, vector<32x96xf32> -> vector<32x96xf32>
    %c0_12 = arith.constant 0 : index
    %c0_13 = arith.constant 0 : index
    %27 = vector.load %arg5[%c0_12, %c0_13] : memref<1x96xf32, #tpu.memory_space<vmem>>, vector<1x96xf32>
    %28 = vector.broadcast %27 : vector<1x96xf32> to vector<32x96xf32>
    %29 = arith.addf %26, %28 : vector<32x96xf32>
    %c0_14 = arith.constant 0 : index
    %c0_15 = arith.constant 0 : index
    %30 = vector.load %arg6[%c0_14, %c0_15] : memref<32x96xf32, #tpu.memory_space<vmem>>, vector<32x96xf32>
    tpu.vector_store %arg6[%c0_14, %c0_15], %29 {strides = array<i32>} : memref<32x96xf32, #tpu.memory_space<vmem>>, vector<32x96xf32>,
    return
  }
  func.func @transform_0(%arg0: i32) -> (i32, i32) {
    %c0_i32 = arith.constant 0 : i32
    %c0_i32_0 = arith.constant 0 : i32
    %c0_i32_1 = arith.constant 0 : i32
    return %c0_i32, %c0_i32_0 : i32, i32
  }
  func.func @transform_1(%arg0: i32) -> (i32, i32) {
    %c0_i32 = arith.constant 0 : i32
    %c0_i32_0 = arith.constant 0 : i32
    %c0_i32_1 = arith.constant 0 : i32
    return %c0_i32, %c0_i32_0 : i32, i32
  }
  func.func @transform_2(%arg0: i32) -> (i32, i32) {
    %c0_i32 = arith.constant 0 : i32
    %c0_i32_0 = arith.constant 0 : i32
    %c0_i32_1 = arith.constant 0 : i32
    return %c0_i32, %c0_i32_0 : i32, i32
  }
  func.func @transform_3(%arg0: i32) -> (i32, i32) {
    %c0_i32 = arith.constant 0 : i32
    %c0_i32_0 = arith.constant 0 : i32
    %c0_i32_1 = arith.constant 0 : i32
    return %c0_i32, %c0_i32_0 : i32, i32
  }
  func.func @transform_4(%arg0: i32) -> (i32, i32) {
    %c0_i32 = arith.constant 0 : i32
    %c0_i32_0 = arith.constant 0 : i32
    %c0_i32_1 = arith.constant 0 : i32
    return %c0_i32, %c0_i32_0 : i32, i32
  }
  func.func @transform_5(%arg0: i32) -> (i32, i32) {
    %c0_i32 = arith.constant 0 : i32
    %c0_i32_0 = arith.constant 0 : i32
    %c0_i32_1 = arith.constant 0 : i32
    return %c0_i32, %c0_i32_0 : i32, i32
  }
}

</mosaic_0001>

<llo_original>
// kernel: stprivacy_forward.6
$region0: #{stprivacy_forward.6}
  #allocation0 [shape = 'u32[]', space=smem, size = 0x4, offset = 0x4, fixed_abs, tag = 'smem constant byte address 0x4 - core index']
  #allocation1 [shape = 'u32[72,128]{1,0:T(1,128)}', space=vmem, size = 0x9000, scoped, tag = 'internal scratch']
  %s0 = inlined_call_operand.vmem [shape: f32[64,96], index: 0, kind: input, shape index: {}]
  %s1 = inlined_call_operand.vmem [shape: f32[96,48], index: 1, kind: input, shape index: {}]
  %s2 = inlined_call_operand.vmem [shape: f32[1,48], index: 2, kind: input, shape index: {}]
  %s3 = inlined_call_operand.vmem [shape: f32[64,48], index: 3, kind: output, shape index: {}]
  %s4 = sld [smem:[#allocation0]]
  $region22: #{stprivacy_forward.6} parent=0
    _
  %s6 = ssub.s32 1, %s4
  %s7 = scalar_select 0, %s6, %s4
  // Predicated region
  $region2: #{stprivacy_forward.6} parent=0 // pred_check
    _
  $region3: #{stprivacy_forward.6} parent=0 // pred_check_branch
    %9 = sbr.rel (0) target = $region5
  $region4: #{stprivacy_forward.6} parent=0 // pred_region
    _
  $region5: #{stprivacy_forward.6} parent=0 // pred_fallthru
    _
  // Predicated region
  $region6: #{stprivacy_forward.6} parent=0 // pred_check
    _
  $region7: #{stprivacy_forward.6} parent=0 // pred_check_branch
    %11 = sbr.rel (0) target = $region9
  $region8: #{stprivacy_forward.6} parent=0 // pred_region
    _
  $region9: #{stprivacy_forward.6} parent=0 // pred_fallthru
    _
  // Predicated region
  $region10: #{stprivacy_forward.6} parent=0 // pred_check
    _
  $region11: #{stprivacy_forward.6} parent=0 // pred_check_branch
    %13 = sbr.rel (0) target = $region13
  $region12: #{stprivacy_forward.6} parent=0 // pred_region
    _
  $region13: #{stprivacy_forward.6} parent=0 // pred_fallthru
    _
  %v14 = vld [vmem:[%s0] sm:$0xff]
  %v15 = vld [vmem:[%s0 + $0x8] sm:$0xff]
  %v16 = vld [vmem:[%s0 + $0x10] sm:$0xff]
  %v17 = vld [vmem:[%s0 + $0x18] sm:$0xff]
  %v18 = vld [vmem:[%s0 + $0x20] sm:$0xff]
  %v19 = vld [vmem:[%s0 + $0x28] sm:$0xff]
  %v20 = vld [vmem:[%s0 + $0x30] sm:$0xff]
  %v21 = vld [vmem:[%s0 + $0x38] sm:$0xff]
  %v22 = vld [vmem:[%s1] sm:$0xff]
  %v23 = vld [vmem:[%s1 + $0x8] sm:$0xff]
  %v24 = vld [vmem:[%s1 + $0x10] sm:$0xff]
  %v25 = vld [vmem:[%s1 + $0x18] sm:$0xff]
  %v26 = vld [vmem:[%s1 + $0x20] sm:$0xff]
  %v27 = vld [vmem:[%s1 + $0x28] sm:$0xff]
  %v28 = vld [vmem:[%s1 + $0x30] sm:$0xff]
  %v29 = vld [vmem:[%s1 + $0x38] sm:$0xff]
  %v30 = vld [vmem:[%s1 + $0x40] sm:$0xff]
  %v31 = vld [vmem:[%s1 + $0x48] sm:$0xff]
  %v32 = vld [vmem:[%s1 + $0x50] sm:$0xff]
  %v33 = vld [vmem:[%s1 + $0x58] sm:$0xff]
  %v34 = vld [vmem:[%s2] sm:$0x1]
  %v36 = vperm.slane %v34, 0
  %vm38 = vcmask 785408
  %v40 = vsel %vm38, %v14, 0
  %v43 = vsel %vm38, %v15, 0
  %v46 = vsel %vm38, %v16, 0
  %v49 = vsel %vm38, %v17, 0
  %v52 = vsel %vm38, %v18, 0
  %v55 = vsel %vm38, %v19, 0
  %v58 = vsel %vm38, %v20, 0
  %v61 = vsel %vm38, %v21, 0
  %63 = vmatpush.msra.mxu0 0.0
  %64 = vmatpush.msra.mxu0 0.0
  %65 = vmatpush.msra.mxu0 0.0
  %66 = vmatpush.msra.mxu0 0.0
  %67 = vmatpush.msra.mxu0 %v33
  %68 = vmatpush.msra.mxu0 %v32
  %69 = vmatpush.msra.mxu0 %v31
  %70 = vmatpush.msra.mxu0 %v30
  %71 = vmatpush.msra.mxu0 %v29
  %72 = vmatpush.msra.mxu0 %v28
  %73 = vmatpush.msra.mxu0 %v27
  %74 = vmatpush.msra.mxu0 %v26
  %75 = vmatpush.msra.mxu0 %v25
  %76 = vmatpush.msra.mxu0 %v24
  %77 = vmatpush.msra.mxu0 %v23
  %78 = vmatpush.msra.mxu0 %v22
  %79 = vmatmul.f32.gmra.mxu0 %v40
  %v80 = vpop.f32.mrf.mxu0
  %v81 = vadd.f32 %v36, %v80
  %82 = vmatmul.f32.gmra.mxu0 %v43
  %v83 = vpop.f32.mrf.mxu0
  %v84 = vadd.f32 %v36, %v83
  %85 = vmatmul.f32.gmra.mxu0 %v46
  %v86 = vpop.f32.mrf.mxu0
  %v87 = vadd.f32 %v36, %v86
  %88 = vmatmul.f32.gmra.mxu0 %v49
  %v89 = vpop.f32.mrf.mxu0
  %v90 = vadd.f32 %v36, %v89
  %91 = vmatmul.f32.gmra.mxu0 %v52
  %v92 = vpop.f32.mrf.mxu0
  %v93 = vadd.f32 %v36, %v92
  %94 = vmatmul.f32.gmra.mxu0 %v55
  %v95 = vpop.f32.mrf.mxu0
  %v96 = vadd.f32 %v36, %v95
  %97 = vmatmul.f32.gmra.mxu0 %v58
  %v98 = vpop.f32.mrf.mxu0
  %v99 = vadd.f32 %v36, %v98
  %100 = vmatmul.f32.gmra.mxu0 %v61
  %v101 = vpop.f32.mrf.mxu0
  %v102 = vadd.f32 %v36, %v101
  %103 = vdwg.mxu0
  %vm104 = vcmask 392192
  %105 = vst.msk [vmem:[%s3] sm:$0xff] %vm104, %v81
  %106 = vst.msk [vmem:[%s3 + $0x8] sm:$0xff] %vm104, %v84
  %107 = vst.msk [vmem:[%s3 + $0x10] sm:$0xff] %vm104, %v87
  %108 = vst.msk [vmem:[%s3 + $0x18] sm:$0xff] %vm104, %v90
  %109 = vst.msk [vmem:[%s3 + $0x20] sm:$0xff] %vm104, %v93
  %110 = vst.msk [vmem:[%s3 + $0x28] sm:$0xff] %vm104, %v96
  %111 = vst.msk [vmem:[%s3 + $0x30] sm:$0xff] %vm104, %v99
  %112 = vst.msk [vmem:[%s3 + $0x38] sm:$0xff] %vm104, %v102
  // Predicated region
  $region14: #{stprivacy_forward.6} parent=0 // pred_check
    _
  $region15: #{stprivacy_forward.6} parent=0 // pred_check_branch
    %114 = sbr.rel (0) target = $region17
  $region16: #{stprivacy_forward.6} parent=0 // pred_region
    _
  $region17: #{stprivacy_forward.6} parent=0 // pred_fallthru
    _
  // Predicated region
  $region18: #{stprivacy_forward.6} parent=0 // pred_check
    _
  $region19: #{stprivacy_forward.6} parent=0 // pred_check_branch
    %116 = sbr.rel (0) target = $region21
  $region20: #{stprivacy_forward.6} parent=0 // pred_region
    _
  $region21: #{stprivacy_forward.6} parent=0 // pred_fallthru
    _

// kernel: stprivacy_forward.8
$region0: #{stprivacy_forward.8}
  #allocation0 [shape = 'u32[]', space=smem, size = 0x4, offset = 0x4, fixed_abs, tag = 'smem constant byte address 0x4 - core index']
  #allocation1 [shape = 'u32[72,128]{1,0:T(1,128)}', space=vmem, size = 0x9000, scoped, tag = 'internal scratch']
  %s0 = inlined_call_operand.vmem [shape: f32[64,48], index: 0, kind: input, shape index: {}]
  %s1 = inlined_call_operand.vmem [shape: f32[1,48], index: 1, kind: input, shape index: {}]
  %s2 = inlined_call_operand.vmem [shape: f32[1,48], index: 2, kind: input, shape index: {}]
  %s3 = inlined_call_operand.vmem [shape: f32[48,48], index: 3, kind: input, shape index: {}]
  %s4 = inlined_call_operand.vmem [shape: f32[1,48], index: 4, kind: input, shape index: {}]
  %s5 = inlined_call_operand.vmem [shape: f32[64,48], index: 5, kind: output, shape index: {}]
  %s6 = sld [smem:[#allocation0]]
  $region30: #{stprivacy_forward.8} parent=0
    _
  %s8 = ssub.s32 1, %s6
  %s9 = scalar_select 0, %s8, %s6
  // Predicated region
  $region2: #{stprivacy_forward.8} parent=0 // pred_check
    _
  $region3: #{stprivacy_forward.8} parent=0 // pred_check_branch
    %11 = sbr.rel (0) target = $region5
  $region4: #{stprivacy_forward.8} parent=0 // pred_region
    _
  $region5: #{stprivacy_forward.8} parent=0 // pred_fallthru
    _
  // Predicated region
  $region6: #{stprivacy_forward.8} parent=0 // pred_check
    _
  $region7: #{stprivacy_forward.8} parent=0 // pred_check_branch
    %13 = sbr.rel (0) target = $region9
  $region8: #{stprivacy_forward.8} parent=0 // pred_region
    _
  $region9: #{stprivacy_forward.8} parent=0 // pred_fallthru
    _
  // Predicated region
  $region10: #{stprivacy_forward.8} parent=0 // pred_check
    _
  $region11: #{stprivacy_forward.8} parent=0 // pred_check_branch
    %15 = sbr.rel (0) target = $region13
  $region12: #{stprivacy_forward.8} parent=0 // pred_region
    _
  $region13: #{stprivacy_forward.8} parent=0 // pred_fallthru
    _
  // Predicated region
  $region14: #{stprivacy_forward.8} parent=0 // pred_check
    _
  $region15: #{stprivacy_forward.8} parent=0 // pred_check_branch
    %17 = sbr.rel (0) target = $region17
  $region16: #{stprivacy_forward.8} parent=0 // pred_region
    _
  $region17: #{stprivacy_forward.8} parent=0 // pred_fallthru
    _
  // Predicated region
  $region18: #{stprivacy_forward.8} parent=0 // pred_check
    _
  $region19: #{stprivacy_forward.8} parent=0 // pred_check_branch
    %19 = sbr.rel (0) target = $region21
  $region20: #{stprivacy_forward.8} parent=0 // pred_region
    _
  $region21: #{stprivacy_forward.8} parent=0 // pred_fallthru
    _
  %v20 = vld [vmem:[%s0] sm:$0xff]
  %v21 = vld [vmem:[%s0 + $0x8] sm:$0xff]
  %v22 = vld [vmem:[%s0 + $0x10] sm:$0xff]
  %v23 = vld [vmem:[%s0 + $0x18] sm:$0xff]
  %v24 = vld [vmem:[%s0 + $0x20] sm:$0xff]
  %v25 = vld [vmem:[%s0 + $0x28] sm:$0xff]
  %v26 = vld [vmem:[%s0 + $0x30] sm:$0xff]
  %v27 = vld [vmem:[%s0 + $0x38] sm:$0xff]
  %v28 = vld [vmem:[%s1] sm:$0x1]
  %v29 = vld [vmem:[%s2] sm:$0x1]
  %vm30 = vcmask 392192
  %v31 = vsel %vm30, %v20, 0.0
  %32 = vadd.xlane.f32.xlu0 %v31
  %v33 = vpop.xlane.xlu0 %32
  %v34 = vsel %vm30, %v21, 0.0
  %35 = vadd.xlane.f32.xlu0 %v34
  %v36 = vpop.xlane.xlu0 %35
  %v37 = vsel %vm30, %v22, 0.0
  %38 = vadd.xlane.f32.xlu0 %v37
  %v39 = vpop.xlane.xlu0 %38
  %v40 = vsel %vm30, %v23, 0.0
  %41 = vadd.xlane.f32.xlu0 %v40
  %v42 = vpop.xlane.xlu0 %41
  %v43 = vsel %vm30, %v24, 0.0
  %44 = vadd.xlane.f32.xlu0 %v43
  %v45 = vpop.xlane.xlu0 %44
  %v46 = vsel %vm30, %v25, 0.0
  %47 = vadd.xlane.f32.xlu0 %v46
  %v48 = vpop.xlane.xlu0 %47
  %v49 = vsel %vm30, %v26, 0.0
  %50 = vadd.xlane.f32.xlu0 %v49
  %v51 = vpop.xlane.xlu0 %50
  %v52 = vsel %vm30, %v27, 0.0
  %53 = vadd.xlane.f32.xlu0 %v52
  %v54 = vpop.xlane.xlu0 %53
  %v55 = vrcp.pop 48.0
  %v56 = vmul.f32 48.0, %v55
  %v57 = vsub.f32 1.0, %v56
  %v58 = vmul.f32 %v55, %v57
  %v59 = vadd.f32 %v55, %v58
  %vm60 = vweird.f32 %v55
  %v61 = vsel %vm60, %v55, %v59
  %v62 = vmul.f32 %v33, %v61
  %v63 = vmul.f32 %v36, %v61
  %v64 = vmul.f32 %v39, %v61
  %v65 = vmul.f32 %v42, %v61
  %v66 = vmul.f32 %v45, %v61
  %v67 = vmul.f32 %v48, %v61
  %v68 = vmul.f32 %v51, %v61
  %v69 = vmul.f32 %v54, %v61
  %v70 = vsub.f32 %v20, %v62
  %v71 = vsub.f32 %v21, %v63
  %v72 = vsub.f32 %v22, %v64
  %v73 = vsub.f32 %v23, %v65
  %v74 = vsub.f32 %v24, %v66
  %v75 = vsub.f32 %v25, %v67
  %v76 = vsub.f32 %v26, %v68
  %v77 = vsub.f32 %v27, %v69
  %v78 = vmul.f32 %v70, %v70
  %v79 = vmul.f32 %v71, %v71
  %v80 = vmul.f32 %v72, %v72
  %v81 = vmul.f32 %v73, %v73
  %v82 = vmul.f32 %v74, %v74
  %v83 = vmul.f32 %v75, %v75
  %v84 = vmul.f32 %v76, %v76
  %v85 = vmul.f32 %v77, %v77
  %v86 = vsel %vm30, %v78, 0.0
  %87 = vadd.xlane.f32.xlu0 %v86
  %v88 = vpop.xlane.xlu0 %87
  %v89 = vsel %vm30, %v79, 0.0
  %90 = vadd.xlane.f32.xlu0 %v89
  %v91 = vpop.xlane.xlu0 %90
  %v92 = vsel %vm30, %v80, 0.0
  %93 = vadd.xlane.f32.xlu0 %v92
  %v94 = vpop.xlane.xlu0 %93
  %v95 = vsel %vm30, %v81, 0.0
  %96 = vadd.xlane.f32.xlu0 %v95
  %v97 = vpop.xlane.xlu0 %96
  %v98 = vsel %vm30, %v82, 0.0
  %99 = vadd.xlane.f32.xlu0 %v98
  %v100 = vpop.xlane.xlu0 %99
  %v101 = vsel %vm30, %v83, 0.0
  %102 = vadd.xlane.f32.xlu0 %v101
  %v103 = vpop.xlane.xlu0 %102
  %v104 = vsel %vm30, %v84, 0.0
  %105 = vadd.xlane.f32.xlu0 %v104
  %v106 = vpop.xlane.xlu0 %105
  %v107 = vsel %vm30, %v85, 0.0
  %108 = vadd.xlane.f32.xlu0 %v107
  %v109 = vpop.xlane.xlu0 %108
  %v110 = vmul.f32 %v88, %v61
  %v111 = vmul.f32 %v91, %v61
  %v112 = vmul.f32 %v94, %v61
  %v113 = vmul.f32 %v97, %v61
  %v114 = vmul.f32 %v100, %v61
  %v115 = vmul.f32 %v103, %v61
  %v116 = vmul.f32 %v106, %v61
  %v117 = vmul.f32 %v109, %v61
  %v118 = vadd.f32 %v110, 1e-05
  %v119 = vadd.f32 %v111, 1e-05
  %v120 = vadd.f32 %v112, 1e-05
  %v121 = vadd.f32 %v113, 1e-05
  %v122 = vadd.f32 %v114, 1e-05
  %v123 = vadd.f32 %v115, 1e-05
  %v124 = vadd.f32 %v116, 1e-05
  %v125 = vadd.f32 %v117, 1e-05
  %v126 = vrsqrt.pop %v118
  %v127 = vmul.f32 %v126, %v118
  %v128 = vmul.f32 %v127, %v126
  %v129 = vmul.f32 0.5, %v128
  %v130 = vsub.f32 1.5, %v129
  %v131 = vmul.f32 %v126, %v130
  %vm132 = vweird.f32 %v118
  %vm133 = vweird.f32 %v126
  %vm134 = vmor %vm132, %vm133
  %v135 = vsel %vm134, %v126, %v131
  %v136 = vrsqrt.pop %v119
  %v137 = vmul.f32 %v136, %v119
  %v138 = vmul.f32 %v137, %v136
  %v139 = vmul.f32 0.5, %v138
  %v140 = vsub.f32 1.5, %v139
  %v141 = vmul.f32 %v136, %v140
  %vm142 = vweird.f32 %v119
  %vm143 = vweird.f32 %v136
  %vm144 = vmor %vm142, %vm143
  %v145 = vsel %vm144, %v136, %v141
  %v146 = vrsqrt.pop %v120
  %v147 = vmul.f32 %v146, %v120
  %v148 = vmul.f32 %v147, %v146
  %v149 = vmul.f32 0.5, %v148
  %v150 = vsub.f32 1.5, %v149
  %v151 = vmul.f32 %v146, %v150
  %vm152 = vweird.f32 %v120
  %vm153 = vweird.f32 %v146
  %vm154 = vmor %vm152, %vm153
  %v155 = vsel %vm154, %v146, %v151
  %v156 = vrsqrt.pop %v121
  %v157 = vmul.f32 %v156, %v121
  %v158 = vmul.f32 %v157, %v156
  %v159 = vmul.f32 0.5, %v158
  %v160 = vsub.f32 1.5, %v159
  %v161 = vmul.f32 %v156, %v160
  %vm162 = vweird.f32 %v121
  %vm163 = vweird.f32 %v156
  %vm164 = vmor %vm162, %vm163
  %v165 = vsel %vm164, %v156, %v161
  %v166 = vrsqrt.pop %v122
  %v167 = vmul.f32 %v166, %v122
  %v168 = vmul.f32 %v167, %v166
  %v169 = vmul.f32 0.5, %v168
  %v170 = vsub.f32 1.5, %v169
  %v171 = vmul.f32 %v166, %v170
  %vm172 = vweird.f32 %v122
  %vm173 = vweird.f32 %v166
  %vm174 = vmor %vm172, %vm173
  %v175 = vsel %vm174, %v166, %v171
  %v176 = vrsqrt.pop %v123
  %v177 = vmul.f32 %v176, %v123
  %v178 = vmul.f32 %v177, %v176
  %v179 = vmul.f32 0.5, %v178
  %v180 = vsub.f32 1.5, %v179
  %v181 = vmul.f32 %v176, %v180
  %vm182 = vweird.f32 %v123
  %vm183 = vweird.f32 %v176
  %vm184 = vmor %vm182, %vm183
  %v185 = vsel %vm184, %v176, %v181
  %v186 = vrsqrt.pop %v124
  %v187 = vmul.f32 %v186, %v124
  %v188 = vmul.f32 %v187, %v186
  %v189 = vmul.f32 0.5, %v188
  %v190 = vsub.f32 1.5, %v189
  %v191 = vmul.f32 %v186, %v190
  %vm192 = vweird.f32 %v124
  %vm193 = vweird.f32 %v186
  %vm194 = vmor %vm192, %vm193
  %v195 = vsel %vm194, %v186, %v191
  %v196 = vrsqrt.pop %v125
  %v197 = vmul.f32 %v196, %v125
  %v198 = vmul.f32 %v197, %v196
  %v199 = vmul.f32 0.5, %v198
  %v200 = vsub.f32 1.5, %v199
  %v201 = vmul.f32 %v196, %v200
  %vm202 = vweird.f32 %v125
  %vm203 = vweird.f32 %v196
  %vm204 = vmor %vm202, %vm203
  %v205 = vsel %vm204, %v196, %v201
  %v206 = vmul.f32 %v70, %v135
  %v207 = vmul.f32 %v71, %v145
  %v208 = vmul.f32 %v72, %v155
  %v209 = vmul.f32 %v73, %v165
  %v210 = vmul.f32 %v74, %v175
  %v211 = vmul.f32 %v75, %v185
  %v212 = vmul.f32 %v76, %v195
  %v213 = vmul.f32 %v77, %v205
  %v215 = vperm.slane %v28, 0
  %v217 = vmul.f32 %v206, %v215
  %v218 = vmul.f32 %v207, %v215
  %v219 = vmul.f32 %v208, %v215
  %v220 = vmul.f32 %v209, %v215
  %v221 = vmul.f32 %v210, %v215
  %v222 = vmul.f32 %v211, %v215
  %v223 = vmul.f32 %v212, %v215
  %v224 = vmul.f32 %v213, %v215
  %v226 = vperm.slane %v29, 0
  %v228 = vadd.f32 %v217, %v226
  %v229 = vadd.f32 %v218, %v226
  %v230 = vadd.f32 %v219, %v226
  %v231 = vadd.f32 %v220, %v226
  %v232 = vadd.f32 %v221, %v226
  %v233 = vadd.f32 %v222, %v226
  %v234 = vadd.f32 %v223, %v226
  %v235 = vadd.f32 %v224, %v226
  %v236 = vld [vmem:[%s3] sm:$0xff]
  %v237 = vld [vmem:[%s3 + $0x8] sm:$0xff]
  %v238 = vld [vmem:[%s3 + $0x10] sm:$0xff]
  %v239 = vld [vmem:[%s3 + $0x18] sm:$0xff]
  %v240 = vld [vmem:[%s3 + $0x20] sm:$0xff]
  %v241 = vld [vmem:[%s3 + $0x28] sm:$0xff]
  %v242 = vld [vmem:[%s4] sm:$0x1]
  %v244 = vperm.slane %v242, 0
  %v247 = vsel %vm30, %v228, 0
  %v250 = vsel %vm30, %v229, 0
  %v253 = vsel %vm30, %v230, 0
  %v256 = vsel %vm30, %v231, 0
  %v259 = vsel %vm30, %v232, 0
  %v262 = vsel %vm30, %v233, 0
  %v265 = vsel %vm30, %v234, 0
  %v268 = vsel %vm30, %v235, 0
  %270 = vmatpush.msra.mxu0 0.0
  %271 = vmatpush.msra.mxu0 0.0
  %272 = vmatpush.msra.mxu0 0.0
  %273 = vmatpush.msra.mxu0 0.0
  %274 = vmatpush.msra.mxu0 0.0
  %275 = vmatpush.msra.mxu0 0.0
  %276 = vmatpush.msra.mxu0 0.0
  %277 = vmatpush.msra.mxu0 0.0
  %278 = vmatpush.msra.mxu0 0.0
  %279 = vmatpush.msra.mxu0 0.0
  %280 = vmatpush.msra.mxu0 %v241
  %281 = vmatpush.msra.mxu0 %v240
  %282 = vmatpush.msra.mxu0 %v239
  %283 = vmatpush.msra.mxu0 %v238
  %284 = vmatpush.msra.mxu0 %v237
  %285 = vmatpush.msra.mxu0 %v236
  %286 = vmatmul.f32.gmra.mxu0 %v247
  %v287 = vpop.f32.mrf.mxu0
  %v288 = vadd.f32 %v244, %v287
  %289 = vmatmul.f32.gmra.mxu0 %v250
  %v290 = vpop.f32.mrf.mxu0
  %v291 = vadd.f32 %v244, %v290
  %292 = vmatmul.f32.gmra.mxu0 %v253
  %v293 = vpop.f32.mrf.mxu0
  %v294 = vadd.f32 %v244, %v293
  %295 = vmatmul.f32.gmra.mxu0 %v256
  %v296 = vpop.f32.mrf.mxu0
  %v297 = vadd.f32 %v244, %v296
  %298 = vmatmul.f32.gmra.mxu0 %v259
  %v299 = vpop.f32.mrf.mxu0
  %v300 = vadd.f32 %v244, %v299
  %301 = vmatmul.f32.gmra.mxu0 %v262
  %v302 = vpop.f32.mrf.mxu0
  %v303 = vadd.f32 %v244, %v302
  %304 = vmatmul.f32.gmra.mxu0 %v265
  %v305 = vpop.f32.mrf.mxu0
  %v306 = vadd.f32 %v244, %v305
  %307 = vmatmul.f32.gmra.mxu0 %v268
  %v308 = vpop.f32.mrf.mxu0
  %v309 = vadd.f32 %v244, %v308
  %310 = vdwg.mxu0
  %v311 = vmul.f32 %v288, 0.5
  %v312 = vmul.f32 %v291, 0.5
  %v313 = vmul.f32 %v294, 0.5
  %v314 = vmul.f32 %v297, 0.5
  %v315 = vmul.f32 %v300, 0.5
  %v316 = vmul.f32 %v303, 0.5
  %v317 = vmul.f32 %v306, 0.5
  %v318 = vmul.f32 %v309, 0.5
  %v319 = vmul.f32 %v288, 0.70710677
  %v320 = vmul.f32 %v291, 0.70710677
  %v321 = vmul.f32 %v294, 0.70710677
  %v322 = vmul.f32 %v297, 0.70710677
  %v323 = vmul.f32 %v300, 0.70710677
  %v324 = vmul.f32 %v303, 0.70710677
  %v325 = vmul.f32 %v306, 0.70710677
  %v326 = vmul.f32 %v309, 0.70710677
  %v327 = vmul.f32 %v319, %v319
  %v328 = vmin.f32 16.0, %v327
  %v329 = vmul.f32 %v328, 2.1237322e-06
  %v330 = vadd.f32 %v329, 0.00028619796
  %v331 = vmul.f32 %v328, %v330
  %v332 = vadd.f32 %v331, 0.0036580483
  %v333 = vmul.f32 %v328, %v332
  %v334 = vadd.f32 %v333, 0.05243302
  %v335 = vmul.f32 %v328, %v334
  %v336 = vadd.f32 %v335, 0.18741608
  %v337 = vmul.f32 %v328, %v336
  %v338 = vadd.f32 %v337, 1.1283791
  %v339 = vmul.f32 %v319, %v338
  %v340 = vmul.f32 %v328, 3.8918573e-05
  %v341 = vadd.f32 %v340, 0.001143296
  %v342 = vmul.f32 %v328, %v341
  %v343 = vadd.f32 %v342, 0.014752088
  %v344 = vmul.f32 %v328, %v343
  %v345 = vadd.f32 %v344, 0.112945676
  %v346 = vmul.f32 %v328, %v345
  %v347 = vadd.f32 %v346, 0.4994258
  %v348 = vmul.f32 %v328, %v347
  %v349 = vadd.f32 %v348, 1.0
  %v350 = vrcp.pop %v349
  %v351 = vmul.f32 %v349, %v350
  %v352 = vsub.f32 1.0, %v351
  %v353 = vmul.f32 %v350, %v352
  %v354 = vadd.f32 %v350, %v353
  %vm355 = vweird.f32 %v349
  %vm356 = vweird.f32 %v350
  %vm357 = vmor %vm355, %vm356
  %v358 = vsel %vm357, %v350, %v354
  %v359 = vand.u32 2147483647, %v349
  %vm360 = vcmp.eq.f32.partialorder %v359, 8.507059e+37
  %v361 = vand.u32 %v349, 2147483648
  %v362 = vor.u32 1.1754944e-38, %v361
  %v363 = vsel %vm360, %v362, %v358
  %v364 = vmul.f32 %v339, %v363
  %v365 = vmin.f32 %v364, 1.0
  %v366 = vmax.f32 %v365, -1.0
  %v367 = vmul.f32 %v320, %v320
  %v368 = vmin.f32 16.0, %v367
  %v369 = vmul.f32 %v368, 2.1237322e-06
  %v370 = vadd.f32 %v369, 0.00028619796
  %v371 = vmul.f32 %v368, %v370
  %v372 = vadd.f32 %v371, 0.0036580483
  %v373 = vmul.f32 %v368, %v372
  %v374 = vadd.f32 %v373, 0.05243302
  %v375 = vmul.f32 %v368, %v374
  %v376 = vadd.f32 %v375, 0.18741608
  %v377 = vmul.f32 %v368, %v376
  %v378 = vadd.f32 %v377, 1.1283791
  %v379 = vmul.f32 %v320, %v378
  %v380 = vmul.f32 %v368, 3.8918573e-05
  %v381 = vadd.f32 %v380, 0.001143296
  %v382 = vmul.f32 %v368, %v381
  %v383 = vadd.f32 %v382, 0.014752088
  %v384 = vmul.f32 %v368, %v383
  %v385 = vadd.f32 %v384, 0.112945676
  %v386 = vmul.f32 %v368, %v385
  %v387 = vadd.f32 %v386, 0.4994258
  %v388 = vmul.f32 %v368, %v387
  %v389 = vadd.f32 %v388, 1.0
  %v390 = vrcp.pop %v389
  %v391 = vmul.f32 %v389, %v390
  %v392 = vsub.f32 1.0, %v391
  %v393 = vmul.f32 %v390, %v392
  %v394 = vadd.f32 %v390, %v393
  %vm395 = vweird.f32 %v389
  %vm396 = vweird.f32 %v390
  %vm397 = vmor %vm395, %vm396
  %v398 = vsel %vm397, %v390, %v394
  %v399 = vand.u32 2147483647, %v389
  %vm400 = vcmp.eq.f32.partialorder %v399, 8.507059e+37
  %v401 = vand.u32 %v389, 2147483648
  %v402 = vor.u32 1.1754944e-38, %v401
  %v403 = vsel %vm400, %v402, %v398
  %v404 = vmul.f32 %v379, %v403
  %v405 = vmin.f32 %v404, 1.0
  %v406 = vmax.f32 %v405, -1.0
  %v407 = vmul.f32 %v321, %v321
  %v408 = vmin.f32 16.0, %v407
  %v409 = vmul.f32 %v408, 2.1237322e-06
  %v410 = vadd.f32 %v409, 0.00028619796
  %v411 = vmul.f32 %v408, %v410
  %v412 = vadd.f32 %v411, 0.0036580483
  %v413 = vmul.f32 %v408, %v412
  %v414 = vadd.f32 %v413, 0.05243302
  %v415 = vmul.f32 %v408, %v414
  %v416 = vadd.f32 %v415, 0.18741608
  %v417 = vmul.f32 %v408, %v416
  %v418 = vadd.f32 %v417, 1.1283791
  %v419 = vmul.f32 %v321, %v418
  %v420 = vmul.f32 %v408, 3.8918573e-05
  %v421 = vadd.f32 %v420, 0.001143296
  %v422 = vmul.f32 %v408, %v421
  %v423 = vadd.f32 %v422, 0.014752088
  %v424 = vmul.f32 %v408, %v423
  %v425 = vadd.f32 %v424, 0.112945676
  %v426 = vmul.f32 %v408, %v425
  %v427 = vadd.f32 %v426, 0.4994258
  %v428 = vmul.f32 %v408, %v427
  %v429 = vadd.f32 %v428, 1.0
  %v430 = vrcp.pop %v429
  %v431 = vmul.f32 %v429, %v430
  %v432 = vsub.f32 1.0, %v431
  %v433 = vmul.f32 %v430, %v432
  %v434 = vadd.f32 %v430, %v433
  %vm435 = vweird.f32 %v429
  %vm436 = vweird.f32 %v430
  %vm437 = vmor %vm435, %vm436
  %v438 = vsel %vm437, %v430, %v434
  %v439 = vand.u32 2147483647, %v429
  %vm440 = vcmp.eq.f32.partialorder %v439, 8.507059e+37
  %v441 = vand.u32 %v429, 2147483648
  %v442 = vor.u32 1.1754944e-38, %v441
  %v443 = vsel %vm440, %v442, %v438
  %v444 = vmul.f32 %v419, %v443
  %v445 = vmin.f32 %v444, 1.0
  %v446 = vmax.f32 %v445, -1.0
  %v447 = vmul.f32 %v322, %v322
  %v448 = vmin.f32 16.0, %v447
  %v449 = vmul.f32 %v448, 2.1237322e-06
  %v450 = vadd.f32 %v449, 0.00028619796
  %v451 = vmul.f32 %v448, %v450
  %v452 = vadd.f32 %v451, 0.0036580483
  %v453 = vmul.f32 %v448, %v452
  %v454 = vadd.f32 %v453, 0.05243302
  %v455 = vmul.f32 %v448, %v454
  %v456 = vadd.f32 %v455, 0.18741608
  %v457 = vmul.f32 %v448, %v456
  %v458 = vadd.f32 %v457, 1.1283791
  %v459 = vmul.f32 %v322, %v458
  %v460 = vmul.f32 %v448, 3.8918573e-05
  %v461 = vadd.f32 %v460, 0.001143296
  %v462 = vmul.f32 %v448, %v461
  %v463 = vadd.f32 %v462, 0.014752088
  %v464 = vmul.f32 %v448, %v463
  %v465 = vadd.f32 %v464, 0.112945676
  %v466 = vmul.f32 %v448, %v465
  %v467 = vadd.f32 %v466, 0.4994258
  %v468 = vmul.f32 %v448, %v467
  %v469 = vadd.f32 %v468, 1.0
  %v470 = vrcp.pop %v469
  %v471 = vmul.f32 %v469, %v470
  %v472 = vsub.f32 1.0, %v471
  %v473 = vmul.f32 %v470, %v472
  %v474 = vadd.f32 %v470, %v473
  %vm475 = vweird.f32 %v469
  %vm476 = vweird.f32 %v470
  %vm477 = vmor %vm475, %vm476
  %v478 = vsel %vm477, %v470, %v474
  %v479 = vand.u32 2147483647, %v469
  %vm480 = vcmp.eq.f32.partialorder %v479, 8.507059e+37
  %v481 = vand.u32 %v469, 2147483648
  %v482 = vor.u32 1.1754944e-38, %v481
  %v483 = vsel %vm480, %v482, %v478
  %v484 = vmul.f32 %v459, %v483
  %v485 = vmin.f32 %v484, 1.0
  %v486 = vmax.f32 %v485, -1.0
  %v487 = vmul.f32 %v323, %v323
  %v488 = vmin.f32 16.0, %v487
  %v489 = vmul.f32 %v488, 2.1237322e-06
  %v490 = vadd.f32 %v489, 0.00028619796
  %v491 = vmul.f32 %v488, %v490
  %v492 = vadd.f32 %v491, 0.0036580483
  %v493 = vmul.f32 %v488, %v492
  %v494 = vadd.f32 %v493, 0.05243302
  %v495 = vmul.f32 %v488, %v494
  %v496 = vadd.f32 %v495, 0.18741608
  %v497 = vmul.f32 %v488, %v496
  %v498 = vadd.f32 %v497, 1.1283791
  %v499 = vmul.f32 %v323, %v498
  %v500 = vmul.f32 %v488, 3.8918573e-05
  %v501 = vadd.f32 %v500, 0.001143296
  %v502 = vmul.f32 %v488, %v501
  %v503 = vadd.f32 %v502, 0.014752088
  %v504 = vmul.f32 %v488, %v503
  %v505 = vadd.f32 %v504, 0.112945676
  %v506 = vmul.f32 %v488, %v505
  %v507 = vadd.f32 %v506, 0.4994258
  %v508 = vmul.f32 %v488, %v507
  %v509 = vadd.f32 %v508, 1.0
  %v510 = vrcp.pop %v509
  %v511 = vmul.f32 %v509, %v510
  %v512 = vsub.f32 1.0, %v511
  %v513 = vmul.f32 %v510, %v512
  %v514 = vadd.f32 %v510, %v513
  %vm515 = vweird.f32 %v509
  %vm516 = vweird.f32 %v510
  %vm517 = vmor %vm515, %vm516
  %v518 = vsel %vm517, %v510, %v514
  %v519 = vand.u32 2147483647, %v509
  %vm520 = vcmp.eq.f32.partialorder %v519, 8.507059e+37
  %v521 = vand.u32 %v509, 2147483648
  %v522 = vor.u32 1.1754944e-38, %v521
  %v523 = vsel %vm520, %v522, %v518
  %v524 = vmul.f32 %v499, %v523
  %v525 = vmin.f32 %v524, 1.0
  %v526 = vmax.f32 %v525, -1.0
  %v527 = vmul.f32 %v324, %v324
  %v528 = vmin.f32 16.0, %v527
  %v529 = vmul.f32 %v528, 2.1237322e-06
  %v530 = vadd.f32 %v529, 0.00028619796
  %v531 = vmul.f32 %v528, %v530
  %v532 = vadd.f32 %v531, 0.0036580483
  %v533 = vmul.f32 %v528, %v532
  %v534 = vadd.f32 %v533, 0.05243302
  %v535 = vmul.f32 %v528, %v534
  %v536 = vadd.f32 %v535, 0.18741608
  %v537 = vmul.f32 %v528, %v536
  %v538 = vadd.f32 %v537, 1.1283791
  %v539 = vmul.f32 %v324, %v538
  %v540 = vmul.f32 %v528, 3.8918573e-05
  %v541 = vadd.f32 %v540, 0.001143296
  %v542 = vmul.f32 %v528, %v541
  %v543 = vadd.f32 %v542, 0.014752088
  %v544 = vmul.f32 %v528, %v543
  %v545 = vadd.f32 %v544, 0.112945676
  %v546 = vmul.f32 %v528, %v545
  %v547 = vadd.f32 %v546, 0.4994258
  %v548 = vmul.f32 %v528, %v547
  %v549 = vadd.f32 %v548, 1.0
  %v550 = vrcp.pop %v549
  %v551 = vmul.f32 %v549, %v550
  %v552 = vsub.f32 1.0, %v551
  %v553 = vmul.f32 %v550, %v552
  %v554 = vadd.f32 %v550, %v553
  %vm555 = vweird.f32 %v549
  %vm556 = vweird.f32 %v550
  %vm557 = vmor %vm555, %vm556
  %v558 = vsel %vm557, %v550, %v554
  %v559 = vand.u32 2147483647, %v549
  %vm560 = vcmp.eq.f32.partialorder %v559, 8.507059e+37
  %v561 = vand.u32 %v549, 2147483648
  %v562 = vor.u32 1.1754944e-38, %v561
  %v563 = vsel %vm560, %v562, %v558
  %v564 = vmul.f32 %v539, %v563
  %v565 = vmin.f32 %v564, 1.0
  %v566 = vmax.f32 %v565, -1.0
  %v567 = vmul.f32 %v325, %v325
  %v568 = vmin.f32 16.0, %v567
  %v569 = vmul.f32 %v568, 2.1237322e-06
  %v570 = vadd.f32 %v569, 0.00028619796
  %v571 = vmul.f32 %v568, %v570
  %v572 = vadd.f32 %v571, 0.0036580483
  %v573 = vmul.f32 %v568, %v572
  %v574 = vadd.f32 %v573, 0.05243302
  %v575 = vmul.f32 %v568, %v574
  %v576 = vadd.f32 %v575, 0.18741608
  %v577 = vmul.f32 %v568, %v576
  %v578 = vadd.f32 %v577, 1.1283791
  %v579 = vmul.f32 %v325, %v578
  %v580 = vmul.f32 %v568, 3.8918573e-05
  %v581 = vadd.f32 %v580, 0.001143296
  %v582 = vmul.f32 %v568, %v581
  %v583 = vadd.f32 %v582, 0.014752088
  %v584 = vmul.f32 %v568, %v583
  %v585 = vadd.f32 %v584, 0.112945676
  %v586 = vmul.f32 %v568, %v585
  %v587 = vadd.f32 %v586, 0.4994258
  %v588 = vmul.f32 %v568, %v587
  %v589 = vadd.f32 %v588, 1.0
  %v590 = vrcp.pop %v589
  %v591 = vmul.f32 %v589, %v590
  %v592 = vsub.f32 1.0, %v591
  %v593 = vmul.f32 %v590, %v592
  %v594 = vadd.f32 %v590, %v593
  %vm595 = vweird.f32 %v589
  %vm596 = vweird.f32 %v590
  %vm597 = vmor %vm595, %vm596
  %v598 = vsel %vm597, %v590, %v594
  %v599 = vand.u32 2147483647, %v589
  %vm600 = vcmp.eq.f32.partialorder %v599, 8.507059e+37
  %v601 = vand.u32 %v589, 2147483648
  %v602 = vor.u32 1.1754944e-38, %v601
  %v603 = vsel %vm600, %v602, %v598
  %v604 = vmul.f32 %v579, %v603
  %v605 = vmin.f32 %v604, 1.0
  %v606 = vmax.f32 %v605, -1.0
  %v607 = vmul.f32 %v326, %v326
  %v608 = vmin.f32 16.0, %v607
  %v609 = vmul.f32 %v608, 2.1237322e-06
  %v610 = vadd.f32 %v609, 0.00028619796
  %v611 = vmul.f32 %v608, %v610
  %v612 = vadd.f32 %v611, 0.0036580483
  %v613 = vmul.f32 %v608, %v612
  %v614 = vadd.f32 %v613, 0.05243302
  %v615 = vmul.f32 %v608, %v614
  %v616 = vadd.f32 %v615, 0.18741608
  %v617 = vmul.f32 %v608, %v616
  %v618 = vadd.f32 %v617, 1.1283791
  %v619 = vmul.f32 %v326, %v618
  %v620 = vmul.f32 %v608, 3.8918573e-05
  %v621 = vadd.f32 %v620, 0.001143296
  %v622 = vmul.f32 %v608, %v621
  %v623 = vadd.f32 %v622, 0.014752088
  %v624 = vmul.f32 %v608, %v623
  %v625 = vadd.f32 %v624, 0.112945676
  %v626 = vmul.f32 %v608, %v625
  %v627 = vadd.f32 %v626, 0.4994258
  %v628 = vmul.f32 %v608, %v627
  %v629 = vadd.f32 %v628, 1.0
  %v630 = vrcp.pop %v629
  %v631 = vmul.f32 %v629, %v630
  %v632 = vsub.f32 1.0, %v631
  %v633 = vmul.f32 %v630, %v632
  %v634 = vadd.f32 %v630, %v633
  %vm635 = vweird.f32 %v629
  %vm636 = vweird.f32 %v630
  %vm637 = vmor %vm635, %vm636
  %v638 = vsel %vm637, %v630, %v634
  %v639 = vand.u32 2147483647, %v629
  %vm640 = vcmp.eq.f32.partialorder %v639, 8.507059e+37
  %v641 = vand.u32 %v629, 2147483648
  %v642 = vor.u32 1.1754944e-38, %v641
  %v643 = vsel %vm640, %v642, %v638
  %v644 = vmul.f32 %v619, %v643
  %v645 = vmin.f32 %v644, 1.0
  %v646 = vmax.f32 %v645, -1.0
  %v647 = vadd.f32 %v366, 1.0
  %v648 = vadd.f32 %v406, 1.0
  %v649 = vadd.f32 %v446, 1.0
  %v650 = vadd.f32 %v486, 1.0
  %v651 = vadd.f32 %v526, 1.0
  %v652 = vadd.f32 %v566, 1.0
  %v653 = vadd.f32 %v606, 1.0
  %v654 = vadd.f32 %v646, 1.0
  %v655 = vmul.f32 %v311, %v647
  %v656 = vmul.f32 %v312, %v648
  %v657 = vmul.f32 %v313, %v649
  %v658 = vmul.f32 %v314, %v650
  %v659 = vmul.f32 %v315, %v651
  %v660 = vmul.f32 %v316, %v652
  %v661 = vmul.f32 %v317, %v653
  %v662 = vmul.f32 %v318, %v654
  %663 = vst.msk [vmem:[%s5] sm:$0xff] %vm30, %v655
  %664 = vst.msk [vmem:[%s5 + $0x8] sm:$0xff] %vm30, %v656
  %665 = vst.msk [vmem:[%s5 + $0x10] sm:$0xff] %vm30, %v657
  %666 = vst.msk [vmem:[%s5 + $0x18] sm:$0xff] %vm30, %v658
  %667 = vst.msk [vmem:[%s5 + $0x20] sm:$0xff] %vm30, %v659
  %668 = vst.msk [vmem:[%s5 + $0x28] sm:$0xff] %vm30, %v660
  %669 = vst.msk [vmem:[%s5 + $0x30] sm:$0xff] %vm30, %v661
  %670 = vst.msk [vmem:[%s5 + $0x38] sm:$0xff] %vm30, %v662
  // Predicated region
  $region22: #{stprivacy_forward.8} parent=0 // pred_check
    _
  $region23: #{stprivacy_forward.8} parent=0 // pred_check_branch
    %672 = sbr.rel (0) target = $region25
  $region24: #{stprivacy_forward.8} parent=0 // pred_region
    _
  $region25: #{stprivacy_forward.8} parent=0 // pred_fallthru
    _
  // Predicated region
  $region26: #{stprivacy_forward.8} parent=0 // pred_check
    _
  $region27: #{stprivacy_forward.8} parent=0 // pred_check_branch
    %674 = sbr.rel (0) target = $region29
  $region28: #{stprivacy_forward.8} parent=0 // pred_region
    _
  $region29: #{stprivacy_forward.8} parent=0 // pred_fallthru
    _

// kernel: stprivacy_forward.7
$region0: #{stprivacy_forward.7}
  #allocation0 [shape = 'u32[]', space=smem, size = 0x4, offset = 0x4, fixed_abs, tag = 'smem constant byte address 0x4 - core index']
  #allocation1 [shape = 'u32[72,128]{1,0:T(1,128)}', space=vmem, size = 0x9000, scoped, tag = 'internal scratch']
  %s0 = inlined_call_operand.vmem [shape: f32[2,32,48], index: 0, kind: input, shape index: {}]
  %s1 = inlined_call_operand.vmem [shape: f32[1,48], index: 1, kind: input, shape index: {}]
  %s2 = inlined_call_operand.vmem [shape: f32[1,48], index: 2, kind: input, shape index: {}]
  %s3 = inlined_call_operand.vmem [shape: f32[48,144], index: 3, kind: input, shape index: {}]
  %s4 = inlined_call_operand.vmem [shape: f32[1,144], index: 4, kind: input, shape index: {}]
  %s5 = inlined_call_operand.vmem [shape: f32[48,48], index: 5, kind: input, shape index: {}]
  %s6 = inlined_call_operand.vmem [shape: f32[1,48], index: 6, kind: input, shape index: {}]
  %s7 = inlined_call_operand.vmem [shape: f32[1,48], index: 7, kind: input, shape index: {}]
  %s8 = inlined_call_operand.vmem [shape: f32[1,48], index: 8, kind: input, shape index: {}]
  %s9 = inlined_call_operand.vmem [shape: f32[48,192], index: 9, kind: input, shape index: {}]
  %s10 = inlined_call_operand.vmem [shape: f32[1,192], index: 10, kind: input, shape index: {}]
  %s11 = inlined_call_operand.vmem [shape: f32[192,48], index: 11, kind: input, shape index: {}]
  %s12 = inlined_call_operand.vmem [shape: f32[1,48], index: 12, kind: input, shape index: {}]
  %s13 = inlined_call_operand.vmem [shape: f32[2,32,48], index: 13, kind: output, shape index: {}]
  %s14 = sld [smem:[#allocation0]]
  $region85: #{stprivacy_forward.7} parent=0
    _
  %s16 = ssub.s32 1, %s14
  %s17 = scalar_select 0, %s16, %s14
  loop: start=0, step=1, limit=4
  $region2: #{stprivacy_forward.7} parent=0 // loop_pre_header
    _
  $region3: #{stprivacy_forward.7} parent=0 // loop_header
    %s19 = sphi 0, %s23
    %p20 = scmp.ge.s32.totalorder %s19, 4
    %s29 = sphi 0, %s31
    %s32 = sphi 0, %s29
    %s33 = sphi 0, %s32
    %s49 = sphi 0, %s33
    %s53 = sphi 0, %s53
    %s55 = sphi 0, %s53
    %s56 = sphi 0, %s55
    %s70 = sphi 0, %s56
    %s74 = sphi 0, %s74
    %s76 = sphi 0, %s74
    %s77 = sphi 0, %s76
    %s91 = sphi 0, %s77
    %s95 = sphi 0, %s95
    %s97 = sphi 0, %s95
    %s98 = sphi 0, %s97
    %s112 = sphi 0, %s98
    %s116 = sphi 0, %s116
    %s118 = sphi 0, %s116
    %s119 = sphi 0, %s118
    %s133 = sphi 0, %s119
    %s137 = sphi 0, %s137
    %s139 = sphi 0, %s137
    %s140 = sphi 0, %s139
    %s154 = sphi 0, %s140
    %s158 = sphi 0, %s158
    %s160 = sphi 0, %s158
    %s161 = sphi 0, %s160
    %s175 = sphi 0, %s161
    %s179 = sphi 0, %s179
    %s181 = sphi 0, %s179
    %s182 = sphi 0, %s181
    %s196 = sphi 0, %s182
    %s200 = sphi 0, %s200
    %s202 = sphi 0, %s200
    %s203 = sphi 0, %s202
    %s217 = sphi 0, %s203
    %s221 = sphi 0, %s221
    %s223 = sphi 0, %s221
    %s224 = sphi 0, %s223
    %s238 = sphi 0, %s224
    %s242 = sphi 0, %s242
    %s244 = sphi 0, %s242
    %s245 = sphi 0, %s244
    %s259 = sphi 0, %s245
    %s263 = sphi 0, %s263
    %s265 = sphi 0, %s263
    %s266 = sphi 0, %s265
    %s280 = sphi 0, %s266
    %s284 = sphi 0, %s284
    %s286 = sphi 0, %s284
    %s287 = sphi 0, %s286
    %s301 = sphi 0, %s287
    %s307 = sphi 0, %s309
    %s310 = sphi 0, %s307
    %s311 = sphi 0, %s310
    %s327 = sphi 0, %s311
  $region4: #{stprivacy_forward.7} parent=0 // loop_header_branch
    %22 = sbr.rel (%p20) target = $region8
  $region5: #{stprivacy_forward.7} parent=0 // loop_body
    %s24 = ssub.s32 %s19, 1
    %s25 = ssub.s32 %s19, 2
    %s26 = sadd.s32 %s19, 1
    %s27 = ssub.s32 %s19, %s26
    %p28 = scmp.eq.s32.totalorder %s27, 0
    %s30 = sadd.s32 %s29, 1
    %s31 = scalar_select %p28, %s29, %s30
    %p34 = pneg %p28
    %p35 = scmp.eq.s32.totalorder %s19, 1
    %p36 = por %p34, %p35
    %p37 = scmp.ne.s32.totalorder %s29, %s32
    %p38 = scmp.eq.s32.totalorder %s19, 0
    %p39 = por %p37, %p38
    %p40 = scmp.ne.s32.totalorder %s29, %s32
    %p41 = scmp.eq.s32.totalorder %s24, 1
    %p42 = por %p40, %p41
    %p43 = scmp.ne.s32.totalorder %s32, %s33
    %p44 = scmp.eq.s32.totalorder %s24, 0
    %p45 = por %p43, %p44
    %p46 = scmp.ne.s32.totalorder %s32, %s33
    %p47 = scmp.eq.s32.totalorder %s25, 1
    %p48 = por %p46, %p47
    %p50 = scmp.ne.s32.totalorder %s33, %s49
    %p51 = scmp.eq.s32.totalorder %s25, 0
    %p52 = por %p50, %p51
    %s54 = sadd.s32 %s53, 1
    %p57 = scmp.eq.s32.totalorder %s19, 1
    %p58 = scmp.ne.s32.totalorder %s53, %s55
    %p59 = scmp.eq.s32.totalorder %s19, 0
    %p60 = por %p58, %p59
    %p61 = scmp.ne.s32.totalorder %s53, %s55
    %p62 = scmp.eq.s32.totalorder %s24, 1
    %p63 = por %p61, %p62
    %p64 = scmp.ne.s32.totalorder %s55, %s56
    %p65 = scmp.eq.s32.totalorder %s24, 0
    %p66 = por %p64, %p65
    %p67 = scmp.ne.s32.totalorder %s55, %s56
    %p68 = scmp.eq.s32.totalorder %s25, 1
    %p69 = por %p67, %p68
    %p71 = scmp.ne.s32.totalorder %s56, %s70
    %p72 = scmp.eq.s32.totalorder %s25, 0
    %p73 = por %p71, %p72
    %s75 = sadd.s32 %s74, 1
    %p78 = scmp.eq.s32.totalorder %s19, 1
    %p79 = scmp.ne.s32.totalorder %s74, %s76
    %p80 = scmp.eq.s32.totalorder %s19, 0
    %p81 = por %p79, %p80
    %p82 = scmp.ne.s32.totalorder %s74, %s76
    %p83 = scmp.eq.s32.totalorder %s24, 1
    %p84 = por %p82, %p83
    %p85 = scmp.ne.s32.totalorder %s76, %s77
    %p86 = scmp.eq.s32.totalorder %s24, 0
    %p87 = por %p85, %p86
    %p88 = scmp.ne.s32.totalorder %s76, %s77
    %p89 = scmp.eq.s32.totalorder %s25, 1
    %p90 = por %p88, %p89
    %p92 = scmp.ne.s32.totalorder %s77, %s91
    %p93 = scmp.eq.s32.totalorder %s25, 0
    %p94 = por %p92, %p93
    %s96 = sadd.s32 %s95, 1
    %p99 = scmp.eq.s32.totalorder %s19, 1
    %p100 = scmp.ne.s32.totalorder %s95, %s97
    %p101 = scmp.eq.s32.totalorder %s19, 0
    %p102 = por %p100, %p101
    %p103 = scmp.ne.s32.totalorder %s95, %s97
    %p104 = scmp.eq.s32.totalorder %s24, 1
    %p105 = por %p103, %p104
    %p106 = scmp.ne.s32.totalorder %s97, %s98
    %p107 = scmp.eq.s32.totalorder %s24, 0
    %p108 = por %p106, %p107
    %p109 = scmp.ne.s32.totalorder %s97, %s98
    %p110 = scmp.eq.s32.totalorder %s25, 1
    %p111 = por %p109, %p110
    %p113 = scmp.ne.s32.totalorder %s98, %s112
    %p114 = scmp.eq.s32.totalorder %s25, 0
    %p115 = por %p113, %p114
    %s117 = sadd.s32 %s116, 1
    %p120 = scmp.eq.s32.totalorder %s19, 1
    %p121 = scmp.ne.s32.totalorder %s116, %s118
    %p122 = scmp.eq.s32.totalorder %s19, 0
    %p123 = por %p121, %p122
    %p124 = scmp.ne.s32.totalorder %s116, %s118
    %p125 = scmp.eq.s32.totalorder %s24, 1
    %p126 = por %p124, %p125
    %p127 = scmp.ne.s32.totalorder %s118, %s119
    %p128 = scmp.eq.s32.totalorder %s24, 0
    %p129 = por %p127, %p128
    %p130 = scmp.ne.s32.totalorder %s118, %s119
    %p131 = scmp.eq.s32.totalorder %s25, 1
    %p132 = por %p130, %p131
    %p134 = scmp.ne.s32.totalorder %s119, %s133
    %p135 = scmp.eq.s32.totalorder %s25, 0
    %p136 = por %p134, %p135
    %s138 = sadd.s32 %s137, 1
    %p141 = scmp.eq.s32.totalorder %s19, 1
    %p142 = scmp.ne.s32.totalorder %s137, %s139
    %p143 = scmp.eq.s32.totalorder %s19, 0
    %p144 = por %p142, %p143
    %p145 = scmp.ne.s32.totalorder %s137, %s139
    %p146 = scmp.eq.s32.totalorder %s24, 1
    %p147 = por %p145, %p146
    %p148 = scmp.ne.s32.totalorder %s139, %s140
    %p149 = scmp.eq.s32.totalorder %s24, 0
    %p150 = por %p148, %p149
    %p151 = scmp.ne.s32.totalorder %s139, %s140
    %p152 = scmp.eq.s32.totalorder %s25, 1
    %p153 = por %p151, %p152
    %p155 = scmp.ne.s32.totalorder %s140, %s154
    %p156 = scmp.eq.s32.totalorder %s25, 0
    %p157 = por %p155, %p156
    %s159 = sadd.s32 %s158, 1
    %p162 = scmp.eq.s32.totalorder %s19, 1
    %p163 = scmp.ne.s32.totalorder %s158, %s160
    %p164 = scmp.eq.s32.totalorder %s19, 0
    %p165 = por %p163, %p164
    %p166 = scmp.ne.s32.totalorder %s158, %s160
    %p167 = scmp.eq.s32.totalorder %s24, 1
    %p168 = por %p166, %p167
    %p169 = scmp.ne.s32.totalorder %s160, %s161
    %p170 = scmp.eq.s32.totalorder %s24, 0
    %p171 = por %p169, %p170
    %p172 = scmp.ne.s32.totalorder %s160, %s161
    %p173 = scmp.eq.s32.totalorder %s25, 1
    %p174 = por %p172, %p173
    %p176 = scmp.ne.s32.totalorder %s161, %s175
    %p177 = scmp.eq.s32.totalorder %s25, 0
    %p178 = por %p176, %p177
    %s180 = sadd.s32 %s179, 1
    %p183 = scmp.eq.s32.totalorder %s19, 1
    %p184 = scmp.ne.s32.totalorder %s179, %s181
    %p185 = scmp.eq.s32.totalorder %s19, 0
    %p186 = por %p184, %p185
    %p187 = scmp.ne.s32.totalorder %s179, %s181
    %p188 = scmp.eq.s32.totalorder %s24, 1
    %p189 = por %p187, %p188
    %p190 = scmp.ne.s32.totalorder %s181, %s182
    %p191 = scmp.eq.s32.totalorder %s24, 0
    %p192 = por %p190, %p191
    %p193 = scmp.ne.s32.totalorder %s181, %s182
    %p194 = scmp.eq.s32.totalorder %s25, 1
    %p195 = por %p193, %p194
    %p197 = scmp.ne.s32.totalorder %s182, %s196
    %p198 = scmp.eq.s32.totalorder %s25, 0
    %p199 = por %p197, %p198
    %s201 = sadd.s32 %s200, 1
    %p204 = scmp.eq.s32.totalorder %s19, 1
    %p205 = scmp.ne.s32.totalorder %s200, %s202
    %p206 = scmp.eq.s32.totalorder %s19, 0
    %p207 = por %p205, %p206
    %p208 = scmp.ne.s32.totalorder %s200, %s202
    %p209 = scmp.eq.s32.totalorder %s24, 1
    %p210 = por %p208, %p209
    %p211 = scmp.ne.s32.totalorder %s202, %s203
    %p212 = scmp.eq.s32.totalorder %s24, 0
    %p213 = por %p211, %p212
    %p214 = scmp.ne.s32.totalorder %s202, %s203
    %p215 = scmp.eq.s32.totalorder %s25, 1
    %p216 = por %p214, %p215
    %p218 = scmp.ne.s32.totalorder %s203, %s217
    %p219 = scmp.eq.s32.totalorder %s25, 0
    %p220 = por %p218, %p219
    %s222 = sadd.s32 %s221, 1
    %p225 = scmp.eq.s32.totalorder %s19, 1
    %p226 = scmp.ne.s32.totalorder %s221, %s223
    %p227 = scmp.eq.s32.totalorder %s19, 0
    %p228 = por %p226, %p227
    %p229 = scmp.ne.s32.totalorder %s221, %s223
    %p230 = scmp.eq.s32.totalorder %s24, 1
    %p231 = por %p229, %p230
    %p232 = scmp.ne.s32.totalorder %s223, %s224
    %p233 = scmp.eq.s32.totalorder %s24, 0
    %p234 = por %p232, %p233
    %p235 = scmp.ne.s32.totalorder %s223, %s224
    %p236 = scmp.eq.s32.totalorder %s25, 1
    %p237 = por %p235, %p236
    %p239 = scmp.ne.s32.totalorder %s224, %s238
    %p240 = scmp.eq.s32.totalorder %s25, 0
    %p241 = por %p239, %p240
    %s243 = sadd.s32 %s242, 1
    %p246 = scmp.eq.s32.totalorder %s19, 1
    %p247 = scmp.ne.s32.totalorder %s242, %s244
    %p248 = scmp.eq.s32.totalorder %s19, 0
    %p249 = por %p247, %p248
    %p250 = scmp.ne.s32.totalorder %s242, %s244
    %p251 = scmp.eq.s32.totalorder %s24, 1
    %p252 = por %p250, %p251
    %p253 = scmp.ne.s32.totalorder %s244, %s245
    %p254 = scmp.eq.s32.totalorder %s24, 0
    %p255 = por %p253, %p254
    %p256 = scmp.ne.s32.totalorder %s244, %s245
    %p257 = scmp.eq.s32.totalorder %s25, 1
    %p258 = por %p256, %p257
    %p260 = scmp.ne.s32.totalorder %s245, %s259
    %p261 = scmp.eq.s32.totalorder %s25, 0
    %p262 = por %p260, %p261
    %s264 = sadd.s32 %s263, 1
    %p267 = scmp.eq.s32.totalorder %s19, 1
    %p268 = scmp.ne.s32.totalorder %s263, %s265
    %p269 = scmp.eq.s32.totalorder %s19, 0
    %p270 = por %p268, %p269
    %p271 = scmp.ne.s32.totalorder %s263, %s265
    %p272 = scmp.eq.s32.totalorder %s24, 1
    %p273 = por %p271, %p272
    %p274 = scmp.ne.s32.totalorder %s265, %s266
    %p275 = scmp.eq.s32.totalorder %s24, 0
    %p276 = por %p274, %p275
    %p277 = scmp.ne.s32.totalorder %s265, %s266
    %p278 = scmp.eq.s32.totalorder %s25, 1
    %p279 = por %p277, %p278
    %p281 = scmp.ne.s32.totalorder %s266, %s280
    %p282 = scmp.eq.s32.totalorder %s25, 0
    %p283 = por %p281, %p282
    %s285 = sadd.s32 %s284, 1
    %p288 = scmp.eq.s32.totalorder %s19, 1
    %p289 = scmp.ne.s32.totalorder %s284, %s286
    %p290 = scmp.eq.s32.totalorder %s19, 0
    %p291 = por %p289, %p290
    %p292 = scmp.ne.s32.totalorder %s284, %s286
    %p293 = scmp.eq.s32.totalorder %s24, 1
    %p294 = por %p292, %p293
    %p295 = scmp.ne.s32.totalorder %s286, %s287
    %p296 = scmp.eq.s32.totalorder %s24, 0
    %p297 = por %p295, %p296
    %p298 = scmp.ne.s32.totalorder %s286, %s287
    %p299 = scmp.eq.s32.totalorder %s25, 1
    %p300 = por %p298, %p299
    %p302 = scmp.ne.s32.totalorder %s287, %s301
    %p303 = scmp.eq.s32.totalorder %s25, 0
    %p304 = por %p302, %p303
    %s305 = ssub.s32 %s19, %s26
    %p306 = scmp.eq.s32.totalorder %s305, 0
    %s308 = sadd.s32 %s307, 1
    %s309 = scalar_select %p306, %s307, %s308
    %p312 = pneg %p306
    %p313 = scmp.eq.s32.totalorder %s19, 1
    %p314 = por %p312, %p313
    %p315 = scmp.ne.s32.totalorder %s307, %s310
    %p316 = scmp.eq.s32.totalorder %s19, 0
    %p317 = por %p315, %p316
    %p318 = scmp.ne.s32.totalorder %s307, %s310
    %p319 = scmp.eq.s32.totalorder %s24, 1
    %p320 = por %p318, %p319
    %p321 = scmp.ne.s32.totalorder %s310, %s311
    %p322 = scmp.eq.s32.totalorder %s24, 0
    %p323 = por %p321, %p322
    %p324 = scmp.ne.s32.totalorder %s310, %s311
    %p325 = scmp.eq.s32.totalorder %s25, 1
    %p326 = por %p324, %p325
    %p328 = scmp.ne.s32.totalorder %s311, %s327
    %p329 = scmp.eq.s32.totalorder %s25, 0
    %p330 = por %p328, %p329
    %p331 = scmp.le.s32.totalorder 1, %s19
    %p332 = scmp.lt.s32.totalorder %s19, 3
    %p333 = pnand %p331, %p332
    %p334 = pneg %p333
    // Predicated region
    $region9: #{stprivacy_forward.7} parent=5 // pred_check
      _
    $region10: #{stprivacy_forward.7} parent=5 // pred_check_branch
      %336 = sbr.rel (%p333) target = $region12
    $region11: #{stprivacy_forward.7} parent=5 // pred_region
      %s337 = ssub.s32 %s19, 1
      // Predicated region
      $region13: #{stprivacy_forward.7} parent=11 // pred_check
        %p338 = pneg %p66
      $region14: #{stprivacy_forward.7} parent=11 // pred_check_branch
        %340 = sbr.rel (%p338) target = $region16
      $region15: #{stprivacy_forward.7} parent=11 // pred_region
        _
      $region16: #{stprivacy_forward.7} parent=11 // pred_fallthru
        _
      // Predicated region
      $region17: #{stprivacy_forward.7} parent=11 // pred_check
        %p341 = pneg %p87
      $region18: #{stprivacy_forward.7} parent=11 // pred_check_branch
        %343 = sbr.rel (%p341) target = $region20
      $region19: #{stprivacy_forward.7} parent=11 // pred_region
        _
      $region20: #{stprivacy_forward.7} parent=11 // pred_fallthru
        _
      // Predicated region
      $region21: #{stprivacy_forward.7} parent=11 // pred_check
        %p344 = pneg %p108
      $region22: #{stprivacy_forward.7} parent=11 // pred_check_branch
        %346 = sbr.rel (%p344) target = $region24
      $region23: #{stprivacy_forward.7} parent=11 // pred_region
        _
      $region24: #{stprivacy_forward.7} parent=11 // pred_fallthru
        _
      // Predicated region
      $region25: #{stprivacy_forward.7} parent=11 // pred_check
        %p347 = pneg %p129
      $region26: #{stprivacy_forward.7} parent=11 // pred_check_branch
        %349 = sbr.rel (%p347) target = $region28
      $region27: #{stprivacy_forward.7} parent=11 // pred_region
        _
      $region28: #{stprivacy_forward.7} parent=11 // pred_fallthru
        _
      // Predicated region
      $region29: #{stprivacy_forward.7} parent=11 // pred_check
        %p350 = pneg %p150
      $region30: #{stprivacy_forward.7} parent=11 // pred_check_branch
        %352 = sbr.rel (%p350) target = $region32
      $region31: #{stprivacy_forward.7} parent=11 // pred_region
        _
      $region32: #{stprivacy_forward.7} parent=11 // pred_fallthru
        _
      // Predicated region
      $region33: #{stprivacy_forward.7} parent=11 // pred_check
        %p353 = pneg %p171
      $region34: #{stprivacy_forward.7} parent=11 // pred_check_branch
        %355 = sbr.rel (%p353) target = $region36
      $region35: #{stprivacy_forward.7} parent=11 // pred_region
        _
      $region36: #{stprivacy_forward.7} parent=11 // pred_fallthru
        _
      // Predicated region
      $region37: #{stprivacy_forward.7} parent=11 // pred_check
        %p356 = pneg %p192
      $region38: #{stprivacy_forward.7} parent=11 // pred_check_branch
        %358 = sbr.rel (%p356) target = $region40
      $region39: #{stprivacy_forward.7} parent=11 // pred_region
        _
      $region40: #{stprivacy_forward.7} parent=11 // pred_fallthru
        _
      // Predicated region
      $region41: #{stprivacy_forward.7} parent=11 // pred_check
        %p359 = pneg %p213
      $region42: #{stprivacy_forward.7} parent=11 // pred_check_branch
        %361 = sbr.rel (%p359) target = $region44
      $region43: #{stprivacy_forward.7} parent=11 // pred_region
        _
      $region44: #{stprivacy_forward.7} parent=11 // pred_fallthru
        _
      // Predicated region
      $region45: #{stprivacy_forward.7} parent=11 // pred_check
        %p362 = pneg %p234
      $region46: #{stprivacy_forward.7} parent=11 // pred_check_branch
        %364 = sbr.rel (%p362) target = $region48
      $region47: #{stprivacy_forward.7} parent=11 // pred_region
        _
      $region48: #{stprivacy_forward.7} parent=11 // pred_fallthru
        _
      // Predicated region
      $region49: #{stprivacy_forward.7} parent=11 // pred_check
        %p365 = pneg %p255
      $region50: #{stprivacy_forward.7} parent=11 // pred_check_branch
        %367 = sbr.rel (%p365) target = $region52
      $region51: #{stprivacy_forward.7} parent=11 // pred_region
        _
      $region52: #{stprivacy_forward.7} parent=11 // pred_fallthru
        _
      // Predicated region
      $region53: #{stprivacy_forward.7} parent=11 // pred_check
        %p368 = pneg %p276
      $region54: #{stprivacy_forward.7} parent=11 // pred_check_branch
        %370 = sbr.rel (%p368) target = $region56
      $region55: #{stprivacy_forward.7} parent=11 // pred_region
        _
      $region56: #{stprivacy_forward.7} parent=11 // pred_fallthru
        _
      // Predicated region
      $region57: #{stprivacy_forward.7} parent=11 // pred_check
        %p371 = pneg %p297
      $region58: #{stprivacy_forward.7} parent=11 // pred_check_branch
        %373 = sbr.rel (%p371) target = $region60
      $region59: #{stprivacy_forward.7} parent=11 // pred_region
        _
      $region60: #{stprivacy_forward.7} parent=11 // pred_fallthru
        _
    $region12: #{stprivacy_forward.7} parent=5 // pred_fallthru
      _
    %p374 = scmp.lt.s32.totalorder %s19, 2
    // Predicated region
    $region61: #{stprivacy_forward.7} parent=5 // pred_check
      %p375 = pneg %p374
    $region62: #{stprivacy_forward.7} parent=5 // pred_check_branch
      %377 = sbr.rel (%p375) target = $region64
    $region63: #{stprivacy_forward.7} parent=5 // pred_region
      // Predicated region
      $region65: #{stprivacy_forward.7} parent=63 // pred_check
        %p378 = pneg %p39
      $region66: #{stprivacy_forward.7} parent=63 // pred_check_branch
        %380 = sbr.rel (%p378) target = $region68
      $region67: #{stprivacy_forward.7} parent=63 // pred_region
        %p381 = scmp.lt.s32.totalorder %s19, 1
        %s382 = scalar_select %p381, %s19, 1
        %s383 = smul.addr %s382, 4
        %s384 = smul.addr %s383, 8
        %s385 = scalar_lea.vmem %s0, %s384
      $region68: #{stprivacy_forward.7} parent=63 // pred_fallthru
        _
    $region64: #{stprivacy_forward.7} parent=5 // pred_fallthru
      _
    %p386 = scmp.le.s32.totalorder 1, %s19
    %p387 = scmp.lt.s32.totalorder %s19, 3
    %p388 = pnand %p386, %p387
    %p389 = pneg %p388
    // Predicated region
    $region69: #{stprivacy_forward.7} parent=5 // pred_check
      _
    $region70: #{stprivacy_forward.7} parent=5 // pred_check_branch
      %391 = sbr.rel (%p388) target = $region72
    $region71: #{stprivacy_forward.7} parent=5 // pred_region
      %s392 = ssub.s32 %s19, 1
      %p393 = scmp.lt.s32.totalorder %s24, 1
      %s394 = scalar_select %p393, %s24, 1
      %s395 = smul.addr %s394, 4
      %s396 = smul.addr %s395, 8
      %s397 = scalar_lea.vmem %s0, %s396
      %p398 = pneg %p45
      %p399 = pneg %p42
      %p400 = pneg %p66
      %p401 = pneg %p63
      %p402 = pneg %p87
      %p403 = pneg %p84
      %p404 = pneg %p108
      %p405 = pneg %p105
      %p406 = pneg %p129
      %p407 = pneg %p126
      %p408 = pneg %p150
      %p409 = pneg %p147
      %p410 = pneg %p171
      %p411 = pneg %p168
      %p412 = pneg %p192
      %p413 = pneg %p189
      %p414 = pneg %p213
      %p415 = pneg %p210
      %p416 = pneg %p234
      %p417 = pneg %p231
      %p418 = pneg %p255
      %p419 = pneg %p252
      %p420 = pneg %p276
      %p421 = pneg %p273
      %p422 = pneg %p297
      %p423 = pneg %p294
      %p424 = pneg %p323
      %p425 = pneg %p320
      %p426 = scmp.lt.s32.totalorder %s24, 1
      %s427 = scalar_select %p426, %s24, 1
      %s428 = smul.addr %s427, 4
      %s429 = smul.addr %s428, 8
      %s430 = scalar_lea.vmem %s13, %s429
      %p431 = scmp.lt.s32.totalorder %s24, 1
      %s432 = scalar_select %p431, %s24, 1
      %s433 = smul.addr %s432, 4
      %s434 = smul.addr %s433, 8
      %s435 = scalar_lea.vmem %s0, %s434
      %p436 = scmp.lt.s32.totalorder %s24, 1
      %s437 = scalar_select %p436, %s24, 1
      %s438 = smul.addr %s437, 4
      %s439 = smul.addr %s438, 8
      %s440 = scalar_lea.vmem %s13, %s439
      %v441 = vld [vmem:[%s435] sm:$0xff]
      %v442 = vld [vmem:[%s435 + $0x8] sm:$0xff]
      %v443 = vld [vmem:[%s435 + $0x10] sm:$0xff]
      %v444 = vld [vmem:[%s435 + $0x18] sm:$0xff]
      %v445 = vld [vmem:[%s1] sm:$0x1]
      %v446 = vld [vmem:[%s2] sm:$0x1]
      %vm447 = vcmask 392192
      %v448 = vsel %vm447, %v441, 0.0
      %449 = vadd.xlane.f32.xlu0 %v448
      %v450 = vpop.xlane.xlu0 %449
      %v451 = vsel %vm447, %v442, 0.0
      %452 = vadd.xlane.f32.xlu0 %v451
      %v453 = vpop.xlane.xlu0 %452
      %v454 = vsel %vm447, %v443, 0.0
      %455 = vadd.xlane.f32.xlu0 %v454
      %v456 = vpop.xlane.xlu0 %455
      %v457 = vsel %vm447, %v444, 0.0
      %458 = vadd.xlane.f32.xlu0 %v457
      %v459 = vpop.xlane.xlu0 %458
      %v460 = vrcp.pop 48.0
      %v461 = vmul.f32 48.0, %v460
      %v462 = vsub.f32 1.0, %v461
      %v463 = vmul.f32 %v460, %v462
      %v464 = vadd.f32 %v460, %v463
      %vm465 = vweird.f32 %v460
      %v466 = vsel %vm465, %v460, %v464
      %v467 = vmul.f32 %v450, %v466
      %v468 = vmul.f32 %v453, %v466
      %v469 = vmul.f32 %v456, %v466
      %v470 = vmul.f32 %v459, %v466
      %v471 = vsub.f32 %v441, %v467
      %v472 = vsub.f32 %v442, %v468
      %v473 = vsub.f32 %v443, %v469
      %v474 = vsub.f32 %v444, %v470
      %v475 = vmul.f32 %v471, %v471
      %v476 = vmul.f32 %v472, %v472
      %v477 = vmul.f32 %v473, %v473
      %v478 = vmul.f32 %v474, %v474
      %v479 = vsel %vm447, %v475, 0.0
      %480 = vadd.xlane.f32.xlu0 %v479
      %v481 = vpop.xlane.xlu0 %480
      %v482 = vsel %vm447, %v476, 0.0
      %483 = vadd.xlane.f32.xlu0 %v482
      %v484 = vpop.xlane.xlu0 %483
      %v485 = vsel %vm447, %v477, 0.0
      %486 = vadd.xlane.f32.xlu0 %v485
      %v487 = vpop.xlane.xlu0 %486
      %v488 = vsel %vm447, %v478, 0.0
      %489 = vadd.xlane.f32.xlu0 %v488
      %v490 = vpop.xlane.xlu0 %489
      %v491 = vmul.f32 %v481, %v466
      %v492 = vmul.f32 %v484, %v466
      %v493 = vmul.f32 %v487, %v466
      %v494 = vmul.f32 %v490, %v466
      %v495 = vadd.f32 %v491, 1e-06
      %v496 = vadd.f32 %v492, 1e-06
      %v497 = vadd.f32 %v493, 1e-06
      %v498 = vadd.f32 %v494, 1e-06
      %v499 = vrsqrt.pop %v495
      %v500 = vmul.f32 %v499, %v495
      %v501 = vmul.f32 %v500, %v499
      %v502 = vmul.f32 0.5, %v501
      %v503 = vsub.f32 1.5, %v502
      %v504 = vmul.f32 %v499, %v503
      %vm505 = vweird.f32 %v495
      %vm506 = vweird.f32 %v499
      %vm507 = vmor %vm505, %vm506
      %v508 = vsel %vm507, %v499, %v504
      %v509 = vrsqrt.pop %v496
      %v510 = vmul.f32 %v509, %v496
      %v511 = vmul.f32 %v510, %v509
      %v512 = vmul.f32 0.5, %v511
      %v513 = vsub.f32 1.5, %v512
      %v514 = vmul.f32 %v509, %v513
      %vm515 = vweird.f32 %v496
      %vm516 = vweird.f32 %v509
      %vm517 = vmor %vm515, %vm516
      %v518 = vsel %vm517, %v509, %v514
      %v519 = vrsqrt.pop %v497
      %v520 = vmul.f32 %v519, %v497
      %v521 = vmul.f32 %v520, %v519
      %v522 = vmul.f32 0.5, %v521
      %v523 = vsub.f32 1.5, %v522
      %v524 = vmul.f32 %v519, %v523
      %vm525 = vweird.f32 %v497
      %vm526 = vweird.f32 %v519
      %vm527 = vmor %vm525, %vm526
      %v528 = vsel %vm527, %v519, %v524
      %v529 = vrsqrt.pop %v498
      %v530 = vmul.f32 %v529, %v498
      %v531 = vmul.f32 %v530, %v529
      %v532 = vmul.f32 0.5, %v531
      %v533 = vsub.f32 1.5, %v532
      %v534 = vmul.f32 %v529, %v533
      %vm535 = vweird.f32 %v498
      %vm536 = vweird.f32 %v529
      %vm537 = vmor %vm535, %vm536
      %v538 = vsel %vm537, %v529, %v534
      %v539 = vmul.f32 %v471, %v508
      %v540 = vmul.f32 %v472, %v518
      %v541 = vmul.f32 %v473, %v528
      %v542 = vmul.f32 %v474, %v538
      %v544 = vperm.slane %v445, 0
      %v546 = vmul.f32 %v539, %v544
      %v547 = vmul.f32 %v540, %v544
      %v548 = vmul.f32 %v541, %v544
      %v549 = vmul.f32 %v542, %v544
      %v551 = vperm.slane %v446, 0
      %v553 = vadd.f32 %v546, %v551
      %v554 = vadd.f32 %v547, %v551
      %v555 = vadd.f32 %v548, %v551
      %v556 = vadd.f32 %v549, %v551
      %v557 = vld [vmem:[%s3] sm:$0xff]
      %v558 = vld [vmem:[%s3 + $0x8] sm:$0xff]
      %v559 = vld [vmem:[%s3 + $0x10] sm:$0xff]
      %v560 = vld [vmem:[%s3 + $0x18] sm:$0xff]
      %v561 = vld [vmem:[%s3 + $0x20] sm:$0xff]
      %v562 = vld [vmem:[%s3 + $0x28] sm:$0xff]
      %v563 = vld [vmem:[%s3 + $0x30] sm:$0xff]
      %v564 = vld [vmem:[%s3 + $0x38] sm:$0xff]
      %v565 = vld [vmem:[%s3 + $0x40] sm:$0xff]
      %v566 = vld [vmem:[%s3 + $0x48] sm:$0xff]
      %v567 = vld [vmem:[%s3 + $0x50] sm:$0xff]
      %v568 = vld [vmem:[%s3 + $0x58] sm:$0xff]
      %v569 = vld [vmem:[%s4] sm:$0x3]
      %v571 = vperm.slane %v569, 0
      %v572 = vperm.slane %v569, 1
      %v576 = vsel %vm447, %v553, 0
      %v579 = vsel %vm447, %v554, 0
      %v582 = vsel %vm447, %v555, 0
      %v585 = vsel %vm447, %v556, 0
      %587 = vmatpush.msra.mxu0 0.0
      %588 = vmatpush.msra.mxu0 0.0
      %589 = vmatpush.msra.mxu0 0.0
      %590 = vmatpush.msra.mxu0 0.0
      %591 = vmatpush.msra.mxu0 0.0
      %592 = vmatpush.msra.mxu0 0.0
      %593 = vmatpush.msra.mxu0 0.0
      %594 = vmatpush.msra.mxu0 0.0
      %595 = vmatpush.msra.mxu0 0.0
      %596 = vmatpush.msra.mxu0 0.0
      %597 = vmatpush.msra.mxu0 %v567
      %598 = vmatpush.msra.mxu0 %v565
      %599 = vmatpush.msra.mxu0 %v563
      %600 = vmatpush.msra.mxu0 %v561
      %601 = vmatpush.msra.mxu0 %v559
      %602 = vmatpush.msra.mxu0 %v557
      %603 = vmatmul.f32.gmra.mxu0 %v576
      %v604 = vpop.f32.mrf.mxu0
      %v605 = vadd.f32 %v571, %v604
      %606 = vmatmul.f32.gmra.mxu0 %v579
      %v607 = vpop.f32.mrf.mxu0
      %v608 = vadd.f32 %v571, %v607
      %609 = vmatmul.f32.gmra.mxu0 %v582
      %v610 = vpop.f32.mrf.mxu0
      %v611 = vadd.f32 %v571, %v610
      %612 = vmatmul.f32.gmra.mxu0 %v585
      %v613 = vpop.f32.mrf.mxu0
      %v614 = vadd.f32 %v571, %v613
      %615 = vdwg.mxu0
      %616 = vmatpush.msra.mxu0 0.0
      %617 = vmatpush.msra.mxu0 0.0
      %618 = vmatpush.msra.mxu0 0.0
      %619 = vmatpush.msra.mxu0 0.0
      %620 = vmatpush.msra.mxu0 0.0
      %621 = vmatpush.msra.mxu0 0.0
      %622 = vmatpush.msra.mxu0 0.0
      %623 = vmatpush.msra.mxu0 0.0
      %624 = vmatpush.msra.mxu0 0.0
      %625 = vmatpush.msra.mxu0 0.0
      %626 = vmatpush.msra.mxu0 %v568
      %627 = vmatpush.msra.mxu0 %v566
      %628 = vmatpush.msra.mxu0 %v564
      %629 = vmatpush.msra.mxu0 %v562
      %630 = vmatpush.msra.mxu0 %v560
      %631 = vmatpush.msra.mxu0 %v558
      %632 = vmatmul.f32.gmra.mxu0 %v576
      %v633 = vpop.f32.mrf.mxu0
      %v634 = vadd.f32 %v572, %v633
      %635 = vmatmul.f32.gmra.mxu0 %v579
      %v636 = vpop.f32.mrf.mxu0
      %v637 = vadd.f32 %v572, %v636
      %638 = vmatmul.f32.gmra.mxu0 %v582
      %v639 = vpop.f32.mrf.mxu0
      %v640 = vadd.f32 %v572, %v639
      %641 = vmatmul.f32.gmra.mxu0 %v585
      %v642 = vpop.f32.mrf.mxu0
      %v643 = vadd.f32 %v572, %v642
      %644 = vdwg.mxu0
      %649 = vrot.lane.b32.xlu0 %v605, 80
      %v650 = vpop.permute.xlu0 %649
      %651 = vrot.lane.b32.xlu0 %v608, 80
      %v652 = vpop.permute.xlu0 %651
      %653 = vrot.lane.b32.xlu0 %v611, 80
      %v654 = vpop.permute.xlu0 %653
      %655 = vrot.lane.b32.xlu0 %v614, 80
      %v656 = vpop.permute.xlu0 %655
      %vm657 = vcmask 97280
      %v658 = vsel %vm657, %v605, 0
      %v660 = vsel %vm657, %v608, 0
      %v662 = vsel %vm657, %v611, 0
      %v664 = vsel %vm657, %v614, 0
      %v666 = vsel %vm657, %v650, 0
      %v668 = vsel %vm657, %v652, 0
      %v670 = vsel %vm657, %v654, 0
      %v672 = vsel %vm657, %v656, 0
      %674 = vmatpush.xpose.msra.mxu0 0.0
      %675 = vmatpush.xpose.msra.mxu0 0.0
      %676 = vmatpush.xpose.msra.mxu0 0.0
      %677 = vmatpush.xpose.msra.mxu0 0.0
      %678 = vmatpush.xpose.msra.mxu0 0.0
      %679 = vmatpush.xpose.msra.mxu0 0.0
      %680 = vmatpush.xpose.msra.mxu0 0.0
      %681 = vmatpush.xpose.msra.mxu0 0.0
      %682 = vmatpush.xpose.msra.mxu0 0.0
      %683 = vmatpush.xpose.msra.mxu0 0.0
      %684 = vmatpush.xpose.msra.mxu0 0.0
      %685 = vmatpush.xpose.msra.mxu0 0.0
      %686 = vmatpush.xpose.msra.mxu0 %v672
      %687 = vmatpush.xpose.msra.mxu0 %v670
      %688 = vmatpush.xpose.msra.mxu0 %v668
      %689 = vmatpush.xpose.msra.mxu0 %v666
      %690 = vmatmul.f32.gmra.mxu0 %v658
      %v691 = vpop.f32.mrf.mxu0
      %v692 = vadd.f32 0.0, %v691
      %693 = vmatmul.f32.gmra.mxu0 %v660
      %v694 = vpop.f32.mrf.mxu0
      %v695 = vadd.f32 0.0, %v694
      %696 = vmatmul.f32.gmra.mxu0 %v662
      %v697 = vpop.f32.mrf.mxu0
      %v698 = vadd.f32 0.0, %v697
      %699 = vmatmul.f32.gmra.mxu0 %v664
      %v700 = vpop.f32.mrf.mxu0
      %v701 = vadd.f32 0.0, %v700
      %702 = vdwg.mxu0
      %v703 = vmul.f32 %v692, 0.28867513
      %v704 = vmul.f32 %v695, 0.28867513
      %v705 = vmul.f32 %v698, 0.28867513
      %v706 = vmul.f32 %v701, 0.28867513
      %vm707 = vcmask 261120
      %v708 = vsel %vm707, %v703, -inf
      %709 = vmax.xlane.f32.xlu0 %v708
      %v710 = vpop.xlane.xlu0 %709
      %v711 = vsel %vm707, %v704, -inf
      %712 = vmax.xlane.f32.xlu0 %v711
      %v713 = vpop.xlane.xlu0 %712
      %v714 = vsel %vm707, %v705, -inf
      %715 = vmax.xlane.f32.xlu0 %v714
      %v716 = vpop.xlane.xlu0 %715
      %v717 = vsel %vm707, %v706, -inf
      %718 = vmax.xlane.f32.xlu0 %v717
      %v719 = vpop.xlane.xlu0 %718
      %v720 = vsub.f32 %v703, %v710
      %v721 = vsub.f32 %v704, %v713
      %v722 = vsub.f32 %v705, %v716
      %v723 = vsub.f32 %v706, %v719
      %v724 = vmul.f32 %v720, 1.442695
      %v725 = vpow.pop %v724
      %v726 = vmul.f32 %v721, 1.442695
      %v727 = vpow.pop %v726
      %v728 = vmul.f32 %v722, 1.442695
      %v729 = vpow.pop %v728
      %v730 = vmul.f32 %v723, 1.442695
      %v731 = vpow.pop %v730
      %v732 = vsel %vm707, %v725, 0.0
      %733 = vadd.xlane.f32.xlu0 %v732
      %v734 = vpop.xlane.xlu0 %733
      %v735 = vsel %vm707, %v727, 0.0
      %736 = vadd.xlane.f32.xlu0 %v735
      %v737 = vpop.xlane.xlu0 %736
      %v738 = vsel %vm707, %v729, 0.0
      %739 = vadd.xlane.f32.xlu0 %v738
      %v740 = vpop.xlane.xlu0 %739
      %v741 = vsel %vm707, %v731, 0.0
      %742 = vadd.xlane.f32.xlu0 %v741
      %v743 = vpop.xlane.xlu0 %742
      %v744 = vrcp.pop %v734
      %v745 = vmul.f32 %v734, %v744
      %v746 = vsub.f32 1.0, %v745
      %v747 = vmul.f32 %v744, %v746
      %v748 = vadd.f32 %v744, %v747
      %vm749 = vweird.f32 %v734
      %vm750 = vweird.f32 %v744
      %vm751 = vmor %vm749, %vm750
      %v752 = vsel %vm751, %v744, %v748
      %v753 = vand.u32 2147483647, %v734
      %vm754 = vcmp.eq.f32.partialorder %v753, 8.507059e+37
      %v755 = vand.u32 %v734, 2147483648
      %v756 = vor.u32 1.1754944e-38, %v755
      %v757 = vsel %vm754, %v756, %v752
      %v758 = vmul.f32 %v725, %v757
      %v759 = vrcp.pop %v737
      %v760 = vmul.f32 %v737, %v759
      %v761 = vsub.f32 1.0, %v760
      %v762 = vmul.f32 %v759, %v761
      %v763 = vadd.f32 %v759, %v762
      %vm764 = vweird.f32 %v737
      %vm765 = vweird.f32 %v759
      %vm766 = vmor %vm764, %vm765
      %v767 = vsel %vm766, %v759, %v763
      %v768 = vand.u32 2147483647, %v737
      %vm769 = vcmp.eq.f32.partialorder %v768, 8.507059e+37
      %v770 = vand.u32 %v737, 2147483648
      %v771 = vor.u32 1.1754944e-38, %v770
      %v772 = vsel %vm769, %v771, %v767
      %v773 = vmul.f32 %v727, %v772
      %v774 = vrcp.pop %v740
      %v775 = vmul.f32 %v740, %v774
      %v776 = vsub.f32 1.0, %v775
      %v777 = vmul.f32 %v774, %v776
      %v778 = vadd.f32 %v774, %v777
      %vm779 = vweird.f32 %v740
      %vm780 = vweird.f32 %v774
      %vm781 = vmor %vm779, %vm780
      %v782 = vsel %vm781, %v774, %v778
      %v783 = vand.u32 2147483647, %v740
      %vm784 = vcmp.eq.f32.partialorder %v783, 8.507059e+37
      %v785 = vand.u32 %v740, 2147483648
      %v786 = vor.u32 1.1754944e-38, %v785
      %v787 = vsel %vm784, %v786, %v782
      %v788 = vmul.f32 %v729, %v787
      %v789 = vrcp.pop %v743
      %v790 = vmul.f32 %v743, %v789
      %v791 = vsub.f32 1.0, %v790
      %v792 = vmul.f32 %v789, %v791
      %v793 = vadd.f32 %v789, %v792
      %vm794 = vweird.f32 %v743
      %vm795 = vweird.f32 %v789
      %vm796 = vmor %vm794, %vm795
      %v797 = vsel %vm796, %v789, %v793
      %v798 = vand.u32 2147483647, %v743
      %vm799 = vcmp.eq.f32.partialorder %v798, 8.507059e+37
      %v800 = vand.u32 %v743, 2147483648
      %v801 = vor.u32 1.1754944e-38, %v800
      %v802 = vsel %vm799, %v801, %v797
      %v803 = vmul.f32 %v731, %v802
      %804 = vrot.lane.b32.xlu0 %v605, 32
      %v805 = vpop.permute.xlu0 %804
      %806 = vrot.lane.b32.xlu0 %v608, 32
      %v807 = vpop.permute.xlu0 %806
      %808 = vrot.lane.b32.xlu0 %v611, 32
      %v809 = vpop.permute.xlu0 %808
      %810 = vrot.lane.b32.xlu0 %v614, 32
      %v811 = vpop.permute.xlu0 %810
      %v817 = vsel %vm707, %v758, 0
      %v820 = vsel %vm707, %v773, 0
      %v823 = vsel %vm707, %v788, 0
      %v826 = vsel %vm707, %v803, 0
      %828 = vmatpush.msra.mxu0 0.0
      %829 = vmatpush.msra.mxu0 0.0
      %830 = vmatpush.msra.mxu0 0.0
      %831 = vmatpush.msra.mxu0 0.0
      %832 = vmatpush.msra.mxu0 0.0
      %833 = vmatpush.msra.mxu0 0.0
      %834 = vmatpush.msra.mxu0 0.0
      %835 = vmatpush.msra.mxu0 0.0
      %836 = vmatpush.msra.mxu0 0.0
      %837 = vmatpush.msra.mxu0 0.0
      %838 = vmatpush.msra.mxu0 0.0
      %839 = vmatpush.msra.mxu0 0.0
      %840 = vmatpush.msra.mxu0 %v811
      %841 = vmatpush.msra.mxu0 %v809
      %842 = vmatpush.msra.mxu0 %v807
      %843 = vmatpush.msra.mxu0 %v805
      %844 = vmatmul.f32.gmra.mxu0 %v817
      %v845 = vpop.f32.mrf.mxu0
      %v846 = vadd.f32 0.0, %v845
      %847 = vmatmul.f32.gmra.mxu0 %v820
      %v848 = vpop.f32.mrf.mxu0
      %v849 = vadd.f32 0.0, %v848
      %850 = vmatmul.f32.gmra.mxu0 %v823
      %v851 = vpop.f32.mrf.mxu0
      %v852 = vadd.f32 0.0, %v851
      %853 = vmatmul.f32.gmra.mxu0 %v826
      %v854 = vpop.f32.mrf.mxu0
      %v855 = vadd.f32 0.0, %v854
      %856 = vdwg.mxu0
      %857 = vrot.lane.b32.xlu0 %v605, 116
      %v858 = vpop.permute.xlu0 %857
      %859 = vrot.lane.b32.xlu0 %v608, 116
      %v860 = vpop.permute.xlu0 %859
      %861 = vrot.lane.b32.xlu0 %v611, 116
      %v862 = vpop.permute.xlu0 %861
      %863 = vrot.lane.b32.xlu0 %v614, 116
      %v864 = vpop.permute.xlu0 %863
      %865 = vrot.lane.b32.xlu0 %v605, 68
      %v866 = vpop.permute.xlu0 %865
      %867 = vrot.lane.b32.xlu0 %v608, 68
      %v868 = vpop.permute.xlu0 %867
      %869 = vrot.lane.b32.xlu0 %v611, 68
      %v870 = vpop.permute.xlu0 %869
      %871 = vrot.lane.b32.xlu0 %v614, 68
      %v872 = vpop.permute.xlu0 %871
      %v873 = vsel %vm657, %v858, 0
      %v875 = vsel %vm657, %v860, 0
      %v877 = vsel %vm657, %v862, 0
      %v879 = vsel %vm657, %v864, 0
      %v881 = vsel %vm657, %v866, 0
      %v883 = vsel %vm657, %v868, 0
      %v885 = vsel %vm657, %v870, 0
      %v887 = vsel %vm657, %v872, 0
      %889 = vmatpush.xpose.msra.mxu0 0.0
      %890 = vmatpush.xpose.msra.mxu0 0.0
      %891 = vmatpush.xpose.msra.mxu0 0.0
      %892 = vmatpush.xpose.msra.mxu0 0.0
      %893 = vmatpush.xpose.msra.mxu0 0.0
      %894 = vmatpush.xpose.msra.mxu0 0.0
      %895 = vmatpush.xpose.msra.mxu0 0.0
      %896 = vmatpush.xpose.msra.mxu0 0.0
      %897 = vmatpush.xpose.msra.mxu0 0.0
      %898 = vmatpush.xpose.msra.mxu0 0.0
      %899 = vmatpush.xpose.msra.mxu0 0.0
      %900 = vmatpush.xpose.msra.mxu0 0.0
      %901 = vmatpush.xpose.msra.mxu0 %v887
      %902 = vmatpush.xpose.msra.mxu0 %v885
      %903 = vmatpush.xpose.msra.mxu0 %v883
      %904 = vmatpush.xpose.msra.mxu0 %v881
      %905 = vmatmul.f32.gmra.mxu0 %v873
      %v906 = vpop.f32.mrf.mxu0
      %v907 = vadd.f32 0.0, %v906
      %908 = vmatmul.f32.gmra.mxu0 %v875
      %v909 = vpop.f32.mrf.mxu0
      %v910 = vadd.f32 0.0, %v909
      %911 = vmatmul.f32.gmra.mxu0 %v877
      %v912 = vpop.f32.mrf.mxu0
      %v913 = vadd.f32 0.0, %v912
      %914 = vmatmul.f32.gmra.mxu0 %v879
      %v915 = vpop.f32.mrf.mxu0
      %v916 = vadd.f32 0.0, %v915
      %917 = vdwg.mxu0
      %v918 = vmul.f32 %v907, 0.28867513
      %v919 = vmul.f32 %v910, 0.28867513
      %v920 = vmul.f32 %v913, 0.28867513
      %v921 = vmul.f32 %v916, 0.28867513
      %v922 = vsel %vm707, %v918, -inf
      %923 = vmax.xlane.f32.xlu0 %v922
      %v924 = vpop.xlane.xlu0 %923
      %v925 = vsel %vm707, %v919, -inf
      %926 = vmax.xlane.f32.xlu0 %v925
      %v927 = vpop.xlane.xlu0 %926
      %v928 = vsel %vm707, %v920, -inf
      %929 = vmax.xlane.f32.xlu0 %v928
      %v930 = vpop.xlane.xlu0 %929
      %v931 = vsel %vm707, %v921, -inf
      %932 = vmax.xlane.f32.xlu0 %v931
      %v933 = vpop.xlane.xlu0 %932
      %v934 = vsub.f32 %v918, %v924
      %v935 = vsub.f32 %v919, %v927
      %v936 = vsub.f32 %v920, %v930
      %v937 = vsub.f32 %v921, %v933
      %v938 = vmul.f32 %v934, 1.442695
      %v939 = vpow.pop %v938
      %v940 = vmul.f32 %v935, 1.442695
      %v941 = vpow.pop %v940
      %v942 = vmul.f32 %v936, 1.442695
      %v943 = vpow.pop %v942
      %v944 = vmul.f32 %v937, 1.442695
      %v945 = vpow.pop %v944
      %v946 = vsel %vm707, %v939, 0.0
      %947 = vadd.xlane.f32.xlu0 %v946
      %v948 = vpop.xlane.xlu0 %947
      %v949 = vsel %vm707, %v941, 0.0
      %950 = vadd.xlane.f32.xlu0 %v949
      %v951 = vpop.xlane.xlu0 %950
      %v952 = vsel %vm707, %v943, 0.0
      %953 = vadd.xlane.f32.xlu0 %v952
      %v954 = vpop.xlane.xlu0 %953
      %v955 = vsel %vm707, %v945, 0.0
      %956 = vadd.xlane.f32.xlu0 %v955
      %v957 = vpop.xlane.xlu0 %956
      %v958 = vrcp.pop %v948
      %v959 = vmul.f32 %v948, %v958
      %v960 = vsub.f32 1.0, %v959
      %v961 = vmul.f32 %v958, %v960
      %v962 = vadd.f32 %v958, %v961
      %vm963 = vweird.f32 %v948
      %vm964 = vweird.f32 %v958
      %vm965 = vmor %vm963, %vm964
      %v966 = vsel %vm965, %v958, %v962
      %v967 = vand.u32 2147483647, %v948
      %vm968 = vcmp.eq.f32.partialorder %v967, 8.507059e+37
      %v969 = vand.u32 %v948, 2147483648
      %v970 = vor.u32 1.1754944e-38, %v969
      %v971 = vsel %vm968, %v970, %v966
      %v972 = vmul.f32 %v939, %v971
      %v973 = vrcp.pop %v951
      %v974 = vmul.f32 %v951, %v973
      %v975 = vsub.f32 1.0, %v974
      %v976 = vmul.f32 %v973, %v975
      %v977 = vadd.f32 %v973, %v976
      %vm978 = vweird.f32 %v951
      %vm979 = vweird.f32 %v973
      %vm980 = vmor %vm978, %vm979
      %v981 = vsel %vm980, %v973, %v977
      %v982 = vand.u32 2147483647, %v951
      %vm983 = vcmp.eq.f32.partialorder %v982, 8.507059e+37
      %v984 = vand.u32 %v951, 2147483648
      %v985 = vor.u32 1.1754944e-38, %v984
      %v986 = vsel %vm983, %v985, %v981
      %v987 = vmul.f32 %v941, %v986
      %v988 = vrcp.pop %v954
      %v989 = vmul.f32 %v954, %v988
      %v990 = vsub.f32 1.0, %v989
      %v991 = vmul.f32 %v988, %v990
      %v992 = vadd.f32 %v988, %v991
      %vm993 = vweird.f32 %v954
      %vm994 = vweird.f32 %v988
      %vm995 = vmor %vm993, %vm994
      %v996 = vsel %vm995, %v988, %v992
      %v997 = vand.u32 2147483647, %v954
      %vm998 = vcmp.eq.f32.partialorder %v997, 8.507059e+37
      %v999 = vand.u32 %v954, 2147483648
      %v1000 = vor.u32 1.1754944e-38, %v999
      %v1001 = vsel %vm998, %v1000, %v996
      %v1002 = vmul.f32 %v943, %v1001
      %v1003 = vrcp.pop %v957
      %v1004 = vmul.f32 %v957, %v1003
      %v1005 = vsub.f32 1.0, %v1004
      %v1006 = vmul.f32 %v1003, %v1005
      %v1007 = vadd.f32 %v1003, %v1006
      %vm1008 = vweird.f32 %v957
      %vm1009 = vweird.f32 %v1003
      %vm1010 = vmor %vm1008, %vm1009
      %v1011 = vsel %vm1010, %v1003, %v1007
      %v1012 = vand.u32 2147483647, %v957
      %vm1013 = vcmp.eq.f32.partialorder %v1012, 8.507059e+37
      %v1014 = vand.u32 %v957, 2147483648
      %v1015 = vor.u32 1.1754944e-38, %v1014
      %v1016 = vsel %vm1013, %v1015, %v1011
      %v1017 = vmul.f32 %v945, %v1016
      %1018 = vrot.lane.b32.xlu0 %v605, 20
      %v1019 = vpop.permute.xlu0 %1018
      %1020 = vrot.lane.b32.xlu0 %v608, 20
      %v1021 = vpop.permute.xlu0 %1020
      %1022 = vrot.lane.b32.xlu0 %v611, 20
      %v1023 = vpop.permute.xlu0 %1022
      %1024 = vrot.lane.b32.xlu0 %v614, 20
      %v1025 = vpop.permute.xlu0 %1024
      %v1031 = vsel %vm707, %v972, 0
      %v1034 = vsel %vm707, %v987, 0
      %v1037 = vsel %vm707, %v1002, 0
      %v1040 = vsel %vm707, %v1017, 0
      %1042 = vmatpush.msra.mxu0 0.0
      %1043 = vmatpush.msra.mxu0 0.0
      %1044 = vmatpush.msra.mxu0 0.0
      %1045 = vmatpush.msra.mxu0 0.0
      %1046 = vmatpush.msra.mxu0 0.0
      %1047 = vmatpush.msra.mxu0 0.0
      %1048 = vmatpush.msra.mxu0 0.0
      %1049 = vmatpush.msra.mxu0 0.0
      %1050 = vmatpush.msra.mxu0 0.0
      %1051 = vmatpush.msra.mxu0 0.0
      %1052 = vmatpush.msra.mxu0 0.0
      %1053 = vmatpush.msra.mxu0 0.0
      %1054 = vmatpush.msra.mxu0 %v1025
      %1055 = vmatpush.msra.mxu0 %v1023
      %1056 = vmatpush.msra.mxu0 %v1021
      %1057 = vmatpush.msra.mxu0 %v1019
      %1058 = vmatmul.f32.gmra.mxu0 %v1031
      %v1059 = vpop.f32.mrf.mxu0
      %v1060 = vadd.f32 0.0, %v1059
      %1061 = vmatmul.f32.gmra.mxu0 %v1034
      %v1062 = vpop.f32.mrf.mxu0
      %v1063 = vadd.f32 0.0, %v1062
      %1064 = vmatmul.f32.gmra.mxu0 %v1037
      %v1065 = vpop.f32.mrf.mxu0
      %v1066 = vadd.f32 0.0, %v1065
      %1067 = vmatmul.f32.gmra.mxu0 %v1040
      %v1068 = vpop.f32.mrf.mxu0
      %v1069 = vadd.f32 0.0, %v1068
      %1070 = vdwg.mxu0
      %1071 = vrot.lane.b32.xlu0 %v605, 104
      %v1072 = vpop.permute.xlu0 %1071
      %1073 = vrot.lane.b32.xlu0 %v608, 104
      %v1074 = vpop.permute.xlu0 %1073
      %1075 = vrot.lane.b32.xlu0 %v611, 104
      %v1076 = vpop.permute.xlu0 %1075
      %1077 = vrot.lane.b32.xlu0 %v614, 104
      %v1078 = vpop.permute.xlu0 %1077
      %1079 = vrot.lane.b32.xlu0 %v605, 56
      %v1080 = vpop.permute.xlu0 %1079
      %1081 = vrot.lane.b32.xlu0 %v608, 56
      %v1082 = vpop.permute.xlu0 %1081
      %1083 = vrot.lane.b32.xlu0 %v611, 56
      %v1084 = vpop.permute.xlu0 %1083
      %1085 = vrot.lane.b32.xlu0 %v614, 56
      %v1086 = vpop.permute.xlu0 %1085
      %v1087 = vsel %vm657, %v1072, 0
      %v1089 = vsel %vm657, %v1074, 0
      %v1091 = vsel %vm657, %v1076, 0
      %v1093 = vsel %vm657, %v1078, 0
      %v1095 = vsel %vm657, %v1080, 0
      %v1097 = vsel %vm657, %v1082, 0
      %v1099 = vsel %vm657, %v1084, 0
      %v1101 = vsel %vm657, %v1086, 0
      %1103 = vmatpush.xpose.msra.mxu0 0.0
      %1104 = vmatpush.xpose.msra.mxu0 0.0
      %1105 = vmatpush.xpose.msra.mxu0 0.0
      %1106 = vmatpush.xpose.msra.mxu0 0.0
      %1107 = vmatpush.xpose.msra.mxu0 0.0
      %1108 = vmatpush.xpose.msra.mxu0 0.0
      %1109 = vmatpush.xpose.msra.mxu0 0.0
      %1110 = vmatpush.xpose.msra.mxu0 0.0
      %1111 = vmatpush.xpose.msra.mxu0 0.0
      %1112 = vmatpush.xpose.msra.mxu0 0.0
      %1113 = vmatpush.xpose.msra.mxu0 0.0
      %1114 = vmatpush.xpose.msra.mxu0 0.0
      %1115 = vmatpush.xpose.msra.mxu0 %v1101
      %1116 = vmatpush.xpose.msra.mxu0 %v1099
      %1117 = vmatpush.xpose.msra.mxu0 %v1097
      %1118 = vmatpush.xpose.msra.mxu0 %v1095
      %1119 = vmatmul.f32.gmra.mxu0 %v1087
      %v1120 = vpop.f32.mrf.mxu0
      %v1121 = vadd.f32 0.0, %v1120
      %1122 = vmatmul.f32.gmra.mxu0 %v1089
      %v1123 = vpop.f32.mrf.mxu0
      %v1124 = vadd.f32 0.0, %v1123
      %1125 = vmatmul.f32.gmra.mxu0 %v1091
      %v1126 = vpop.f32.mrf.mxu0
      %v1127 = vadd.f32 0.0, %v1126
      %1128 = vmatmul.f32.gmra.mxu0 %v1093
      %v1129 = vpop.f32.mrf.mxu0
      %v1130 = vadd.f32 0.0, %v1129
      %1131 = vdwg.mxu0
      %v1132 = vmul.f32 %v1121, 0.28867513
      %v1133 = vmul.f32 %v1124, 0.28867513
      %v1134 = vmul.f32 %v1127, 0.28867513
      %v1135 = vmul.f32 %v1130, 0.28867513
      %v1136 = vsel %vm707, %v1132, -inf
      %1137 = vmax.xlane.f32.xlu0 %v1136
      %v1138 = vpop.xlane.xlu0 %1137
      %v1139 = vsel %vm707, %v1133, -inf
      %1140 = vmax.xlane.f32.xlu0 %v1139
      %v1141 = vpop.xlane.xlu0 %1140
      %v1142 = vsel %vm707, %v1134, -inf
      %1143 = vmax.xlane.f32.xlu0 %v1142
      %v1144 = vpop.xlane.xlu0 %1143
      %v1145 = vsel %vm707, %v1135, -inf
      %1146 = vmax.xlane.f32.xlu0 %v1145
      %v1147 = vpop.xlane.xlu0 %1146
      %v1148 = vsub.f32 %v1132, %v1138
      %v1149 = vsub.f32 %v1133, %v1141
      %v1150 = vsub.f32 %v1134, %v1144
      %v1151 = vsub.f32 %v1135, %v1147
      %v1152 = vmul.f32 %v1148, 1.442695
      %v1153 = vpow.pop %v1152
      %v1154 = vmul.f32 %v1149, 1.442695
      %v1155 = vpow.pop %v1154
      %v1156 = vmul.f32 %v1150, 1.442695
      %v1157 = vpow.pop %v1156
      %v1158 = vmul.f32 %v1151, 1.442695
      %v1159 = vpow.pop %v1158
      %v1160 = vsel %vm707, %v1153, 0.0
      %1161 = vadd.xlane.f32.xlu0 %v1160
      %v1162 = vpop.xlane.xlu0 %1161
      %v1163 = vsel %vm707, %v1155, 0.0
      %1164 = vadd.xlane.f32.xlu0 %v1163
      %v1165 = vpop.xlane.xlu0 %1164
      %v1166 = vsel %vm707, %v1157, 0.0
      %1167 = vadd.xlane.f32.xlu0 %v1166
      %v1168 = vpop.xlane.xlu0 %1167
      %v1169 = vsel %vm707, %v1159, 0.0
      %1170 = vadd.xlane.f32.xlu0 %v1169
      %v1171 = vpop.xlane.xlu0 %1170
      %v1172 = vrcp.pop %v1162
      %v1173 = vmul.f32 %v1162, %v1172
      %v1174 = vsub.f32 1.0, %v1173
      %v1175 = vmul.f32 %v1172, %v1174
      %v1176 = vadd.f32 %v1172, %v1175
      %vm1177 = vweird.f32 %v1162
      %vm1178 = vweird.f32 %v1172
      %vm1179 = vmor %vm1177, %vm1178
      %v1180 = vsel %vm1179, %v1172, %v1176
      %v1181 = vand.u32 2147483647, %v1162
      %vm1182 = vcmp.eq.f32.partialorder %v1181, 8.507059e+37
      %v1183 = vand.u32 %v1162, 2147483648
      %v1184 = vor.u32 1.1754944e-38, %v1183
      %v1185 = vsel %vm1182, %v1184, %v1180
      %v1186 = vmul.f32 %v1153, %v1185
      %v1187 = vrcp.pop %v1165
      %v1188 = vmul.f32 %v1165, %v1187
      %v1189 = vsub.f32 1.0, %v1188
      %v1190 = vmul.f32 %v1187, %v1189
      %v1191 = vadd.f32 %v1187, %v1190
      %vm1192 = vweird.f32 %v1165
      %vm1193 = vweird.f32 %v1187
      %vm1194 = vmor %vm1192, %vm1193
      %v1195 = vsel %vm1194, %v1187, %v1191
      %v1196 = vand.u32 2147483647, %v1165
      %vm1197 = vcmp.eq.f32.partialorder %v1196, 8.507059e+37
      %v1198 = vand.u32 %v1165, 2147483648
      %v1199 = vor.u32 1.1754944e-38, %v1198
      %v1200 = vsel %vm1197, %v1199, %v1195
      %v1201 = vmul.f32 %v1155, %v1200
      %v1202 = vrcp.pop %v1168
      %v1203 = vmul.f32 %v1168, %v1202
      %v1204 = vsub.f32 1.0, %v1203
      %v1205 = vmul.f32 %v1202, %v1204
      %v1206 = vadd.f32 %v1202, %v1205
      %vm1207 = vweird.f32 %v1168
      %vm1208 = vweird.f32 %v1202
      %vm1209 = vmor %vm1207, %vm1208
      %v1210 = vsel %vm1209, %v1202, %v1206
      %v1211 = vand.u32 2147483647, %v1168
      %vm1212 = vcmp.eq.f32.partialorder %v1211, 8.507059e+37
      %v1213 = vand.u32 %v1168, 2147483648
      %v1214 = vor.u32 1.1754944e-38, %v1213
      %v1215 = vsel %vm1212, %v1214, %v1210
      %v1216 = vmul.f32 %v1157, %v1215
      %v1217 = vrcp.pop %v1171
      %v1218 = vmul.f32 %v1171, %v1217
      %v1219 = vsub.f32 1.0, %v1218
      %v1220 = vmul.f32 %v1217, %v1219
      %v1221 = vadd.f32 %v1217, %v1220
      %vm1222 = vweird.f32 %v1171
      %vm1223 = vweird.f32 %v1217
      %vm1224 = vmor %vm1222, %vm1223
      %v1225 = vsel %vm1224, %v1217, %v1221
      %v1226 = vand.u32 2147483647, %v1171
      %vm1227 = vcmp.eq.f32.partialorder %v1226, 8.507059e+37
      %v1228 = vand.u32 %v1171, 2147483648
      %v1229 = vor.u32 1.1754944e-38, %v1228
      %v1230 = vsel %vm1227, %v1229, %v1225
      %v1231 = vmul.f32 %v1159, %v1230
      %1236 = vrot.lane.b32.xlu0 %v605, 8
      %v1237 = vpop.permute.xlu0 %1236
      %1238 = vrot.lane.b32.xlu0 %v634, 8
      %v1239 = vpop.permute.xlu0 %1238
      %1240 = vrot.lane.b32.xlu0 %v608, 8
      %v1241 = vpop.permute.xlu0 %1240
      %1242 = vrot.lane.b32.xlu0 %v637, 8
      %v1243 = vpop.permute.xlu0 %1242
      %1244 = vrot.lane.b32.xlu0 %v611, 8
      %v1245 = vpop.permute.xlu0 %1244
      %1246 = vrot.lane.b32.xlu0 %v640, 8
      %v1247 = vpop.permute.xlu0 %1246
      %1248 = vrot.lane.b32.xlu0 %v614, 8
      %v1249 = vpop.permute.xlu0 %1248
      %1250 = vrot.lane.b32.xlu0 %v643, 8
      %v1251 = vpop.permute.xlu0 %1250
      %vm1252 = vcmask 64512
      %v1253 = vsel %vm1252, %v1237, %v1239
      %v1254 = vsel %vm1252, %v1241, %v1243
      %v1255 = vsel %vm1252, %v1245, %v1247
      %v1256 = vsel %vm1252, %v1249, %v1251
      %v1262 = vsel %vm707, %v1186, 0
      %v1265 = vsel %vm707, %v1201, 0
      %v1268 = vsel %vm707, %v1216, 0
      %v1271 = vsel %vm707, %v1231, 0
      %1273 = vmatpush.msra.mxu0 0.0
      %1274 = vmatpush.msra.mxu0 0.0
      %1275 = vmatpush.msra.mxu0 0.0
      %1276 = vmatpush.msra.mxu0 0.0
      %1277 = vmatpush.msra.mxu0 0.0
      %1278 = vmatpush.msra.mxu0 0.0
      %1279 = vmatpush.msra.mxu0 0.0
      %1280 = vmatpush.msra.mxu0 0.0
      %1281 = vmatpush.msra.mxu0 0.0
      %1282 = vmatpush.msra.mxu0 0.0
      %1283 = vmatpush.msra.mxu0 0.0
      %1284 = vmatpush.msra.mxu0 0.0
      %1285 = vmatpush.msra.mxu0 %v1256
      %1286 = vmatpush.msra.mxu0 %v1255
      %1287 = vmatpush.msra.mxu0 %v1254
      %1288 = vmatpush.msra.mxu0 %v1253
      %1289 = vmatmul.f32.gmra.mxu0 %v1262
      %v1290 = vpop.f32.mrf.mxu0
      %v1291 = vadd.f32 0.0, %v1290
      %1292 = vmatmul.f32.gmra.mxu0 %v1265
      %v1293 = vpop.f32.mrf.mxu0
      %v1294 = vadd.f32 0.0, %v1293
      %1295 = vmatmul.f32.gmra.mxu0 %v1268
      %v1296 = vpop.f32.mrf.mxu0
      %v1297 = vadd.f32 0.0, %v1296
      %1298 = vmatmul.f32.gmra.mxu0 %v1271
      %v1299 = vpop.f32.mrf.mxu0
      %v1300 = vadd.f32 0.0, %v1299
      %1301 = vdwg.mxu0
      %1302 = vrot.lane.b32.xlu0 %v605, 92
      %v1303 = vpop.permute.xlu0 %1302
      %1304 = vrot.lane.b32.xlu0 %v608, 92
      %v1305 = vpop.permute.xlu0 %1304
      %1306 = vrot.lane.b32.xlu0 %v611, 92
      %v1307 = vpop.permute.xlu0 %1306
      %1308 = vrot.lane.b32.xlu0 %v614, 92
      %v1309 = vpop.permute.xlu0 %1308
      %1310 = vrot.lane.b32.xlu0 %v605, 44
      %v1311 = vpop.permute.xlu0 %1310
      %1312 = vrot.lane.b32.xlu0 %v608, 44
      %v1313 = vpop.permute.xlu0 %1312
      %1314 = vrot.lane.b32.xlu0 %v611, 44
      %v1315 = vpop.permute.xlu0 %1314
      %1316 = vrot.lane.b32.xlu0 %v614, 44
      %v1317 = vpop.permute.xlu0 %1316
      %v1318 = vsel %vm657, %v1303, 0
      %v1320 = vsel %vm657, %v1305, 0
      %v1322 = vsel %vm657, %v1307, 0
      %v1324 = vsel %vm657, %v1309, 0
      %v1326 = vsel %vm657, %v1311, 0
      %v1328 = vsel %vm657, %v1313, 0
      %v1330 = vsel %vm657, %v1315, 0
      %v1332 = vsel %vm657, %v1317, 0
      %1334 = vmatpush.xpose.msra.mxu0 0.0
      %1335 = vmatpush.xpose.msra.mxu0 0.0
      %1336 = vmatpush.xpose.msra.mxu0 0.0
      %1337 = vmatpush.xpose.msra.mxu0 0.0
      %1338 = vmatpush.xpose.msra.mxu0 0.0
      %1339 = vmatpush.xpose.msra.mxu0 0.0
      %1340 = vmatpush.xpose.msra.mxu0 0.0
      %1341 = vmatpush.xpose.msra.mxu0 0.0
      %1342 = vmatpush.xpose.msra.mxu0 0.0
      %1343 = vmatpush.xpose.msra.mxu0 0.0
      %1344 = vmatpush.xpose.msra.mxu0 0.0
      %1345 = vmatpush.xpose.msra.mxu0 0.0
      %1346 = vmatpush.xpose.msra.mxu0 %v1332
      %1347 = vmatpush.xpose.msra.mxu0 %v1330
      %1348 = vmatpush.xpose.msra.mxu0 %v1328
      %1349 = vmatpush.xpose.msra.mxu0 %v1326
      %1350 = vmatmul.f32.gmra.mxu0 %v1318
      %v1351 = vpop.f32.mrf.mxu0
      %v1352 = vadd.f32 0.0, %v1351
      %1353 = vmatmul.f32.gmra.mxu0 %v1320
      %v1354 = vpop.f32.mrf.mxu0
      %v1355 = vadd.f32 0.0, %v1354
      %1356 = vmatmul.f32.gmra.mxu0 %v1322
      %v1357 = vpop.f32.mrf.mxu0
      %v1358 = vadd.f32 0.0, %v1357
      %1359 = vmatmul.f32.gmra.mxu0 %v1324
      %v1360 = vpop.f32.mrf.mxu0
      %v1361 = vadd.f32 0.0, %v1360
      %1362 = vdwg.mxu0
      %v1363 = vmul.f32 %v1352, 0.28867513
      %v1364 = vmul.f32 %v1355, 0.28867513
      %v1365 = vmul.f32 %v1358, 0.28867513
      %v1366 = vmul.f32 %v1361, 0.28867513
      %v1367 = vsel %vm707, %v1363, -inf
      %1368 = vmax.xlane.f32.xlu0 %v1367
      %v1369 = vpop.xlane.xlu0 %1368
      %v1370 = vsel %vm707, %v1364, -inf
      %1371 = vmax.xlane.f32.xlu0 %v1370
      %v1372 = vpop.xlane.xlu0 %1371
      %v1373 = vsel %vm707, %v1365, -inf
      %1374 = vmax.xlane.f32.xlu0 %v1373
      %v1375 = vpop.xlane.xlu0 %1374
      %v1376 = vsel %vm707, %v1366, -inf
      %1377 = vmax.xlane.f32.xlu0 %v1376
      %v1378 = vpop.xlane.xlu0 %1377
      %v1379 = vsub.f32 %v1363, %v1369
      %v1380 = vsub.f32 %v1364, %v1372
      %v1381 = vsub.f32 %v1365, %v1375
      %v1382 = vsub.f32 %v1366, %v1378
      %v1383 = vmul.f32 %v1379, 1.442695
      %v1384 = vpow.pop %v1383
      %v1385 = vmul.f32 %v1380, 1.442695
      %v1386 = vpow.pop %v1385
      %v1387 = vmul.f32 %v1381, 1.442695
      %v1388 = vpow.pop %v1387
      %v1389 = vmul.f32 %v1382, 1.442695
      %v1390 = vpow.pop %v1389
      %v1391 = vsel %vm707, %v1384, 0.0
      %1392 = vadd.xlane.f32.xlu0 %v1391
      %v1393 = vpop.xlane.xlu0 %1392
      %v1394 = vsel %vm707, %v1386, 0.0
      %1395 = vadd.xlane.f32.xlu0 %v1394
      %v1396 = vpop.xlane.xlu0 %1395
      %v1397 = vsel %vm707, %v1388, 0.0
      %1398 = vadd.xlane.f32.xlu0 %v1397
      %v1399 = vpop.xlane.xlu0 %1398
      %v1400 = vsel %vm707, %v1390, 0.0
      %1401 = vadd.xlane.f32.xlu0 %v1400
      %v1402 = vpop.xlane.xlu0 %1401
      %v1403 = vrcp.pop %v1393
      %v1404 = vmul.f32 %v1393, %v1403
      %v1405 = vsub.f32 1.0, %v1404
      %v1406 = vmul.f32 %v1403, %v1405
      %v1407 = vadd.f32 %v1403, %v1406
      %vm1408 = vweird.f32 %v1393
      %vm1409 = vweird.f32 %v1403
      %vm1410 = vmor %vm1408, %vm1409
      %v1411 = vsel %vm1410, %v1403, %v1407
      %v1412 = vand.u32 2147483647, %v1393
      %vm1413 = vcmp.eq.f32.partialorder %v1412, 8.507059e+37
      %v1414 = vand.u32 %v1393, 2147483648
      %v1415 = vor.u32 1.1754944e-38, %v1414
      %v1416 = vsel %vm1413, %v1415, %v1411
      %v1417 = vmul.f32 %v1384, %v1416
      %v1418 = vrcp.pop %v1396
      %v1419 = vmul.f32 %v1396, %v1418
      %v1420 = vsub.f32 1.0, %v1419
      %v1421 = vmul.f32 %v1418, %v1420
      %v1422 = vadd.f32 %v1418, %v1421
      %vm1423 = vweird.f32 %v1396
      %vm1424 = vweird.f32 %v1418
      %vm1425 = vmor %vm1423, %vm1424
      %v1426 = vsel %vm1425, %v1418, %v1422
      %v1427 = vand.u32 2147483647, %v1396
      %vm1428 = vcmp.eq.f32.partialorder %v1427, 8.507059e+37
      %v1429 = vand.u32 %v1396, 2147483648
      %v1430 = vor.u32 1.1754944e-38, %v1429
      %v1431 = vsel %vm1428, %v1430, %v1426
      %v1432 = vmul.f32 %v1386, %v1431
      %v1433 = vrcp.pop %v1399
      %v1434 = vmul.f32 %v1399, %v1433
      %v1435 = vsub.f32 1.0, %v1434
      %v1436 = vmul.f32 %v1433, %v1435
      %v1437 = vadd.f32 %v1433, %v1436
      %vm1438 = vweird.f32 %v1399
      %vm1439 = vweird.f32 %v1433
      %vm1440 = vmor %vm1438, %vm1439
      %v1441 = vsel %vm1440, %v1433, %v1437
      %v1442 = vand.u32 2147483647, %v1399
      %vm1443 = vcmp.eq.f32.partialorder %v1442, 8.507059e+37
      %v1444 = vand.u32 %v1399, 2147483648
      %v1445 = vor.u32 1.1754944e-38, %v1444
      %v1446 = vsel %vm1443, %v1445, %v1441
      %v1447 = vmul.f32 %v1388, %v1446
      %v1448 = vrcp.pop %v1402
      %v1449 = vmul.f32 %v1402, %v1448
      %v1450 = vsub.f32 1.0, %v1449
      %v1451 = vmul.f32 %v1448, %v1450
      %v1452 = vadd.f32 %v1448, %v1451
      %vm1453 = vweird.f32 %v1402
      %vm1454 = vweird.f32 %v1448
      %vm1455 = vmor %vm1453, %vm1454
      %v1456 = vsel %vm1455, %v1448, %v1452
      %v1457 = vand.u32 2147483647, %v1402
      %vm1458 = vcmp.eq.f32.partialorder %v1457, 8.507059e+37
      %v1459 = vand.u32 %v1402, 2147483648
      %v1460 = vor.u32 1.1754944e-38, %v1459
      %v1461 = vsel %vm1458, %v1460, %v1456
      %v1462 = vmul.f32 %v1390, %v1461
      %1463 = vrot.lane.b32.xlu0 %v634, 124
      %v1464 = vpop.permute.xlu0 %1463
      %1465 = vrot.lane.b32.xlu0 %v637, 124
      %v1466 = vpop.permute.xlu0 %1465
      %1467 = vrot.lane.b32.xlu0 %v640, 124
      %v1468 = vpop.permute.xlu0 %1467
      %1469 = vrot.lane.b32.xlu0 %v643, 124
      %v1470 = vpop.permute.xlu0 %1469
      %v1476 = vsel %vm707, %v1417, 0
      %v1479 = vsel %vm707, %v1432, 0
      %v1482 = vsel %vm707, %v1447, 0
      %v1485 = vsel %vm707, %v1462, 0
      %1487 = vmatpush.msra.mxu0 0.0
      %1488 = vmatpush.msra.mxu0 0.0
      %1489 = vmatpush.msra.mxu0 0.0
      %1490 = vmatpush.msra.mxu0 0.0
      %1491 = vmatpush.msra.mxu0 0.0
      %1492 = vmatpush.msra.mxu0 0.0
      %1493 = vmatpush.msra.mxu0 0.0
      %1494 = vmatpush.msra.mxu0 0.0
      %1495 = vmatpush.msra.mxu0 0.0
      %1496 = vmatpush.msra.mxu0 0.0
      %1497 = vmatpush.msra.mxu0 0.0
      %1498 = vmatpush.msra.mxu0 0.0
      %1499 = vmatpush.msra.mxu0 %v1470
      %1500 = vmatpush.msra.mxu0 %v1468
      %1501 = vmatpush.msra.mxu0 %v1466
      %1502 = vmatpush.msra.mxu0 %v1464
      %1503 = vmatmul.f32.gmra.mxu0 %v1476
      %v1504 = vpop.f32.mrf.mxu0
      %v1505 = vadd.f32 0.0, %v1504
      %1506 = vmatmul.f32.gmra.mxu0 %v1479
      %v1507 = vpop.f32.mrf.mxu0
      %v1508 = vadd.f32 0.0, %v1507
      %1509 = vmatmul.f32.gmra.mxu0 %v1482
      %v1510 = vpop.f32.mrf.mxu0
      %v1511 = vadd.f32 0.0, %v1510
      %1512 = vmatmul.f32.gmra.mxu0 %v1485
      %v1513 = vpop.f32.mrf.mxu0
      %v1514 = vadd.f32 0.0, %v1513
      %1515 = vdwg.mxu0
      %1520 = vrot.lane.b32.xlu0 %v1060, 12
      %v1521 = vpop.permute.xlu0 %1520
      %1522 = vrot.lane.b32.xlu0 %v1063, 12
      %v1523 = vpop.permute.xlu0 %1522
      %1524 = vrot.lane.b32.xlu0 %v1066, 12
      %v1525 = vpop.permute.xlu0 %1524
      %1526 = vrot.lane.b32.xlu0 %v1069, 12
      %v1527 = vpop.permute.xlu0 %1526
      %1536 = vrot.lane.b32.xlu0 %v1291, 24
      %v1537 = vpop.permute.xlu0 %1536
      %1538 = vrot.lane.b32.xlu0 %v1294, 24
      %v1539 = vpop.permute.xlu0 %1538
      %1540 = vrot.lane.b32.xlu0 %v1297, 24
      %v1541 = vpop.permute.xlu0 %1540
      %1542 = vrot.lane.b32.xlu0 %v1300, 24
      %v1543 = vpop.permute.xlu0 %1542
      %1552 = vrot.lane.b32.xlu0 %v1505, 36
      %v1553 = vpop.permute.xlu0 %1552
      %1554 = vrot.lane.b32.xlu0 %v1508, 36
      %v1555 = vpop.permute.xlu0 %1554
      %1556 = vrot.lane.b32.xlu0 %v1511, 36
      %v1557 = vpop.permute.xlu0 %1556
      %1558 = vrot.lane.b32.xlu0 %v1514, 36
      %v1559 = vpop.permute.xlu0 %1558
      %v1564 = vsel %vm657, %v846, %v1521
      %v1565 = vsel %vm657, %v849, %v1523
      %v1566 = vsel %vm657, %v852, %v1525
      %v1567 = vsel %vm657, %v855, %v1527
      %vm1568 = vcmask 195584
      %v1569 = vsel %vm1568, %v1564, %v1537
      %v1570 = vsel %vm1568, %v1565, %v1539
      %v1571 = vsel %vm1568, %v1566, %v1541
      %v1572 = vsel %vm1568, %v1567, %v1543
      %vm1573 = vcmask 293888
      %v1574 = vsel %vm1573, %v1569, %v1553
      %v1575 = vsel %vm1573, %v1570, %v1555
      %v1576 = vsel %vm1573, %v1571, %v1557
      %v1577 = vsel %vm1573, %v1572, %v1559
      %v1578 = vld [vmem:[%s5] sm:$0xff]
      %v1579 = vld [vmem:[%s5 + $0x8] sm:$0xff]
      %v1580 = vld [vmem:[%s5 + $0x10] sm:$0xff]
      %v1581 = vld [vmem:[%s5 + $0x18] sm:$0xff]
      %v1582 = vld [vmem:[%s5 + $0x20] sm:$0xff]
      %v1583 = vld [vmem:[%s5 + $0x28] sm:$0xff]
      %v1584 = vld [vmem:[%s6] sm:$0x1]
      %v1586 = vperm.slane %v1584, 0
      %v1589 = vsel %vm447, %v1574, 0
      %v1592 = vsel %vm447, %v1575, 0
      %v1595 = vsel %vm447, %v1576, 0
      %v1598 = vsel %vm447, %v1577, 0
      %1600 = vmatpush.msra.mxu0 0.0
      %1601 = vmatpush.msra.mxu0 0.0
      %1602 = vmatpush.msra.mxu0 0.0
      %1603 = vmatpush.msra.mxu0 0.0
      %1604 = vmatpush.msra.mxu0 0.0
      %1605 = vmatpush.msra.mxu0 0.0
      %1606 = vmatpush.msra.mxu0 0.0
      %1607 = vmatpush.msra.mxu0 0.0
      %1608 = vmatpush.msra.mxu0 0.0
      %1609 = vmatpush.msra.mxu0 0.0
      %1610 = vmatpush.msra.mxu0 %v1583
      %1611 = vmatpush.msra.mxu0 %v1582
      %1612 = vmatpush.msra.mxu0 %v1581
      %1613 = vmatpush.msra.mxu0 %v1580
      %1614 = vmatpush.msra.mxu0 %v1579
      %1615 = vmatpush.msra.mxu0 %v1578
      %1616 = vmatmul.f32.gmra.mxu0 %v1589
      %v1617 = vpop.f32.mrf.mxu0
      %v1618 = vadd.f32 %v1586, %v1617
      %1619 = vmatmul.f32.gmra.mxu0 %v1592
      %v1620 = vpop.f32.mrf.mxu0
      %v1621 = vadd.f32 %v1586, %v1620
      %1622 = vmatmul.f32.gmra.mxu0 %v1595
      %v1623 = vpop.f32.mrf.mxu0
      %v1624 = vadd.f32 %v1586, %v1623
      %1625 = vmatmul.f32.gmra.mxu0 %v1598
      %v1626 = vpop.f32.mrf.mxu0
      %v1627 = vadd.f32 %v1586, %v1626
      %1628 = vdwg.mxu0
      %v1629 = vadd.f32 %v1618, %v441
      %v1630 = vadd.f32 %v1621, %v442
      %v1631 = vadd.f32 %v1624, %v443
      %v1632 = vadd.f32 %v1627, %v444
      %v1633 = vld [vmem:[%s7] sm:$0x1]
      %v1634 = vld [vmem:[%s8] sm:$0x1]
      %v1635 = vsel %vm447, %v1629, 0.0
      %1636 = vadd.xlane.f32.xlu0 %v1635
      %v1637 = vpop.xlane.xlu0 %1636
      %v1638 = vsel %vm447, %v1630, 0.0
      %1639 = vadd.xlane.f32.xlu0 %v1638
      %v1640 = vpop.xlane.xlu0 %1639
      %v1641 = vsel %vm447, %v1631, 0.0
      %1642 = vadd.xlane.f32.xlu0 %v1641
      %v1643 = vpop.xlane.xlu0 %1642
      %v1644 = vsel %vm447, %v1632, 0.0
      %1645 = vadd.xlane.f32.xlu0 %v1644
      %v1646 = vpop.xlane.xlu0 %1645
      %v1647 = vmul.f32 %v1637, %v466
      %v1648 = vmul.f32 %v1640, %v466
      %v1649 = vmul.f32 %v1643, %v466
      %v1650 = vmul.f32 %v1646, %v466
      %v1651 = vsub.f32 %v1629, %v1647
      %v1652 = vsub.f32 %v1630, %v1648
      %v1653 = vsub.f32 %v1631, %v1649
      %v1654 = vsub.f32 %v1632, %v1650
      %v1655 = vmul.f32 %v1651, %v1651
      %v1656 = vmul.f32 %v1652, %v1652
      %v1657 = vmul.f32 %v1653, %v1653
      %v1658 = vmul.f32 %v1654, %v1654
      %v1659 = vsel %vm447, %v1655, 0.0
      %1660 = vadd.xlane.f32.xlu0 %v1659
      %v1661 = vpop.xlane.xlu0 %1660
      %v1662 = vsel %vm447, %v1656, 0.0
      %1663 = vadd.xlane.f32.xlu0 %v1662
      %v1664 = vpop.xlane.xlu0 %1663
      %v1665 = vsel %vm447, %v1657, 0.0
      %1666 = vadd.xlane.f32.xlu0 %v1665
      %v1667 = vpop.xlane.xlu0 %1666
      %v1668 = vsel %vm447, %v1658, 0.0
      %1669 = vadd.xlane.f32.xlu0 %v1668
      %v1670 = vpop.xlane.xlu0 %1669
      %v1671 = vmul.f32 %v1661, %v466
      %v1672 = vmul.f32 %v1664, %v466
      %v1673 = vmul.f32 %v1667, %v466
      %v1674 = vmul.f32 %v1670, %v466
      %v1675 = vadd.f32 %v1671, 1e-06
      %v1676 = vadd.f32 %v1672, 1e-06
      %v1677 = vadd.f32 %v1673, 1e-06
      %v1678 = vadd.f32 %v1674, 1e-06
      %v1679 = vrsqrt.pop %v1675
      %v1680 = vmul.f32 %v1679, %v1675
      %v1681 = vmul.f32 %v1680, %v1679
      %v1682 = vmul.f32 0.5, %v1681
      %v1683 = vsub.f32 1.5, %v1682
      %v1684 = vmul.f32 %v1679, %v1683
      %vm1685 = vweird.f32 %v1675
      %vm1686 = vweird.f32 %v1679
      %vm1687 = vmor %vm1685, %vm1686
      %v1688 = vsel %vm1687, %v1679, %v1684
      %v1689 = vrsqrt.pop %v1676
      %v1690 = vmul.f32 %v1689, %v1676
      %v1691 = vmul.f32 %v1690, %v1689
      %v1692 = vmul.f32 0.5, %v1691
      %v1693 = vsub.f32 1.5, %v1692
      %v1694 = vmul.f32 %v1689, %v1693
      %vm1695 = vweird.f32 %v1676
      %vm1696 = vweird.f32 %v1689
      %vm1697 = vmor %vm1695, %vm1696
      %v1698 = vsel %vm1697, %v1689, %v1694
      %v1699 = vrsqrt.pop %v1677
      %v1700 = vmul.f32 %v1699, %v1677
      %v1701 = vmul.f32 %v1700, %v1699
      %v1702 = vmul.f32 0.5, %v1701
      %v1703 = vsub.f32 1.5, %v1702
      %v1704 = vmul.f32 %v1699, %v1703
      %vm1705 = vweird.f32 %v1677
      %vm1706 = vweird.f32 %v1699
      %vm1707 = vmor %vm1705, %vm1706
      %v1708 = vsel %vm1707, %v1699, %v1704
      %v1709 = vrsqrt.pop %v1678
      %v1710 = vmul.f32 %v1709, %v1678
      %v1711 = vmul.f32 %v1710, %v1709
      %v1712 = vmul.f32 0.5, %v1711
      %v1713 = vsub.f32 1.5, %v1712
      %v1714 = vmul.f32 %v1709, %v1713
      %vm1715 = vweird.f32 %v1678
      %vm1716 = vweird.f32 %v1709
      %vm1717 = vmor %vm1715, %vm1716
      %v1718 = vsel %vm1717, %v1709, %v1714
      %v1719 = vmul.f32 %v1651, %v1688
      %v1720 = vmul.f32 %v1652, %v1698
      %v1721 = vmul.f32 %v1653, %v1708
      %v1722 = vmul.f32 %v1654, %v1718
      %v1724 = vperm.slane %v1633, 0
      %v1726 = vmul.f32 %v1719, %v1724
      %v1727 = vmul.f32 %v1720, %v1724
      %v1728 = vmul.f32 %v1721, %v1724
      %v1729 = vmul.f32 %v1722, %v1724
      %v1731 = vperm.slane %v1634, 0
      %v1733 = vadd.f32 %v1726, %v1731
      %v1734 = vadd.f32 %v1727, %v1731
      %v1735 = vadd.f32 %v1728, %v1731
      %v1736 = vadd.f32 %v1729, %v1731
      %v1737 = vld [vmem:[%s9] sm:$0xff]
      %v1738 = vld [vmem:[%s9 + $0x8] sm:$0xff]
      %v1739 = vld [vmem:[%s9 + $0x10] sm:$0xff]
      %v1740 = vld [vmem:[%s9 + $0x18] sm:$0xff]
      %v1741 = vld [vmem:[%s9 + $0x20] sm:$0xff]
      %v1742 = vld [vmem:[%s9 + $0x28] sm:$0xff]
      %v1743 = vld [vmem:[%s9 + $0x30] sm:$0xff]
      %v1744 = vld [vmem:[%s9 + $0x38] sm:$0xff]
      %v1745 = vld [vmem:[%s9 + $0x40] sm:$0xff]
      %v1746 = vld [vmem:[%s9 + $0x48] sm:$0xff]
      %v1747 = vld [vmem:[%s9 + $0x50] sm:$0xff]
      %v1748 = vld [vmem:[%s9 + $0x58] sm:$0xff]
      %v1749 = vld [vmem:[%s10] sm:$0x3]
      %v1751 = vperm.slane %v1749, 0
      %v1752 = vperm.slane %v1749, 1
      %v1756 = vsel %vm447, %v1733, 0
      %v1759 = vsel %vm447, %v1734, 0
      %v1762 = vsel %vm447, %v1735, 0
      %v1765 = vsel %vm447, %v1736, 0
      %1767 = vmatpush.msra.mxu0 0.0
      %1768 = vmatpush.msra.mxu0 0.0
      %1769 = vmatpush.msra.mxu0 0.0
      %1770 = vmatpush.msra.mxu0 0.0
      %1771 = vmatpush.msra.mxu0 0.0
      %1772 = vmatpush.msra.mxu0 0.0
      %1773 = vmatpush.msra.mxu0 0.0
      %1774 = vmatpush.msra.mxu0 0.0
      %1775 = vmatpush.msra.mxu0 0.0
      %1776 = vmatpush.msra.mxu0 0.0
      %1777 = vmatpush.msra.mxu0 %v1747
      %1778 = vmatpush.msra.mxu0 %v1745
      %1779 = vmatpush.msra.mxu0 %v1743
      %1780 = vmatpush.msra.mxu0 %v1741
      %1781 = vmatpush.msra.mxu0 %v1739
      %1782 = vmatpush.msra.mxu0 %v1737
      %1783 = vmatmul.f32.gmra.mxu0 %v1756
      %v1784 = vpop.f32.mrf.mxu0
      %v1785 = vadd.f32 %v1751, %v1784
      %1786 = vmatmul.f32.gmra.mxu0 %v1759
      %v1787 = vpop.f32.mrf.mxu0
      %v1788 = vadd.f32 %v1751, %v1787
      %1789 = vmatmul.f32.gmra.mxu0 %v1762
      %v1790 = vpop.f32.mrf.mxu0
      %v1791 = vadd.f32 %v1751, %v1790
      %1792 = vmatmul.f32.gmra.mxu0 %v1765
      %v1793 = vpop.f32.mrf.mxu0
      %v1794 = vadd.f32 %v1751, %v1793
      %1795 = vdwg.mxu0
      %1796 = vmatpush.msra.mxu0 0.0
      %1797 = vmatpush.msra.mxu0 0.0
      %1798 = vmatpush.msra.mxu0 0.0
      %1799 = vmatpush.msra.mxu0 0.0
      %1800 = vmatpush.msra.mxu0 0.0
      %1801 = vmatpush.msra.mxu0 0.0
      %1802 = vmatpush.msra.mxu0 0.0
      %1803 = vmatpush.msra.mxu0 0.0
      %1804 = vmatpush.msra.mxu0 0.0
      %1805 = vmatpush.msra.mxu0 0.0
      %1806 = vmatpush.msra.mxu0 %v1748
      %1807 = vmatpush.msra.mxu0 %v1746
      %1808 = vmatpush.msra.mxu0 %v1744
      %1809 = vmatpush.msra.mxu0 %v1742
      %1810 = vmatpush.msra.mxu0 %v1740
      %1811 = vmatpush.msra.mxu0 %v1738
      %1812 = vmatmul.f32.gmra.mxu0 %v1756
      %v1813 = vpop.f32.mrf.mxu0
      %v1814 = vadd.f32 %v1752, %v1813
      %1815 = vmatmul.f32.gmra.mxu0 %v1759
      %v1816 = vpop.f32.mrf.mxu0
      %v1817 = vadd.f32 %v1752, %v1816
      %1818 = vmatmul.f32.gmra.mxu0 %v1762
      %v1819 = vpop.f32.mrf.mxu0
      %v1820 = vadd.f32 %v1752, %v1819
      %1821 = vmatmul.f32.gmra.mxu0 %v1765
      %v1822 = vpop.f32.mrf.mxu0
      %v1823 = vadd.f32 %v1752, %v1822
      %1824 = vdwg.mxu0
      %v1825 = vmul.f32 %v1785, 0.5
      %v1826 = vmul.f32 %v1814, 0.5
      %v1827 = vmul.f32 %v1788, 0.5
      %v1828 = vmul.f32 %v1817, 0.5
      %v1829 = vmul.f32 %v1791, 0.5
      %v1830 = vmul.f32 %v1820, 0.5
      %v1831 = vmul.f32 %v1794, 0.5
      %v1832 = vmul.f32 %v1823, 0.5
      %v1833 = vmul.f32 %v1785, 0.70710677
      %v1834 = vmul.f32 %v1814, 0.70710677
      %v1835 = vmul.f32 %v1788, 0.70710677
      %v1836 = vmul.f32 %v1817, 0.70710677
      %v1837 = vmul.f32 %v1791, 0.70710677
      %v1838 = vmul.f32 %v1820, 0.70710677
      %v1839 = vmul.f32 %v1794, 0.70710677
      %v1840 = vmul.f32 %v1823, 0.70710677
      %v1841 = vmul.f32 %v1833, %v1833
      %v1842 = vmin.f32 16.0, %v1841
      %v1843 = vmul.f32 %v1842, 2.1237322e-06
      %v1844 = vadd.f32 %v1843, 0.00028619796
      %v1845 = vmul.f32 %v1842, %v1844
      %v1846 = vadd.f32 %v1845, 0.0036580483
      %v1847 = vmul.f32 %v1842, %v1846
      %v1848 = vadd.f32 %v1847, 0.05243302
      %v1849 = vmul.f32 %v1842, %v1848
      %v1850 = vadd.f32 %v1849, 0.18741608
      %v1851 = vmul.f32 %v1842, %v1850
      %v1852 = vadd.f32 %v1851, 1.1283791
      %v1853 = vmul.f32 %v1833, %v1852
      %v1854 = vmul.f32 %v1842, 3.8918573e-05
      %v1855 = vadd.f32 %v1854, 0.001143296
      %v1856 = vmul.f32 %v1842, %v1855
      %v1857 = vadd.f32 %v1856, 0.014752088
      %v1858 = vmul.f32 %v1842, %v1857
      %v1859 = vadd.f32 %v1858, 0.112945676
      %v1860 = vmul.f32 %v1842, %v1859
      %v1861 = vadd.f32 %v1860, 0.4994258
      %v1862 = vmul.f32 %v1842, %v1861
      %v1863 = vadd.f32 %v1862, 1.0
      %v1864 = vrcp.pop %v1863
      %v1865 = vmul.f32 %v1863, %v1864
      %v1866 = vsub.f32 1.0, %v1865
      %v1867 = vmul.f32 %v1864, %v1866
      %v1868 = vadd.f32 %v1864, %v1867
      %vm1869 = vweird.f32 %v1863
      %vm1870 = vweird.f32 %v1864
      %vm1871 = vmor %vm1869, %vm1870
      %v1872 = vsel %vm1871, %v1864, %v1868
      %v1873 = vand.u32 2147483647, %v1863
      %vm1874 = vcmp.eq.f32.partialorder %v1873, 8.507059e+37
      %v1875 = vand.u32 %v1863, 2147483648
      %v1876 = vor.u32 1.1754944e-38, %v1875
      %v1877 = vsel %vm1874, %v1876, %v1872
      %v1878 = vmul.f32 %v1853, %v1877
      %v1879 = vmin.f32 %v1878, 1.0
      %v1880 = vmax.f32 %v1879, -1.0
      %v1881 = vmul.f32 %v1834, %v1834
      %v1882 = vmin.f32 16.0, %v1881
      %v1883 = vmul.f32 %v1882, 2.1237322e-06
      %v1884 = vadd.f32 %v1883, 0.00028619796
      %v1885 = vmul.f32 %v1882, %v1884
      %v1886 = vadd.f32 %v1885, 0.0036580483
      %v1887 = vmul.f32 %v1882, %v1886
      %v1888 = vadd.f32 %v1887, 0.05243302
      %v1889 = vmul.f32 %v1882, %v1888
      %v1890 = vadd.f32 %v1889, 0.18741608
      %v1891 = vmul.f32 %v1882, %v1890
      %v1892 = vadd.f32 %v1891, 1.1283791
      %v1893 = vmul.f32 %v1834, %v1892
      %v1894 = vmul.f32 %v1882, 3.8918573e-05
      %v1895 = vadd.f32 %v1894, 0.001143296
      %v1896 = vmul.f32 %v1882, %v1895
      %v1897 = vadd.f32 %v1896, 0.014752088
      %v1898 = vmul.f32 %v1882, %v1897
      %v1899 = vadd.f32 %v1898, 0.112945676
      %v1900 = vmul.f32 %v1882, %v1899
      %v1901 = vadd.f32 %v1900, 0.4994258
      %v1902 = vmul.f32 %v1882, %v1901
      %v1903 = vadd.f32 %v1902, 1.0
      %v1904 = vrcp.pop %v1903
      %v1905 = vmul.f32 %v1903, %v1904
      %v1906 = vsub.f32 1.0, %v1905
      %v1907 = vmul.f32 %v1904, %v1906
      %v1908 = vadd.f32 %v1904, %v1907
      %vm1909 = vweird.f32 %v1903
      %vm1910 = vweird.f32 %v1904
      %vm1911 = vmor %vm1909, %vm1910
      %v1912 = vsel %vm1911, %v1904, %v1908
      %v1913 = vand.u32 2147483647, %v1903
      %vm1914 = vcmp.eq.f32.partialorder %v1913, 8.507059e+37
      %v1915 = vand.u32 %v1903, 2147483648
      %v1916 = vor.u32 1.1754944e-38, %v1915
      %v1917 = vsel %vm1914, %v1916, %v1912
      %v1918 = vmul.f32 %v1893, %v1917
      %v1919 = vmin.f32 %v1918, 1.0
      %v1920 = vmax.f32 %v1919, -1.0
      %v1921 = vmul.f32 %v1835, %v1835
      %v1922 = vmin.f32 16.0, %v1921
      %v1923 = vmul.f32 %v1922, 2.1237322e-06
      %v1924 = vadd.f32 %v1923, 0.00028619796
      %v1925 = vmul.f32 %v1922, %v1924
      %v1926 = vadd.f32 %v1925, 0.0036580483
      %v1927 = vmul.f32 %v1922, %v1926
      %v1928 = vadd.f32 %v1927, 0.05243302
      %v1929 = vmul.f32 %v1922, %v1928
      %v1930 = vadd.f32 %v1929, 0.18741608
      %v1931 = vmul.f32 %v1922, %v1930
      %v1932 = vadd.f32 %v1931, 1.1283791
      %v1933 = vmul.f32 %v1835, %v1932
      %v1934 = vmul.f32 %v1922, 3.8918573e-05
      %v1935 = vadd.f32 %v1934, 0.001143296
      %v1936 = vmul.f32 %v1922, %v1935
      %v1937 = vadd.f32 %v1936, 0.014752088
      %v1938 = vmul.f32 %v1922, %v1937
      %v1939 = vadd.f32 %v1938, 0.112945676
      %v1940 = vmul.f32 %v1922, %v1939
      %v1941 = vadd.f32 %v1940, 0.4994258
      %v1942 = vmul.f32 %v1922, %v1941
      %v1943 = vadd.f32 %v1942, 1.0
      %v1944 = vrcp.pop %v1943
      %v1945 = vmul.f32 %v1943, %v1944
      %v1946 = vsub.f32 1.0, %v1945
      %v1947 = vmul.f32 %v1944, %v1946
      %v1948 = vadd.f32 %v1944, %v1947
      %vm1949 = vweird.f32 %v1943
      %vm1950 = vweird.f32 %v1944
      %vm1951 = vmor %vm1949, %vm1950
      %v1952 = vsel %vm1951, %v1944, %v1948
      %v1953 = vand.u32 2147483647, %v1943
      %vm1954 = vcmp.eq.f32.partialorder %v1953, 8.507059e+37
      %v1955 = vand.u32 %v1943, 2147483648
      %v1956 = vor.u32 1.1754944e-38, %v1955
      %v1957 = vsel %vm1954, %v1956, %v1952
      %v1958 = vmul.f32 %v1933, %v1957
      %v1959 = vmin.f32 %v1958, 1.0
      %v1960 = vmax.f32 %v1959, -1.0
      %v1961 = vmul.f32 %v1836, %v1836
      %v1962 = vmin.f32 16.0, %v1961
      %v1963 = vmul.f32 %v1962, 2.1237322e-06
      %v1964 = vadd.f32 %v1963, 0.00028619796
      %v1965 = vmul.f32 %v1962, %v1964
      %v1966 = vadd.f32 %v1965, 0.0036580483
      %v1967 = vmul.f32 %v1962, %v1966
      %v1968 = vadd.f32 %v1967, 0.05243302
      %v1969 = vmul.f32 %v1962, %v1968
      %v1970 = vadd.f32 %v1969, 0.18741608
      %v1971 = vmul.f32 %v1962, %v1970
      %v1972 = vadd.f32 %v1971, 1.1283791
      %v1973 = vmul.f32 %v1836, %v1972
      %v1974 = vmul.f32 %v1962, 3.8918573e-05
      %v1975 = vadd.f32 %v1974, 0.001143296
      %v1976 = vmul.f32 %v1962, %v1975
      %v1977 = vadd.f32 %v1976, 0.014752088
      %v1978 = vmul.f32 %v1962, %v1977
      %v1979 = vadd.f32 %v1978, 0.112945676
      %v1980 = vmul.f32 %v1962, %v1979
      %v1981 = vadd.f32 %v1980, 0.4994258
      %v1982 = vmul.f32 %v1962, %v1981
      %v1983 = vadd.f32 %v1982, 1.0
      %v1984 = vrcp.pop %v1983
      %v1985 = vmul.f32 %v1983, %v1984
      %v1986 = vsub.f32 1.0, %v1985
      %v1987 = vmul.f32 %v1984, %v1986
      %v1988 = vadd.f32 %v1984, %v1987
      %vm1989 = vweird.f32 %v1983
      %vm1990 = vweird.f32 %v1984
      %vm1991 = vmor %vm1989, %vm1990
      %v1992 = vsel %vm1991, %v1984, %v1988
      %v1993 = vand.u32 2147483647, %v1983
      %vm1994 = vcmp.eq.f32.partialorder %v1993, 8.507059e+37
      %v1995 = vand.u32 %v1983, 2147483648
      %v1996 = vor.u32 1.1754944e-38, %v1995
      %v1997 = vsel %vm1994, %v1996, %v1992
      %v1998 = vmul.f32 %v1973, %v1997
      %v1999 = vmin.f32 %v1998, 1.0
      %v2000 = vmax.f32 %v1999, -1.0
      %v2001 = vmul.f32 %v1837, %v1837
      %v2002 = vmin.f32 16.0, %v2001
      %v2003 = vmul.f32 %v2002, 2.1237322e-06
      %v2004 = vadd.f32 %v2003, 0.00028619796
      %v2005 = vmul.f32 %v2002, %v2004
      %v2006 = vadd.f32 %v2005, 0.0036580483
      %v2007 = vmul.f32 %v2002, %v2006
      %v2008 = vadd.f32 %v2007, 0.05243302
      %v2009 = vmul.f32 %v2002, %v2008
      %v2010 = vadd.f32 %v2009, 0.18741608
      %v2011 = vmul.f32 %v2002, %v2010
      %v2012 = vadd.f32 %v2011, 1.1283791
      %v2013 = vmul.f32 %v1837, %v2012
      %v2014 = vmul.f32 %v2002, 3.8918573e-05
      %v2015 = vadd.f32 %v2014, 0.001143296
      %v2016 = vmul.f32 %v2002, %v2015
      %v2017 = vadd.f32 %v2016, 0.014752088
      %v2018 = vmul.f32 %v2002, %v2017
      %v2019 = vadd.f32 %v2018, 0.112945676
      %v2020 = vmul.f32 %v2002, %v2019
      %v2021 = vadd.f32 %v2020, 0.4994258
      %v2022 = vmul.f32 %v2002, %v2021
      %v2023 = vadd.f32 %v2022, 1.0
      %v2024 = vrcp.pop %v2023
      %v2025 = vmul.f32 %v2023, %v2024
      %v2026 = vsub.f32 1.0, %v2025
      %v2027 = vmul.f32 %v2024, %v2026
      %v2028 = vadd.f32 %v2024, %v2027
      %vm2029 = vweird.f32 %v2023
      %vm2030 = vweird.f32 %v2024
      %vm2031 = vmor %vm2029, %vm2030
      %v2032 = vsel %vm2031, %v2024, %v2028
      %v2033 = vand.u32 2147483647, %v2023
      %vm2034 = vcmp.eq.f32.partialorder %v2033, 8.507059e+37
      %v2035 = vand.u32 %v2023, 2147483648
      %v2036 = vor.u32 1.1754944e-38, %v2035
      %v2037 = vsel %vm2034, %v2036, %v2032
      %v2038 = vmul.f32 %v2013, %v2037
      %v2039 = vmin.f32 %v2038, 1.0
      %v2040 = vmax.f32 %v2039, -1.0
      %v2041 = vmul.f32 %v1838, %v1838
      %v2042 = vmin.f32 16.0, %v2041
      %v2043 = vmul.f32 %v2042, 2.1237322e-06
      %v2044 = vadd.f32 %v2043, 0.00028619796
      %v2045 = vmul.f32 %v2042, %v2044
      %v2046 = vadd.f32 %v2045, 0.0036580483
      %v2047 = vmul.f32 %v2042, %v2046
      %v2048 = vadd.f32 %v2047, 0.05243302
      %v2049 = vmul.f32 %v2042, %v2048
      %v2050 = vadd.f32 %v2049, 0.18741608
      %v2051 = vmul.f32 %v2042, %v2050
      %v2052 = vadd.f32 %v2051, 1.1283791
      %v2053 = vmul.f32 %v1838, %v2052
      %v2054 = vmul.f32 %v2042, 3.8918573e-05
      %v2055 = vadd.f32 %v2054, 0.001143296
      %v2056 = vmul.f32 %v2042, %v2055
      %v2057 = vadd.f32 %v2056, 0.014752088
      %v2058 = vmul.f32 %v2042, %v2057
      %v2059 = vadd.f32 %v2058, 0.112945676
      %v2060 = vmul.f32 %v2042, %v2059
      %v2061 = vadd.f32 %v2060, 0.4994258
      %v2062 = vmul.f32 %v2042, %v2061
      %v2063 = vadd.f32 %v2062, 1.0
      %v2064 = vrcp.pop %v2063
      %v2065 = vmul.f32 %v2063, %v2064
      %v2066 = vsub.f32 1.0, %v2065
      %v2067 = vmul.f32 %v2064, %v2066
      %v2068 = vadd.f32 %v2064, %v2067
      %vm2069 = vweird.f32 %v2063
      %vm2070 = vweird.f32 %v2064
      %vm2071 = vmor %vm2069, %vm2070
      %v2072 = vsel %vm2071, %v2064, %v2068
      %v2073 = vand.u32 2147483647, %v2063
      %vm2074 = vcmp.eq.f32.partialorder %v2073, 8.507059e+37
      %v2075 = vand.u32 %v2063, 2147483648
      %v2076 = vor.u32 1.1754944e-38, %v2075
      %v2077 = vsel %vm2074, %v2076, %v2072
      %v2078 = vmul.f32 %v2053, %v2077
      %v2079 = vmin.f32 %v2078, 1.0
      %v2080 = vmax.f32 %v2079, -1.0
      %v2081 = vmul.f32 %v1839, %v1839
      %v2082 = vmin.f32 16.0, %v2081
      %v2083 = vmul.f32 %v2082, 2.1237322e-06
      %v2084 = vadd.f32 %v2083, 0.00028619796
      %v2085 = vmul.f32 %v2082, %v2084
      %v2086 = vadd.f32 %v2085, 0.0036580483
      %v2087 = vmul.f32 %v2082, %v2086
      %v2088 = vadd.f32 %v2087, 0.05243302
      %v2089 = vmul.f32 %v2082, %v2088
      %v2090 = vadd.f32 %v2089, 0.18741608
      %v2091 = vmul.f32 %v2082, %v2090
      %v2092 = vadd.f32 %v2091, 1.1283791
      %v2093 = vmul.f32 %v1839, %v2092
      %v2094 = vmul.f32 %v2082, 3.8918573e-05
      %v2095 = vadd.f32 %v2094, 0.001143296
      %v2096 = vmul.f32 %v2082, %v2095
      %v2097 = vadd.f32 %v2096, 0.014752088
      %v2098 = vmul.f32 %v2082, %v2097
      %v2099 = vadd.f32 %v2098, 0.112945676
      %v2100 = vmul.f32 %v2082, %v2099
      %v2101 = vadd.f32 %v2100, 0.4994258
      %v2102 = vmul.f32 %v2082, %v2101
      %v2103 = vadd.f32 %v2102, 1.0
      %v2104 = vrcp.pop %v2103
      %v2105 = vmul.f32 %v2103, %v2104
      %v2106 = vsub.f32 1.0, %v2105
      %v2107 = vmul.f32 %v2104, %v2106
      %v2108 = vadd.f32 %v2104, %v2107
      %vm2109 = vweird.f32 %v2103
      %vm2110 = vweird.f32 %v2104
      %vm2111 = vmor %vm2109, %vm2110
      %v2112 = vsel %vm2111, %v2104, %v2108
      %v2113 = vand.u32 2147483647, %v2103
      %vm2114 = vcmp.eq.f32.partialorder %v2113, 8.507059e+37
      %v2115 = vand.u32 %v2103, 2147483648
      %v2116 = vor.u32 1.1754944e-38, %v2115
      %v2117 = vsel %vm2114, %v2116, %v2112
      %v2118 = vmul.f32 %v2093, %v2117
      %v2119 = vmin.f32 %v2118, 1.0
      %v2120 = vmax.f32 %v2119, -1.0
      %v2121 = vmul.f32 %v1840, %v1840
      %v2122 = vmin.f32 16.0, %v2121
      %v2123 = vmul.f32 %v2122, 2.1237322e-06
      %v2124 = vadd.f32 %v2123, 0.00028619796
      %v2125 = vmul.f32 %v2122, %v2124
      %v2126 = vadd.f32 %v2125, 0.0036580483
      %v2127 = vmul.f32 %v2122, %v2126
      %v2128 = vadd.f32 %v2127, 0.05243302
      %v2129 = vmul.f32 %v2122, %v2128
      %v2130 = vadd.f32 %v2129, 0.18741608
      %v2131 = vmul.f32 %v2122, %v2130
      %v2132 = vadd.f32 %v2131, 1.1283791
      %v2133 = vmul.f32 %v1840, %v2132
      %v2134 = vmul.f32 %v2122, 3.8918573e-05
      %v2135 = vadd.f32 %v2134, 0.001143296
      %v2136 = vmul.f32 %v2122, %v2135
      %v2137 = vadd.f32 %v2136, 0.014752088
      %v2138 = vmul.f32 %v2122, %v2137
      %v2139 = vadd.f32 %v2138, 0.112945676
      %v2140 = vmul.f32 %v2122, %v2139
      %v2141 = vadd.f32 %v2140, 0.4994258
      %v2142 = vmul.f32 %v2122, %v2141
      %v2143 = vadd.f32 %v2142, 1.0
      %v2144 = vrcp.pop %v2143
      %v2145 = vmul.f32 %v2143, %v2144
      %v2146 = vsub.f32 1.0, %v2145
      %v2147 = vmul.f32 %v2144, %v2146
      %v2148 = vadd.f32 %v2144, %v2147
      %vm2149 = vweird.f32 %v2143
      %vm2150 = vweird.f32 %v2144
      %vm2151 = vmor %vm2149, %vm2150
      %v2152 = vsel %vm2151, %v2144, %v2148
      %v2153 = vand.u32 2147483647, %v2143
      %vm2154 = vcmp.eq.f32.partialorder %v2153, 8.507059e+37
      %v2155 = vand.u32 %v2143, 2147483648
      %v2156 = vor.u32 1.1754944e-38, %v2155
      %v2157 = vsel %vm2154, %v2156, %v2152
      %v2158 = vmul.f32 %v2133, %v2157
      %v2159 = vmin.f32 %v2158, 1.0
      %v2160 = vmax.f32 %v2159, -1.0
      %v2161 = vadd.f32 %v1880, 1.0
      %v2162 = vadd.f32 %v1920, 1.0
      %v2163 = vadd.f32 %v1960, 1.0
      %v2164 = vadd.f32 %v2000, 1.0
      %v2165 = vadd.f32 %v2040, 1.0
      %v2166 = vadd.f32 %v2080, 1.0
      %v2167 = vadd.f32 %v2120, 1.0
      %v2168 = vadd.f32 %v2160, 1.0
      %v2169 = vmul.f32 %v1825, %v2161
      %v2170 = vmul.f32 %v1826, %v2162
      %v2171 = vmul.f32 %v1827, %v2163
      %v2172 = vmul.f32 %v1828, %v2164
      %v2173 = vmul.f32 %v1829, %v2165
      %v2174 = vmul.f32 %v1830, %v2166
      %v2175 = vmul.f32 %v1831, %v2167
      %v2176 = vmul.f32 %v1832, %v2168
      %v2177 = vld [vmem:[%s11] sm:$0xff]
      %v2178 = vld [vmem:[%s11 + $0x8] sm:$0xff]
      %v2179 = vld [vmem:[%s11 + $0x10] sm:$0xff]
      %v2180 = vld [vmem:[%s11 + $0x18] sm:$0xff]
      %v2181 = vld [vmem:[%s11 + $0x20] sm:$0xff]
      %v2182 = vld [vmem:[%s11 + $0x28] sm:$0xff]
      %v2183 = vld [vmem:[%s11 + $0x30] sm:$0xff]
      %v2184 = vld [vmem:[%s11 + $0x38] sm:$0xff]
      %v2185 = vld [vmem:[%s11 + $0x40] sm:$0xff]
      %v2186 = vld [vmem:[%s11 + $0x48] sm:$0xff]
      %v2187 = vld [vmem:[%s11 + $0x50] sm:$0xff]
      %v2188 = vld [vmem:[%s11 + $0x58] sm:$0xff]
      %v2189 = vld [vmem:[%s11 + $0x60] sm:$0xff]
      %v2190 = vld [vmem:[%s11 + $0x68] sm:$0xff]
      %v2191 = vld [vmem:[%s11 + $0x70] sm:$0xff]
      %v2192 = vld [vmem:[%s11 + $0x78] sm:$0xff]
      %v2193 = vld [vmem:[%s11 + $0x80] sm:$0xff]
      %v2194 = vld [vmem:[%s11 + $0x88] sm:$0xff]
      %v2195 = vld [vmem:[%s11 + $0x90] sm:$0xff]
      %v2196 = vld [vmem:[%s11 + $0x98] sm:$0xff]
      %v2197 = vld [vmem:[%s11 + $0xa0] sm:$0xff]
      %v2198 = vld [vmem:[%s11 + $0xa8] sm:$0xff]
      %v2199 = vld [vmem:[%s11 + $0xb0] sm:$0xff]
      %v2200 = vld [vmem:[%s11 + $0xb8] sm:$0xff]
      %v2201 = vld [vmem:[%s12] sm:$0x1]
      %v2203 = vperm.slane %v2201, 0
      %vm2205 = vcmask 523264
      %v2207 = vsel %vm2205, %v2170, 0
      %v2210 = vsel %vm2205, %v2172, 0
      %v2213 = vsel %vm2205, %v2174, 0
      %v2216 = vsel %vm2205, %v2176, 0
      %2218 = vmatpush.msra.mxu0 %v2192
      %2219 = vmatpush.msra.mxu0 %v2191
      %2220 = vmatpush.msra.mxu0 %v2190
      %2221 = vmatpush.msra.mxu0 %v2189
      %2222 = vmatpush.msra.mxu0 %v2188
      %2223 = vmatpush.msra.mxu0 %v2187
      %2224 = vmatpush.msra.mxu0 %v2186
      %2225 = vmatpush.msra.mxu0 %v2185
      %2226 = vmatpush.msra.mxu0 %v2184
      %2227 = vmatpush.msra.mxu0 %v2183
      %2228 = vmatpush.msra.mxu0 %v2182
      %2229 = vmatpush.msra.mxu0 %v2181
      %2230 = vmatpush.msra.mxu0 %v2180
      %2231 = vmatpush.msra.mxu0 %v2179
      %2232 = vmatpush.msra.mxu0 %v2178
      %2233 = vmatpush.msra.mxu0 %v2177
      %2234 = vmatmul.f32.gmra.mxu0 %v2169
      %v2235 = vpop.f32.mrf.mxu0
      %v2236 = vadd.f32 %v2203, %v2235
      %2237 = vmatmul.f32.gmra.mxu0 %v2171
      %v2238 = vpop.f32.mrf.mxu0
      %v2239 = vadd.f32 %v2203, %v2238
      %2240 = vmatmul.f32.gmra.mxu0 %v2173
      %v2241 = vpop.f32.mrf.mxu0
      %v2242 = vadd.f32 %v2203, %v2241
      %2243 = vmatmul.f32.gmra.mxu0 %v2175
      %v2244 = vpop.f32.mrf.mxu0
      %v2245 = vadd.f32 %v2203, %v2244
      %2246 = vdwg.mxu0
      %2247 = vmatpush.msra.mxu0 0.0
      %2248 = vmatpush.msra.mxu0 0.0
      %2249 = vmatpush.msra.mxu0 0.0
      %2250 = vmatpush.msra.mxu0 0.0
      %2251 = vmatpush.msra.mxu0 0.0
      %2252 = vmatpush.msra.mxu0 0.0
      %2253 = vmatpush.msra.mxu0 0.0
      %2254 = vmatpush.msra.mxu0 0.0
      %2255 = vmatpush.msra.mxu0 %v2200
      %2256 = vmatpush.msra.mxu0 %v2199
      %2257 = vmatpush.msra.mxu0 %v2198
      %2258 = vmatpush.msra.mxu0 %v2197
      %2259 = vmatpush.msra.mxu0 %v2196
      %2260 = vmatpush.msra.mxu0 %v2195
      %2261 = vmatpush.msra.mxu0 %v2194
      %2262 = vmatpush.msra.mxu0 %v2193
      %2263 = vmatmul.f32.gmra.mxu0 %v2207
      %v2264 = vpop.f32.mrf.mxu0
      %v2265 = vadd.f32 %v2236, %v2264
      %2266 = vmatmul.f32.gmra.mxu0 %v2210
      %v2267 = vpop.f32.mrf.mxu0
      %v2268 = vadd.f32 %v2239, %v2267
      %2269 = vmatmul.f32.gmra.mxu0 %v2213
      %v2270 = vpop.f32.mrf.mxu0
      %v2271 = vadd.f32 %v2242, %v2270
      %2272 = vmatmul.f32.gmra.mxu0 %v2216
      %v2273 = vpop.f32.mrf.mxu0
      %v2274 = vadd.f32 %v2245, %v2273
      %2275 = vdwg.mxu0
      %v2276 = vadd.f32 %v2265, %v1629
      %v2277 = vadd.f32 %v2268, %v1630
      %v2278 = vadd.f32 %v2271, %v1631
      %v2279 = vadd.f32 %v2274, %v1632
      %2280 = vst.msk [vmem:[%s440] sm:$0xff] %vm447, %v2276
      %2281 = vst.msk [vmem:[%s440 + $0x8] sm:$0xff] %vm447, %v2277
      %2282 = vst.msk [vmem:[%s440 + $0x10] sm:$0xff] %vm447, %v2278
      %2283 = vst.msk [vmem:[%s440 + $0x18] sm:$0xff] %vm447, %v2279
      %p2284 = scmp.lt.s32.totalorder %s24, 1
      %s2285 = scalar_select %p2284, %s24, 1
      %s2286 = smul.addr %s2285, 4
      %s2287 = smul.addr %s2286, 8
      %s2288 = scalar_lea.vmem %s13, %s2287
      // Predicated region
      $region73: #{stprivacy_forward.7} parent=71 // pred_check
        %p2289 = pneg %p320
      $region74: #{stprivacy_forward.7} parent=71 // pred_check_branch
        %2291 = sbr.rel (%p2289) target = $region76
      $region75: #{stprivacy_forward.7} parent=71 // pred_region
        _
      $region76: #{stprivacy_forward.7} parent=71 // pred_fallthru
        _
    $region72: #{stprivacy_forward.7} parent=5 // pred_fallthru
      _
    %p2292 = scmp.le.s32.totalorder 2, %s19
    // Predicated region
    $region77: #{stprivacy_forward.7} parent=5 // pred_check
      %p2293 = pneg %p2292
    $region78: #{stprivacy_forward.7} parent=5 // pred_check_branch
      %2295 = sbr.rel (%p2293) target = $region80
    $region79: #{stprivacy_forward.7} parent=5 // pred_region
      %s2296 = ssub.s32 %s19, 2
      // Predicated region
      $region81: #{stprivacy_forward.7} parent=79 // pred_check
        %p2297 = pneg %p326
      $region82: #{stprivacy_forward.7} parent=79 // pred_check_branch
        %2299 = sbr.rel (%p2297) target = $region84
      $region83: #{stprivacy_forward.7} parent=79 // pred_region
        %p2300 = scmp.lt.s32.totalorder %s25, 1
        %s2301 = scalar_select %p2300, %s25, 1
        %s2302 = smul.addr %s2301, 4
        %s2303 = smul.addr %s2302, 8
        %s2304 = scalar_lea.vmem %s13, %s2303
      $region84: #{stprivacy_forward.7} parent=79 // pred_fallthru
        _
    $region80: #{stprivacy_forward.7} parent=5 // pred_fallthru
      _
  $region6: #{stprivacy_forward.7} parent=0 // loop_footer
    %s23 = sadd.s32 1, %s19
  $region7: #{stprivacy_forward.7} parent=0 // loop_footer_branch
    %18 = sbr.rel target = $region3
  $region8: #{stprivacy_forward.7} parent=0 // loop_exit
    _

// kernel: neg.0
$region0: #{neg.0}
  #allocation0 [shape = 's32[1]{0}', space=sflag, size = 0x4, scoped, tag = 'scoped memory for neg.0']
  %s0 = inlined_call_operand.vmem [shape: f32[2,32,1], index: 0, kind: input, shape index: {}]
  %s1 = inlined_call_operand.vmem [shape: f32[2,32,1], index: 1, kind: output, shape index: {}]
  %v2 = vld [vmem:[%s0] sm:$0x3]
  %3 = xla_tuple %v2
  %4 = xla_tuple %3
  %v5 = vxor.u32 %v2, 2147483648
  %6 = xla_tuple %v5
  %7 = vst [vmem:[%s1] sm:$0x3] %v5

// kernel: stprivacy_forward.9
$region0: #{stprivacy_forward.9}
  #allocation0 [shape = 'u32[]', space=smem, size = 0x4, offset = 0x4, fixed_abs, tag = 'smem constant byte address 0x4 - core index']
  #allocation1 [shape = 'u32[72,128]{1,0:T(1,128)}', space=vmem, size = 0x9000, scoped, tag = 'internal scratch']
  %s0 = inlined_call_operand.vmem [shape: f32[64,48], index: 0, kind: input, shape index: {}]
  %s1 = inlined_call_operand.vmem [shape: f32[48,24], index: 1, kind: input, shape index: {}]
  %s2 = inlined_call_operand.vmem [shape: f32[1,24], index: 2, kind: input, shape index: {}]
  %s3 = inlined_call_operand.vmem [shape: f32[24,12], index: 3, kind: input, shape index: {}]
  %s4 = inlined_call_operand.vmem [shape: f32[1,12], index: 4, kind: input, shape index: {}]
  %s5 = inlined_call_operand.vmem [shape: f32[12,2], index: 5, kind: input, shape index: {}]
  %s6 = inlined_call_operand.vmem [shape: f32[1,2], index: 6, kind: input, shape index: {}]
  %s7 = inlined_call_operand.vmem [shape: f32[64,2], index: 7, kind: output, shape index: {}]
  %s8 = sld [smem:[#allocation0]]
  $region38: #{stprivacy_forward.9} parent=0
    _
  %s10 = ssub.s32 1, %s8
  %s11 = scalar_select 0, %s10, %s8
  // Predicated region
  $region2: #{stprivacy_forward.9} parent=0 // pred_check
    _
  $region3: #{stprivacy_forward.9} parent=0 // pred_check_branch
    %13 = sbr.rel (0) target = $region5
  $region4: #{stprivacy_forward.9} parent=0 // pred_region
    _
  $region5: #{stprivacy_forward.9} parent=0 // pred_fallthru
    _
  // Predicated region
  $region6: #{stprivacy_forward.9} parent=0 // pred_check
    _
  $region7: #{stprivacy_forward.9} parent=0 // pred_check_branch
    %15 = sbr.rel (0) target = $region9
  $region8: #{stprivacy_forward.9} parent=0 // pred_region
    _
  $region9: #{stprivacy_forward.9} parent=0 // pred_fallthru
    _
  // Predicated region
  $region10: #{stprivacy_forward.9} parent=0 // pred_check
    _
  $region11: #{stprivacy_forward.9} parent=0 // pred_check_branch
    %17 = sbr.rel (0) target = $region13
  $region12: #{stprivacy_forward.9} parent=0 // pred_region
    _
  $region13: #{stprivacy_forward.9} parent=0 // pred_fallthru
    _
  // Predicated region
  $region14: #{stprivacy_forward.9} parent=0 // pred_check
    _
  $region15: #{stprivacy_forward.9} parent=0 // pred_check_branch
    %19 = sbr.rel (0) target = $region17
  $region16: #{stprivacy_forward.9} parent=0 // pred_region
    _
  $region17: #{stprivacy_forward.9} parent=0 // pred_fallthru
    _
  // Predicated region
  $region18: #{stprivacy_forward.9} parent=0 // pred_check
    _
  $region19: #{stprivacy_forward.9} parent=0 // pred_check_branch
    %21 = sbr.rel (0) target = $region21
  $region20: #{stprivacy_forward.9} parent=0 // pred_region
    _
  $region21: #{stprivacy_forward.9} parent=0 // pred_fallthru
    _
  // Predicated region
  $region22: #{stprivacy_forward.9} parent=0 // pred_check
    _
  $region23: #{stprivacy_forward.9} parent=0 // pred_check_branch
    %23 = sbr.rel (0) target = $region25
  $region24: #{stprivacy_forward.9} parent=0 // pred_region
    _
  $region25: #{stprivacy_forward.9} parent=0 // pred_fallthru
    _
  // Predicated region
  $region26: #{stprivacy_forward.9} parent=0 // pred_check
    _
  $region27: #{stprivacy_forward.9} parent=0 // pred_check_branch
    %25 = sbr.rel (0) target = $region29
  $region28: #{stprivacy_forward.9} parent=0 // pred_region
    _
  $region29: #{stprivacy_forward.9} parent=0 // pred_fallthru
    _
  %v26 = vld [vmem:[%s0] sm:$0xff]
  %v27 = vld [vmem:[%s0 + $0x8] sm:$0xff]
  %v28 = vld [vmem:[%s0 + $0x10] sm:$0xff]
  %v29 = vld [vmem:[%s0 + $0x18] sm:$0xff]
  %v30 = vld [vmem:[%s0 + $0x20] sm:$0xff]
  %v31 = vld [vmem:[%s0 + $0x28] sm:$0xff]
  %v32 = vld [vmem:[%s0 + $0x30] sm:$0xff]
  %v33 = vld [vmem:[%s0 + $0x38] sm:$0xff]
  %v34 = vld [vmem:[%s1] sm:$0xff]
  %v35 = vld [vmem:[%s1 + $0x8] sm:$0xff]
  %v36 = vld [vmem:[%s1 + $0x10] sm:$0xff]
  %v37 = vld [vmem:[%s1 + $0x18] sm:$0xff]
  %v38 = vld [vmem:[%s1 + $0x20] sm:$0xff]
  %v39 = vld [vmem:[%s1 + $0x28] sm:$0xff]
  %v40 = vld [vmem:[%s2] sm:$0x1]
  %v42 = vperm.slane %v40, 0
  %vm44 = vcmask 392192
  %v46 = vsel %vm44, %v26, 0
  %v49 = vsel %vm44, %v27, 0
  %v52 = vsel %vm44, %v28, 0
  %v55 = vsel %vm44, %v29, 0
  %v58 = vsel %vm44, %v30, 0
  %v61 = vsel %vm44, %v31, 0
  %v64 = vsel %vm44, %v32, 0
  %v67 = vsel %vm44, %v33, 0
  %69 = vmatpush.msra.mxu0 0.0
  %70 = vmatpush.msra.mxu0 0.0
  %71 = vmatpush.msra.mxu0 0.0
  %72 = vmatpush.msra.mxu0 0.0
  %73 = vmatpush.msra.mxu0 0.0
  %74 = vmatpush.msra.mxu0 0.0
  %75 = vmatpush.msra.mxu0 0.0
  %76 = vmatpush.msra.mxu0 0.0
  %77 = vmatpush.msra.mxu0 0.0
  %78 = vmatpush.msra.mxu0 0.0
  %79 = vmatpush.msra.mxu0 %v39
  %80 = vmatpush.msra.mxu0 %v38
  %81 = vmatpush.msra.mxu0 %v37
  %82 = vmatpush.msra.mxu0 %v36
  %83 = vmatpush.msra.mxu0 %v35
  %84 = vmatpush.msra.mxu0 %v34
  %85 = vmatmul.f32.gmra.mxu0 %v46
  %v86 = vpop.f32.mrf.mxu0
  %v87 = vadd.f32 %v42, %v86
  %88 = vmatmul.f32.gmra.mxu0 %v49
  %v89 = vpop.f32.mrf.mxu0
  %v90 = vadd.f32 %v42, %v89
  %91 = vmatmul.f32.gmra.mxu0 %v52
  %v92 = vpop.f32.mrf.mxu0
  %v93 = vadd.f32 %v42, %v92
  %94 = vmatmul.f32.gmra.mxu0 %v55
  %v95 = vpop.f32.mrf.mxu0
  %v96 = vadd.f32 %v42, %v95
  %97 = vmatmul.f32.gmra.mxu0 %v58
  %v98 = vpop.f32.mrf.mxu0
  %v99 = vadd.f32 %v42, %v98
  %100 = vmatmul.f32.gmra.mxu0 %v61
  %v101 = vpop.f32.mrf.mxu0
  %v102 = vadd.f32 %v42, %v101
  %103 = vmatmul.f32.gmra.mxu0 %v64
  %v104 = vpop.f32.mrf.mxu0
  %v105 = vadd.f32 %v42, %v104
  %106 = vmatmul.f32.gmra.mxu0 %v67
  %v107 = vpop.f32.mrf.mxu0
  %v108 = vadd.f32 %v42, %v107
  %109 = vdwg.mxu0
  %v110 = vmul.f32 %v87, 0.5
  %v111 = vmul.f32 %v90, 0.5
  %v112 = vmul.f32 %v93, 0.5
  %v113 = vmul.f32 %v96, 0.5
  %v114 = vmul.f32 %v99, 0.5
  %v115 = vmul.f32 %v102, 0.5
  %v116 = vmul.f32 %v105, 0.5
  %v117 = vmul.f32 %v108, 0.5
  %v118 = vmul.f32 %v87, 0.70710677
  %v119 = vmul.f32 %v90, 0.70710677
  %v120 = vmul.f32 %v93, 0.70710677
  %v121 = vmul.f32 %v96, 0.70710677
  %v122 = vmul.f32 %v99, 0.70710677
  %v123 = vmul.f32 %v102, 0.70710677
  %v124 = vmul.f32 %v105, 0.70710677
  %v125 = vmul.f32 %v108, 0.70710677
  %v126 = vmul.f32 %v118, %v118
  %v127 = vmin.f32 16.0, %v126
  %v128 = vmul.f32 %v127, 2.1237322e-06
  %v129 = vadd.f32 %v128, 0.00028619796
  %v130 = vmul.f32 %v127, %v129
  %v131 = vadd.f32 %v130, 0.0036580483
  %v132 = vmul.f32 %v127, %v131
  %v133 = vadd.f32 %v132, 0.05243302
  %v134 = vmul.f32 %v127, %v133
  %v135 = vadd.f32 %v134, 0.18741608
  %v136 = vmul.f32 %v127, %v135
  %v137 = vadd.f32 %v136, 1.1283791
  %v138 = vmul.f32 %v118, %v137
  %v139 = vmul.f32 %v127, 3.8918573e-05
  %v140 = vadd.f32 %v139, 0.001143296
  %v141 = vmul.f32 %v127, %v140
  %v142 = vadd.f32 %v141, 0.014752088
  %v143 = vmul.f32 %v127, %v142
  %v144 = vadd.f32 %v143, 0.112945676
  %v145 = vmul.f32 %v127, %v144
  %v146 = vadd.f32 %v145, 0.4994258
  %v147 = vmul.f32 %v127, %v146
  %v148 = vadd.f32 %v147, 1.0
  %v149 = vrcp.pop %v148
  %v150 = vmul.f32 %v148, %v149
  %v151 = vsub.f32 1.0, %v150
  %v152 = vmul.f32 %v149, %v151
  %v153 = vadd.f32 %v149, %v152
  %vm154 = vweird.f32 %v148
  %vm155 = vweird.f32 %v149
  %vm156 = vmor %vm154, %vm155
  %v157 = vsel %vm156, %v149, %v153
  %v158 = vand.u32 2147483647, %v148
  %vm159 = vcmp.eq.f32.partialorder %v158, 8.507059e+37
  %v160 = vand.u32 %v148, 2147483648
  %v161 = vor.u32 1.1754944e-38, %v160
  %v162 = vsel %vm159, %v161, %v157
  %v163 = vmul.f32 %v138, %v162
  %v164 = vmin.f32 %v163, 1.0
  %v165 = vmax.f32 %v164, -1.0
  %v166 = vmul.f32 %v119, %v119
  %v167 = vmin.f32 16.0, %v166
  %v168 = vmul.f32 %v167, 2.1237322e-06
  %v169 = vadd.f32 %v168, 0.00028619796
  %v170 = vmul.f32 %v167, %v169
  %v171 = vadd.f32 %v170, 0.0036580483
  %v172 = vmul.f32 %v167, %v171
  %v173 = vadd.f32 %v172, 0.05243302
  %v174 = vmul.f32 %v167, %v173
  %v175 = vadd.f32 %v174, 0.18741608
  %v176 = vmul.f32 %v167, %v175
  %v177 = vadd.f32 %v176, 1.1283791
  %v178 = vmul.f32 %v119, %v177
  %v179 = vmul.f32 %v167, 3.8918573e-05
  %v180 = vadd.f32 %v179, 0.001143296
  %v181 = vmul.f32 %v167, %v180
  %v182 = vadd.f32 %v181, 0.014752088
  %v183 = vmul.f32 %v167, %v182
  %v184 = vadd.f32 %v183, 0.112945676
  %v185 = vmul.f32 %v167, %v184
  %v186 = vadd.f32 %v185, 0.4994258
  %v187 = vmul.f32 %v167, %v186
  %v188 = vadd.f32 %v187, 1.0
  %v189 = vrcp.pop %v188
  %v190 = vmul.f32 %v188, %v189
  %v191 = vsub.f32 1.0, %v190
  %v192 = vmul.f32 %v189, %v191
  %v193 = vadd.f32 %v189, %v192
  %vm194 = vweird.f32 %v188
  %vm195 = vweird.f32 %v189
  %vm196 = vmor %vm194, %vm195
  %v197 = vsel %vm196, %v189, %v193
  %v198 = vand.u32 2147483647, %v188
  %vm199 = vcmp.eq.f32.partialorder %v198, 8.507059e+37
  %v200 = vand.u32 %v188, 2147483648
  %v201 = vor.u32 1.1754944e-38, %v200
  %v202 = vsel %vm199, %v201, %v197
  %v203 = vmul.f32 %v178, %v202
  %v204 = vmin.f32 %v203, 1.0
  %v205 = vmax.f32 %v204, -1.0
  %v206 = vmul.f32 %v120, %v120
  %v207 = vmin.f32 16.0, %v206
  %v208 = vmul.f32 %v207, 2.1237322e-06
  %v209 = vadd.f32 %v208, 0.00028619796
  %v210 = vmul.f32 %v207, %v209
  %v211 = vadd.f32 %v210, 0.0036580483
  %v212 = vmul.f32 %v207, %v211
  %v213 = vadd.f32 %v212, 0.05243302
  %v214 = vmul.f32 %v207, %v213
  %v215 = vadd.f32 %v214, 0.18741608
  %v216 = vmul.f32 %v207, %v215
  %v217 = vadd.f32 %v216, 1.1283791
  %v218 = vmul.f32 %v120, %v217
  %v219 = vmul.f32 %v207, 3.8918573e-05
  %v220 = vadd.f32 %v219, 0.001143296
  %v221 = vmul.f32 %v207, %v220
  %v222 = vadd.f32 %v221, 0.014752088
  %v223 = vmul.f32 %v207, %v222
  %v224 = vadd.f32 %v223, 0.112945676
  %v225 = vmul.f32 %v207, %v224
  %v226 = vadd.f32 %v225, 0.4994258
  %v227 = vmul.f32 %v207, %v226
  %v228 = vadd.f32 %v227, 1.0
  %v229 = vrcp.pop %v228
  %v230 = vmul.f32 %v228, %v229
  %v231 = vsub.f32 1.0, %v230
  %v232 = vmul.f32 %v229, %v231
  %v233 = vadd.f32 %v229, %v232
  %vm234 = vweird.f32 %v228
  %vm235 = vweird.f32 %v229
  %vm236 = vmor %vm234, %vm235
  %v237 = vsel %vm236, %v229, %v233
  %v238 = vand.u32 2147483647, %v228
  %vm239 = vcmp.eq.f32.partialorder %v238, 8.507059e+37
  %v240 = vand.u32 %v228, 2147483648
  %v241 = vor.u32 1.1754944e-38, %v240
  %v242 = vsel %vm239, %v241, %v237
  %v243 = vmul.f32 %v218, %v242
  %v244 = vmin.f32 %v243, 1.0
  %v245 = vmax.f32 %v244, -1.0
  %v246 = vmul.f32 %v121, %v121
  %v247 = vmin.f32 16.0, %v246
  %v248 = vmul.f32 %v247, 2.1237322e-06
  %v249 = vadd.f32 %v248, 0.00028619796
  %v250 = vmul.f32 %v247, %v249
  %v251 = vadd.f32 %v250, 0.0036580483
  %v252 = vmul.f32 %v247, %v251
  %v253 = vadd.f32 %v252, 0.05243302
  %v254 = vmul.f32 %v247, %v253
  %v255 = vadd.f32 %v254, 0.18741608
  %v256 = vmul.f32 %v247, %v255
  %v257 = vadd.f32 %v256, 1.1283791
  %v258 = vmul.f32 %v121, %v257
  %v259 = vmul.f32 %v247, 3.8918573e-05
  %v260 = vadd.f32 %v259, 0.001143296
  %v261 = vmul.f32 %v247, %v260
  %v262 = vadd.f32 %v261, 0.014752088
  %v263 = vmul.f32 %v247, %v262
  %v264 = vadd.f32 %v263, 0.112945676
  %v265 = vmul.f32 %v247, %v264
  %v266 = vadd.f32 %v265, 0.4994258
  %v267 = vmul.f32 %v247, %v266
  %v268 = vadd.f32 %v267, 1.0
  %v269 = vrcp.pop %v268
  %v270 = vmul.f32 %v268, %v269
  %v271 = vsub.f32 1.0, %v270
  %v272 = vmul.f32 %v269, %v271
  %v273 = vadd.f32 %v269, %v272
  %vm274 = vweird.f32 %v268
  %vm275 = vweird.f32 %v269
  %vm276 = vmor %vm274, %vm275
  %v277 = vsel %vm276, %v269, %v273
  %v278 = vand.u32 2147483647, %v268
  %vm279 = vcmp.eq.f32.partialorder %v278, 8.507059e+37
  %v280 = vand.u32 %v268, 2147483648
  %v281 = vor.u32 1.1754944e-38, %v280
  %v282 = vsel %vm279, %v281, %v277
  %v283 = vmul.f32 %v258, %v282
  %v284 = vmin.f32 %v283, 1.0
  %v285 = vmax.f32 %v284, -1.0
  %v286 = vmul.f32 %v122, %v122
  %v287 = vmin.f32 16.0, %v286
  %v288 = vmul.f32 %v287, 2.1237322e-06
  %v289 = vadd.f32 %v288, 0.00028619796
  %v290 = vmul.f32 %v287, %v289
  %v291 = vadd.f32 %v290, 0.0036580483
  %v292 = vmul.f32 %v287, %v291
  %v293 = vadd.f32 %v292, 0.05243302
  %v294 = vmul.f32 %v287, %v293
  %v295 = vadd.f32 %v294, 0.18741608
  %v296 = vmul.f32 %v287, %v295
  %v297 = vadd.f32 %v296, 1.1283791
  %v298 = vmul.f32 %v122, %v297
  %v299 = vmul.f32 %v287, 3.8918573e-05
  %v300 = vadd.f32 %v299, 0.001143296
  %v301 = vmul.f32 %v287, %v300
  %v302 = vadd.f32 %v301, 0.014752088
  %v303 = vmul.f32 %v287, %v302
  %v304 = vadd.f32 %v303, 0.112945676
  %v305 = vmul.f32 %v287, %v304
  %v306 = vadd.f32 %v305, 0.4994258
  %v307 = vmul.f32 %v287, %v306
  %v308 = vadd.f32 %v307, 1.0
  %v309 = vrcp.pop %v308
  %v310 = vmul.f32 %v308, %v309
  %v311 = vsub.f32 1.0, %v310
  %v312 = vmul.f32 %v309, %v311
  %v313 = vadd.f32 %v309, %v312
  %vm314 = vweird.f32 %v308
  %vm315 = vweird.f32 %v309
  %vm316 = vmor %vm314, %vm315
  %v317 = vsel %vm316, %v309, %v313
  %v318 = vand.u32 2147483647, %v308
  %vm319 = vcmp.eq.f32.partialorder %v318, 8.507059e+37
  %v320 = vand.u32 %v308, 2147483648
  %v321 = vor.u32 1.1754944e-38, %v320
  %v322 = vsel %vm319, %v321, %v317
  %v323 = vmul.f32 %v298, %v322
  %v324 = vmin.f32 %v323, 1.0
  %v325 = vmax.f32 %v324, -1.0
  %v326 = vmul.f32 %v123, %v123
  %v327 = vmin.f32 16.0, %v326
  %v328 = vmul.f32 %v327, 2.1237322e-06
  %v329 = vadd.f32 %v328, 0.00028619796
  %v330 = vmul.f32 %v327, %v329
  %v331 = vadd.f32 %v330, 0.0036580483
  %v332 = vmul.f32 %v327, %v331
  %v333 = vadd.f32 %v332, 0.05243302
  %v334 = vmul.f32 %v327, %v333
  %v335 = vadd.f32 %v334, 0.18741608
  %v336 = vmul.f32 %v327, %v335
  %v337 = vadd.f32 %v336, 1.1283791
  %v338 = vmul.f32 %v123, %v337
  %v339 = vmul.f32 %v327, 3.8918573e-05
  %v340 = vadd.f32 %v339, 0.001143296
  %v341 = vmul.f32 %v327, %v340
  %v342 = vadd.f32 %v341, 0.014752088
  %v343 = vmul.f32 %v327, %v342
  %v344 = vadd.f32 %v343, 0.112945676
  %v345 = vmul.f32 %v327, %v344
  %v346 = vadd.f32 %v345, 0.4994258
  %v347 = vmul.f32 %v327, %v346
  %v348 = vadd.f32 %v347, 1.0
  %v349 = vrcp.pop %v348
  %v350 = vmul.f32 %v348, %v349
  %v351 = vsub.f32 1.0, %v350
  %v352 = vmul.f32 %v349, %v351
  %v353 = vadd.f32 %v349, %v352
  %vm354 = vweird.f32 %v348
  %vm355 = vweird.f32 %v349
  %vm356 = vmor %vm354, %vm355
  %v357 = vsel %vm356, %v349, %v353
  %v358 = vand.u32 2147483647, %v348
  %vm359 = vcmp.eq.f32.partialorder %v358, 8.507059e+37
  %v360 = vand.u32 %v348, 2147483648
  %v361 = vor.u32 1.1754944e-38, %v360
  %v362 = vsel %vm359, %v361, %v357
  %v363 = vmul.f32 %v338, %v362
  %v364 = vmin.f32 %v363, 1.0
  %v365 = vmax.f32 %v364, -1.0
  %v366 = vmul.f32 %v124, %v124
  %v367 = vmin.f32 16.0, %v366
  %v368 = vmul.f32 %v367, 2.1237322e-06
  %v369 = vadd.f32 %v368, 0.00028619796
  %v370 = vmul.f32 %v367, %v369
  %v371 = vadd.f32 %v370, 0.0036580483
  %v372 = vmul.f32 %v367, %v371
  %v373 = vadd.f32 %v372, 0.05243302
  %v374 = vmul.f32 %v367, %v373
  %v375 = vadd.f32 %v374, 0.18741608
  %v376 = vmul.f32 %v367, %v375
  %v377 = vadd.f32 %v376, 1.1283791
  %v378 = vmul.f32 %v124, %v377
  %v379 = vmul.f32 %v367, 3.8918573e-05
  %v380 = vadd.f32 %v379, 0.001143296
  %v381 = vmul.f32 %v367, %v380
  %v382 = vadd.f32 %v381, 0.014752088
  %v383 = vmul.f32 %v367, %v382
  %v384 = vadd.f32 %v383, 0.112945676
  %v385 = vmul.f32 %v367, %v384
  %v386 = vadd.f32 %v385, 0.4994258
  %v387 = vmul.f32 %v367, %v386
  %v388 = vadd.f32 %v387, 1.0
  %v389 = vrcp.pop %v388
  %v390 = vmul.f32 %v388, %v389
  %v391 = vsub.f32 1.0, %v390
  %v392 = vmul.f32 %v389, %v391
  %v393 = vadd.f32 %v389, %v392
  %vm394 = vweird.f32 %v388
  %vm395 = vweird.f32 %v389
  %vm396 = vmor %vm394, %vm395
  %v397 = vsel %vm396, %v389, %v393
  %v398 = vand.u32 2147483647, %v388
  %vm399 = vcmp.eq.f32.partialorder %v398, 8.507059e+37
  %v400 = vand.u32 %v388, 2147483648
  %v401 = vor.u32 1.1754944e-38, %v400
  %v402 = vsel %vm399, %v401, %v397
  %v403 = vmul.f32 %v378, %v402
  %v404 = vmin.f32 %v403, 1.0
  %v405 = vmax.f32 %v404, -1.0
  %v406 = vmul.f32 %v125, %v125
  %v407 = vmin.f32 16.0, %v406
  %v408 = vmul.f32 %v407, 2.1237322e-06
  %v409 = vadd.f32 %v408, 0.00028619796
  %v410 = vmul.f32 %v407, %v409
  %v411 = vadd.f32 %v410, 0.0036580483
  %v412 = vmul.f32 %v407, %v411
  %v413 = vadd.f32 %v412, 0.05243302
  %v414 = vmul.f32 %v407, %v413
  %v415 = vadd.f32 %v414, 0.18741608
  %v416 = vmul.f32 %v407, %v415
  %v417 = vadd.f32 %v416, 1.1283791
  %v418 = vmul.f32 %v125, %v417
  %v419 = vmul.f32 %v407, 3.8918573e-05
  %v420 = vadd.f32 %v419, 0.001143296
  %v421 = vmul.f32 %v407, %v420
  %v422 = vadd.f32 %v421, 0.014752088
  %v423 = vmul.f32 %v407, %v422
  %v424 = vadd.f32 %v423, 0.112945676
  %v425 = vmul.f32 %v407, %v424
  %v426 = vadd.f32 %v425, 0.4994258
  %v427 = vmul.f32 %v407, %v426
  %v428 = vadd.f32 %v427, 1.0
  %v429 = vrcp.pop %v428
  %v430 = vmul.f32 %v428, %v429
  %v431 = vsub.f32 1.0, %v430
  %v432 = vmul.f32 %v429, %v431
  %v433 = vadd.f32 %v429, %v432
  %vm434 = vweird.f32 %v428
  %vm435 = vweird.f32 %v429
  %vm436 = vmor %vm434, %vm435
  %v437 = vsel %vm436, %v429, %v433
  %v438 = vand.u32 2147483647, %v428
  %vm439 = vcmp.eq.f32.partialorder %v438, 8.507059e+37
  %v440 = vand.u32 %v428, 2147483648
  %v441 = vor.u32 1.1754944e-38, %v440
  %v442 = vsel %vm439, %v441, %v437
  %v443 = vmul.f32 %v418, %v442
  %v444 = vmin.f32 %v443, 1.0
  %v445 = vmax.f32 %v444, -1.0
  %v446 = vadd.f32 %v165, 1.0
  %v447 = vadd.f32 %v205, 1.0
  %v448 = vadd.f32 %v245, 1.0
  %v449 = vadd.f32 %v285, 1.0
  %v450 = vadd.f32 %v325, 1.0
  %v451 = vadd.f32 %v365, 1.0
  %v452 = vadd.f32 %v405, 1.0
  %v453 = vadd.f32 %v445, 1.0
  %v454 = vmul.f32 %v110, %v446
  %v455 = vmul.f32 %v111, %v447
  %v456 = vmul.f32 %v112, %v448
  %v457 = vmul.f32 %v113, %v449
  %v458 = vmul.f32 %v114, %v450
  %v459 = vmul.f32 %v115, %v451
  %v460 = vmul.f32 %v116, %v452
  %v461 = vmul.f32 %v117, %v453
  %v462 = vld [vmem:[%s3] sm:$0xff]
  %v463 = vld [vmem:[%s3 + $0x8] sm:$0xff]
  %v464 = vld [vmem:[%s3 + $0x10] sm:$0xff]
  %v465 = vld [vmem:[%s4] sm:$0x1]
  %v467 = vperm.slane %v465, 0
  %vm469 = vcmask 195584
  %v471 = vsel %vm469, %v454, 0
  %v474 = vsel %vm469, %v455, 0
  %v477 = vsel %vm469, %v456, 0
  %v480 = vsel %vm469, %v457, 0
  %v483 = vsel %vm469, %v458, 0
  %v486 = vsel %vm469, %v459, 0
  %v489 = vsel %vm469, %v460, 0
  %v492 = vsel %vm469, %v461, 0
  %494 = vmatpush.msra.mxu0 0.0
  %495 = vmatpush.msra.mxu0 0.0
  %496 = vmatpush.msra.mxu0 0.0
  %497 = vmatpush.msra.mxu0 0.0
  %498 = vmatpush.msra.mxu0 0.0
  %499 = vmatpush.msra.mxu0 0.0
  %500 = vmatpush.msra.mxu0 0.0
  %501 = vmatpush.msra.mxu0 0.0
  %502 = vmatpush.msra.mxu0 0.0
  %503 = vmatpush.msra.mxu0 0.0
  %504 = vmatpush.msra.mxu0 0.0
  %505 = vmatpush.msra.mxu0 0.0
  %506 = vmatpush.msra.mxu0 0.0
  %507 = vmatpush.msra.mxu0 %v464
  %508 = vmatpush.msra.mxu0 %v463
  %509 = vmatpush.msra.mxu0 %v462
  %510 = vmatmul.f32.gmra.mxu0 %v471
  %v511 = vpop.f32.mrf.mxu0
  %v512 = vadd.f32 %v467, %v511
  %513 = vmatmul.f32.gmra.mxu0 %v474
  %v514 = vpop.f32.mrf.mxu0
  %v515 = vadd.f32 %v467, %v514
  %516 = vmatmul.f32.gmra.mxu0 %v477
  %v517 = vpop.f32.mrf.mxu0
  %v518 = vadd.f32 %v467, %v517
  %519 = vmatmul.f32.gmra.mxu0 %v480
  %v520 = vpop.f32.mrf.mxu0
  %v521 = vadd.f32 %v467, %v520
  %522 = vmatmul.f32.gmra.mxu0 %v483
  %v523 = vpop.f32.mrf.mxu0
  %v524 = vadd.f32 %v467, %v523
  %525 = vmatmul.f32.gmra.mxu0 %v486
  %v526 = vpop.f32.mrf.mxu0
  %v527 = vadd.f32 %v467, %v526
  %528 = vmatmul.f32.gmra.mxu0 %v489
  %v529 = vpop.f32.mrf.mxu0
  %v530 = vadd.f32 %v467, %v529
  %531 = vmatmul.f32.gmra.mxu0 %v492
  %v532 = vpop.f32.mrf.mxu0
  %v533 = vadd.f32 %v467, %v532
  %534 = vdwg.mxu0
  %v535 = vmul.f32 %v512, 0.5
  %v536 = vmul.f32 %v515, 0.5
  %v537 = vmul.f32 %v518, 0.5
  %v538 = vmul.f32 %v521, 0.5
  %v539 = vmul.f32 %v524, 0.5
  %v540 = vmul.f32 %v527, 0.5
  %v541 = vmul.f32 %v530, 0.5
  %v542 = vmul.f32 %v533, 0.5
  %v543 = vmul.f32 %v512, 0.70710677
  %v544 = vmul.f32 %v515, 0.70710677
  %v545 = vmul.f32 %v518, 0.70710677
  %v546 = vmul.f32 %v521, 0.70710677
  %v547 = vmul.f32 %v524, 0.70710677
  %v548 = vmul.f32 %v527, 0.70710677
  %v549 = vmul.f32 %v530, 0.70710677
  %v550 = vmul.f32 %v533, 0.70710677
  %v551 = vmul.f32 %v543, %v543
  %v552 = vmin.f32 16.0, %v551
  %v553 = vmul.f32 %v552, 2.1237322e-06
  %v554 = vadd.f32 %v553, 0.00028619796
  %v555 = vmul.f32 %v552, %v554
  %v556 = vadd.f32 %v555, 0.0036580483
  %v557 = vmul.f32 %v552, %v556
  %v558 = vadd.f32 %v557, 0.05243302
  %v559 = vmul.f32 %v552, %v558
  %v560 = vadd.f32 %v559, 0.18741608
  %v561 = vmul.f32 %v552, %v560
  %v562 = vadd.f32 %v561, 1.1283791
  %v563 = vmul.f32 %v543, %v562
  %v564 = vmul.f32 %v552, 3.8918573e-05
  %v565 = vadd.f32 %v564, 0.001143296
  %v566 = vmul.f32 %v552, %v565
  %v567 = vadd.f32 %v566, 0.014752088
  %v568 = vmul.f32 %v552, %v567
  %v569 = vadd.f32 %v568, 0.112945676
  %v570 = vmul.f32 %v552, %v569
  %v571 = vadd.f32 %v570, 0.4994258
  %v572 = vmul.f32 %v552, %v571
  %v573 = vadd.f32 %v572, 1.0
  %v574 = vrcp.pop %v573
  %v575 = vmul.f32 %v573, %v574
  %v576 = vsub.f32 1.0, %v575
  %v577 = vmul.f32 %v574, %v576
  %v578 = vadd.f32 %v574, %v577
  %vm579 = vweird.f32 %v573
  %vm580 = vweird.f32 %v574
  %vm581 = vmor %vm579, %vm580
  %v582 = vsel %vm581, %v574, %v578
  %v583 = vand.u32 2147483647, %v573
  %vm584 = vcmp.eq.f32.partialorder %v583, 8.507059e+37
  %v585 = vand.u32 %v573, 2147483648
  %v586 = vor.u32 1.1754944e-38, %v585
  %v587 = vsel %vm584, %v586, %v582
  %v588 = vmul.f32 %v563, %v587
  %v589 = vmin.f32 %v588, 1.0
  %v590 = vmax.f32 %v589, -1.0
  %v591 = vmul.f32 %v544, %v544
  %v592 = vmin.f32 16.0, %v591
  %v593 = vmul.f32 %v592, 2.1237322e-06
  %v594 = vadd.f32 %v593, 0.00028619796
  %v595 = vmul.f32 %v592, %v594
  %v596 = vadd.f32 %v595, 0.0036580483
  %v597 = vmul.f32 %v592, %v596
  %v598 = vadd.f32 %v597, 0.05243302
  %v599 = vmul.f32 %v592, %v598
  %v600 = vadd.f32 %v599, 0.18741608
  %v601 = vmul.f32 %v592, %v600
  %v602 = vadd.f32 %v601, 1.1283791
  %v603 = vmul.f32 %v544, %v602
  %v604 = vmul.f32 %v592, 3.8918573e-05
  %v605 = vadd.f32 %v604, 0.001143296
  %v606 = vmul.f32 %v592, %v605
  %v607 = vadd.f32 %v606, 0.014752088
  %v608 = vmul.f32 %v592, %v607
  %v609 = vadd.f32 %v608, 0.112945676
  %v610 = vmul.f32 %v592, %v609
  %v611 = vadd.f32 %v610, 0.4994258
  %v612 = vmul.f32 %v592, %v611
  %v613 = vadd.f32 %v612, 1.0
  %v614 = vrcp.pop %v613
  %v615 = vmul.f32 %v613, %v614
  %v616 = vsub.f32 1.0, %v615
  %v617 = vmul.f32 %v614, %v616
  %v618 = vadd.f32 %v614, %v617
  %vm619 = vweird.f32 %v613
  %vm620 = vweird.f32 %v614
  %vm621 = vmor %vm619, %vm620
  %v622 = vsel %vm621, %v614, %v618
  %v623 = vand.u32 2147483647, %v613
  %vm624 = vcmp.eq.f32.partialorder %v623, 8.507059e+37
  %v625 = vand.u32 %v613, 2147483648
  %v626 = vor.u32 1.1754944e-38, %v625
  %v627 = vsel %vm624, %v626, %v622
  %v628 = vmul.f32 %v603, %v627
  %v629 = vmin.f32 %v628, 1.0
  %v630 = vmax.f32 %v629, -1.0
  %v631 = vmul.f32 %v545, %v545
  %v632 = vmin.f32 16.0, %v631
  %v633 = vmul.f32 %v632, 2.1237322e-06
  %v634 = vadd.f32 %v633, 0.00028619796
  %v635 = vmul.f32 %v632, %v634
  %v636 = vadd.f32 %v635, 0.0036580483
  %v637 = vmul.f32 %v632, %v636
  %v638 = vadd.f32 %v637, 0.05243302
  %v639 = vmul.f32 %v632, %v638
  %v640 = vadd.f32 %v639, 0.18741608
  %v641 = vmul.f32 %v632, %v640
  %v642 = vadd.f32 %v641, 1.1283791
  %v643 = vmul.f32 %v545, %v642
  %v644 = vmul.f32 %v632, 3.8918573e-05
  %v645 = vadd.f32 %v644, 0.001143296
  %v646 = vmul.f32 %v632, %v645
  %v647 = vadd.f32 %v646, 0.014752088
  %v648 = vmul.f32 %v632, %v647
  %v649 = vadd.f32 %v648, 0.112945676
  %v650 = vmul.f32 %v632, %v649
  %v651 = vadd.f32 %v650, 0.4994258
  %v652 = vmul.f32 %v632, %v651
  %v653 = vadd.f32 %v652, 1.0
  %v654 = vrcp.pop %v653
  %v655 = vmul.f32 %v653, %v654
  %v656 = vsub.f32 1.0, %v655
  %v657 = vmul.f32 %v654, %v656
  %v658 = vadd.f32 %v654, %v657
  %vm659 = vweird.f32 %v653
  %vm660 = vweird.f32 %v654
  %vm661 = vmor %vm659, %vm660
  %v662 = vsel %vm661, %v654, %v658
  %v663 = vand.u32 2147483647, %v653
  %vm664 = vcmp.eq.f32.partialorder %v663, 8.507059e+37
  %v665 = vand.u32 %v653, 2147483648
  %v666 = vor.u32 1.1754944e-38, %v665
  %v667 = vsel %vm664, %v666, %v662
  %v668 = vmul.f32 %v643, %v667
  %v669 = vmin.f32 %v668, 1.0
  %v670 = vmax.f32 %v669, -1.0
  %v671 = vmul.f32 %v546, %v546
  %v672 = vmin.f32 16.0, %v671
  %v673 = vmul.f32 %v672, 2.1237322e-06
  %v674 = vadd.f32 %v673, 0.00028619796
  %v675 = vmul.f32 %v672, %v674
  %v676 = vadd.f32 %v675, 0.0036580483
  %v677 = vmul.f32 %v672, %v676
  %v678 = vadd.f32 %v677, 0.05243302
  %v679 = vmul.f32 %v672, %v678
  %v680 = vadd.f32 %v679, 0.18741608
  %v681 = vmul.f32 %v672, %v680
  %v682 = vadd.f32 %v681, 1.1283791
  %v683 = vmul.f32 %v546, %v682
  %v684 = vmul.f32 %v672, 3.8918573e-05
  %v685 = vadd.f32 %v684, 0.001143296
  %v686 = vmul.f32 %v672, %v685
  %v687 = vadd.f32 %v686, 0.014752088
  %v688 = vmul.f32 %v672, %v687
  %v689 = vadd.f32 %v688, 0.112945676
  %v690 = vmul.f32 %v672, %v689
  %v691 = vadd.f32 %v690, 0.4994258
  %v692 = vmul.f32 %v672, %v691
  %v693 = vadd.f32 %v692, 1.0
  %v694 = vrcp.pop %v693
  %v695 = vmul.f32 %v693, %v694
  %v696 = vsub.f32 1.0, %v695
  %v697 = vmul.f32 %v694, %v696
  %v698 = vadd.f32 %v694, %v697
  %vm699 = vweird.f32 %v693
  %vm700 = vweird.f32 %v694
  %vm701 = vmor %vm699, %vm700
  %v702 = vsel %vm701, %v694, %v698
  %v703 = vand.u32 2147483647, %v693
  %vm704 = vcmp.eq.f32.partialorder %v703, 8.507059e+37
  %v705 = vand.u32 %v693, 2147483648
  %v706 = vor.u32 1.1754944e-38, %v705
  %v707 = vsel %vm704, %v706, %v702
  %v708 = vmul.f32 %v683, %v707
  %v709 = vmin.f32 %v708, 1.0
  %v710 = vmax.f32 %v709, -1.0
  %v711 = vmul.f32 %v547, %v547
  %v712 = vmin.f32 16.0, %v711
  %v713 = vmul.f32 %v712, 2.1237322e-06
  %v714 = vadd.f32 %v713, 0.00028619796
  %v715 = vmul.f32 %v712, %v714
  %v716 = vadd.f32 %v715, 0.0036580483
  %v717 = vmul.f32 %v712, %v716
  %v718 = vadd.f32 %v717, 0.05243302
  %v719 = vmul.f32 %v712, %v718
  %v720 = vadd.f32 %v719, 0.18741608
  %v721 = vmul.f32 %v712, %v720
  %v722 = vadd.f32 %v721, 1.1283791
  %v723 = vmul.f32 %v547, %v722
  %v724 = vmul.f32 %v712, 3.8918573e-05
  %v725 = vadd.f32 %v724, 0.001143296
  %v726 = vmul.f32 %v712, %v725
  %v727 = vadd.f32 %v726, 0.014752088
  %v728 = vmul.f32 %v712, %v727
  %v729 = vadd.f32 %v728, 0.112945676
  %v730 = vmul.f32 %v712, %v729
  %v731 = vadd.f32 %v730, 0.4994258
  %v732 = vmul.f32 %v712, %v731
  %v733 = vadd.f32 %v732, 1.0
  %v734 = vrcp.pop %v733
  %v735 = vmul.f32 %v733, %v734
  %v736 = vsub.f32 1.0, %v735
  %v737 = vmul.f32 %v734, %v736
  %v738 = vadd.f32 %v734, %v737
  %vm739 = vweird.f32 %v733
  %vm740 = vweird.f32 %v734
  %vm741 = vmor %vm739, %vm740
  %v742 = vsel %vm741, %v734, %v738
  %v743 = vand.u32 2147483647, %v733
  %vm744 = vcmp.eq.f32.partialorder %v743, 8.507059e+37
  %v745 = vand.u32 %v733, 2147483648
  %v746 = vor.u32 1.1754944e-38, %v745
  %v747 = vsel %vm744, %v746, %v742
  %v748 = vmul.f32 %v723, %v747
  %v749 = vmin.f32 %v748, 1.0
  %v750 = vmax.f32 %v749, -1.0
  %v751 = vmul.f32 %v548, %v548
  %v752 = vmin.f32 16.0, %v751
  %v753 = vmul.f32 %v752, 2.1237322e-06
  %v754 = vadd.f32 %v753, 0.00028619796
  %v755 = vmul.f32 %v752, %v754
  %v756 = vadd.f32 %v755, 0.0036580483
  %v757 = vmul.f32 %v752, %v756
  %v758 = vadd.f32 %v757, 0.05243302
  %v759 = vmul.f32 %v752, %v758
  %v760 = vadd.f32 %v759, 0.18741608
  %v761 = vmul.f32 %v752, %v760
  %v762 = vadd.f32 %v761, 1.1283791
  %v763 = vmul.f32 %v548, %v762
  %v764 = vmul.f32 %v752, 3.8918573e-05
  %v765 = vadd.f32 %v764, 0.001143296
  %v766 = vmul.f32 %v752, %v765
  %v767 = vadd.f32 %v766, 0.014752088
  %v768 = vmul.f32 %v752, %v767
  %v769 = vadd.f32 %v768, 0.112945676
  %v770 = vmul.f32 %v752, %v769
  %v771 = vadd.f32 %v770, 0.4994258
  %v772 = vmul.f32 %v752, %v771
  %v773 = vadd.f32 %v772, 1.0
  %v774 = vrcp.pop %v773
  %v775 = vmul.f32 %v773, %v774
  %v776 = vsub.f32 1.0, %v775
  %v777 = vmul.f32 %v774, %v776
  %v778 = vadd.f32 %v774, %v777
  %vm779 = vweird.f32 %v773
  %vm780 = vweird.f32 %v774
  %vm781 = vmor %vm779, %vm780
  %v782 = vsel %vm781, %v774, %v778
  %v783 = vand.u32 2147483647, %v773
  %vm784 = vcmp.eq.f32.partialorder %v783, 8.507059e+37
  %v785 = vand.u32 %v773, 2147483648
  %v786 = vor.u32 1.1754944e-38, %v785
  %v787 = vsel %vm784, %v786, %v782
  %v788 = vmul.f32 %v763, %v787
  %v789 = vmin.f32 %v788, 1.0
  %v790 = vmax.f32 %v789, -1.0
  %v791 = vmul.f32 %v549, %v549
  %v792 = vmin.f32 16.0, %v791
  %v793 = vmul.f32 %v792, 2.1237322e-06
  %v794 = vadd.f32 %v793, 0.00028619796
  %v795 = vmul.f32 %v792, %v794
  %v796 = vadd.f32 %v795, 0.0036580483
  %v797 = vmul.f32 %v792, %v796
  %v798 = vadd.f32 %v797, 0.05243302
  %v799 = vmul.f32 %v792, %v798
  %v800 = vadd.f32 %v799, 0.18741608
  %v801 = vmul.f32 %v792, %v800
  %v802 = vadd.f32 %v801, 1.1283791
  %v803 = vmul.f32 %v549, %v802
  %v804 = vmul.f32 %v792, 3.8918573e-05
  %v805 = vadd.f32 %v804, 0.001143296
  %v806 = vmul.f32 %v792, %v805
  %v807 = vadd.f32 %v806, 0.014752088
  %v808 = vmul.f32 %v792, %v807
  %v809 = vadd.f32 %v808, 0.112945676
  %v810 = vmul.f32 %v792, %v809
  %v811 = vadd.f32 %v810, 0.4994258
  %v812 = vmul.f32 %v792, %v811
  %v813 = vadd.f32 %v812, 1.0
  %v814 = vrcp.pop %v813
  %v815 = vmul.f32 %v813, %v814
  %v816 = vsub.f32 1.0, %v815
  %v817 = vmul.f32 %v814, %v816
  %v818 = vadd.f32 %v814, %v817
  %vm819 = vweird.f32 %v813
  %vm820 = vweird.f32 %v814
  %vm821 = vmor %vm819, %vm820
  %v822 = vsel %vm821, %v814, %v818
  %v823 = vand.u32 2147483647, %v813
  %vm824 = vcmp.eq.f32.partialorder %v823, 8.507059e+37
  %v825 = vand.u32 %v813, 2147483648
  %v826 = vor.u32 1.1754944e-38, %v825
  %v827 = vsel %vm824, %v826, %v822
  %v828 = vmul.f32 %v803, %v827
  %v829 = vmin.f32 %v828, 1.0
  %v830 = vmax.f32 %v829, -1.0
  %v831 = vmul.f32 %v550, %v550
  %v832 = vmin.f32 16.0, %v831
  %v833 = vmul.f32 %v832, 2.1237322e-06
  %v834 = vadd.f32 %v833, 0.00028619796
  %v835 = vmul.f32 %v832, %v834
  %v836 = vadd.f32 %v835, 0.0036580483
  %v837 = vmul.f32 %v832, %v836
  %v838 = vadd.f32 %v837, 0.05243302
  %v839 = vmul.f32 %v832, %v838
  %v840 = vadd.f32 %v839, 0.18741608
  %v841 = vmul.f32 %v832, %v840
  %v842 = vadd.f32 %v841, 1.1283791
  %v843 = vmul.f32 %v550, %v842
  %v844 = vmul.f32 %v832, 3.8918573e-05
  %v845 = vadd.f32 %v844, 0.001143296
  %v846 = vmul.f32 %v832, %v845
  %v847 = vadd.f32 %v846, 0.014752088
  %v848 = vmul.f32 %v832, %v847
  %v849 = vadd.f32 %v848, 0.112945676
  %v850 = vmul.f32 %v832, %v849
  %v851 = vadd.f32 %v850, 0.4994258
  %v852 = vmul.f32 %v832, %v851
  %v853 = vadd.f32 %v852, 1.0
  %v854 = vrcp.pop %v853
  %v855 = vmul.f32 %v853, %v854
  %v856 = vsub.f32 1.0, %v855
  %v857 = vmul.f32 %v854, %v856
  %v858 = vadd.f32 %v854, %v857
  %vm859 = vweird.f32 %v853
  %vm860 = vweird.f32 %v854
  %vm861 = vmor %vm859, %vm860
  %v862 = vsel %vm861, %v854, %v858
  %v863 = vand.u32 2147483647, %v853
  %vm864 = vcmp.eq.f32.partialorder %v863, 8.507059e+37
  %v865 = vand.u32 %v853, 2147483648
  %v866 = vor.u32 1.1754944e-38, %v865
  %v867 = vsel %vm864, %v866, %v862
  %v868 = vmul.f32 %v843, %v867
  %v869 = vmin.f32 %v868, 1.0
  %v870 = vmax.f32 %v869, -1.0
  %v871 = vadd.f32 %v590, 1.0
  %v872 = vadd.f32 %v630, 1.0
  %v873 = vadd.f32 %v670, 1.0
  %v874 = vadd.f32 %v710, 1.0
  %v875 = vadd.f32 %v750, 1.0
  %v876 = vadd.f32 %v790, 1.0
  %v877 = vadd.f32 %v830, 1.0
  %v878 = vadd.f32 %v870, 1.0
  %v879 = vmul.f32 %v535, %v871
  %v880 = vmul.f32 %v536, %v872
  %v881 = vmul.f32 %v537, %v873
  %v882 = vmul.f32 %v538, %v874
  %v883 = vmul.f32 %v539, %v875
  %v884 = vmul.f32 %v540, %v876
  %v885 = vmul.f32 %v541, %v877
  %v886 = vmul.f32 %v542, %v878
  %v887 = vld [vmem:[%s5] sm:$0xff]
  %v888 = vld [vmem:[%s5 + $0x8] sm:$0xf]
  %v889 = vld [vmem:[%s6] sm:$0x1]
  %v891 = vperm.slane %v889, 0
  %vm893 = vcmask 97280
  %v895 = vsel %vm893, %v879, 0
  %v898 = vsel %vm893, %v880, 0
  %v901 = vsel %vm893, %v881, 0
  %v904 = vsel %vm893, %v882, 0
  %v907 = vsel %vm893, %v883, 0
  %v910 = vsel %vm893, %v884, 0
  %v913 = vsel %vm893, %v885, 0
  %v916 = vsel %vm893, %v886, 0
  %vm918 = vcmask 1043456
  %v920 = vsel %vm918, %v888, 0
  %922 = vmatpush.msra.mxu0 0.0
  %923 = vmatpush.msra.mxu0 0.0
  %924 = vmatpush.msra.mxu0 0.0
  %925 = vmatpush.msra.mxu0 0.0
  %926 = vmatpush.msra.mxu0 0.0
  %927 = vmatpush.msra.mxu0 0.0
  %928 = vmatpush.msra.mxu0 0.0
  %929 = vmatpush.msra.mxu0 0.0
  %930 = vmatpush.msra.mxu0 0.0
  %931 = vmatpush.msra.mxu0 0.0
  %932 = vmatpush.msra.mxu0 0.0
  %933 = vmatpush.msra.mxu0 0.0
  %934 = vmatpush.msra.mxu0 0.0
  %935 = vmatpush.msra.mxu0 0.0
  %936 = vmatpush.msra.mxu0 %v920
  %937 = vmatpush.msra.mxu0 %v887
  %938 = vmatmul.f32.gmra.mxu0 %v895
  %v939 = vpop.f32.mrf.mxu0
  %v940 = vadd.f32 %v891, %v939
  %941 = vmatmul.f32.gmra.mxu0 %v898
  %v942 = vpop.f32.mrf.mxu0
  %v943 = vadd.f32 %v891, %v942
  %944 = vmatmul.f32.gmra.mxu0 %v901
  %v945 = vpop.f32.mrf.mxu0
  %v946 = vadd.f32 %v891, %v945
  %947 = vmatmul.f32.gmra.mxu0 %v904
  %v948 = vpop.f32.mrf.mxu0
  %v949 = vadd.f32 %v891, %v948
  %950 = vmatmul.f32.gmra.mxu0 %v907
  %v951 = vpop.f32.mrf.mxu0
  %v952 = vadd.f32 %v891, %v951
  %953 = vmatmul.f32.gmra.mxu0 %v910
  %v954 = vpop.f32.mrf.mxu0
  %v955 = vadd.f32 %v891, %v954
  %956 = vmatmul.f32.gmra.mxu0 %v913
  %v957 = vpop.f32.mrf.mxu0
  %v958 = vadd.f32 %v891, %v957
  %959 = vmatmul.f32.gmra.mxu0 %v916
  %v960 = vpop.f32.mrf.mxu0
  %v961 = vadd.f32 %v891, %v960
  %962 = vdwg.mxu0
  %vm963 = vcmask 15360
  %v964 = vsel %vm963, %v940, -inf
  %965 = vmax.xlane.f32.xlu0 %v964
  %v966 = vpop.xlane.xlu0 %965
  %v967 = vsel %vm963, %v943, -inf
  %968 = vmax.xlane.f32.xlu0 %v967
  %v969 = vpop.xlane.xlu0 %968
  %v970 = vsel %vm963, %v946, -inf
  %971 = vmax.xlane.f32.xlu0 %v970
  %v972 = vpop.xlane.xlu0 %971
  %v973 = vsel %vm963, %v949, -inf
  %974 = vmax.xlane.f32.xlu0 %v973
  %v975 = vpop.xlane.xlu0 %974
  %v976 = vsel %vm963, %v952, -inf
  %977 = vmax.xlane.f32.xlu0 %v976
  %v978 = vpop.xlane.xlu0 %977
  %v979 = vsel %vm963, %v955, -inf
  %980 = vmax.xlane.f32.xlu0 %v979
  %v981 = vpop.xlane.xlu0 %980
  %v982 = vsel %vm963, %v958, -inf
  %983 = vmax.xlane.f32.xlu0 %v982
  %v984 = vpop.xlane.xlu0 %983
  %v985 = vsel %vm963, %v961, -inf
  %986 = vmax.xlane.f32.xlu0 %v985
  %v987 = vpop.xlane.xlu0 %986
  %v988 = vsub.f32 %v940, %v966
  %v989 = vsub.f32 %v943, %v969
  %v990 = vsub.f32 %v946, %v972
  %v991 = vsub.f32 %v949, %v975
  %v992 = vsub.f32 %v952, %v978
  %v993 = vsub.f32 %v955, %v981
  %v994 = vsub.f32 %v958, %v984
  %v995 = vsub.f32 %v961, %v987
  %v996 = vmul.f32 %v988, 1.442695
  %v997 = vpow.pop %v996
  %v998 = vmul.f32 %v989, 1.442695
  %v999 = vpow.pop %v998
  %v1000 = vmul.f32 %v990, 1.442695
  %v1001 = vpow.pop %v1000
  %v1002 = vmul.f32 %v991, 1.442695
  %v1003 = vpow.pop %v1002
  %v1004 = vmul.f32 %v992, 1.442695
  %v1005 = vpow.pop %v1004
  %v1006 = vmul.f32 %v993, 1.442695
  %v1007 = vpow.pop %v1006
  %v1008 = vmul.f32 %v994, 1.442695
  %v1009 = vpow.pop %v1008
  %v1010 = vmul.f32 %v995, 1.442695
  %v1011 = vpow.pop %v1010
  %v1012 = vsel %vm963, %v997, 0.0
  %1013 = vadd.xlane.f32.xlu0 %v1012
  %v1014 = vpop.xlane.xlu0 %1013
  %v1015 = vsel %vm963, %v999, 0.0
  %1016 = vadd.xlane.f32.xlu0 %v1015
  %v1017 = vpop.xlane.xlu0 %1016
  %v1018 = vsel %vm963, %v1001, 0.0
  %1019 = vadd.xlane.f32.xlu0 %v1018
  %v1020 = vpop.xlane.xlu0 %1019
  %v1021 = vsel %vm963, %v1003, 0.0
  %1022 = vadd.xlane.f32.xlu0 %v1021
  %v1023 = vpop.xlane.xlu0 %1022
  %v1024 = vsel %vm963, %v1005, 0.0
  %1025 = vadd.xlane.f32.xlu0 %v1024
  %v1026 = vpop.xlane.xlu0 %1025
  %v1027 = vsel %vm963, %v1007, 0.0
  %1028 = vadd.xlane.f32.xlu0 %v1027
  %v1029 = vpop.xlane.xlu0 %1028
  %v1030 = vsel %vm963, %v1009, 0.0
  %1031 = vadd.xlane.f32.xlu0 %v1030
  %v1032 = vpop.xlane.xlu0 %1031
  %v1033 = vsel %vm963, %v1011, 0.0
  %1034 = vadd.xlane.f32.xlu0 %v1033
  %v1035 = vpop.xlane.xlu0 %1034
  %v1036 = vlog2.pop %v1014
  %v1037 = vmul.f32 %v1036, 0.6931472
  %v1038 = vlog2.pop %v1017
  %v1039 = vmul.f32 %v1038, 0.6931472
  %v1040 = vlog2.pop %v1020
  %v1041 = vmul.f32 %v1040, 0.6931472
  %v1042 = vlog2.pop %v1023
  %v1043 = vmul.f32 %v1042, 0.6931472
  %v1044 = vlog2.pop %v1026
  %v1045 = vmul.f32 %v1044, 0.6931472
  %v1046 = vlog2.pop %v1029
  %v1047 = vmul.f32 %v1046, 0.6931472
  %v1048 = vlog2.pop %v1032
  %v1049 = vmul.f32 %v1048, 0.6931472
  %v1050 = vlog2.pop %v1035
  %v1051 = vmul.f32 %v1050, 0.6931472
  %v1052 = vsub.f32 %v988, %v1037
  %v1053 = vsub.f32 %v989, %v1039
  %v1054 = vsub.f32 %v990, %v1041
  %v1055 = vsub.f32 %v991, %v1043
  %v1056 = vsub.f32 %v992, %v1045
  %v1057 = vsub.f32 %v993, %v1047
  %v1058 = vsub.f32 %v994, %v1049
  %v1059 = vsub.f32 %v995, %v1051
  %1060 = vst.msk [vmem:[%s7] sm:$0xff] %vm963, %v1052
  %1061 = vst.msk [vmem:[%s7 + $0x8] sm:$0xff] %vm963, %v1053
  %1062 = vst.msk [vmem:[%s7 + $0x10] sm:$0xff] %vm963, %v1054
  %1063 = vst.msk [vmem:[%s7 + $0x18] sm:$0xff] %vm963, %v1055
  %1064 = vst.msk [vmem:[%s7 + $0x20] sm:$0xff] %vm963, %v1056
  %1065 = vst.msk [vmem:[%s7 + $0x28] sm:$0xff] %vm963, %v1057
  %1066 = vst.msk [vmem:[%s7 + $0x30] sm:$0xff] %vm963, %v1058
  %1067 = vst.msk [vmem:[%s7 + $0x38] sm:$0xff] %vm963, %v1059
  // Predicated region
  $region30: #{stprivacy_forward.9} parent=0 // pred_check
    _
  $region31: #{stprivacy_forward.9} parent=0 // pred_check_branch
    %1069 = sbr.rel (0) target = $region33
  $region32: #{stprivacy_forward.9} parent=0 // pred_region
    _
  $region33: #{stprivacy_forward.9} parent=0 // pred_fallthru
    _
  // Predicated region
  $region34: #{stprivacy_forward.9} parent=0 // pred_check
    _
  $region35: #{stprivacy_forward.9} parent=0 // pred_check_branch
    %1071 = sbr.rel (0) target = $region37
  $region36: #{stprivacy_forward.9} parent=0 // pred_region
    _
  $region37: #{stprivacy_forward.9} parent=0 // pred_fallthru
    _

// kernel: stprivacy_forward.11
$region0: #{stprivacy_forward.11}
  #allocation0 [shape = 'u32[]', space=smem, size = 0x4, offset = 0x4, fixed_abs, tag = 'smem constant byte address 0x4 - core index']
  #allocation1 [shape = 'u32[72,128]{1,0:T(1,128)}', space=vmem, size = 0x9000, scoped, tag = 'internal scratch']
  %s0 = inlined_call_operand.vmem [shape: f32[32,48], index: 0, kind: input, shape index: {}]
  %s1 = inlined_call_operand.vmem [shape: f32[1,48], index: 1, kind: input, shape index: {}]
  %s2 = inlined_call_operand.vmem [shape: f32[1,48], index: 2, kind: input, shape index: {}]
  %s3 = inlined_call_operand.vmem [shape: f32[48,96], index: 3, kind: input, shape index: {}]
  %s4 = inlined_call_operand.vmem [shape: f32[1,96], index: 4, kind: input, shape index: {}]
  %s5 = inlined_call_operand.vmem [shape: f32[32,96], index: 5, kind: output, shape index: {}]
  %s6 = sld [smem:[#allocation0]]
  $region30: #{stprivacy_forward.11} parent=0
    _
  %s8 = ssub.s32 1, %s6
  %s9 = scalar_select 0, %s8, %s6
  // Predicated region
  $region2: #{stprivacy_forward.11} parent=0 // pred_check
    _
  $region3: #{stprivacy_forward.11} parent=0 // pred_check_branch
    %11 = sbr.rel (0) target = $region5
  $region4: #{stprivacy_forward.11} parent=0 // pred_region
    _
  $region5: #{stprivacy_forward.11} parent=0 // pred_fallthru
    _
  // Predicated region
  $region6: #{stprivacy_forward.11} parent=0 // pred_check
    _
  $region7: #{stprivacy_forward.11} parent=0 // pred_check_branch
    %13 = sbr.rel (0) target = $region9
  $region8: #{stprivacy_forward.11} parent=0 // pred_region
    _
  $region9: #{stprivacy_forward.11} parent=0 // pred_fallthru
    _
  // Predicated region
  $region10: #{stprivacy_forward.11} parent=0 // pred_check
    _
  $region11: #{stprivacy_forward.11} parent=0 // pred_check_branch
    %15 = sbr.rel (0) target = $region13
  $region12: #{stprivacy_forward.11} parent=0 // pred_region
    _
  $region13: #{stprivacy_forward.11} parent=0 // pred_fallthru
    _
  // Predicated region
  $region14: #{stprivacy_forward.11} parent=0 // pred_check
    _
  $region15: #{stprivacy_forward.11} parent=0 // pred_check_branch
    %17 = sbr.rel (0) target = $region17
  $region16: #{stprivacy_forward.11} parent=0 // pred_region
    _
  $region17: #{stprivacy_forward.11} parent=0 // pred_fallthru
    _
  // Predicated region
  $region18: #{stprivacy_forward.11} parent=0 // pred_check
    _
  $region19: #{stprivacy_forward.11} parent=0 // pred_check_branch
    %19 = sbr.rel (0) target = $region21
  $region20: #{stprivacy_forward.11} parent=0 // pred_region
    _
  $region21: #{stprivacy_forward.11} parent=0 // pred_fallthru
    _
  %v20 = vld [vmem:[%s0] sm:$0xff]
  %v21 = vld [vmem:[%s0 + $0x8] sm:$0xff]
  %v22 = vld [vmem:[%s0 + $0x10] sm:$0xff]
  %v23 = vld [vmem:[%s0 + $0x18] sm:$0xff]
  %v24 = vld [vmem:[%s1] sm:$0x1]
  %v25 = vld [vmem:[%s2] sm:$0x1]
  %vm26 = vcmask 392192
  %v27 = vsel %vm26, %v20, 0.0
  %28 = vadd.xlane.f32.xlu0 %v27
  %v29 = vpop.xlane.xlu0 %28
  %v30 = vsel %vm26, %v21, 0.0
  %31 = vadd.xlane.f32.xlu0 %v30
  %v32 = vpop.xlane.xlu0 %31
  %v33 = vsel %vm26, %v22, 0.0
  %34 = vadd.xlane.f32.xlu0 %v33
  %v35 = vpop.xlane.xlu0 %34
  %v36 = vsel %vm26, %v23, 0.0
  %37 = vadd.xlane.f32.xlu0 %v36
  %v38 = vpop.xlane.xlu0 %37
  %v39 = vrcp.pop 48.0
  %v40 = vmul.f32 48.0, %v39
  %v41 = vsub.f32 1.0, %v40
  %v42 = vmul.f32 %v39, %v41
  %v43 = vadd.f32 %v39, %v42
  %vm44 = vweird.f32 %v39
  %v45 = vsel %vm44, %v39, %v43
  %v46 = vmul.f32 %v29, %v45
  %v47 = vmul.f32 %v32, %v45
  %v48 = vmul.f32 %v35, %v45
  %v49 = vmul.f32 %v38, %v45
  %v50 = vsub.f32 %v20, %v46
  %v51 = vsub.f32 %v21, %v47
  %v52 = vsub.f32 %v22, %v48
  %v53 = vsub.f32 %v23, %v49
  %v54 = vmul.f32 %v50, %v50
  %v55 = vmul.f32 %v51, %v51
  %v56 = vmul.f32 %v52, %v52
  %v57 = vmul.f32 %v53, %v53
  %v58 = vsel %vm26, %v54, 0.0
  %59 = vadd.xlane.f32.xlu0 %v58
  %v60 = vpop.xlane.xlu0 %59
  %v61 = vsel %vm26, %v55, 0.0
  %62 = vadd.xlane.f32.xlu0 %v61
  %v63 = vpop.xlane.xlu0 %62
  %v64 = vsel %vm26, %v56, 0.0
  %65 = vadd.xlane.f32.xlu0 %v64
  %v66 = vpop.xlane.xlu0 %65
  %v67 = vsel %vm26, %v57, 0.0
  %68 = vadd.xlane.f32.xlu0 %v67
  %v69 = vpop.xlane.xlu0 %68
  %v70 = vmul.f32 %v60, %v45
  %v71 = vmul.f32 %v63, %v45
  %v72 = vmul.f32 %v66, %v45
  %v73 = vmul.f32 %v69, %v45
  %v74 = vadd.f32 %v70, 1e-06
  %v75 = vadd.f32 %v71, 1e-06
  %v76 = vadd.f32 %v72, 1e-06
  %v77 = vadd.f32 %v73, 1e-06
  %v78 = vrsqrt.pop %v74
  %v79 = vmul.f32 %v78, %v74
  %v80 = vmul.f32 %v79, %v78
  %v81 = vmul.f32 0.5, %v80
  %v82 = vsub.f32 1.5, %v81
  %v83 = vmul.f32 %v78, %v82
  %vm84 = vweird.f32 %v74
  %vm85 = vweird.f32 %v78
  %vm86 = vmor %vm84, %vm85
  %v87 = vsel %vm86, %v78, %v83
  %v88 = vrsqrt.pop %v75
  %v89 = vmul.f32 %v88, %v75
  %v90 = vmul.f32 %v89, %v88
  %v91 = vmul.f32 0.5, %v90
  %v92 = vsub.f32 1.5, %v91
  %v93 = vmul.f32 %v88, %v92
  %vm94 = vweird.f32 %v75
  %vm95 = vweird.f32 %v88
  %vm96 = vmor %vm94, %vm95
  %v97 = vsel %vm96, %v88, %v93
  %v98 = vrsqrt.pop %v76
  %v99 = vmul.f32 %v98, %v76
  %v100 = vmul.f32 %v99, %v98
  %v101 = vmul.f32 0.5, %v100
  %v102 = vsub.f32 1.5, %v101
  %v103 = vmul.f32 %v98, %v102
  %vm104 = vweird.f32 %v76
  %vm105 = vweird.f32 %v98
  %vm106 = vmor %vm104, %vm105
  %v107 = vsel %vm106, %v98, %v103
  %v108 = vrsqrt.pop %v77
  %v109 = vmul.f32 %v108, %v77
  %v110 = vmul.f32 %v109, %v108
  %v111 = vmul.f32 0.5, %v110
  %v112 = vsub.f32 1.5, %v111
  %v113 = vmul.f32 %v108, %v112
  %vm114 = vweird.f32 %v77
  %vm115 = vweird.f32 %v108
  %vm116 = vmor %vm114, %vm115
  %v117 = vsel %vm116, %v108, %v113
  %v118 = vmul.f32 %v50, %v87
  %v119 = vmul.f32 %v51, %v97
  %v120 = vmul.f32 %v52, %v107
  %v121 = vmul.f32 %v53, %v117
  %v123 = vperm.slane %v24, 0
  %v125 = vmul.f32 %v118, %v123
  %v126 = vmul.f32 %v119, %v123
  %v127 = vmul.f32 %v120, %v123
  %v128 = vmul.f32 %v121, %v123
  %v130 = vperm.slane %v25, 0
  %v132 = vadd.f32 %v125, %v130
  %v133 = vadd.f32 %v126, %v130
  %v134 = vadd.f32 %v127, %v130
  %v135 = vadd.f32 %v128, %v130
  %v136 = vld [vmem:[%s3] sm:$0xff]
  %v137 = vld [vmem:[%s3 + $0x8] sm:$0xff]
  %v138 = vld [vmem:[%s3 + $0x10] sm:$0xff]
  %v139 = vld [vmem:[%s3 + $0x18] sm:$0xff]
  %v140 = vld [vmem:[%s3 + $0x20] sm:$0xff]
  %v141 = vld [vmem:[%s3 + $0x28] sm:$0xff]
  %v142 = vld [vmem:[%s4] sm:$0x1]
  %v144 = vperm.slane %v142, 0
  %v147 = vsel %vm26, %v132, 0
  %v150 = vsel %vm26, %v133, 0
  %v153 = vsel %vm26, %v134, 0
  %v156 = vsel %vm26, %v135, 0
  %158 = vmatpush.msra.mxu0 0.0
  %159 = vmatpush.msra.mxu0 0.0
  %160 = vmatpush.msra.mxu0 0.0
  %161 = vmatpush.msra.mxu0 0.0
  %162 = vmatpush.msra.mxu0 0.0
  %163 = vmatpush.msra.mxu0 0.0
  %164 = vmatpush.msra.mxu0 0.0
  %165 = vmatpush.msra.mxu0 0.0
  %166 = vmatpush.msra.mxu0 0.0
  %167 = vmatpush.msra.mxu0 0.0
  %168 = vmatpush.msra.mxu0 %v141
  %169 = vmatpush.msra.mxu0 %v140
  %170 = vmatpush.msra.mxu0 %v139
  %171 = vmatpush.msra.mxu0 %v138
  %172 = vmatpush.msra.mxu0 %v137
  %173 = vmatpush.msra.mxu0 %v136
  %174 = vmatmul.f32.gmra.mxu0 %v147
  %v175 = vpop.f32.mrf.mxu0
  %v176 = vadd.f32 %v144, %v175
  %177 = vmatmul.f32.gmra.mxu0 %v150
  %v178 = vpop.f32.mrf.mxu0
  %v179 = vadd.f32 %v144, %v178
  %180 = vmatmul.f32.gmra.mxu0 %v153
  %v181 = vpop.f32.mrf.mxu0
  %v182 = vadd.f32 %v144, %v181
  %183 = vmatmul.f32.gmra.mxu0 %v156
  %v184 = vpop.f32.mrf.mxu0
  %v185 = vadd.f32 %v144, %v184
  %186 = vdwg.mxu0
  %vm187 = vcmask 785408
  %188 = vst.msk [vmem:[%s5] sm:$0xff] %vm187, %v176
  %189 = vst.msk [vmem:[%s5 + $0x8] sm:$0xff] %vm187, %v179
  %190 = vst.msk [vmem:[%s5 + $0x10] sm:$0xff] %vm187, %v182
  %191 = vst.msk [vmem:[%s5 + $0x18] sm:$0xff] %vm187, %v185
  // Predicated region
  $region22: #{stprivacy_forward.11} parent=0 // pred_check
    _
  $region23: #{stprivacy_forward.11} parent=0 // pred_check_branch
    %193 = sbr.rel (0) target = $region25
  $region24: #{stprivacy_forward.11} parent=0 // pred_region
    _
  $region25: #{stprivacy_forward.11} parent=0 // pred_fallthru
    _
  // Predicated region
  $region26: #{stprivacy_forward.11} parent=0 // pred_check
    _
  $region27: #{stprivacy_forward.11} parent=0 // pred_check_branch
    %195 = sbr.rel (0) target = $region29
  $region28: #{stprivacy_forward.11} parent=0 // pred_region
    _
  $region29: #{stprivacy_forward.11} parent=0 // pred_fallthru
    _

// kernel: stprivacy_forward.10
$region0: #{stprivacy_forward.10}
  #allocation0 [shape = 'u32[]', space=smem, size = 0x4, offset = 0x4, fixed_abs, tag = 'smem constant byte address 0x4 - core index']
  #allocation1 [shape = 'u32[72,128]{1,0:T(1,128)}', space=vmem, size = 0x9000, scoped, tag = 'internal scratch']
  %s0 = inlined_call_operand.vmem [shape: f32[2,16,48], index: 0, kind: input, shape index: {}]
  %s1 = inlined_call_operand.vmem [shape: f32[1,48], index: 1, kind: input, shape index: {}]
  %s2 = inlined_call_operand.vmem [shape: f32[1,48], index: 2, kind: input, shape index: {}]
  %s3 = inlined_call_operand.vmem [shape: f32[48,144], index: 3, kind: input, shape index: {}]
  %s4 = inlined_call_operand.vmem [shape: f32[1,144], index: 4, kind: input, shape index: {}]
  %s5 = inlined_call_operand.vmem [shape: f32[48,48], index: 5, kind: input, shape index: {}]
  %s6 = inlined_call_operand.vmem [shape: f32[1,48], index: 6, kind: input, shape index: {}]
  %s7 = inlined_call_operand.vmem [shape: f32[1,48], index: 7, kind: input, shape index: {}]
  %s8 = inlined_call_operand.vmem [shape: f32[1,48], index: 8, kind: input, shape index: {}]
  %s9 = inlined_call_operand.vmem [shape: f32[48,192], index: 9, kind: input, shape index: {}]
  %s10 = inlined_call_operand.vmem [shape: f32[1,192], index: 10, kind: input, shape index: {}]
  %s11 = inlined_call_operand.vmem [shape: f32[192,48], index: 11, kind: input, shape index: {}]
  %s12 = inlined_call_operand.vmem [shape: f32[1,48], index: 12, kind: input, shape index: {}]
  %s13 = inlined_call_operand.vmem [shape: f32[2,16,48], index: 13, kind: output, shape index: {}]
  %s14 = sld [smem:[#allocation0]]
  $region85: #{stprivacy_forward.10} parent=0
    _
  %s16 = ssub.s32 1, %s14
  %s17 = scalar_select 0, %s16, %s14
  loop: start=0, step=1, limit=4
  $region2: #{stprivacy_forward.10} parent=0 // loop_pre_header
    _
  $region3: #{stprivacy_forward.10} parent=0 // loop_header
    %s19 = sphi 0, %s23
    %p20 = scmp.ge.s32.totalorder %s19, 4
    %s29 = sphi 0, %s31
    %s32 = sphi 0, %s29
    %s33 = sphi 0, %s32
    %s49 = sphi 0, %s33
    %s53 = sphi 0, %s53
    %s55 = sphi 0, %s53
    %s56 = sphi 0, %s55
    %s70 = sphi 0, %s56
    %s74 = sphi 0, %s74
    %s76 = sphi 0, %s74
    %s77 = sphi 0, %s76
    %s91 = sphi 0, %s77
    %s95 = sphi 0, %s95
    %s97 = sphi 0, %s95
    %s98 = sphi 0, %s97
    %s112 = sphi 0, %s98
    %s116 = sphi 0, %s116
    %s118 = sphi 0, %s116
    %s119 = sphi 0, %s118
    %s133 = sphi 0, %s119
    %s137 = sphi 0, %s137
    %s139 = sphi 0, %s137
    %s140 = sphi 0, %s139
    %s154 = sphi 0, %s140
    %s158 = sphi 0, %s158
    %s160 = sphi 0, %s158
    %s161 = sphi 0, %s160
    %s175 = sphi 0, %s161
    %s179 = sphi 0, %s179
    %s181 = sphi 0, %s179
    %s182 = sphi 0, %s181
    %s196 = sphi 0, %s182
    %s200 = sphi 0, %s200
    %s202 = sphi 0, %s200
    %s203 = sphi 0, %s202
    %s217 = sphi 0, %s203
    %s221 = sphi 0, %s221
    %s223 = sphi 0, %s221
    %s224 = sphi 0, %s223
    %s238 = sphi 0, %s224
    %s242 = sphi 0, %s242
    %s244 = sphi 0, %s242
    %s245 = sphi 0, %s244
    %s259 = sphi 0, %s245
    %s263 = sphi 0, %s263
    %s265 = sphi 0, %s263
    %s266 = sphi 0, %s265
    %s280 = sphi 0, %s266
    %s284 = sphi 0, %s284
    %s286 = sphi 0, %s284
    %s287 = sphi 0, %s286
    %s301 = sphi 0, %s287
    %s307 = sphi 0, %s309
    %s310 = sphi 0, %s307
    %s311 = sphi 0, %s310
    %s327 = sphi 0, %s311
  $region4: #{stprivacy_forward.10} parent=0 // loop_header_branch
    %22 = sbr.rel (%p20) target = $region8
  $region5: #{stprivacy_forward.10} parent=0 // loop_body
    %s24 = ssub.s32 %s19, 1
    %s25 = ssub.s32 %s19, 2
    %s26 = sadd.s32 %s19, 1
    %s27 = ssub.s32 %s19, %s26
    %p28 = scmp.eq.s32.totalorder %s27, 0
    %s30 = sadd.s32 %s29, 1
    %s31 = scalar_select %p28, %s29, %s30
    %p34 = pneg %p28
    %p35 = scmp.eq.s32.totalorder %s19, 1
    %p36 = por %p34, %p35
    %p37 = scmp.ne.s32.totalorder %s29, %s32
    %p38 = scmp.eq.s32.totalorder %s19, 0
    %p39 = por %p37, %p38
    %p40 = scmp.ne.s32.totalorder %s29, %s32
    %p41 = scmp.eq.s32.totalorder %s24, 1
    %p42 = por %p40, %p41
    %p43 = scmp.ne.s32.totalorder %s32, %s33
    %p44 = scmp.eq.s32.totalorder %s24, 0
    %p45 = por %p43, %p44
    %p46 = scmp.ne.s32.totalorder %s32, %s33
    %p47 = scmp.eq.s32.totalorder %s25, 1
    %p48 = por %p46, %p47
    %p50 = scmp.ne.s32.totalorder %s33, %s49
    %p51 = scmp.eq.s32.totalorder %s25, 0
    %p52 = por %p50, %p51
    %s54 = sadd.s32 %s53, 1
    %p57 = scmp.eq.s32.totalorder %s19, 1
    %p58 = scmp.ne.s32.totalorder %s53, %s55
    %p59 = scmp.eq.s32.totalorder %s19, 0
    %p60 = por %p58, %p59
    %p61 = scmp.ne.s32.totalorder %s53, %s55
    %p62 = scmp.eq.s32.totalorder %s24, 1
    %p63 = por %p61, %p62
    %p64 = scmp.ne.s32.totalorder %s55, %s56
    %p65 = scmp.eq.s32.totalorder %s24, 0
    %p66 = por %p64, %p65
    %p67 = scmp.ne.s32.totalorder %s55, %s56
    %p68 = scmp.eq.s32.totalorder %s25, 1
    %p69 = por %p67, %p68
    %p71 = scmp.ne.s32.totalorder %s56, %s70
    %p72 = scmp.eq.s32.totalorder %s25, 0
    %p73 = por %p71, %p72
    %s75 = sadd.s32 %s74, 1
    %p78 = scmp.eq.s32.totalorder %s19, 1
    %p79 = scmp.ne.s32.totalorder %s74, %s76
    %p80 = scmp.eq.s32.totalorder %s19, 0
    %p81 = por %p79, %p80
    %p82 = scmp.ne.s32.totalorder %s74, %s76
    %p83 = scmp.eq.s32.totalorder %s24, 1
    %p84 = por %p82, %p83
    %p85 = scmp.ne.s32.totalorder %s76, %s77
    %p86 = scmp.eq.s32.totalorder %s24, 0
    %p87 = por %p85, %p86
    %p88 = scmp.ne.s32.totalorder %s76, %s77
    %p89 = scmp.eq.s32.totalorder %s25, 1
    %p90 = por %p88, %p89
    %p92 = scmp.ne.s32.totalorder %s77, %s91
    %p93 = scmp.eq.s32.totalorder %s25, 0
    %p94 = por %p92, %p93
    %s96 = sadd.s32 %s95, 1
    %p99 = scmp.eq.s32.totalorder %s19, 1
    %p100 = scmp.ne.s32.totalorder %s95, %s97
    %p101 = scmp.eq.s32.totalorder %s19, 0
    %p102 = por %p100, %p101
    %p103 = scmp.ne.s32.totalorder %s95, %s97
    %p104 = scmp.eq.s32.totalorder %s24, 1
    %p105 = por %p103, %p104
    %p106 = scmp.ne.s32.totalorder %s97, %s98
    %p107 = scmp.eq.s32.totalorder %s24, 0
    %p108 = por %p106, %p107
    %p109 = scmp.ne.s32.totalorder %s97, %s98
    %p110 = scmp.eq.s32.totalorder %s25, 1
    %p111 = por %p109, %p110
    %p113 = scmp.ne.s32.totalorder %s98, %s112
    %p114 = scmp.eq.s32.totalorder %s25, 0
    %p115 = por %p113, %p114
    %s117 = sadd.s32 %s116, 1
    %p120 = scmp.eq.s32.totalorder %s19, 1
    %p121 = scmp.ne.s32.totalorder %s116, %s118
    %p122 = scmp.eq.s32.totalorder %s19, 0
    %p123 = por %p121, %p122
    %p124 = scmp.ne.s32.totalorder %s116, %s118
    %p125 = scmp.eq.s32.totalorder %s24, 1
    %p126 = por %p124, %p125
    %p127 = scmp.ne.s32.totalorder %s118, %s119
    %p128 = scmp.eq.s32.totalorder %s24, 0
    %p129 = por %p127, %p128
    %p130 = scmp.ne.s32.totalorder %s118, %s119
    %p131 = scmp.eq.s32.totalorder %s25, 1
    %p132 = por %p130, %p131
    %p134 = scmp.ne.s32.totalorder %s119, %s133
    %p135 = scmp.eq.s32.totalorder %s25, 0
    %p136 = por %p134, %p135
    %s138 = sadd.s32 %s137, 1
    %p141 = scmp.eq.s32.totalorder %s19, 1
    %p142 = scmp.ne.s32.totalorder %s137, %s139
    %p143 = scmp.eq.s32.totalorder %s19, 0
    %p144 = por %p142, %p143
    %p145 = scmp.ne.s32.totalorder %s137, %s139
    %p146 = scmp.eq.s32.totalorder %s24, 1
    %p147 = por %p145, %p146
    %p148 = scmp.ne.s32.totalorder %s139, %s140
    %p149 = scmp.eq.s32.totalorder %s24, 0
    %p150 = por %p148, %p149
    %p151 = scmp.ne.s32.totalorder %s139, %s140
    %p152 = scmp.eq.s32.totalorder %s25, 1
    %p153 = por %p151, %p152
    %p155 = scmp.ne.s32.totalorder %s140, %s154
    %p156 = scmp.eq.s32.totalorder %s25, 0
    %p157 = por %p155, %p156
    %s159 = sadd.s32 %s158, 1
    %p162 = scmp.eq.s32.totalorder %s19, 1
    %p163 = scmp.ne.s32.totalorder %s158, %s160
    %p164 = scmp.eq.s32.totalorder %s19, 0
    %p165 = por %p163, %p164
    %p166 = scmp.ne.s32.totalorder %s158, %s160
    %p167 = scmp.eq.s32.totalorder %s24, 1
    %p168 = por %p166, %p167
    %p169 = scmp.ne.s32.totalorder %s160, %s161
    %p170 = scmp.eq.s32.totalorder %s24, 0
    %p171 = por %p169, %p170
    %p172 = scmp.ne.s32.totalorder %s160, %s161
    %p173 = scmp.eq.s32.totalorder %s25, 1
    %p174 = por %p172, %p173
    %p176 = scmp.ne.s32.totalorder %s161, %s175
    %p177 = scmp.eq.s32.totalorder %s25, 0
    %p178 = por %p176, %p177
    %s180 = sadd.s32 %s179, 1
    %p183 = scmp.eq.s32.totalorder %s19, 1
    %p184 = scmp.ne.s32.totalorder %s179, %s181
    %p185 = scmp.eq.s32.totalorder %s19, 0
    %p186 = por %p184, %p185
    %p187 = scmp.ne.s32.totalorder %s179, %s181
    %p188 = scmp.eq.s32.totalorder %s24, 1
    %p189 = por %p187, %p188
    %p190 = scmp.ne.s32.totalorder %s181, %s182
    %p191 = scmp.eq.s32.totalorder %s24, 0
    %p192 = por %p190, %p191
    %p193 = scmp.ne.s32.totalorder %s181, %s182
    %p194 = scmp.eq.s32.totalorder %s25, 1
    %p195 = por %p193, %p194
    %p197 = scmp.ne.s32.totalorder %s182, %s196
    %p198 = scmp.eq.s32.totalorder %s25, 0
    %p199 = por %p197, %p198
    %s201 = sadd.s32 %s200, 1
    %p204 = scmp.eq.s32.totalorder %s19, 1
    %p205 = scmp.ne.s32.totalorder %s200, %s202
    %p206 = scmp.eq.s32.totalorder %s19, 0
    %p207 = por %p205, %p206
    %p208 = scmp.ne.s32.totalorder %s200, %s202
    %p209 = scmp.eq.s32.totalorder %s24, 1
    %p210 = por %p208, %p209
    %p211 = scmp.ne.s32.totalorder %s202, %s203
    %p212 = scmp.eq.s32.totalorder %s24, 0
    %p213 = por %p211, %p212
    %p214 = scmp.ne.s32.totalorder %s202, %s203
    %p215 = scmp.eq.s32.totalorder %s25, 1
    %p216 = por %p214, %p215
    %p218 = scmp.ne.s32.totalorder %s203, %s217
    %p219 = scmp.eq.s32.totalorder %s25, 0
    %p220 = por %p218, %p219
    %s222 = sadd.s32 %s221, 1
    %p225 = scmp.eq.s32.totalorder %s19, 1
    %p226 = scmp.ne.s32.totalorder %s221, %s223
    %p227 = scmp.eq.s32.totalorder %s19, 0
    %p228 = por %p226, %p227
    %p229 = scmp.ne.s32.totalorder %s221, %s223
    %p230 = scmp.eq.s32.totalorder %s24, 1
    %p231 = por %p229, %p230
    %p232 = scmp.ne.s32.totalorder %s223, %s224
    %p233 = scmp.eq.s32.totalorder %s24, 0
    %p234 = por %p232, %p233
    %p235 = scmp.ne.s32.totalorder %s223, %s224
    %p236 = scmp.eq.s32.totalorder %s25, 1
    %p237 = por %p235, %p236
    %p239 = scmp.ne.s32.totalorder %s224, %s238
    %p240 = scmp.eq.s32.totalorder %s25, 0
    %p241 = por %p239, %p240
    %s243 = sadd.s32 %s242, 1
    %p246 = scmp.eq.s32.totalorder %s19, 1
    %p247 = scmp.ne.s32.totalorder %s242, %s244
    %p248 = scmp.eq.s32.totalorder %s19, 0
    %p249 = por %p247, %p248
    %p250 = scmp.ne.s32.totalorder %s242, %s244
    %p251 = scmp.eq.s32.totalorder %s24, 1
    %p252 = por %p250, %p251
    %p253 = scmp.ne.s32.totalorder %s244, %s245
    %p254 = scmp.eq.s32.totalorder %s24, 0
    %p255 = por %p253, %p254
    %p256 = scmp.ne.s32.totalorder %s244, %s245
    %p257 = scmp.eq.s32.totalorder %s25, 1
    %p258 = por %p256, %p257
    %p260 = scmp.ne.s32.totalorder %s245, %s259
    %p261 = scmp.eq.s32.totalorder %s25, 0
    %p262 = por %p260, %p261
    %s264 = sadd.s32 %s263, 1
    %p267 = scmp.eq.s32.totalorder %s19, 1
    %p268 = scmp.ne.s32.totalorder %s263, %s265
    %p269 = scmp.eq.s32.totalorder %s19, 0
    %p270 = por %p268, %p269
    %p271 = scmp.ne.s32.totalorder %s263, %s265
    %p272 = scmp.eq.s32.totalorder %s24, 1
    %p273 = por %p271, %p272
    %p274 = scmp.ne.s32.totalorder %s265, %s266
    %p275 = scmp.eq.s32.totalorder %s24, 0
    %p276 = por %p274, %p275
    %p277 = scmp.ne.s32.totalorder %s265, %s266
    %p278 = scmp.eq.s32.totalorder %s25, 1
    %p279 = por %p277, %p278
    %p281 = scmp.ne.s32.totalorder %s266, %s280
    %p282 = scmp.eq.s32.totalorder %s25, 0
    %p283 = por %p281, %p282
    %s285 = sadd.s32 %s284, 1
    %p288 = scmp.eq.s32.totalorder %s19, 1
    %p289 = scmp.ne.s32.totalorder %s284, %s286
    %p290 = scmp.eq.s32.totalorder %s19, 0
    %p291 = por %p289, %p290
    %p292 = scmp.ne.s32.totalorder %s284, %s286
    %p293 = scmp.eq.s32.totalorder %s24, 1
    %p294 = por %p292, %p293
    %p295 = scmp.ne.s32.totalorder %s286, %s287
    %p296 = scmp.eq.s32.totalorder %s24, 0
    %p297 = por %p295, %p296
    %p298 = scmp.ne.s32.totalorder %s286, %s287
    %p299 = scmp.eq.s32.totalorder %s25, 1
    %p300 = por %p298, %p299
    %p302 = scmp.ne.s32.totalorder %s287, %s301
    %p303 = scmp.eq.s32.totalorder %s25, 0
    %p304 = por %p302, %p303
    %s305 = ssub.s32 %s19, %s26
    %p306 = scmp.eq.s32.totalorder %s305, 0
    %s308 = sadd.s32 %s307, 1
    %s309 = scalar_select %p306, %s307, %s308
    %p312 = pneg %p306
    %p313 = scmp.eq.s32.totalorder %s19, 1
    %p314 = por %p312, %p313
    %p315 = scmp.ne.s32.totalorder %s307, %s310
    %p316 = scmp.eq.s32.totalorder %s19, 0
    %p317 = por %p315, %p316
    %p318 = scmp.ne.s32.totalorder %s307, %s310
    %p319 = scmp.eq.s32.totalorder %s24, 1
    %p320 = por %p318, %p319
    %p321 = scmp.ne.s32.totalorder %s310, %s311
    %p322 = scmp.eq.s32.totalorder %s24, 0
    %p323 = por %p321, %p322
    %p324 = scmp.ne.s32.totalorder %s310, %s311
    %p325 = scmp.eq.s32.totalorder %s25, 1
    %p326 = por %p324, %p325
    %p328 = scmp.ne.s32.totalorder %s311, %s327
    %p329 = scmp.eq.s32.totalorder %s25, 0
    %p330 = por %p328, %p329
    %p331 = scmp.le.s32.totalorder 1, %s19
    %p332 = scmp.lt.s32.totalorder %s19, 3
    %p333 = pnand %p331, %p332
    %p334 = pneg %p333
    // Predicated region
    $region9: #{stprivacy_forward.10} parent=5 // pred_check
      _
    $region10: #{stprivacy_forward.10} parent=5 // pred_check_branch
      %336 = sbr.rel (%p333) target = $region12
    $region11: #{stprivacy_forward.10} parent=5 // pred_region
      %s337 = ssub.s32 %s19, 1
      // Predicated region
      $region13: #{stprivacy_forward.10} parent=11 // pred_check
        %p338 = pneg %p66
      $region14: #{stprivacy_forward.10} parent=11 // pred_check_branch
        %340 = sbr.rel (%p338) target = $region16
      $region15: #{stprivacy_forward.10} parent=11 // pred_region
        _
      $region16: #{stprivacy_forward.10} parent=11 // pred_fallthru
        _
      // Predicated region
      $region17: #{stprivacy_forward.10} parent=11 // pred_check
        %p341 = pneg %p87
      $region18: #{stprivacy_forward.10} parent=11 // pred_check_branch
        %343 = sbr.rel (%p341) target = $region20
      $region19: #{stprivacy_forward.10} parent=11 // pred_region
        _
      $region20: #{stprivacy_forward.10} parent=11 // pred_fallthru
        _
      // Predicated region
      $region21: #{stprivacy_forward.10} parent=11 // pred_check
        %p344 = pneg %p108
      $region22: #{stprivacy_forward.10} parent=11 // pred_check_branch
        %346 = sbr.rel (%p344) target = $region24
      $region23: #{stprivacy_forward.10} parent=11 // pred_region
        _
      $region24: #{stprivacy_forward.10} parent=11 // pred_fallthru
        _
      // Predicated region
      $region25: #{stprivacy_forward.10} parent=11 // pred_check
        %p347 = pneg %p129
      $region26: #{stprivacy_forward.10} parent=11 // pred_check_branch
        %349 = sbr.rel (%p347) target = $region28
      $region27: #{stprivacy_forward.10} parent=11 // pred_region
        _
      $region28: #{stprivacy_forward.10} parent=11 // pred_fallthru
        _
      // Predicated region
      $region29: #{stprivacy_forward.10} parent=11 // pred_check
        %p350 = pneg %p150
      $region30: #{stprivacy_forward.10} parent=11 // pred_check_branch
        %352 = sbr.rel (%p350) target = $region32
      $region31: #{stprivacy_forward.10} parent=11 // pred_region
        _
      $region32: #{stprivacy_forward.10} parent=11 // pred_fallthru
        _
      // Predicated region
      $region33: #{stprivacy_forward.10} parent=11 // pred_check
        %p353 = pneg %p171
      $region34: #{stprivacy_forward.10} parent=11 // pred_check_branch
        %355 = sbr.rel (%p353) target = $region36
      $region35: #{stprivacy_forward.10} parent=11 // pred_region
        _
      $region36: #{stprivacy_forward.10} parent=11 // pred_fallthru
        _
      // Predicated region
      $region37: #{stprivacy_forward.10} parent=11 // pred_check
        %p356 = pneg %p192
      $region38: #{stprivacy_forward.10} parent=11 // pred_check_branch
        %358 = sbr.rel (%p356) target = $region40
      $region39: #{stprivacy_forward.10} parent=11 // pred_region
        _
      $region40: #{stprivacy_forward.10} parent=11 // pred_fallthru
        _
      // Predicated region
      $region41: #{stprivacy_forward.10} parent=11 // pred_check
        %p359 = pneg %p213
      $region42: #{stprivacy_forward.10} parent=11 // pred_check_branch
        %361 = sbr.rel (%p359) target = $region44
      $region43: #{stprivacy_forward.10} parent=11 // pred_region
        _
      $region44: #{stprivacy_forward.10} parent=11 // pred_fallthru
        _
      // Predicated region
      $region45: #{stprivacy_forward.10} parent=11 // pred_check
        %p362 = pneg %p234
      $region46: #{stprivacy_forward.10} parent=11 // pred_check_branch
        %364 = sbr.rel (%p362) target = $region48
      $region47: #{stprivacy_forward.10} parent=11 // pred_region
        _
      $region48: #{stprivacy_forward.10} parent=11 // pred_fallthru
        _
      // Predicated region
      $region49: #{stprivacy_forward.10} parent=11 // pred_check
        %p365 = pneg %p255
      $region50: #{stprivacy_forward.10} parent=11 // pred_check_branch
        %367 = sbr.rel (%p365) target = $region52
      $region51: #{stprivacy_forward.10} parent=11 // pred_region
        _
      $region52: #{stprivacy_forward.10} parent=11 // pred_fallthru
        _
      // Predicated region
      $region53: #{stprivacy_forward.10} parent=11 // pred_check
        %p368 = pneg %p276
      $region54: #{stprivacy_forward.10} parent=11 // pred_check_branch
        %370 = sbr.rel (%p368) target = $region56
      $region55: #{stprivacy_forward.10} parent=11 // pred_region
        _
      $region56: #{stprivacy_forward.10} parent=11 // pred_fallthru
        _
      // Predicated region
      $region57: #{stprivacy_forward.10} parent=11 // pred_check
        %p371 = pneg %p297
      $region58: #{stprivacy_forward.10} parent=11 // pred_check_branch
        %373 = sbr.rel (%p371) target = $region60
      $region59: #{stprivacy_forward.10} parent=11 // pred_region
        _
      $region60: #{stprivacy_forward.10} parent=11 // pred_fallthru
        _
    $region12: #{stprivacy_forward.10} parent=5 // pred_fallthru
      _
    %p374 = scmp.lt.s32.totalorder %s19, 2
    // Predicated region
    $region61: #{stprivacy_forward.10} parent=5 // pred_check
      %p375 = pneg %p374
    $region62: #{stprivacy_forward.10} parent=5 // pred_check_branch
      %377 = sbr.rel (%p375) target = $region64
    $region63: #{stprivacy_forward.10} parent=5 // pred_region
      // Predicated region
      $region65: #{stprivacy_forward.10} parent=63 // pred_check
        %p378 = pneg %p39
      $region66: #{stprivacy_forward.10} parent=63 // pred_check_branch
        %380 = sbr.rel (%p378) target = $region68
      $region67: #{stprivacy_forward.10} parent=63 // pred_region
        %p381 = scmp.lt.s32.totalorder %s19, 1
        %s382 = scalar_select %p381, %s19, 1
        %s383 = smul.addr %s382, 2
        %s384 = smul.addr %s383, 8
        %s385 = scalar_lea.vmem %s0, %s384
      $region68: #{stprivacy_forward.10} parent=63 // pred_fallthru
        _
    $region64: #{stprivacy_forward.10} parent=5 // pred_fallthru
      _
    %p386 = scmp.le.s32.totalorder 1, %s19
    %p387 = scmp.lt.s32.totalorder %s19, 3
    %p388 = pnand %p386, %p387
    %p389 = pneg %p388
    // Predicated region
    $region69: #{stprivacy_forward.10} parent=5 // pred_check
      _
    $region70: #{stprivacy_forward.10} parent=5 // pred_check_branch
      %391 = sbr.rel (%p388) target = $region72
    $region71: #{stprivacy_forward.10} parent=5 // pred_region
      %s392 = ssub.s32 %s19, 1
      %p393 = scmp.lt.s32.totalorder %s24, 1
      %s394 = scalar_select %p393, %s24, 1
      %s395 = smul.addr %s394, 2
      %s396 = smul.addr %s395, 8
      %s397 = scalar_lea.vmem %s0, %s396
      %p398 = pneg %p45
      %p399 = pneg %p42
      %p400 = pneg %p66
      %p401 = pneg %p63
      %p402 = pneg %p87
      %p403 = pneg %p84
      %p404 = pneg %p108
      %p405 = pneg %p105
      %p406 = pneg %p129
      %p407 = pneg %p126
      %p408 = pneg %p150
      %p409 = pneg %p147
      %p410 = pneg %p171
      %p411 = pneg %p168
      %p412 = pneg %p192
      %p413 = pneg %p189
      %p414 = pneg %p213
      %p415 = pneg %p210
      %p416 = pneg %p234
      %p417 = pneg %p231
      %p418 = pneg %p255
      %p419 = pneg %p252
      %p420 = pneg %p276
      %p421 = pneg %p273
      %p422 = pneg %p297
      %p423 = pneg %p294
      %p424 = pneg %p323
      %p425 = pneg %p320
      %p426 = scmp.lt.s32.totalorder %s24, 1
      %s427 = scalar_select %p426, %s24, 1
      %s428 = smul.addr %s427, 2
      %s429 = smul.addr %s428, 8
      %s430 = scalar_lea.vmem %s13, %s429
      %p431 = scmp.lt.s32.totalorder %s24, 1
      %s432 = scalar_select %p431, %s24, 1
      %s433 = smul.addr %s432, 2
      %s434 = smul.addr %s433, 8
      %s435 = scalar_lea.vmem %s0, %s434
      %p436 = scmp.lt.s32.totalorder %s24, 1
      %s437 = scalar_select %p436, %s24, 1
      %s438 = smul.addr %s437, 2
      %s439 = smul.addr %s438, 8
      %s440 = scalar_lea.vmem %s13, %s439
      %v441 = vld [vmem:[%s435] sm:$0xff]
      %v442 = vld [vmem:[%s435 + $0x8] sm:$0xff]
      %v443 = vld [vmem:[%s1] sm:$0x1]
      %v444 = vld [vmem:[%s2] sm:$0x1]
      %vm445 = vcmask 392192
      %v446 = vsel %vm445, %v441, 0.0
      %447 = vadd.xlane.f32.xlu0 %v446
      %v448 = vpop.xlane.xlu0 %447
      %v449 = vsel %vm445, %v442, 0.0
      %450 = vadd.xlane.f32.xlu0 %v449
      %v451 = vpop.xlane.xlu0 %450
      %v452 = vrcp.pop 48.0
      %v453 = vmul.f32 48.0, %v452
      %v454 = vsub.f32 1.0, %v453
      %v455 = vmul.f32 %v452, %v454
      %v456 = vadd.f32 %v452, %v455
      %vm457 = vweird.f32 %v452
      %v458 = vsel %vm457, %v452, %v456
      %v459 = vmul.f32 %v448, %v458
      %v460 = vmul.f32 %v451, %v458
      %v461 = vsub.f32 %v441, %v459
      %v462 = vsub.f32 %v442, %v460
      %v463 = vmul.f32 %v461, %v461
      %v464 = vmul.f32 %v462, %v462
      %v465 = vsel %vm445, %v463, 0.0
      %466 = vadd.xlane.f32.xlu0 %v465
      %v467 = vpop.xlane.xlu0 %466
      %v468 = vsel %vm445, %v464, 0.0
      %469 = vadd.xlane.f32.xlu0 %v468
      %v470 = vpop.xlane.xlu0 %469
      %v471 = vmul.f32 %v467, %v458
      %v472 = vmul.f32 %v470, %v458
      %v473 = vadd.f32 %v471, 1e-06
      %v474 = vadd.f32 %v472, 1e-06
      %v475 = vrsqrt.pop %v473
      %v476 = vmul.f32 %v475, %v473
      %v477 = vmul.f32 %v476, %v475
      %v478 = vmul.f32 0.5, %v477
      %v479 = vsub.f32 1.5, %v478
      %v480 = vmul.f32 %v475, %v479
      %vm481 = vweird.f32 %v473
      %vm482 = vweird.f32 %v475
      %vm483 = vmor %vm481, %vm482
      %v484 = vsel %vm483, %v475, %v480
      %v485 = vrsqrt.pop %v474
      %v486 = vmul.f32 %v485, %v474
      %v487 = vmul.f32 %v486, %v485
      %v488 = vmul.f32 0.5, %v487
      %v489 = vsub.f32 1.5, %v488
      %v490 = vmul.f32 %v485, %v489
      %vm491 = vweird.f32 %v474
      %vm492 = vweird.f32 %v485
      %vm493 = vmor %vm491, %vm492
      %v494 = vsel %vm493, %v485, %v490
      %v495 = vmul.f32 %v461, %v484
      %v496 = vmul.f32 %v462, %v494
      %v498 = vperm.slane %v443, 0
      %v500 = vmul.f32 %v495, %v498
      %v501 = vmul.f32 %v496, %v498
      %v503 = vperm.slane %v444, 0
      %v505 = vadd.f32 %v500, %v503
      %v506 = vadd.f32 %v501, %v503
      %v507 = vld [vmem:[%s3] sm:$0xff]
      %v508 = vld [vmem:[%s3 + $0x8] sm:$0xff]
      %v509 = vld [vmem:[%s3 + $0x10] sm:$0xff]
      %v510 = vld [vmem:[%s3 + $0x18] sm:$0xff]
      %v511 = vld [vmem:[%s3 + $0x20] sm:$0xff]
      %v512 = vld [vmem:[%s3 + $0x28] sm:$0xff]
      %v513 = vld [vmem:[%s3 + $0x30] sm:$0xff]
      %v514 = vld [vmem:[%s3 + $0x38] sm:$0xff]
      %v515 = vld [vmem:[%s3 + $0x40] sm:$0xff]
      %v516 = vld [vmem:[%s3 + $0x48] sm:$0xff]
      %v517 = vld [vmem:[%s3 + $0x50] sm:$0xff]
      %v518 = vld [vmem:[%s3 + $0x58] sm:$0xff]
      %v519 = vld [vmem:[%s4] sm:$0x3]
      %v521 = vperm.slane %v519, 0
      %v522 = vperm.slane %v519, 1
      %v526 = vsel %vm445, %v505, 0
      %v529 = vsel %vm445, %v506, 0
      %531 = vmatpush.msra.mxu0 0.0
      %532 = vmatpush.msra.mxu0 0.0
      %533 = vmatpush.msra.mxu0 0.0
      %534 = vmatpush.msra.mxu0 0.0
      %535 = vmatpush.msra.mxu0 0.0
      %536 = vmatpush.msra.mxu0 0.0
      %537 = vmatpush.msra.mxu0 0.0
      %538 = vmatpush.msra.mxu0 0.0
      %539 = vmatpush.msra.mxu0 0.0
      %540 = vmatpush.msra.mxu0 0.0
      %541 = vmatpush.msra.mxu0 %v517
      %542 = vmatpush.msra.mxu0 %v515
      %543 = vmatpush.msra.mxu0 %v513
      %544 = vmatpush.msra.mxu0 %v511
      %545 = vmatpush.msra.mxu0 %v509
      %546 = vmatpush.msra.mxu0 %v507
      %547 = vmatmul.f32.gmra.mxu0 %v526
      %v548 = vpop.f32.mrf.mxu0
      %v549 = vadd.f32 %v521, %v548
      %550 = vmatmul.f32.gmra.mxu0 %v529
      %v551 = vpop.f32.mrf.mxu0
      %v552 = vadd.f32 %v521, %v551
      %553 = vdwg.mxu0
      %554 = vmatpush.msra.mxu0 0.0
      %555 = vmatpush.msra.mxu0 0.0
      %556 = vmatpush.msra.mxu0 0.0
      %557 = vmatpush.msra.mxu0 0.0
      %558 = vmatpush.msra.mxu0 0.0
      %559 = vmatpush.msra.mxu0 0.0
      %560 = vmatpush.msra.mxu0 0.0
      %561 = vmatpush.msra.mxu0 0.0
      %562 = vmatpush.msra.mxu0 0.0
      %563 = vmatpush.msra.mxu0 0.0
      %564 = vmatpush.msra.mxu0 %v518
      %565 = vmatpush.msra.mxu0 %v516
      %566 = vmatpush.msra.mxu0 %v514
      %567 = vmatpush.msra.mxu0 %v512
      %568 = vmatpush.msra.mxu0 %v510
      %569 = vmatpush.msra.mxu0 %v508
      %570 = vmatmul.f32.gmra.mxu0 %v526
      %v571 = vpop.f32.mrf.mxu0
      %v572 = vadd.f32 %v522, %v571
      %573 = vmatmul.f32.gmra.mxu0 %v529
      %v574 = vpop.f32.mrf.mxu0
      %v575 = vadd.f32 %v522, %v574
      %576 = vdwg.mxu0
      %579 = vrot.lane.b32.xlu0 %v549, 80
      %v580 = vpop.permute.xlu0 %579
      %581 = vrot.lane.b32.xlu0 %v552, 80
      %v582 = vpop.permute.xlu0 %581
      %vm583 = vcmask 97280
      %v584 = vsel %vm583, %v549, 0
      %v586 = vsel %vm583, %v552, 0
      %v588 = vsel %vm583, %v580, 0
      %v590 = vsel %vm583, %v582, 0
      %592 = vmatpush.xpose.msra.mxu0 0.0
      %593 = vmatpush.xpose.msra.mxu0 0.0
      %594 = vmatpush.xpose.msra.mxu0 0.0
      %595 = vmatpush.xpose.msra.mxu0 0.0
      %596 = vmatpush.xpose.msra.mxu0 0.0
      %597 = vmatpush.xpose.msra.mxu0 0.0
      %598 = vmatpush.xpose.msra.mxu0 0.0
      %599 = vmatpush.xpose.msra.mxu0 0.0
      %600 = vmatpush.xpose.msra.mxu0 0.0
      %601 = vmatpush.xpose.msra.mxu0 0.0
      %602 = vmatpush.xpose.msra.mxu0 0.0
      %603 = vmatpush.xpose.msra.mxu0 0.0
      %604 = vmatpush.xpose.msra.mxu0 0.0
      %605 = vmatpush.xpose.msra.mxu0 0.0
      %606 = vmatpush.xpose.msra.mxu0 %v590
      %607 = vmatpush.xpose.msra.mxu0 %v588
      %608 = vmatmul.f32.gmra.mxu0 %v584
      %v609 = vpop.f32.mrf.mxu0
      %v610 = vadd.f32 0.0, %v609
      %611 = vmatmul.f32.gmra.mxu0 %v586
      %v612 = vpop.f32.mrf.mxu0
      %v613 = vadd.f32 0.0, %v612
      %614 = vdwg.mxu0
      %v615 = vmul.f32 %v610, 0.28867513
      %v616 = vmul.f32 %v613, 0.28867513
      %vm617 = vcmask 130048
      %v618 = vsel %vm617, %v615, -inf
      %619 = vmax.xlane.f32.xlu0 %v618
      %v620 = vpop.xlane.xlu0 %619
      %v621 = vsel %vm617, %v616, -inf
      %622 = vmax.xlane.f32.xlu0 %v621
      %v623 = vpop.xlane.xlu0 %622
      %v624 = vsub.f32 %v615, %v620
      %v625 = vsub.f32 %v616, %v623
      %v626 = vmul.f32 %v624, 1.442695
      %v627 = vpow.pop %v626
      %v628 = vmul.f32 %v625, 1.442695
      %v629 = vpow.pop %v628
      %v630 = vsel %vm617, %v627, 0.0
      %631 = vadd.xlane.f32.xlu0 %v630
      %v632 = vpop.xlane.xlu0 %631
      %v633 = vsel %vm617, %v629, 0.0
      %634 = vadd.xlane.f32.xlu0 %v633
      %v635 = vpop.xlane.xlu0 %634
      %v636 = vrcp.pop %v632
      %v637 = vmul.f32 %v632, %v636
      %v638 = vsub.f32 1.0, %v637
      %v639 = vmul.f32 %v636, %v638
      %v640 = vadd.f32 %v636, %v639
      %vm641 = vweird.f32 %v632
      %vm642 = vweird.f32 %v636
      %vm643 = vmor %vm641, %vm642
      %v644 = vsel %vm643, %v636, %v640
      %v645 = vand.u32 2147483647, %v632
      %vm646 = vcmp.eq.f32.partialorder %v645, 8.507059e+37
      %v647 = vand.u32 %v632, 2147483648
      %v648 = vor.u32 1.1754944e-38, %v647
      %v649 = vsel %vm646, %v648, %v644
      %v650 = vmul.f32 %v627, %v649
      %v651 = vrcp.pop %v635
      %v652 = vmul.f32 %v635, %v651
      %v653 = vsub.f32 1.0, %v652
      %v654 = vmul.f32 %v651, %v653
      %v655 = vadd.f32 %v651, %v654
      %vm656 = vweird.f32 %v635
      %vm657 = vweird.f32 %v651
      %vm658 = vmor %vm656, %vm657
      %v659 = vsel %vm658, %v651, %v655
      %v660 = vand.u32 2147483647, %v635
      %vm661 = vcmp.eq.f32.partialorder %v660, 8.507059e+37
      %v662 = vand.u32 %v635, 2147483648
      %v663 = vor.u32 1.1754944e-38, %v662
      %v664 = vsel %vm661, %v663, %v659
      %v665 = vmul.f32 %v629, %v664
      %666 = vrot.lane.b32.xlu0 %v549, 32
      %v667 = vpop.permute.xlu0 %666
      %668 = vrot.lane.b32.xlu0 %v552, 32
      %v669 = vpop.permute.xlu0 %668
      %v673 = vsel %vm617, %v650, 0
      %v676 = vsel %vm617, %v665, 0
      %678 = vmatpush.msra.mxu0 0.0
      %679 = vmatpush.msra.mxu0 0.0
      %680 = vmatpush.msra.mxu0 0.0
      %681 = vmatpush.msra.mxu0 0.0
      %682 = vmatpush.msra.mxu0 0.0
      %683 = vmatpush.msra.mxu0 0.0
      %684 = vmatpush.msra.mxu0 0.0
      %685 = vmatpush.msra.mxu0 0.0
      %686 = vmatpush.msra.mxu0 0.0
      %687 = vmatpush.msra.mxu0 0.0
      %688 = vmatpush.msra.mxu0 0.0
      %689 = vmatpush.msra.mxu0 0.0
      %690 = vmatpush.msra.mxu0 0.0
      %691 = vmatpush.msra.mxu0 0.0
      %692 = vmatpush.msra.mxu0 %v669
      %693 = vmatpush.msra.mxu0 %v667
      %694 = vmatmul.f32.gmra.mxu0 %v673
      %v695 = vpop.f32.mrf.mxu0
      %v696 = vadd.f32 0.0, %v695
      %697 = vmatmul.f32.gmra.mxu0 %v676
      %v698 = vpop.f32.mrf.mxu0
      %v699 = vadd.f32 0.0, %v698
      %700 = vdwg.mxu0
      %701 = vrot.lane.b32.xlu0 %v549, 116
      %v702 = vpop.permute.xlu0 %701
      %703 = vrot.lane.b32.xlu0 %v552, 116
      %v704 = vpop.permute.xlu0 %703
      %705 = vrot.lane.b32.xlu0 %v549, 68
      %v706 = vpop.permute.xlu0 %705
      %707 = vrot.lane.b32.xlu0 %v552, 68
      %v708 = vpop.permute.xlu0 %707
      %v709 = vsel %vm583, %v702, 0
      %v711 = vsel %vm583, %v704, 0
      %v713 = vsel %vm583, %v706, 0
      %v715 = vsel %vm583, %v708, 0
      %717 = vmatpush.xpose.msra.mxu0 0.0
      %718 = vmatpush.xpose.msra.mxu0 0.0
      %719 = vmatpush.xpose.msra.mxu0 0.0
      %720 = vmatpush.xpose.msra.mxu0 0.0
      %721 = vmatpush.xpose.msra.mxu0 0.0
      %722 = vmatpush.xpose.msra.mxu0 0.0
      %723 = vmatpush.xpose.msra.mxu0 0.0
      %724 = vmatpush.xpose.msra.mxu0 0.0
      %725 = vmatpush.xpose.msra.mxu0 0.0
      %726 = vmatpush.xpose.msra.mxu0 0.0
      %727 = vmatpush.xpose.msra.mxu0 0.0
      %728 = vmatpush.xpose.msra.mxu0 0.0
      %729 = vmatpush.xpose.msra.mxu0 0.0
      %730 = vmatpush.xpose.msra.mxu0 0.0
      %731 = vmatpush.xpose.msra.mxu0 %v715
      %732 = vmatpush.xpose.msra.mxu0 %v713
      %733 = vmatmul.f32.gmra.mxu0 %v709
      %v734 = vpop.f32.mrf.mxu0
      %v735 = vadd.f32 0.0, %v734
      %736 = vmatmul.f32.gmra.mxu0 %v711
      %v737 = vpop.f32.mrf.mxu0
      %v738 = vadd.f32 0.0, %v737
      %739 = vdwg.mxu0
      %v740 = vmul.f32 %v735, 0.28867513
      %v741 = vmul.f32 %v738, 0.28867513
      %v742 = vsel %vm617, %v740, -inf
      %743 = vmax.xlane.f32.xlu0 %v742
      %v744 = vpop.xlane.xlu0 %743
      %v745 = vsel %vm617, %v741, -inf
      %746 = vmax.xlane.f32.xlu0 %v745
      %v747 = vpop.xlane.xlu0 %746
      %v748 = vsub.f32 %v740, %v744
      %v749 = vsub.f32 %v741, %v747
      %v750 = vmul.f32 %v748, 1.442695
      %v751 = vpow.pop %v750
      %v752 = vmul.f32 %v749, 1.442695
      %v753 = vpow.pop %v752
      %v754 = vsel %vm617, %v751, 0.0
      %755 = vadd.xlane.f32.xlu0 %v754
      %v756 = vpop.xlane.xlu0 %755
      %v757 = vsel %vm617, %v753, 0.0
      %758 = vadd.xlane.f32.xlu0 %v757
      %v759 = vpop.xlane.xlu0 %758
      %v760 = vrcp.pop %v756
      %v761 = vmul.f32 %v756, %v760
      %v762 = vsub.f32 1.0, %v761
      %v763 = vmul.f32 %v760, %v762
      %v764 = vadd.f32 %v760, %v763
      %vm765 = vweird.f32 %v756
      %vm766 = vweird.f32 %v760
      %vm767 = vmor %vm765, %vm766
      %v768 = vsel %vm767, %v760, %v764
      %v769 = vand.u32 2147483647, %v756
      %vm770 = vcmp.eq.f32.partialorder %v769, 8.507059e+37
      %v771 = vand.u32 %v756, 2147483648
      %v772 = vor.u32 1.1754944e-38, %v771
      %v773 = vsel %vm770, %v772, %v768
      %v774 = vmul.f32 %v751, %v773
      %v775 = vrcp.pop %v759
      %v776 = vmul.f32 %v759, %v775
      %v777 = vsub.f32 1.0, %v776
      %v778 = vmul.f32 %v775, %v777
      %v779 = vadd.f32 %v775, %v778
      %vm780 = vweird.f32 %v759
      %vm781 = vweird.f32 %v775
      %vm782 = vmor %vm780, %vm781
      %v783 = vsel %vm782, %v775, %v779
      %v784 = vand.u32 2147483647, %v759
      %vm785 = vcmp.eq.f32.partialorder %v784, 8.507059e+37
      %v786 = vand.u32 %v759, 2147483648
      %v787 = vor.u32 1.1754944e-38, %v786
      %v788 = vsel %vm785, %v787, %v783
      %v789 = vmul.f32 %v753, %v788
      %790 = vrot.lane.b32.xlu0 %v549, 20
      %v791 = vpop.permute.xlu0 %790
      %792 = vrot.lane.b32.xlu0 %v552, 20
      %v793 = vpop.permute.xlu0 %792
      %v797 = vsel %vm617, %v774, 0
      %v800 = vsel %vm617, %v789, 0
      %802 = vmatpush.msra.mxu0 0.0
      %803 = vmatpush.msra.mxu0 0.0
      %804 = vmatpush.msra.mxu0 0.0
      %805 = vmatpush.msra.mxu0 0.0
      %806 = vmatpush.msra.mxu0 0.0
      %807 = vmatpush.msra.mxu0 0.0
      %808 = vmatpush.msra.mxu0 0.0
      %809 = vmatpush.msra.mxu0 0.0
      %810 = vmatpush.msra.mxu0 0.0
      %811 = vmatpush.msra.mxu0 0.0
      %812 = vmatpush.msra.mxu0 0.0
      %813 = vmatpush.msra.mxu0 0.0
      %814 = vmatpush.msra.mxu0 0.0
      %815 = vmatpush.msra.mxu0 0.0
      %816 = vmatpush.msra.mxu0 %v793
      %817 = vmatpush.msra.mxu0 %v791
      %818 = vmatmul.f32.gmra.mxu0 %v797
      %v819 = vpop.f32.mrf.mxu0
      %v820 = vadd.f32 0.0, %v819
      %821 = vmatmul.f32.gmra.mxu0 %v800
      %v822 = vpop.f32.mrf.mxu0
      %v823 = vadd.f32 0.0, %v822
      %824 = vdwg.mxu0
      %825 = vrot.lane.b32.xlu0 %v549, 104
      %v826 = vpop.permute.xlu0 %825
      %827 = vrot.lane.b32.xlu0 %v552, 104
      %v828 = vpop.permute.xlu0 %827
      %829 = vrot.lane.b32.xlu0 %v549, 56
      %v830 = vpop.permute.xlu0 %829
      %831 = vrot.lane.b32.xlu0 %v552, 56
      %v832 = vpop.permute.xlu0 %831
      %v833 = vsel %vm583, %v826, 0
      %v835 = vsel %vm583, %v828, 0
      %v837 = vsel %vm583, %v830, 0
      %v839 = vsel %vm583, %v832, 0
      %841 = vmatpush.xpose.msra.mxu0 0.0
      %842 = vmatpush.xpose.msra.mxu0 0.0
      %843 = vmatpush.xpose.msra.mxu0 0.0
      %844 = vmatpush.xpose.msra.mxu0 0.0
      %845 = vmatpush.xpose.msra.mxu0 0.0
      %846 = vmatpush.xpose.msra.mxu0 0.0
      %847 = vmatpush.xpose.msra.mxu0 0.0
      %848 = vmatpush.xpose.msra.mxu0 0.0
      %849 = vmatpush.xpose.msra.mxu0 0.0
      %850 = vmatpush.xpose.msra.mxu0 0.0
      %851 = vmatpush.xpose.msra.mxu0 0.0
      %852 = vmatpush.xpose.msra.mxu0 0.0
      %853 = vmatpush.xpose.msra.mxu0 0.0
      %854 = vmatpush.xpose.msra.mxu0 0.0
      %855 = vmatpush.xpose.msra.mxu0 %v839
      %856 = vmatpush.xpose.msra.mxu0 %v837
      %857 = vmatmul.f32.gmra.mxu0 %v833
      %v858 = vpop.f32.mrf.mxu0
      %v859 = vadd.f32 0.0, %v858
      %860 = vmatmul.f32.gmra.mxu0 %v835
      %v861 = vpop.f32.mrf.mxu0
      %v862 = vadd.f32 0.0, %v861
      %863 = vdwg.mxu0
      %v864 = vmul.f32 %v859, 0.28867513
      %v865 = vmul.f32 %v862, 0.28867513
      %v866 = vsel %vm617, %v864, -inf
      %867 = vmax.xlane.f32.xlu0 %v866
      %v868 = vpop.xlane.xlu0 %867
      %v869 = vsel %vm617, %v865, -inf
      %870 = vmax.xlane.f32.xlu0 %v869
      %v871 = vpop.xlane.xlu0 %870
      %v872 = vsub.f32 %v864, %v868
      %v873 = vsub.f32 %v865, %v871
      %v874 = vmul.f32 %v872, 1.442695
      %v875 = vpow.pop %v874
      %v876 = vmul.f32 %v873, 1.442695
      %v877 = vpow.pop %v876
      %v878 = vsel %vm617, %v875, 0.0
      %879 = vadd.xlane.f32.xlu0 %v878
      %v880 = vpop.xlane.xlu0 %879
      %v881 = vsel %vm617, %v877, 0.0
      %882 = vadd.xlane.f32.xlu0 %v881
      %v883 = vpop.xlane.xlu0 %882
      %v884 = vrcp.pop %v880
      %v885 = vmul.f32 %v880, %v884
      %v886 = vsub.f32 1.0, %v885
      %v887 = vmul.f32 %v884, %v886
      %v888 = vadd.f32 %v884, %v887
      %vm889 = vweird.f32 %v880
      %vm890 = vweird.f32 %v884
      %vm891 = vmor %vm889, %vm890
      %v892 = vsel %vm891, %v884, %v888
      %v893 = vand.u32 2147483647, %v880
      %vm894 = vcmp.eq.f32.partialorder %v893, 8.507059e+37
      %v895 = vand.u32 %v880, 2147483648
      %v896 = vor.u32 1.1754944e-38, %v895
      %v897 = vsel %vm894, %v896, %v892
      %v898 = vmul.f32 %v875, %v897
      %v899 = vrcp.pop %v883
      %v900 = vmul.f32 %v883, %v899
      %v901 = vsub.f32 1.0, %v900
      %v902 = vmul.f32 %v899, %v901
      %v903 = vadd.f32 %v899, %v902
      %vm904 = vweird.f32 %v883
      %vm905 = vweird.f32 %v899
      %vm906 = vmor %vm904, %vm905
      %v907 = vsel %vm906, %v899, %v903
      %v908 = vand.u32 2147483647, %v883
      %vm909 = vcmp.eq.f32.partialorder %v908, 8.507059e+37
      %v910 = vand.u32 %v883, 2147483648
      %v911 = vor.u32 1.1754944e-38, %v910
      %v912 = vsel %vm909, %v911, %v907
      %v913 = vmul.f32 %v877, %v912
      %916 = vrot.lane.b32.xlu0 %v549, 8
      %v917 = vpop.permute.xlu0 %916
      %918 = vrot.lane.b32.xlu0 %v572, 8
      %v919 = vpop.permute.xlu0 %918
      %920 = vrot.lane.b32.xlu0 %v552, 8
      %v921 = vpop.permute.xlu0 %920
      %922 = vrot.lane.b32.xlu0 %v575, 8
      %v923 = vpop.permute.xlu0 %922
      %vm924 = vcmask 64512
      %v925 = vsel %vm924, %v917, %v919
      %v926 = vsel %vm924, %v921, %v923
      %v930 = vsel %vm617, %v898, 0
      %v933 = vsel %vm617, %v913, 0
      %935 = vmatpush.msra.mxu0 0.0
      %936 = vmatpush.msra.mxu0 0.0
      %937 = vmatpush.msra.mxu0 0.0
      %938 = vmatpush.msra.mxu0 0.0
      %939 = vmatpush.msra.mxu0 0.0
      %940 = vmatpush.msra.mxu0 0.0
      %941 = vmatpush.msra.mxu0 0.0
      %942 = vmatpush.msra.mxu0 0.0
      %943 = vmatpush.msra.mxu0 0.0
      %944 = vmatpush.msra.mxu0 0.0
      %945 = vmatpush.msra.mxu0 0.0
      %946 = vmatpush.msra.mxu0 0.0
      %947 = vmatpush.msra.mxu0 0.0
      %948 = vmatpush.msra.mxu0 0.0
      %949 = vmatpush.msra.mxu0 %v926
      %950 = vmatpush.msra.mxu0 %v925
      %951 = vmatmul.f32.gmra.mxu0 %v930
      %v952 = vpop.f32.mrf.mxu0
      %v953 = vadd.f32 0.0, %v952
      %954 = vmatmul.f32.gmra.mxu0 %v933
      %v955 = vpop.f32.mrf.mxu0
      %v956 = vadd.f32 0.0, %v955
      %957 = vdwg.mxu0
      %958 = vrot.lane.b32.xlu0 %v549, 92
      %v959 = vpop.permute.xlu0 %958
      %960 = vrot.lane.b32.xlu0 %v552, 92
      %v961 = vpop.permute.xlu0 %960
      %962 = vrot.lane.b32.xlu0 %v549, 44
      %v963 = vpop.permute.xlu0 %962
      %964 = vrot.lane.b32.xlu0 %v552, 44
      %v965 = vpop.permute.xlu0 %964
      %v966 = vsel %vm583, %v959, 0
      %v968 = vsel %vm583, %v961, 0
      %v970 = vsel %vm583, %v963, 0
      %v972 = vsel %vm583, %v965, 0
      %974 = vmatpush.xpose.msra.mxu0 0.0
      %975 = vmatpush.xpose.msra.mxu0 0.0
      %976 = vmatpush.xpose.msra.mxu0 0.0
      %977 = vmatpush.xpose.msra.mxu0 0.0
      %978 = vmatpush.xpose.msra.mxu0 0.0
      %979 = vmatpush.xpose.msra.mxu0 0.0
      %980 = vmatpush.xpose.msra.mxu0 0.0
      %981 = vmatpush.xpose.msra.mxu0 0.0
      %982 = vmatpush.xpose.msra.mxu0 0.0
      %983 = vmatpush.xpose.msra.mxu0 0.0
      %984 = vmatpush.xpose.msra.mxu0 0.0
      %985 = vmatpush.xpose.msra.mxu0 0.0
      %986 = vmatpush.xpose.msra.mxu0 0.0
      %987 = vmatpush.xpose.msra.mxu0 0.0
      %988 = vmatpush.xpose.msra.mxu0 %v972
      %989 = vmatpush.xpose.msra.mxu0 %v970
      %990 = vmatmul.f32.gmra.mxu0 %v966
      %v991 = vpop.f32.mrf.mxu0
      %v992 = vadd.f32 0.0, %v991
      %993 = vmatmul.f32.gmra.mxu0 %v968
      %v994 = vpop.f32.mrf.mxu0
      %v995 = vadd.f32 0.0, %v994
      %996 = vdwg.mxu0
      %v997 = vmul.f32 %v992, 0.28867513
      %v998 = vmul.f32 %v995, 0.28867513
      %v999 = vsel %vm617, %v997, -inf
      %1000 = vmax.xlane.f32.xlu0 %v999
      %v1001 = vpop.xlane.xlu0 %1000
      %v1002 = vsel %vm617, %v998, -inf
      %1003 = vmax.xlane.f32.xlu0 %v1002
      %v1004 = vpop.xlane.xlu0 %1003
      %v1005 = vsub.f32 %v997, %v1001
      %v1006 = vsub.f32 %v998, %v1004
      %v1007 = vmul.f32 %v1005, 1.442695
      %v1008 = vpow.pop %v1007
      %v1009 = vmul.f32 %v1006, 1.442695
      %v1010 = vpow.pop %v1009
      %v1011 = vsel %vm617, %v1008, 0.0
      %1012 = vadd.xlane.f32.xlu0 %v1011
      %v1013 = vpop.xlane.xlu0 %1012
      %v1014 = vsel %vm617, %v1010, 0.0
      %1015 = vadd.xlane.f32.xlu0 %v1014
      %v1016 = vpop.xlane.xlu0 %1015
      %v1017 = vrcp.pop %v1013
      %v1018 = vmul.f32 %v1013, %v1017
      %v1019 = vsub.f32 1.0, %v1018
      %v1020 = vmul.f32 %v1017, %v1019
      %v1021 = vadd.f32 %v1017, %v1020
      %vm1022 = vweird.f32 %v1013
      %vm1023 = vweird.f32 %v1017
      %vm1024 = vmor %vm1022, %vm1023
      %v1025 = vsel %vm1024, %v1017, %v1021
      %v1026 = vand.u32 2147483647, %v1013
      %vm1027 = vcmp.eq.f32.partialorder %v1026, 8.507059e+37
      %v1028 = vand.u32 %v1013, 2147483648
      %v1029 = vor.u32 1.1754944e-38, %v1028
      %v1030 = vsel %vm1027, %v1029, %v1025
      %v1031 = vmul.f32 %v1008, %v1030
      %v1032 = vrcp.pop %v1016
      %v1033 = vmul.f32 %v1016, %v1032
      %v1034 = vsub.f32 1.0, %v1033
      %v1035 = vmul.f32 %v1032, %v1034
      %v1036 = vadd.f32 %v1032, %v1035
      %vm1037 = vweird.f32 %v1016
      %vm1038 = vweird.f32 %v1032
      %vm1039 = vmor %vm1037, %vm1038
      %v1040 = vsel %vm1039, %v1032, %v1036
      %v1041 = vand.u32 2147483647, %v1016
      %vm1042 = vcmp.eq.f32.partialorder %v1041, 8.507059e+37
      %v1043 = vand.u32 %v1016, 2147483648
      %v1044 = vor.u32 1.1754944e-38, %v1043
      %v1045 = vsel %vm1042, %v1044, %v1040
      %v1046 = vmul.f32 %v1010, %v1045
      %1047 = vrot.lane.b32.xlu0 %v572, 124
      %v1048 = vpop.permute.xlu0 %1047
      %1049 = vrot.lane.b32.xlu0 %v575, 124
      %v1050 = vpop.permute.xlu0 %1049
      %v1054 = vsel %vm617, %v1031, 0
      %v1057 = vsel %vm617, %v1046, 0
      %1059 = vmatpush.msra.mxu0 0.0
      %1060 = vmatpush.msra.mxu0 0.0
      %1061 = vmatpush.msra.mxu0 0.0
      %1062 = vmatpush.msra.mxu0 0.0
      %1063 = vmatpush.msra.mxu0 0.0
      %1064 = vmatpush.msra.mxu0 0.0
      %1065 = vmatpush.msra.mxu0 0.0
      %1066 = vmatpush.msra.mxu0 0.0
      %1067 = vmatpush.msra.mxu0 0.0
      %1068 = vmatpush.msra.mxu0 0.0
      %1069 = vmatpush.msra.mxu0 0.0
      %1070 = vmatpush.msra.mxu0 0.0
      %1071 = vmatpush.msra.mxu0 0.0
      %1072 = vmatpush.msra.mxu0 0.0
      %1073 = vmatpush.msra.mxu0 %v1050
      %1074 = vmatpush.msra.mxu0 %v1048
      %1075 = vmatmul.f32.gmra.mxu0 %v1054
      %v1076 = vpop.f32.mrf.mxu0
      %v1077 = vadd.f32 0.0, %v1076
      %1078 = vmatmul.f32.gmra.mxu0 %v1057
      %v1079 = vpop.f32.mrf.mxu0
      %v1080 = vadd.f32 0.0, %v1079
      %1081 = vdwg.mxu0
      %1084 = vrot.lane.b32.xlu0 %v820, 12
      %v1085 = vpop.permute.xlu0 %1084
      %1086 = vrot.lane.b32.xlu0 %v823, 12
      %v1087 = vpop.permute.xlu0 %1086
      %1092 = vrot.lane.b32.xlu0 %v953, 24
      %v1093 = vpop.permute.xlu0 %1092
      %1094 = vrot.lane.b32.xlu0 %v956, 24
      %v1095 = vpop.permute.xlu0 %1094
      %1100 = vrot.lane.b32.xlu0 %v1077, 36
      %v1101 = vpop.permute.xlu0 %1100
      %1102 = vrot.lane.b32.xlu0 %v1080, 36
      %v1103 = vpop.permute.xlu0 %1102
      %v1106 = vsel %vm583, %v696, %v1085
      %v1107 = vsel %vm583, %v699, %v1087
      %vm1108 = vcmask 195584
      %v1109 = vsel %vm1108, %v1106, %v1093
      %v1110 = vsel %vm1108, %v1107, %v1095
      %vm1111 = vcmask 293888
      %v1112 = vsel %vm1111, %v1109, %v1101
      %v1113 = vsel %vm1111, %v1110, %v1103
      %v1114 = vld [vmem:[%s5] sm:$0xff]
      %v1115 = vld [vmem:[%s5 + $0x8] sm:$0xff]
      %v1116 = vld [vmem:[%s5 + $0x10] sm:$0xff]
      %v1117 = vld [vmem:[%s5 + $0x18] sm:$0xff]
      %v1118 = vld [vmem:[%s5 + $0x20] sm:$0xff]
      %v1119 = vld [vmem:[%s5 + $0x28] sm:$0xff]
      %v1120 = vld [vmem:[%s6] sm:$0x1]
      %v1122 = vperm.slane %v1120, 0
      %v1125 = vsel %vm445, %v1112, 0
      %v1128 = vsel %vm445, %v1113, 0
      %1130 = vmatpush.msra.mxu0 0.0
      %1131 = vmatpush.msra.mxu0 0.0
      %1132 = vmatpush.msra.mxu0 0.0
      %1133 = vmatpush.msra.mxu0 0.0
      %1134 = vmatpush.msra.mxu0 0.0
      %1135 = vmatpush.msra.mxu0 0.0
      %1136 = vmatpush.msra.mxu0 0.0
      %1137 = vmatpush.msra.mxu0 0.0
      %1138 = vmatpush.msra.mxu0 0.0
      %1139 = vmatpush.msra.mxu0 0.0
      %1140 = vmatpush.msra.mxu0 %v1119
      %1141 = vmatpush.msra.mxu0 %v1118
      %1142 = vmatpush.msra.mxu0 %v1117
      %1143 = vmatpush.msra.mxu0 %v1116
      %1144 = vmatpush.msra.mxu0 %v1115
      %1145 = vmatpush.msra.mxu0 %v1114
      %1146 = vmatmul.f32.gmra.mxu0 %v1125
      %v1147 = vpop.f32.mrf.mxu0
      %v1148 = vadd.f32 %v1122, %v1147
      %1149 = vmatmul.f32.gmra.mxu0 %v1128
      %v1150 = vpop.f32.mrf.mxu0
      %v1151 = vadd.f32 %v1122, %v1150
      %1152 = vdwg.mxu0
      %v1153 = vadd.f32 %v1148, %v441
      %v1154 = vadd.f32 %v1151, %v442
      %v1155 = vld [vmem:[%s7] sm:$0x1]
      %v1156 = vld [vmem:[%s8] sm:$0x1]
      %v1157 = vsel %vm445, %v1153, 0.0
      %1158 = vadd.xlane.f32.xlu0 %v1157
      %v1159 = vpop.xlane.xlu0 %1158
      %v1160 = vsel %vm445, %v1154, 0.0
      %1161 = vadd.xlane.f32.xlu0 %v1160
      %v1162 = vpop.xlane.xlu0 %1161
      %v1163 = vmul.f32 %v1159, %v458
      %v1164 = vmul.f32 %v1162, %v458
      %v1165 = vsub.f32 %v1153, %v1163
      %v1166 = vsub.f32 %v1154, %v1164
      %v1167 = vmul.f32 %v1165, %v1165
      %v1168 = vmul.f32 %v1166, %v1166
      %v1169 = vsel %vm445, %v1167, 0.0
      %1170 = vadd.xlane.f32.xlu0 %v1169
      %v1171 = vpop.xlane.xlu0 %1170
      %v1172 = vsel %vm445, %v1168, 0.0
      %1173 = vadd.xlane.f32.xlu0 %v1172
      %v1174 = vpop.xlane.xlu0 %1173
      %v1175 = vmul.f32 %v1171, %v458
      %v1176 = vmul.f32 %v1174, %v458
      %v1177 = vadd.f32 %v1175, 1e-06
      %v1178 = vadd.f32 %v1176, 1e-06
      %v1179 = vrsqrt.pop %v1177
      %v1180 = vmul.f32 %v1179, %v1177
      %v1181 = vmul.f32 %v1180, %v1179
      %v1182 = vmul.f32 0.5, %v1181
      %v1183 = vsub.f32 1.5, %v1182
      %v1184 = vmul.f32 %v1179, %v1183
      %vm1185 = vweird.f32 %v1177
      %vm1186 = vweird.f32 %v1179
      %vm1187 = vmor %vm1185, %vm1186
      %v1188 = vsel %vm1187, %v1179, %v1184
      %v1189 = vrsqrt.pop %v1178
      %v1190 = vmul.f32 %v1189, %v1178
      %v1191 = vmul.f32 %v1190, %v1189
      %v1192 = vmul.f32 0.5, %v1191
      %v1193 = vsub.f32 1.5, %v1192
      %v1194 = vmul.f32 %v1189, %v1193
      %vm1195 = vweird.f32 %v1178
      %vm1196 = vweird.f32 %v1189
      %vm1197 = vmor %vm1195, %vm1196
      %v1198 = vsel %vm1197, %v1189, %v1194
      %v1199 = vmul.f32 %v1165, %v1188
      %v1200 = vmul.f32 %v1166, %v1198
      %v1202 = vperm.slane %v1155, 0
      %v1204 = vmul.f32 %v1199, %v1202
      %v1205 = vmul.f32 %v1200, %v1202
      %v1207 = vperm.slane %v1156, 0
      %v1209 = vadd.f32 %v1204, %v1207
      %v1210 = vadd.f32 %v1205, %v1207
      %v1211 = vld [vmem:[%s9] sm:$0xff]
      %v1212 = vld [vmem:[%s9 + $0x8] sm:$0xff]
      %v1213 = vld [vmem:[%s9 + $0x10] sm:$0xff]
      %v1214 = vld [vmem:[%s9 + $0x18] sm:$0xff]
      %v1215 = vld [vmem:[%s9 + $0x20] sm:$0xff]
      %v1216 = vld [vmem:[%s9 + $0x28] sm:$0xff]
      %v1217 = vld [vmem:[%s9 + $0x30] sm:$0xff]
      %v1218 = vld [vmem:[%s9 + $0x38] sm:$0xff]
      %v1219 = vld [vmem:[%s9 + $0x40] sm:$0xff]
      %v1220 = vld [vmem:[%s9 + $0x48] sm:$0xff]
      %v1221 = vld [vmem:[%s9 + $0x50] sm:$0xff]
      %v1222 = vld [vmem:[%s9 + $0x58] sm:$0xff]
      %v1223 = vld [vmem:[%s10] sm:$0x3]
      %v1225 = vperm.slane %v1223, 0
      %v1226 = vperm.slane %v1223, 1
      %v1230 = vsel %vm445, %v1209, 0
      %v1233 = vsel %vm445, %v1210, 0
      %1235 = vmatpush.msra.mxu0 0.0
      %1236 = vmatpush.msra.mxu0 0.0
      %1237 = vmatpush.msra.mxu0 0.0
      %1238 = vmatpush.msra.mxu0 0.0
      %1239 = vmatpush.msra.mxu0 0.0
      %1240 = vmatpush.msra.mxu0 0.0
      %1241 = vmatpush.msra.mxu0 0.0
      %1242 = vmatpush.msra.mxu0 0.0
      %1243 = vmatpush.msra.mxu0 0.0
      %1244 = vmatpush.msra.mxu0 0.0
      %1245 = vmatpush.msra.mxu0 %v1221
      %1246 = vmatpush.msra.mxu0 %v1219
      %1247 = vmatpush.msra.mxu0 %v1217
      %1248 = vmatpush.msra.mxu0 %v1215
      %1249 = vmatpush.msra.mxu0 %v1213
      %1250 = vmatpush.msra.mxu0 %v1211
      %1251 = vmatmul.f32.gmra.mxu0 %v1230
      %v1252 = vpop.f32.mrf.mxu0
      %v1253 = vadd.f32 %v1225, %v1252
      %1254 = vmatmul.f32.gmra.mxu0 %v1233
      %v1255 = vpop.f32.mrf.mxu0
      %v1256 = vadd.f32 %v1225, %v1255
      %1257 = vdwg.mxu0
      %1258 = vmatpush.msra.mxu0 0.0
      %1259 = vmatpush.msra.mxu0 0.0
      %1260 = vmatpush.msra.mxu0 0.0
      %1261 = vmatpush.msra.mxu0 0.0
      %1262 = vmatpush.msra.mxu0 0.0
      %1263 = vmatpush.msra.mxu0 0.0
      %1264 = vmatpush.msra.mxu0 0.0
      %1265 = vmatpush.msra.mxu0 0.0
      %1266 = vmatpush.msra.mxu0 0.0
      %1267 = vmatpush.msra.mxu0 0.0
      %1268 = vmatpush.msra.mxu0 %v1222
      %1269 = vmatpush.msra.mxu0 %v1220
      %1270 = vmatpush.msra.mxu0 %v1218
      %1271 = vmatpush.msra.mxu0 %v1216
      %1272 = vmatpush.msra.mxu0 %v1214
      %1273 = vmatpush.msra.mxu0 %v1212
      %1274 = vmatmul.f32.gmra.mxu0 %v1230
      %v1275 = vpop.f32.mrf.mxu0
      %v1276 = vadd.f32 %v1226, %v1275
      %1277 = vmatmul.f32.gmra.mxu0 %v1233
      %v1278 = vpop.f32.mrf.mxu0
      %v1279 = vadd.f32 %v1226, %v1278
      %1280 = vdwg.mxu0
      %v1281 = vmul.f32 %v1253, 0.5
      %v1282 = vmul.f32 %v1276, 0.5
      %v1283 = vmul.f32 %v1256, 0.5
      %v1284 = vmul.f32 %v1279, 0.5
      %v1285 = vmul.f32 %v1253, 0.70710677
      %v1286 = vmul.f32 %v1276, 0.70710677
      %v1287 = vmul.f32 %v1256, 0.70710677
      %v1288 = vmul.f32 %v1279, 0.70710677
      %v1289 = vmul.f32 %v1285, %v1285
      %v1290 = vmin.f32 16.0, %v1289
      %v1291 = vmul.f32 %v1290, 2.1237322e-06
      %v1292 = vadd.f32 %v1291, 0.00028619796
      %v1293 = vmul.f32 %v1290, %v1292
      %v1294 = vadd.f32 %v1293, 0.0036580483
      %v1295 = vmul.f32 %v1290, %v1294
      %v1296 = vadd.f32 %v1295, 0.05243302
      %v1297 = vmul.f32 %v1290, %v1296
      %v1298 = vadd.f32 %v1297, 0.18741608
      %v1299 = vmul.f32 %v1290, %v1298
      %v1300 = vadd.f32 %v1299, 1.1283791
      %v1301 = vmul.f32 %v1285, %v1300
      %v1302 = vmul.f32 %v1290, 3.8918573e-05
      %v1303 = vadd.f32 %v1302, 0.001143296
      %v1304 = vmul.f32 %v1290, %v1303
      %v1305 = vadd.f32 %v1304, 0.014752088
      %v1306 = vmul.f32 %v1290, %v1305
      %v1307 = vadd.f32 %v1306, 0.112945676
      %v1308 = vmul.f32 %v1290, %v1307
      %v1309 = vadd.f32 %v1308, 0.4994258
      %v1310 = vmul.f32 %v1290, %v1309
      %v1311 = vadd.f32 %v1310, 1.0
      %v1312 = vrcp.pop %v1311
      %v1313 = vmul.f32 %v1311, %v1312
      %v1314 = vsub.f32 1.0, %v1313
      %v1315 = vmul.f32 %v1312, %v1314
      %v1316 = vadd.f32 %v1312, %v1315
      %vm1317 = vweird.f32 %v1311
      %vm1318 = vweird.f32 %v1312
      %vm1319 = vmor %vm1317, %vm1318
      %v1320 = vsel %vm1319, %v1312, %v1316
      %v1321 = vand.u32 2147483647, %v1311
      %vm1322 = vcmp.eq.f32.partialorder %v1321, 8.507059e+37
      %v1323 = vand.u32 %v1311, 2147483648
      %v1324 = vor.u32 1.1754944e-38, %v1323
      %v1325 = vsel %vm1322, %v1324, %v1320
      %v1326 = vmul.f32 %v1301, %v1325
      %v1327 = vmin.f32 %v1326, 1.0
      %v1328 = vmax.f32 %v1327, -1.0
      %v1329 = vmul.f32 %v1286, %v1286
      %v1330 = vmin.f32 16.0, %v1329
      %v1331 = vmul.f32 %v1330, 2.1237322e-06
      %v1332 = vadd.f32 %v1331, 0.00028619796
      %v1333 = vmul.f32 %v1330, %v1332
      %v1334 = vadd.f32 %v1333, 0.0036580483
      %v1335 = vmul.f32 %v1330, %v1334
      %v1336 = vadd.f32 %v1335, 0.05243302
      %v1337 = vmul.f32 %v1330, %v1336
      %v1338 = vadd.f32 %v1337, 0.18741608
      %v1339 = vmul.f32 %v1330, %v1338
      %v1340 = vadd.f32 %v1339, 1.1283791
      %v1341 = vmul.f32 %v1286, %v1340
      %v1342 = vmul.f32 %v1330, 3.8918573e-05
      %v1343 = vadd.f32 %v1342, 0.001143296
      %v1344 = vmul.f32 %v1330, %v1343
      %v1345 = vadd.f32 %v1344, 0.014752088
      %v1346 = vmul.f32 %v1330, %v1345
      %v1347 = vadd.f32 %v1346, 0.112945676
      %v1348 = vmul.f32 %v1330, %v1347
      %v1349 = vadd.f32 %v1348, 0.4994258
      %v1350 = vmul.f32 %v1330, %v1349
      %v1351 = vadd.f32 %v1350, 1.0
      %v1352 = vrcp.pop %v1351
      %v1353 = vmul.f32 %v1351, %v1352
      %v1354 = vsub.f32 1.0, %v1353
      %v1355 = vmul.f32 %v1352, %v1354
      %v1356 = vadd.f32 %v1352, %v1355
      %vm1357 = vweird.f32 %v1351
      %vm1358 = vweird.f32 %v1352
      %vm1359 = vmor %vm1357, %vm1358
      %v1360 = vsel %vm1359, %v1352, %v1356
      %v1361 = vand.u32 2147483647, %v1351
      %vm1362 = vcmp.eq.f32.partialorder %v1361, 8.507059e+37
      %v1363 = vand.u32 %v1351, 2147483648
      %v1364 = vor.u32 1.1754944e-38, %v1363
      %v1365 = vsel %vm1362, %v1364, %v1360
      %v1366 = vmul.f32 %v1341, %v1365
      %v1367 = vmin.f32 %v1366, 1.0
      %v1368 = vmax.f32 %v1367, -1.0
      %v1369 = vmul.f32 %v1287, %v1287
      %v1370 = vmin.f32 16.0, %v1369
      %v1371 = vmul.f32 %v1370, 2.1237322e-06
      %v1372 = vadd.f32 %v1371, 0.00028619796
      %v1373 = vmul.f32 %v1370, %v1372
      %v1374 = vadd.f32 %v1373, 0.0036580483
      %v1375 = vmul.f32 %v1370, %v1374
      %v1376 = vadd.f32 %v1375, 0.05243302
      %v1377 = vmul.f32 %v1370, %v1376
      %v1378 = vadd.f32 %v1377, 0.18741608
      %v1379 = vmul.f32 %v1370, %v1378
      %v1380 = vadd.f32 %v1379, 1.1283791
      %v1381 = vmul.f32 %v1287, %v1380
      %v1382 = vmul.f32 %v1370, 3.8918573e-05
      %v1383 = vadd.f32 %v1382, 0.001143296
      %v1384 = vmul.f32 %v1370, %v1383
      %v1385 = vadd.f32 %v1384, 0.014752088
      %v1386 = vmul.f32 %v1370, %v1385
      %v1387 = vadd.f32 %v1386, 0.112945676
      %v1388 = vmul.f32 %v1370, %v1387
      %v1389 = vadd.f32 %v1388, 0.4994258
      %v1390 = vmul.f32 %v1370, %v1389
      %v1391 = vadd.f32 %v1390, 1.0
      %v1392 = vrcp.pop %v1391
      %v1393 = vmul.f32 %v1391, %v1392
      %v1394 = vsub.f32 1.0, %v1393
      %v1395 = vmul.f32 %v1392, %v1394
      %v1396 = vadd.f32 %v1392, %v1395
      %vm1397 = vweird.f32 %v1391
      %vm1398 = vweird.f32 %v1392
      %vm1399 = vmor %vm1397, %vm1398
      %v1400 = vsel %vm1399, %v1392, %v1396
      %v1401 = vand.u32 2147483647, %v1391
      %vm1402 = vcmp.eq.f32.partialorder %v1401, 8.507059e+37
      %v1403 = vand.u32 %v1391, 2147483648
      %v1404 = vor.u32 1.1754944e-38, %v1403
      %v1405 = vsel %vm1402, %v1404, %v1400
      %v1406 = vmul.f32 %v1381, %v1405
      %v1407 = vmin.f32 %v1406, 1.0
      %v1408 = vmax.f32 %v1407, -1.0
      %v1409 = vmul.f32 %v1288, %v1288
      %v1410 = vmin.f32 16.0, %v1409
      %v1411 = vmul.f32 %v1410, 2.1237322e-06
      %v1412 = vadd.f32 %v1411, 0.00028619796
      %v1413 = vmul.f32 %v1410, %v1412
      %v1414 = vadd.f32 %v1413, 0.0036580483
      %v1415 = vmul.f32 %v1410, %v1414
      %v1416 = vadd.f32 %v1415, 0.05243302
      %v1417 = vmul.f32 %v1410, %v1416
      %v1418 = vadd.f32 %v1417, 0.18741608
      %v1419 = vmul.f32 %v1410, %v1418
      %v1420 = vadd.f32 %v1419, 1.1283791
      %v1421 = vmul.f32 %v1288, %v1420
      %v1422 = vmul.f32 %v1410, 3.8918573e-05
      %v1423 = vadd.f32 %v1422, 0.001143296
      %v1424 = vmul.f32 %v1410, %v1423
      %v1425 = vadd.f32 %v1424, 0.014752088
      %v1426 = vmul.f32 %v1410, %v1425
      %v1427 = vadd.f32 %v1426, 0.112945676
      %v1428 = vmul.f32 %v1410, %v1427
      %v1429 = vadd.f32 %v1428, 0.4994258
      %v1430 = vmul.f32 %v1410, %v1429
      %v1431 = vadd.f32 %v1430, 1.0
      %v1432 = vrcp.pop %v1431
      %v1433 = vmul.f32 %v1431, %v1432
      %v1434 = vsub.f32 1.0, %v1433
      %v1435 = vmul.f32 %v1432, %v1434
      %v1436 = vadd.f32 %v1432, %v1435
      %vm1437 = vweird.f32 %v1431
      %vm1438 = vweird.f32 %v1432
      %vm1439 = vmor %vm1437, %vm1438
      %v1440 = vsel %vm1439, %v1432, %v1436
      %v1441 = vand.u32 2147483647, %v1431
      %vm1442 = vcmp.eq.f32.partialorder %v1441, 8.507059e+37
      %v1443 = vand.u32 %v1431, 2147483648
      %v1444 = vor.u32 1.1754944e-38, %v1443
      %v1445 = vsel %vm1442, %v1444, %v1440
      %v1446 = vmul.f32 %v1421, %v1445
      %v1447 = vmin.f32 %v1446, 1.0
      %v1448 = vmax.f32 %v1447, -1.0
      %v1449 = vadd.f32 %v1328, 1.0
      %v1450 = vadd.f32 %v1368, 1.0
      %v1451 = vadd.f32 %v1408, 1.0
      %v1452 = vadd.f32 %v1448, 1.0
      %v1453 = vmul.f32 %v1281, %v1449
      %v1454 = vmul.f32 %v1282, %v1450
      %v1455 = vmul.f32 %v1283, %v1451
      %v1456 = vmul.f32 %v1284, %v1452
      %v1457 = vld [vmem:[%s11] sm:$0xff]
      %v1458 = vld [vmem:[%s11 + $0x8] sm:$0xff]
      %v1459 = vld [vmem:[%s11 + $0x10] sm:$0xff]
      %v1460 = vld [vmem:[%s11 + $0x18] sm:$0xff]
      %v1461 = vld [vmem:[%s11 + $0x20] sm:$0xff]
      %v1462 = vld [vmem:[%s11 + $0x28] sm:$0xff]
      %v1463 = vld [vmem:[%s11 + $0x30] sm:$0xff]
      %v1464 = vld [vmem:[%s11 + $0x38] sm:$0xff]
      %v1465 = vld [vmem:[%s11 + $0x40] sm:$0xff]
      %v1466 = vld [vmem:[%s11 + $0x48] sm:$0xff]
      %v1467 = vld [vmem:[%s11 + $0x50] sm:$0xff]
      %v1468 = vld [vmem:[%s11 + $0x58] sm:$0xff]
      %v1469 = vld [vmem:[%s11 + $0x60] sm:$0xff]
      %v1470 = vld [vmem:[%s11 + $0x68] sm:$0xff]
      %v1471 = vld [vmem:[%s11 + $0x70] sm:$0xff]
      %v1472 = vld [vmem:[%s11 + $0x78] sm:$0xff]
      %v1473 = vld [vmem:[%s11 + $0x80] sm:$0xff]
      %v1474 = vld [vmem:[%s11 + $0x88] sm:$0xff]
      %v1475 = vld [vmem:[%s11 + $0x90] sm:$0xff]
      %v1476 = vld [vmem:[%s11 + $0x98] sm:$0xff]
      %v1477 = vld [vmem:[%s11 + $0xa0] sm:$0xff]
      %v1478 = vld [vmem:[%s11 + $0xa8] sm:$0xff]
      %v1479 = vld [vmem:[%s11 + $0xb0] sm:$0xff]
      %v1480 = vld [vmem:[%s11 + $0xb8] sm:$0xff]
      %v1481 = vld [vmem:[%s12] sm:$0x1]
      %v1483 = vperm.slane %v1481, 0
      %vm1485 = vcmask 523264
      %v1487 = vsel %vm1485, %v1454, 0
      %v1490 = vsel %vm1485, %v1456, 0
      %1492 = vmatpush.msra.mxu0 %v1472
      %1493 = vmatpush.msra.mxu0 %v1471
      %1494 = vmatpush.msra.mxu0 %v1470
      %1495 = vmatpush.msra.mxu0 %v1469
      %1496 = vmatpush.msra.mxu0 %v1468
      %1497 = vmatpush.msra.mxu0 %v1467
      %1498 = vmatpush.msra.mxu0 %v1466
      %1499 = vmatpush.msra.mxu0 %v1465
      %1500 = vmatpush.msra.mxu0 %v1464
      %1501 = vmatpush.msra.mxu0 %v1463
      %1502 = vmatpush.msra.mxu0 %v1462
      %1503 = vmatpush.msra.mxu0 %v1461
      %1504 = vmatpush.msra.mxu0 %v1460
      %1505 = vmatpush.msra.mxu0 %v1459
      %1506 = vmatpush.msra.mxu0 %v1458
      %1507 = vmatpush.msra.mxu0 %v1457
      %1508 = vmatmul.f32.gmra.mxu0 %v1453
      %v1509 = vpop.f32.mrf.mxu0
      %v1510 = vadd.f32 %v1483, %v1509
      %1511 = vmatmul.f32.gmra.mxu0 %v1455
      %v1512 = vpop.f32.mrf.mxu0
      %v1513 = vadd.f32 %v1483, %v1512
      %1514 = vdwg.mxu0
      %1515 = vmatpush.msra.mxu0 0.0
      %1516 = vmatpush.msra.mxu0 0.0
      %1517 = vmatpush.msra.mxu0 0.0
      %1518 = vmatpush.msra.mxu0 0.0
      %1519 = vmatpush.msra.mxu0 0.0
      %1520 = vmatpush.msra.mxu0 0.0
      %1521 = vmatpush.msra.mxu0 0.0
      %1522 = vmatpush.msra.mxu0 0.0
      %1523 = vmatpush.msra.mxu0 %v1480
      %1524 = vmatpush.msra.mxu0 %v1479
      %1525 = vmatpush.msra.mxu0 %v1478
      %1526 = vmatpush.msra.mxu0 %v1477
      %1527 = vmatpush.msra.mxu0 %v1476
      %1528 = vmatpush.msra.mxu0 %v1475
      %1529 = vmatpush.msra.mxu0 %v1474
      %1530 = vmatpush.msra.mxu0 %v1473
      %1531 = vmatmul.f32.gmra.mxu0 %v1487
      %v1532 = vpop.f32.mrf.mxu0
      %v1533 = vadd.f32 %v1510, %v1532
      %1534 = vmatmul.f32.gmra.mxu0 %v1490
      %v1535 = vpop.f32.mrf.mxu0
      %v1536 = vadd.f32 %v1513, %v1535
      %1537 = vdwg.mxu0
      %v1538 = vadd.f32 %v1533, %v1153
      %v1539 = vadd.f32 %v1536, %v1154
      %1540 = vst.msk [vmem:[%s440] sm:$0xff] %vm445, %v1538
      %1541 = vst.msk [vmem:[%s440 + $0x8] sm:$0xff] %vm445, %v1539
      %p1542 = scmp.lt.s32.totalorder %s24, 1
      %s1543 = scalar_select %p1542, %s24, 1
      %s1544 = smul.addr %s1543, 2
      %s1545 = smul.addr %s1544, 8
      %s1546 = scalar_lea.vmem %s13, %s1545
      // Predicated region
      $region73: #{stprivacy_forward.10} parent=71 // pred_check
        %p1547 = pneg %p320
      $region74: #{stprivacy_forward.10} parent=71 // pred_check_branch
        %1549 = sbr.rel (%p1547) target = $region76
      $region75: #{stprivacy_forward.10} parent=71 // pred_region
        _
      $region76: #{stprivacy_forward.10} parent=71 // pred_fallthru
        _
    $region72: #{stprivacy_forward.10} parent=5 // pred_fallthru
      _
    %p1550 = scmp.le.s32.totalorder 2, %s19
    // Predicated region
    $region77: #{stprivacy_forward.10} parent=5 // pred_check
      %p1551 = pneg %p1550
    $region78: #{stprivacy_forward.10} parent=5 // pred_check_branch
      %1553 = sbr.rel (%p1551) target = $region80
    $region79: #{stprivacy_forward.10} parent=5 // pred_region
      %s1554 = ssub.s32 %s19, 2
      // Predicated region
      $region81: #{stprivacy_forward.10} parent=79 // pred_check
        %p1555 = pneg %p326
      $region82: #{stprivacy_forward.10} parent=79 // pred_check_branch
        %1557 = sbr.rel (%p1555) target = $region84
      $region83: #{stprivacy_forward.10} parent=79 // pred_region
        %p1558 = scmp.lt.s32.totalorder %s25, 1
        %s1559 = scalar_select %p1558, %s25, 1
        %s1560 = smul.addr %s1559, 2
        %s1561 = smul.addr %s1560, 8
        %s1562 = scalar_lea.vmem %s13, %s1561
      $region84: #{stprivacy_forward.10} parent=79 // pred_fallthru
        _
    $region80: #{stprivacy_forward.10} parent=5 // pred_fallthru
      _
  $region6: #{stprivacy_forward.10} parent=0 // loop_footer
    %s23 = sadd.s32 1, %s19
  $region7: #{stprivacy_forward.10} parent=0 // loop_footer_branch
    %18 = sbr.rel target = $region3
  $region8: #{stprivacy_forward.10} parent=0 // loop_exit
    _

</llo_original>
